<compile_context>
chip_gen: v5e
topology: v5e:2x2
jax: 0.10.0
libtpu: 0.0.40
codegen_flags: <defaults>
</compile_context>

<pallas_src>
import functools

import numpy as np
import jax
import jax.numpy as jnp
from jax import lax
from jax.experimental import pallas as pl
from jax.experimental.pallas import tpu as pltpu


# ----------------------------------------------------------------------------
# Static geometry (implied by fc in_features = 576 = 64*3*3  =>  52x52 input).
# ----------------------------------------------------------------------------
_C_IN, _H, _W = 3, 52, 52
_OH1 = (_H - 8) // 4 + 1        # 12 (conv1 output spatial)
_OH2 = (_OH1 - 4) // 2 + 1      # 5  (conv2 output spatial)
_OH3 = _OH2 - 3 + 1             # 3  (conv3 output spatial)
_K1 = _C_IN * 8 * 8             # 192 (conv1 im2col feature size)
_P1 = _OH1 * _OH1               # 144 unique conv1 positions per element


# ----------------------------------------------------------------------------
# Fused kernel: BB batch elements per grid step, everything stays in VMEM.
# ----------------------------------------------------------------------------
def _encoder_kernel(p_ref, w1_ref, b1_ref, w2_ref, b2_ref, w3_ref, b3_ref,
                    wf_ref, bf_ref, o_ref, *, bb):
    f32, bf16 = jnp.float32, jnp.bfloat16

    # ---- conv1: one matmul over all (position, batch) rows of the block ----
    y1 = jnp.dot(p_ref[...], w1_ref[...], preferred_element_type=f32)  # (144*bb, 32)
    y1 = jnp.maximum(y1 + b1_ref[...], 0.0).astype(bf16)               # cast once

    # y1 row layout: row = p*bb + b, with p = 12*oh1 + 6*(ow1 % 2) + ow1 // 2
    # (width-parity reorder done host-side), so each conv2 tap below reads a
    # single contiguous, bb-aligned range of 5*bb rows.

    # ---- conv2 (4x4, stride 2): 16 taps x 5 output rows, contiguous slices -
    acc2 = [None] * _OH2
    for kh in range(4):
        for kw in range(4):
            w_tap = w2_ref[4 * kh + kw]                    # (32, 64) bf16
            base = 6 * (kw % 2) + kw // 2
            for oh2 in range(_OH2):
                ps = _OH1 * (2 * oh2 + kh) + base
                lhs = y1[ps * bb:(ps + _OH2) * bb, :]      # (5*bb, 32)
                d = jnp.dot(lhs, w_tap, preferred_element_type=f32)
                acc2[oh2] = d if acc2[oh2] is None else acc2[oh2] + d
    # h2[oh2]: (5*bb, 64) bf16, row = ow2*bb + b
    h2 = [jnp.maximum(a + b2_ref[...], 0.0).astype(bf16) for a in acc2]

    # ---- conv3 (3x3, stride 1): 9 taps x 3 output rows, contiguous slices --
    acc3 = [None] * _OH3
    for kh in range(3):
        for kw in range(3):
            w_tap = w3_ref[3 * kh + kw]                    # (64, 64) bf16
            for oh3 in range(_OH3):
                lhs = h2[oh3 + kh][kw * bb:(kw + _OH3) * bb, :]   # (3*bb, 64)
                d = jnp.dot(lhs, w_tap, preferred_element_type=f32)
                acc3[oh3] = d if acc3[oh3] is None else acc3[oh3] + d
    # h3[oh3]: (3*bb, 64) bf16, row = ow3*bb + b
    h3 = [jnp.maximum(a + b3_ref[...], 0.0).astype(bf16) for a in acc3]

    # ---- fc: 9 per-position (bb, 64) @ (64, n_embed) matmuls, accumulated --
    accf = None
    for oh3 in range(_OH3):
        for ow3 in range(_OH3):
            lhs = h3[oh3][ow3 * bb:(ow3 + 1) * bb, :]      # (bb, 64)
            d = jnp.dot(lhs, wf_ref[3 * oh3 + ow3], preferred_element_type=f32)
            accf = d if accf is None else accf + d
    o_ref[...] = jnp.maximum(accf + bf_ref[...], 0.0).astype(o_ref.dtype)


# ----------------------------------------------------------------------------
# Host-side weight repacking (done once) and input im2col (no duplication).
# ----------------------------------------------------------------------------
def pack_params(params):
    """Reorder PyTorch-layout weights once; matmul operands in bf16, bias f32."""
    bf16, f32 = jnp.bfloat16, jnp.float32
    n_embed = params["fc_b"].shape[0]
    # conv1 (32,3,8,8) -> (192,32); K ordered (dh, dw, hi, wi, cin) with
    # kh = 4*dh + hi, kw = 4*dw + wi (matches _build_patches).
    w1 = params["conv1_w"].reshape(32, 3, 2, 4, 2, 4)
    w1 = w1.transpose(2, 4, 3, 5, 1, 0).reshape(_K1, 32).astype(bf16)
    # conv2 (64,32,4,4) -> (16,32,64), tap-major (t = 4*kh + kw).
    w2 = params["conv2_w"].transpose(2, 3, 1, 0).reshape(16, 32, 64).astype(bf16)
    # conv3 (64,64,3,3) -> (9,64,64), tap-major (t = 3*kh + kw).
    w3 = params["conv3_w"].transpose(2, 3, 1, 0).reshape(9, 64, 64).astype(bf16)
    # fc (576,n_embed), PyTorch flatten order (c, h, w) -> (9, 64, n_embed)
    # indexed by (r = 3*h + w, c) to match channels-last h3 in the kernel.
    wf = params["fc_w"].reshape(64, 3, 3, n_embed)
    wf = wf.transpose(1, 2, 0, 3).reshape(9, 64, n_embed).astype(bf16)
    return {
        "w1": w1, "b1": params["conv1_b"].reshape(1, 32).astype(f32),
        "w2": w2, "b2": params["conv2_b"].reshape(1, 64).astype(f32),
        "w3": w3, "b3": params["conv3_b"].reshape(1, 64).astype(f32),
        "wf": wf, "bf": params["fc_b"].reshape(1, n_embed).astype(f32),
    }


def _build_patches(x, bb):
    """x: (B, 3, 52, 52) NCHW f32 -> (nb*144*bb, 192) bf16 conv1 patches.

    Inside each batch block the row index is p*bb + b_local, with
    p = 12*oh1 + 6*(ow1 % 2) + ow1 // 2 (width-parity reorder).  Features are
    ordered (dh, dw, hi, wi, cin).  144 unique rows per element: no row
    duplication and no gather — only slices / transposes / reshapes in XLA.
    """
    B = x.shape[0]
    nb = -(-B // bb)
    bp = nb * bb
    if bp != B:
        x = jnp.concatenate(
            [x, jnp.zeros((bp - B,) + x.shape[1:], x.dtype)], axis=0)
    xb = x.reshape(bp, _C_IN, 13, 4, 13, 4)                # (bp, C, hb, hi, wb, wi)
    pieces = []
    for dh in (0, 1):
        for dw in (0, 1):
            v = xb[:, :, dh:dh + _OH1, :, dw:dw + _OH1, :]  # (bp, C, 12, 4, 12, 4)
            v = v.transpose(0, 2, 4, 3, 5, 1)               # (bp, 12, 12, 4, 4, C)
            pieces.append(v.reshape(bp, _P1, 16 * _C_IN))
    p = jnp.concatenate(pieces, axis=-1)                    # (bp, 144, 192)
    # width-parity reorder: new p = 12*oh1 + 6*(ow1 % 2) + ow1 // 2
    p = p.reshape(bp, _OH1, 6, 2, _K1).transpose(0, 1, 3, 2, 4)
    p = p.reshape(bp, _P1, _K1)
    # position-major / batch-minor interleave inside each batch block.
    p = p.reshape(nb, bb, _P1, _K1).transpose(0, 2, 1, 3)
    return p.reshape(nb * _P1 * bb, _K1).astype(jnp.bfloat16), nb, bp


def pick_bb(batch):
    """Batch-block size: multiple of 16 (bf16 sublane packing), capped at 64
    so the per-step working set stays well inside default scoped VMEM on
    v5e (16 MiB) / v6e (32 MiB) / v7x (32 MiB)."""
    return int(min(64, 16 * ((batch + 15) // 16)))


@functools.partial(jax.jit, static_argnames=("bb",))
def state_encoder_forward(packed, x, *, bb):
    # x: (B, 3, 52, 52) NCHW f32  ->  (B, n_embed) f32
    assert x.shape[1:] == (_C_IN, _H, _W), x.shape
    B = x.shape[0]
    n_embed = packed["bf"].shape[-1]
    p, nb, bp = _build_patches(x.astype(jnp.float32), bb)

    kernel = functools.partial(_encoder_kernel, bb=bb)
    out = pl.pallas_call(
        kernel,
        out_shape=jax.ShapeDtypeStruct((bp, n_embed), jnp.float32),
        grid=(nb,),
        in_specs=[
            pl.BlockSpec((_P1 * bb, _K1), lambda i: (i, 0)),      # conv1 patches
            pl.BlockSpec((_K1, 32), lambda i: (0, 0)),            # w1
            pl.BlockSpec((1, 32), lambda i: (0, 0)),              # b1
            pl.BlockSpec((16, 32, 64), lambda i: (0, 0, 0)),      # w2 (per-tap)
            pl.BlockSpec((1, 64), lambda i: (0, 0)),              # b2
            pl.BlockSpec((9, 64, 64), lambda i: (0, 0, 0)),       # w3 (per-tap)
            pl.BlockSpec((1, 64), lambda i: (0, 0)),              # b3
            pl.BlockSpec((9, 64, n_embed), lambda i: (0, 0, 0)),  # fc (per pos)
            pl.BlockSpec((1, n_embed), lambda i: (0, 0)),         # fc bias
        ],
        out_specs=pl.BlockSpec((bb, n_embed), lambda i: (i, 0)),  # fat slab/step
        compiler_params=pltpu.CompilerParams(
            dimension_semantics=("parallel",)),                   # batch blocks
    )(p, packed["w1"], packed["b1"], packed["w2"], packed["b2"],
      packed["w3"], packed["b3"], packed["wf"], packed["bf"])
    return out[:B]


# ----------------------------------------------------------------------------
# Parameter init (PyTorch layouts) and pure-JAX references.
# ----------------------------------------------------------------------------
def init_params(n_embed, key):
    ks = jax.random.split(key, 8)

    def w(k, shape, fan_in):
        return jax.random.normal(k, shape, jnp.float32) / np.sqrt(fan_in)

    return {
        "conv1_w": w(ks[0], (32, 3, 8, 8), 3 * 8 * 8),
        "conv1_b": w(ks[1], (32,), 3 * 8 * 8),
        "conv2_w": w(ks[2], (64, 32, 4, 4), 32 * 4 * 4),
        "conv2_b": w(ks[3], (64,), 32 * 4 * 4),
        "conv3_w": w(ks[4], (64, 64, 3, 3), 64 * 3 * 3),
        "conv3_b": w(ks[5], (64,), 64 * 3 * 3),
        "fc_w": w(ks[6], (576, n_embed), 576),   # (in, out); in-order = NCHW flatten
        "fc_b": w(ks[7], (n_embed,), 576),
    }


def _ref_forward(params, x, *, bf16_operands):
    """Reference forward.  bf16_operands=True rounds matmul operands to bf16
    exactly like the kernel (accumulation stays f32)."""
    if bf16_operands:
        c = lambda a: a.astype(jnp.bfloat16).astype(jnp.float32)
    else:
        c = lambda a: a

    def conv(h, wgt, b, stride):
        y = lax.conv_general_dilated(
            c(h), c(wgt), window_strides=(stride, stride), padding="VALID",
            dimension_numbers=("NCHW", "OIHW", "NCHW"),
            precision=lax.Precision.HIGHEST)
        return jax.nn.relu(y + b[None, :, None, None])

    h = conv(x, params["conv1_w"], params["conv1_b"], 4)
    h = conv(h, params["conv2_w"], params["conv2_b"], 2)
    h = conv(h, params["conv3_w"], params["conv3_b"], 1)
    flat = h.reshape(h.shape[0], -1)
    y = jnp.dot(c(flat), c(params["fc_w"]), precision=lax.Precision.HIGHEST)
    return jax.nn.relu(y + params["fc_b"])


if __name__ == "__main__":
    n_embed = 32
    batch = 2
    key = jax.random.PRNGKey(0)
    pkey, xkey = jax.random.split(key)

    params = init_params(n_embed, pkey)
    # Input spatial size 52 -> 12 -> 5 -> 3, giving 64*3*3 = 576 features for fc.
    x = jax.random.normal(xkey, (batch, _C_IN, _H, _W), jnp.float32)

    packed = pack_params(params)
    bb = pick_bb(batch)
    out = state_encoder_forward(packed, x, bb=bb)
    jax.block_until_ready(out)
    assert out.shape == (batch, n_embed), out.shape

    # Tight check vs a reference with identical bf16 operands (differences =
    # accumulation order only).
    ref_bf16 = _ref_forward(params, x, bf16_operands=True)
    np.testing.assert_allclose(np.asarray(out), np.asarray(ref_bf16),
                               rtol=3e-3, atol=3e-3)
    # Loose check vs the full-f32 PyTorch-equivalent reference (bounds the
    # bf16 mixed-precision error).
    ref_f32 = _ref_forward(params, x, bf16_operands=False)
    np.testing.assert_allclose(np.asarray(out), np.asarray(ref_f32),
                               rtol=1e-1, atol=1e-1)

    print("KERNEL_OK")
</pallas_src>

<mosaic_0001>
module attributes {stable_mosaic.version = 11 : i64} {
  func.func @_encoder_kernel(%arg0: i32, %arg1: memref<2304x192xbf16, #tpu.memory_space<vmem>>, %arg2: memref<192x32xbf16, #tpu.memory_space<vmem>>, %arg3: memref<1x32xf32, #tpu.memory_space<vmem>>, %arg4: memref<16x32x64xbf16, #tpu.memory_space<vmem>>, %arg5: memref<1x64xf32, #tpu.memory_space<vmem>>, %arg6: memref<9x64x64xbf16, #tpu.memory_space<vmem>>, %arg7: memref<1x64xf32, #tpu.memory_space<vmem>>, %arg8: memref<9x64x32xbf16, #tpu.memory_space<vmem>>, %arg9: memref<1x32xf32, #tpu.memory_space<vmem>>, %arg10: memref<16x32xf32, #tpu.memory_space<vmem>>) attributes {dimension_semantics = [#tpu.dimension_semantics<parallel>], iteration_bounds = array<i64: 1>, scalar_prefetch = 0 : i64, scratch_operands = 0 : i64, tpu.core_type = #tpu.core_type<tc>, window_params = [{transform_indices = @transform_0, window_bounds = array<i64: 2304, 192>}, {pipeline_mode = #tpu.pipeline_mode<synchronous>, transform_indices = @transform_1, window_bounds = array<i64: 192, 32>}, {pipeline_mode = #tpu.pipeline_mode<synchronous>, transform_indices = @transform_2, window_bounds = array<i64: 1, 32>}, {pipeline_mode = #tpu.pipeline_mode<synchronous>, transform_indices = @transform_3, window_bounds = array<i64: 16, 32, 64>}, {pipeline_mode = #tpu.pipeline_mode<synchronous>, transform_indices = @transform_4, window_bounds = array<i64: 1, 64>}, {pipeline_mode = #tpu.pipeline_mode<synchronous>, transform_indices = @transform_5, window_bounds = array<i64: 9, 64, 64>}, {pipeline_mode = #tpu.pipeline_mode<synchronous>, transform_indices = @transform_6, window_bounds = array<i64: 1, 64>}, {pipeline_mode = #tpu.pipeline_mode<synchronous>, transform_indices = @transform_7, window_bounds = array<i64: 9, 64, 32>}, {pipeline_mode = #tpu.pipeline_mode<synchronous>, transform_indices = @transform_8, window_bounds = array<i64: 1, 32>}, {transform_indices = @transform_9, window_bounds = array<i64: 16, 32>}]} {
    %c0 = arith.constant 0 : index
    %c0_0 = arith.constant 0 : index
    %0 = vector.load %arg1[%c0, %c0_0] : memref<2304x192xbf16, #tpu.memory_space<vmem>>, vector<2304x192xbf16>
    %c0_1 = arith.constant 0 : index
    %c0_2 = arith.constant 0 : index
    %1 = vector.load %arg2[%c0_1, %c0_2] : memref<192x32xbf16, #tpu.memory_space<vmem>>, vector<192x32xbf16>
    %cst = arith.constant dense<0.000000e+00> : vector<2304x32xf32>
    %2 = tpu.matmul %0, %1, %cst {dimension_numbers = #tpu.dot_dimension_numbers<[1], [0], [0], [1], [0, 0, 1, 1], [], []>} : vector<2304x192xbf16>, vector<192x32xbf16>, vector<2304x32xf32> -> vector<2304x32xf32>
    %c0_3 = arith.constant 0 : index
    %c0_4 = arith.constant 0 : index
    %3 = vector.load %arg3[%c0_3, %c0_4] : memref<1x32xf32, #tpu.memory_space<vmem>>, vector<1x32xf32>
    %4 = vector.broadcast %3 : vector<1x32xf32> to vector<2304x32xf32>
    %5 = arith.addf %2, %4 : vector<2304x32xf32>
    %cst_5 = arith.constant 0.000000e+00 : f32
    %6 = vector.broadcast %cst_5 : f32 to vector<2304x32xf32>
    %7 = arith.maximumf %5, %6 : vector<2304x32xf32>
    %8 = arith.truncf %7 : vector<2304x32xf32> to vector<2304x32xbf16>
    %c0_6 = arith.constant 0 : index
    %c0_7 = arith.constant 0 : index
    %c0_8 = arith.constant 0 : index
    %9 = vector.load %arg4[%c0_6, %c0_7, %c0_8] : memref<16x32x64xbf16, #tpu.memory_space<vmem>>, vector<1x32x64xbf16>
    %10 = vector.shape_cast %9 : vector<1x32x64xbf16> to vector<32x64xbf16>
    %11 = vector.extract_strided_slice %8 {offsets = [0, 0], sizes = [80, 32], strides = [1, 1]} : vector<2304x32xbf16> to vector<80x32xbf16>
    %cst_9 = arith.constant dense<0.000000e+00> : vector<80x64xf32>
    %12 = tpu.matmul %11, %10, %cst_9 {dimension_numbers = #tpu.dot_dimension_numbers<[1], [0], [0], [1], [0, 0, 1, 1], [], []>} : vector<80x32xbf16>, vector<32x64xbf16>, vector<80x64xf32> -> vector<80x64xf32>
    %13 = vector.extract_strided_slice %8 {offsets = [384, 0], sizes = [80, 32], strides = [1, 1]} : vector<2304x32xbf16> to vector<80x32xbf16>
    %cst_10 = arith.constant dense<0.000000e+00> : vector<80x64xf32>
    %14 = tpu.matmul %13, %10, %cst_10 {dimension_numbers = #tpu.dot_dimension_numbers<[1], [0], [0], [1], [0, 0, 1, 1], [], []>} : vector<80x32xbf16>, vector<32x64xbf16>, vector<80x64xf32> -> vector<80x64xf32>
    %15 = vector.extract_strided_slice %8 {offsets = [768, 0], sizes = [80, 32], strides = [1, 1]} : vector<2304x32xbf16> to vector<80x32xbf16>
    %cst_11 = arith.constant dense<0.000000e+00> : vector<80x64xf32>
    %16 = tpu.matmul %15, %10, %cst_11 {dimension_numbers = #tpu.dot_dimension_numbers<[1], [0], [0], [1], [0, 0, 1, 1], [], []>} : vector<80x32xbf16>, vector<32x64xbf16>, vector<80x64xf32> -> vector<80x64xf32>
    %17 = vector.extract_strided_slice %8 {offsets = [1152, 0], sizes = [80, 32], strides = [1, 1]} : vector<2304x32xbf16> to vector<80x32xbf16>
    %cst_12 = arith.constant dense<0.000000e+00> : vector<80x64xf32>
    %18 = tpu.matmul %17, %10, %cst_12 {dimension_numbers = #tpu.dot_dimension_numbers<[1], [0], [0], [1], [0, 0, 1, 1], [], []>} : vector<80x32xbf16>, vector<32x64xbf16>, vector<80x64xf32> -> vector<80x64xf32>
    %19 = vector.extract_strided_slice %8 {offsets = [1536, 0], sizes = [80, 32], strides = [1, 1]} : vector<2304x32xbf16> to vector<80x32xbf16>
    %cst_13 = arith.constant dense<0.000000e+00> : vector<80x64xf32>
    %20 = tpu.matmul %19, %10, %cst_13 {dimension_numbers = #tpu.dot_dimension_numbers<[1], [0], [0], [1], [0, 0, 1, 1], [], []>} : vector<80x32xbf16>, vector<32x64xbf16>, vector<80x64xf32> -> vector<80x64xf32>
    %c1 = arith.constant 1 : index
    %c0_14 = arith.constant 0 : index
    %c0_15 = arith.constant 0 : index
    %21 = vector.load %arg4[%c1, %c0_14, %c0_15] : memref<16x32x64xbf16, #tpu.memory_space<vmem>>, vector<1x32x64xbf16>
    %22 = vector.shape_cast %21 : vector<1x32x64xbf16> to vector<32x64xbf16>
    %23 = vector.extract_strided_slice %8 {offsets = [96, 0], sizes = [80, 32], strides = [1, 1]} : vector<2304x32xbf16> to vector<80x32xbf16>
    %cst_16 = arith.constant dense<0.000000e+00> : vector<80x64xf32>
    %24 = tpu.matmul %23, %22, %cst_16 {dimension_numbers = #tpu.dot_dimension_numbers<[1], [0], [0], [1], [0, 0, 1, 1], [], []>} : vector<80x32xbf16>, vector<32x64xbf16>, vector<80x64xf32> -> vector<80x64xf32>
    %25 = arith.addf %12, %24 : vector<80x64xf32>
    %26 = vector.extract_strided_slice %8 {offsets = [480, 0], sizes = [80, 32], strides = [1, 1]} : vector<2304x32xbf16> to vector<80x32xbf16>
    %cst_17 = arith.constant dense<0.000000e+00> : vector<80x64xf32>
    %27 = tpu.matmul %26, %22, %cst_17 {dimension_numbers = #tpu.dot_dimension_numbers<[1], [0], [0], [1], [0, 0, 1, 1], [], []>} : vector<80x32xbf16>, vector<32x64xbf16>, vector<80x64xf32> -> vector<80x64xf32>
    %28 = arith.addf %14, %27 : vector<80x64xf32>
    %29 = vector.extract_strided_slice %8 {offsets = [864, 0], sizes = [80, 32], strides = [1, 1]} : vector<2304x32xbf16> to vector<80x32xbf16>
    %cst_18 = arith.constant dense<0.000000e+00> : vector<80x64xf32>
    %30 = tpu.matmul %29, %22, %cst_18 {dimension_numbers = #tpu.dot_dimension_numbers<[1], [0], [0], [1], [0, 0, 1, 1], [], []>} : vector<80x32xbf16>, vector<32x64xbf16>, vector<80x64xf32> -> vector<80x64xf32>
    %31 = arith.addf %16, %30 : vector<80x64xf32>
    %32 = vector.extract_strided_slice %8 {offsets = [1248, 0], sizes = [80, 32], strides = [1, 1]} : vector<2304x32xbf16> to vector<80x32xbf16>
    %cst_19 = arith.constant dense<0.000000e+00> : vector<80x64xf32>
    %33 = tpu.matmul %32, %22, %cst_19 {dimension_numbers = #tpu.dot_dimension_numbers<[1], [0], [0], [1], [0, 0, 1, 1], [], []>} : vector<80x32xbf16>, vector<32x64xbf16>, vector<80x64xf32> -> vector<80x64xf32>
    %34 = arith.addf %18, %33 : vector<80x64xf32>
    %35 = vector.extract_strided_slice %8 {offsets = [1632, 0], sizes = [80, 32], strides = [1, 1]} : vector<2304x32xbf16> to vector<80x32xbf16>
    %cst_20 = arith.constant dense<0.000000e+00> : vector<80x64xf32>
    %36 = tpu.matmul %35, %22, %cst_20 {dimension_numbers = #tpu.dot_dimension_numbers<[1], [0], [0], [1], [0, 0, 1, 1], [], []>} : vector<80x32xbf16>, vector<32x64xbf16>, vector<80x64xf32> -> vector<80x64xf32>
    %37 = arith.addf %20, %36 : vector<80x64xf32>
    %c2 = arith.constant 2 : index
    %c0_21 = arith.constant 0 : index
    %c0_22 = arith.constant 0 : index
    %38 = vector.load %arg4[%c2, %c0_21, %c0_22] : memref<16x32x64xbf16, #tpu.memory_space<vmem>>, vector<1x32x64xbf16>
    %39 = vector.shape_cast %38 : vector<1x32x64xbf16> to vector<32x64xbf16>
    %40 = vector.extract_strided_slice %8 {offsets = [16, 0], sizes = [80, 32], strides = [1, 1]} : vector<2304x32xbf16> to vector<80x32xbf16>
    %cst_23 = arith.constant dense<0.000000e+00> : vector<80x64xf32>
    %41 = tpu.matmul %40, %39, %cst_23 {dimension_numbers = #tpu.dot_dimension_numbers<[1], [0], [0], [1], [0, 0, 1, 1], [], []>} : vector<80x32xbf16>, vector<32x64xbf16>, vector<80x64xf32> -> vector<80x64xf32>
    %42 = arith.addf %25, %41 : vector<80x64xf32>
    %43 = vector.extract_strided_slice %8 {offsets = [400, 0], sizes = [80, 32], strides = [1, 1]} : vector<2304x32xbf16> to vector<80x32xbf16>
    %cst_24 = arith.constant dense<0.000000e+00> : vector<80x64xf32>
    %44 = tpu.matmul %43, %39, %cst_24 {dimension_numbers = #tpu.dot_dimension_numbers<[1], [0], [0], [1], [0, 0, 1, 1], [], []>} : vector<80x32xbf16>, vector<32x64xbf16>, vector<80x64xf32> -> vector<80x64xf32>
    %45 = arith.addf %28, %44 : vector<80x64xf32>
    %46 = vector.extract_strided_slice %8 {offsets = [784, 0], sizes = [80, 32], strides = [1, 1]} : vector<2304x32xbf16> to vector<80x32xbf16>
    %cst_25 = arith.constant dense<0.000000e+00> : vector<80x64xf32>
    %47 = tpu.matmul %46, %39, %cst_25 {dimension_numbers = #tpu.dot_dimension_numbers<[1], [0], [0], [1], [0, 0, 1, 1], [], []>} : vector<80x32xbf16>, vector<32x64xbf16>, vector<80x64xf32> -> vector<80x64xf32>
    %48 = arith.addf %31, %47 : vector<80x64xf32>
    %49 = vector.extract_strided_slice %8 {offsets = [1168, 0], sizes = [80, 32], strides = [1, 1]} : vector<2304x32xbf16> to vector<80x32xbf16>
    %cst_26 = arith.constant dense<0.000000e+00> : vector<80x64xf32>
    %50 = tpu.matmul %49, %39, %cst_26 {dimension_numbers = #tpu.dot_dimension_numbers<[1], [0], [0], [1], [0, 0, 1, 1], [], []>} : vector<80x32xbf16>, vector<32x64xbf16>, vector<80x64xf32> -> vector<80x64xf32>
    %51 = arith.addf %34, %50 : vector<80x64xf32>
    %52 = vector.extract_strided_slice %8 {offsets = [1552, 0], sizes = [80, 32], strides = [1, 1]} : vector<2304x32xbf16> to vector<80x32xbf16>
    %cst_27 = arith.constant dense<0.000000e+00> : vector<80x64xf32>
    %53 = tpu.matmul %52, %39, %cst_27 {dimension_numbers = #tpu.dot_dimension_numbers<[1], [0], [0], [1], [0, 0, 1, 1], [], []>} : vector<80x32xbf16>, vector<32x64xbf16>, vector<80x64xf32> -> vector<80x64xf32>
    %54 = arith.addf %37, %53 : vector<80x64xf32>
    %c3 = arith.constant 3 : index
    %c0_28 = arith.constant 0 : index
    %c0_29 = arith.constant 0 : index
    %55 = vector.load %arg4[%c3, %c0_28, %c0_29] : memref<16x32x64xbf16, #tpu.memory_space<vmem>>, vector<1x32x64xbf16>
    %56 = vector.shape_cast %55 : vector<1x32x64xbf16> to vector<32x64xbf16>
    %57 = vector.extract_strided_slice %8 {offsets = [112, 0], sizes = [80, 32], strides = [1, 1]} : vector<2304x32xbf16> to vector<80x32xbf16>
    %cst_30 = arith.constant dense<0.000000e+00> : vector<80x64xf32>
    %58 = tpu.matmul %57, %56, %cst_30 {dimension_numbers = #tpu.dot_dimension_numbers<[1], [0], [0], [1], [0, 0, 1, 1], [], []>} : vector<80x32xbf16>, vector<32x64xbf16>, vector<80x64xf32> -> vector<80x64xf32>
    %59 = arith.addf %42, %58 : vector<80x64xf32>
    %60 = vector.extract_strided_slice %8 {offsets = [496, 0], sizes = [80, 32], strides = [1, 1]} : vector<2304x32xbf16> to vector<80x32xbf16>
    %cst_31 = arith.constant dense<0.000000e+00> : vector<80x64xf32>
    %61 = tpu.matmul %60, %56, %cst_31 {dimension_numbers = #tpu.dot_dimension_numbers<[1], [0], [0], [1], [0, 0, 1, 1], [], []>} : vector<80x32xbf16>, vector<32x64xbf16>, vector<80x64xf32> -> vector<80x64xf32>
    %62 = arith.addf %45, %61 : vector<80x64xf32>
    %63 = vector.extract_strided_slice %8 {offsets = [880, 0], sizes = [80, 32], strides = [1, 1]} : vector<2304x32xbf16> to vector<80x32xbf16>
    %cst_32 = arith.constant dense<0.000000e+00> : vector<80x64xf32>
    %64 = tpu.matmul %63, %56, %cst_32 {dimension_numbers = #tpu.dot_dimension_numbers<[1], [0], [0], [1], [0, 0, 1, 1], [], []>} : vector<80x32xbf16>, vector<32x64xbf16>, vector<80x64xf32> -> vector<80x64xf32>
    %65 = arith.addf %48, %64 : vector<80x64xf32>
    %66 = vector.extract_strided_slice %8 {offsets = [1264, 0], sizes = [80, 32], strides = [1, 1]} : vector<2304x32xbf16> to vector<80x32xbf16>
    %cst_33 = arith.constant dense<0.000000e+00> : vector<80x64xf32>
    %67 = tpu.matmul %66, %56, %cst_33 {dimension_numbers = #tpu.dot_dimension_numbers<[1], [0], [0], [1], [0, 0, 1, 1], [], []>} : vector<80x32xbf16>, vector<32x64xbf16>, vector<80x64xf32> -> vector<80x64xf32>
    %68 = arith.addf %51, %67 : vector<80x64xf32>
    %69 = vector.extract_strided_slice %8 {offsets = [1648, 0], sizes = [80, 32], strides = [1, 1]} : vector<2304x32xbf16> to vector<80x32xbf16>
    %cst_34 = arith.constant dense<0.000000e+00> : vector<80x64xf32>
    %70 = tpu.matmul %69, %56, %cst_34 {dimension_numbers = #tpu.dot_dimension_numbers<[1], [0], [0], [1], [0, 0, 1, 1], [], []>} : vector<80x32xbf16>, vector<32x64xbf16>, vector<80x64xf32> -> vector<80x64xf32>
    %71 = arith.addf %54, %70 : vector<80x64xf32>
    %c4 = arith.constant 4 : index
    %c0_35 = arith.constant 0 : index
    %c0_36 = arith.constant 0 : index
    %72 = vector.load %arg4[%c4, %c0_35, %c0_36] : memref<16x32x64xbf16, #tpu.memory_space<vmem>>, vector<1x32x64xbf16>
    %73 = vector.shape_cast %72 : vector<1x32x64xbf16> to vector<32x64xbf16>
    %74 = vector.extract_strided_slice %8 {offsets = [192, 0], sizes = [80, 32], strides = [1, 1]} : vector<2304x32xbf16> to vector<80x32xbf16>
    %cst_37 = arith.constant dense<0.000000e+00> : vector<80x64xf32>
    %75 = tpu.matmul %74, %73, %cst_37 {dimension_numbers = #tpu.dot_dimension_numbers<[1], [0], [0], [1], [0, 0, 1, 1], [], []>} : vector<80x32xbf16>, vector<32x64xbf16>, vector<80x64xf32> -> vector<80x64xf32>
    %76 = arith.addf %59, %75 : vector<80x64xf32>
    %77 = vector.extract_strided_slice %8 {offsets = [576, 0], sizes = [80, 32], strides = [1, 1]} : vector<2304x32xbf16> to vector<80x32xbf16>
    %cst_38 = arith.constant dense<0.000000e+00> : vector<80x64xf32>
    %78 = tpu.matmul %77, %73, %cst_38 {dimension_numbers = #tpu.dot_dimension_numbers<[1], [0], [0], [1], [0, 0, 1, 1], [], []>} : vector<80x32xbf16>, vector<32x64xbf16>, vector<80x64xf32> -> vector<80x64xf32>
    %79 = arith.addf %62, %78 : vector<80x64xf32>
    %80 = vector.extract_strided_slice %8 {offsets = [960, 0], sizes = [80, 32], strides = [1, 1]} : vector<2304x32xbf16> to vector<80x32xbf16>
    %cst_39 = arith.constant dense<0.000000e+00> : vector<80x64xf32>
    %81 = tpu.matmul %80, %73, %cst_39 {dimension_numbers = #tpu.dot_dimension_numbers<[1], [0], [0], [1], [0, 0, 1, 1], [], []>} : vector<80x32xbf16>, vector<32x64xbf16>, vector<80x64xf32> -> vector<80x64xf32>
    %82 = arith.addf %65, %81 : vector<80x64xf32>
    %83 = vector.extract_strided_slice %8 {offsets = [1344, 0], sizes = [80, 32], strides = [1, 1]} : vector<2304x32xbf16> to vector<80x32xbf16>
    %cst_40 = arith.constant dense<0.000000e+00> : vector<80x64xf32>
    %84 = tpu.matmul %83, %73, %cst_40 {dimension_numbers = #tpu.dot_dimension_numbers<[1], [0], [0], [1], [0, 0, 1, 1], [], []>} : vector<80x32xbf16>, vector<32x64xbf16>, vector<80x64xf32> -> vector<80x64xf32>
    %85 = arith.addf %68, %84 : vector<80x64xf32>
    %86 = vector.extract_strided_slice %8 {offsets = [1728, 0], sizes = [80, 32], strides = [1, 1]} : vector<2304x32xbf16> to vector<80x32xbf16>
    %cst_41 = arith.constant dense<0.000000e+00> : vector<80x64xf32>
    %87 = tpu.matmul %86, %73, %cst_41 {dimension_numbers = #tpu.dot_dimension_numbers<[1], [0], [0], [1], [0, 0, 1, 1], [], []>} : vector<80x32xbf16>, vector<32x64xbf16>, vector<80x64xf32> -> vector<80x64xf32>
    %88 = arith.addf %71, %87 : vector<80x64xf32>
    %c5 = arith.constant 5 : index
    %c0_42 = arith.constant 0 : index
    %c0_43 = arith.constant 0 : index
    %89 = vector.load %arg4[%c5, %c0_42, %c0_43] : memref<16x32x64xbf16, #tpu.memory_space<vmem>>, vector<1x32x64xbf16>
    %90 = vector.shape_cast %89 : vector<1x32x64xbf16> to vector<32x64xbf16>
    %91 = vector.extract_strided_slice %8 {offsets = [288, 0], sizes = [80, 32], strides = [1, 1]} : vector<2304x32xbf16> to vector<80x32xbf16>
    %cst_44 = arith.constant dense<0.000000e+00> : vector<80x64xf32>
    %92 = tpu.matmul %91, %90, %cst_44 {dimension_numbers = #tpu.dot_dimension_numbers<[1], [0], [0], [1], [0, 0, 1, 1], [], []>} : vector<80x32xbf16>, vector<32x64xbf16>, vector<80x64xf32> -> vector<80x64xf32>
    %93 = arith.addf %76, %92 : vector<80x64xf32>
    %94 = vector.extract_strided_slice %8 {offsets = [672, 0], sizes = [80, 32], strides = [1, 1]} : vector<2304x32xbf16> to vector<80x32xbf16>
    %cst_45 = arith.constant dense<0.000000e+00> : vector<80x64xf32>
    %95 = tpu.matmul %94, %90, %cst_45 {dimension_numbers = #tpu.dot_dimension_numbers<[1], [0], [0], [1], [0, 0, 1, 1], [], []>} : vector<80x32xbf16>, vector<32x64xbf16>, vector<80x64xf32> -> vector<80x64xf32>
    %96 = arith.addf %79, %95 : vector<80x64xf32>
    %97 = vector.extract_strided_slice %8 {offsets = [1056, 0], sizes = [80, 32], strides = [1, 1]} : vector<2304x32xbf16> to vector<80x32xbf16>
    %cst_46 = arith.constant dense<0.000000e+00> : vector<80x64xf32>
    %98 = tpu.matmul %97, %90, %cst_46 {dimension_numbers = #tpu.dot_dimension_numbers<[1], [0], [0], [1], [0, 0, 1, 1], [], []>} : vector<80x32xbf16>, vector<32x64xbf16>, vector<80x64xf32> -> vector<80x64xf32>
    %99 = arith.addf %82, %98 : vector<80x64xf32>
    %100 = vector.extract_strided_slice %8 {offsets = [1440, 0], sizes = [80, 32], strides = [1, 1]} : vector<2304x32xbf16> to vector<80x32xbf16>
    %cst_47 = arith.constant dense<0.000000e+00> : vector<80x64xf32>
    %101 = tpu.matmul %100, %90, %cst_47 {dimension_numbers = #tpu.dot_dimension_numbers<[1], [0], [0], [1], [0, 0, 1, 1], [], []>} : vector<80x32xbf16>, vector<32x64xbf16>, vector<80x64xf32> -> vector<80x64xf32>
    %102 = arith.addf %85, %101 : vector<80x64xf32>
    %103 = vector.extract_strided_slice %8 {offsets = [1824, 0], sizes = [80, 32], strides = [1, 1]} : vector<2304x32xbf16> to vector<80x32xbf16>
    %cst_48 = arith.constant dense<0.000000e+00> : vector<80x64xf32>
    %104 = tpu.matmul %103, %90, %cst_48 {dimension_numbers = #tpu.dot_dimension_numbers<[1], [0], [0], [1], [0, 0, 1, 1], [], []>} : vector<80x32xbf16>, vector<32x64xbf16>, vector<80x64xf32> -> vector<80x64xf32>
    %105 = arith.addf %88, %104 : vector<80x64xf32>
    %c6 = arith.constant 6 : index
    %c0_49 = arith.constant 0 : index
    %c0_50 = arith.constant 0 : index
    %106 = vector.load %arg4[%c6, %c0_49, %c0_50] : memref<16x32x64xbf16, #tpu.memory_space<vmem>>, vector<1x32x64xbf16>
    %107 = vector.shape_cast %106 : vector<1x32x64xbf16> to vector<32x64xbf16>
    %108 = vector.extract_strided_slice %8 {offsets = [208, 0], sizes = [80, 32], strides = [1, 1]} : vector<2304x32xbf16> to vector<80x32xbf16>
    %cst_51 = arith.constant dense<0.000000e+00> : vector<80x64xf32>
    %109 = tpu.matmul %108, %107, %cst_51 {dimension_numbers = #tpu.dot_dimension_numbers<[1], [0], [0], [1], [0, 0, 1, 1], [], []>} : vector<80x32xbf16>, vector<32x64xbf16>, vector<80x64xf32> -> vector<80x64xf32>
    %110 = arith.addf %93, %109 : vector<80x64xf32>
    %111 = vector.extract_strided_slice %8 {offsets = [592, 0], sizes = [80, 32], strides = [1, 1]} : vector<2304x32xbf16> to vector<80x32xbf16>
    %cst_52 = arith.constant dense<0.000000e+00> : vector<80x64xf32>
    %112 = tpu.matmul %111, %107, %cst_52 {dimension_numbers = #tpu.dot_dimension_numbers<[1], [0], [0], [1], [0, 0, 1, 1], [], []>} : vector<80x32xbf16>, vector<32x64xbf16>, vector<80x64xf32> -> vector<80x64xf32>
    %113 = arith.addf %96, %112 : vector<80x64xf32>
    %114 = vector.extract_strided_slice %8 {offsets = [976, 0], sizes = [80, 32], strides = [1, 1]} : vector<2304x32xbf16> to vector<80x32xbf16>
    %cst_53 = arith.constant dense<0.000000e+00> : vector<80x64xf32>
    %115 = tpu.matmul %114, %107, %cst_53 {dimension_numbers = #tpu.dot_dimension_numbers<[1], [0], [0], [1], [0, 0, 1, 1], [], []>} : vector<80x32xbf16>, vector<32x64xbf16>, vector<80x64xf32> -> vector<80x64xf32>
    %116 = arith.addf %99, %115 : vector<80x64xf32>
    %117 = vector.extract_strided_slice %8 {offsets = [1360, 0], sizes = [80, 32], strides = [1, 1]} : vector<2304x32xbf16> to vector<80x32xbf16>
    %cst_54 = arith.constant dense<0.000000e+00> : vector<80x64xf32>
    %118 = tpu.matmul %117, %107, %cst_54 {dimension_numbers = #tpu.dot_dimension_numbers<[1], [0], [0], [1], [0, 0, 1, 1], [], []>} : vector<80x32xbf16>, vector<32x64xbf16>, vector<80x64xf32> -> vector<80x64xf32>
    %119 = arith.addf %102, %118 : vector<80x64xf32>
    %120 = vector.extract_strided_slice %8 {offsets = [1744, 0], sizes = [80, 32], strides = [1, 1]} : vector<2304x32xbf16> to vector<80x32xbf16>
    %cst_55 = arith.constant dense<0.000000e+00> : vector<80x64xf32>
    %121 = tpu.matmul %120, %107, %cst_55 {dimension_numbers = #tpu.dot_dimension_numbers<[1], [0], [0], [1], [0, 0, 1, 1], [], []>} : vector<80x32xbf16>, vector<32x64xbf16>, vector<80x64xf32> -> vector<80x64xf32>
    %122 = arith.addf %105, %121 : vector<80x64xf32>
    %c7 = arith.constant 7 : index
    %c0_56 = arith.constant 0 : index
    %c0_57 = arith.constant 0 : index
    %123 = vector.load %arg4[%c7, %c0_56, %c0_57] : memref<16x32x64xbf16, #tpu.memory_space<vmem>>, vector<1x32x64xbf16>
    %124 = vector.shape_cast %123 : vector<1x32x64xbf16> to vector<32x64xbf16>
    %125 = vector.extract_strided_slice %8 {offsets = [304, 0], sizes = [80, 32], strides = [1, 1]} : vector<2304x32xbf16> to vector<80x32xbf16>
    %cst_58 = arith.constant dense<0.000000e+00> : vector<80x64xf32>
    %126 = tpu.matmul %125, %124, %cst_58 {dimension_numbers = #tpu.dot_dimension_numbers<[1], [0], [0], [1], [0, 0, 1, 1], [], []>} : vector<80x32xbf16>, vector<32x64xbf16>, vector<80x64xf32> -> vector<80x64xf32>
    %127 = arith.addf %110, %126 : vector<80x64xf32>
    %128 = vector.extract_strided_slice %8 {offsets = [688, 0], sizes = [80, 32], strides = [1, 1]} : vector<2304x32xbf16> to vector<80x32xbf16>
    %cst_59 = arith.constant dense<0.000000e+00> : vector<80x64xf32>
    %129 = tpu.matmul %128, %124, %cst_59 {dimension_numbers = #tpu.dot_dimension_numbers<[1], [0], [0], [1], [0, 0, 1, 1], [], []>} : vector<80x32xbf16>, vector<32x64xbf16>, vector<80x64xf32> -> vector<80x64xf32>
    %130 = arith.addf %113, %129 : vector<80x64xf32>
    %131 = vector.extract_strided_slice %8 {offsets = [1072, 0], sizes = [80, 32], strides = [1, 1]} : vector<2304x32xbf16> to vector<80x32xbf16>
    %cst_60 = arith.constant dense<0.000000e+00> : vector<80x64xf32>
    %132 = tpu.matmul %131, %124, %cst_60 {dimension_numbers = #tpu.dot_dimension_numbers<[1], [0], [0], [1], [0, 0, 1, 1], [], []>} : vector<80x32xbf16>, vector<32x64xbf16>, vector<80x64xf32> -> vector<80x64xf32>
    %133 = arith.addf %116, %132 : vector<80x64xf32>
    %134 = vector.extract_strided_slice %8 {offsets = [1456, 0], sizes = [80, 32], strides = [1, 1]} : vector<2304x32xbf16> to vector<80x32xbf16>
    %cst_61 = arith.constant dense<0.000000e+00> : vector<80x64xf32>
    %135 = tpu.matmul %134, %124, %cst_61 {dimension_numbers = #tpu.dot_dimension_numbers<[1], [0], [0], [1], [0, 0, 1, 1], [], []>} : vector<80x32xbf16>, vector<32x64xbf16>, vector<80x64xf32> -> vector<80x64xf32>
    %136 = arith.addf %119, %135 : vector<80x64xf32>
    %137 = vector.extract_strided_slice %8 {offsets = [1840, 0], sizes = [80, 32], strides = [1, 1]} : vector<2304x32xbf16> to vector<80x32xbf16>
    %cst_62 = arith.constant dense<0.000000e+00> : vector<80x64xf32>
    %138 = tpu.matmul %137, %124, %cst_62 {dimension_numbers = #tpu.dot_dimension_numbers<[1], [0], [0], [1], [0, 0, 1, 1], [], []>} : vector<80x32xbf16>, vector<32x64xbf16>, vector<80x64xf32> -> vector<80x64xf32>
    %139 = arith.addf %122, %138 : vector<80x64xf32>
    %c8 = arith.constant 8 : index
    %c0_63 = arith.constant 0 : index
    %c0_64 = arith.constant 0 : index
    %140 = vector.load %arg4[%c8, %c0_63, %c0_64] : memref<16x32x64xbf16, #tpu.memory_space<vmem>>, vector<1x32x64xbf16>
    %141 = vector.shape_cast %140 : vector<1x32x64xbf16> to vector<32x64xbf16>
    %142 = vector.extract_strided_slice %8 {offsets = [384, 0], sizes = [80, 32], strides = [1, 1]} : vector<2304x32xbf16> to vector<80x32xbf16>
    %cst_65 = arith.constant dense<0.000000e+00> : vector<80x64xf32>
    %143 = tpu.matmul %142, %141, %cst_65 {dimension_numbers = #tpu.dot_dimension_numbers<[1], [0], [0], [1], [0, 0, 1, 1], [], []>} : vector<80x32xbf16>, vector<32x64xbf16>, vector<80x64xf32> -> vector<80x64xf32>
    %144 = arith.addf %127, %143 : vector<80x64xf32>
    %145 = vector.extract_strided_slice %8 {offsets = [768, 0], sizes = [80, 32], strides = [1, 1]} : vector<2304x32xbf16> to vector<80x32xbf16>
    %cst_66 = arith.constant dense<0.000000e+00> : vector<80x64xf32>
    %146 = tpu.matmul %145, %141, %cst_66 {dimension_numbers = #tpu.dot_dimension_numbers<[1], [0], [0], [1], [0, 0, 1, 1], [], []>} : vector<80x32xbf16>, vector<32x64xbf16>, vector<80x64xf32> -> vector<80x64xf32>
    %147 = arith.addf %130, %146 : vector<80x64xf32>
    %148 = vector.extract_strided_slice %8 {offsets = [1152, 0], sizes = [80, 32], strides = [1, 1]} : vector<2304x32xbf16> to vector<80x32xbf16>
    %cst_67 = arith.constant dense<0.000000e+00> : vector<80x64xf32>
    %149 = tpu.matmul %148, %141, %cst_67 {dimension_numbers = #tpu.dot_dimension_numbers<[1], [0], [0], [1], [0, 0, 1, 1], [], []>} : vector<80x32xbf16>, vector<32x64xbf16>, vector<80x64xf32> -> vector<80x64xf32>
    %150 = arith.addf %133, %149 : vector<80x64xf32>
    %151 = vector.extract_strided_slice %8 {offsets = [1536, 0], sizes = [80, 32], strides = [1, 1]} : vector<2304x32xbf16> to vector<80x32xbf16>
    %cst_68 = arith.constant dense<0.000000e+00> : vector<80x64xf32>
    %152 = tpu.matmul %151, %141, %cst_68 {dimension_numbers = #tpu.dot_dimension_numbers<[1], [0], [0], [1], [0, 0, 1, 1], [], []>} : vector<80x32xbf16>, vector<32x64xbf16>, vector<80x64xf32> -> vector<80x64xf32>
    %153 = arith.addf %136, %152 : vector<80x64xf32>
    %154 = vector.extract_strided_slice %8 {offsets = [1920, 0], sizes = [80, 32], strides = [1, 1]} : vector<2304x32xbf16> to vector<80x32xbf16>
    %cst_69 = arith.constant dense<0.000000e+00> : vector<80x64xf32>
    %155 = tpu.matmul %154, %141, %cst_69 {dimension_numbers = #tpu.dot_dimension_numbers<[1], [0], [0], [1], [0, 0, 1, 1], [], []>} : vector<80x32xbf16>, vector<32x64xbf16>, vector<80x64xf32> -> vector<80x64xf32>
    %156 = arith.addf %139, %155 : vector<80x64xf32>
    %c9 = arith.constant 9 : index
    %c0_70 = arith.constant 0 : index
    %c0_71 = arith.constant 0 : index
    %157 = vector.load %arg4[%c9, %c0_70, %c0_71] : memref<16x32x64xbf16, #tpu.memory_space<vmem>>, vector<1x32x64xbf16>
    %158 = vector.shape_cast %157 : vector<1x32x64xbf16> to vector<32x64xbf16>
    %159 = vector.extract_strided_slice %8 {offsets = [480, 0], sizes = [80, 32], strides = [1, 1]} : vector<2304x32xbf16> to vector<80x32xbf16>
    %cst_72 = arith.constant dense<0.000000e+00> : vector<80x64xf32>
    %160 = tpu.matmul %159, %158, %cst_72 {dimension_numbers = #tpu.dot_dimension_numbers<[1], [0], [0], [1], [0, 0, 1, 1], [], []>} : vector<80x32xbf16>, vector<32x64xbf16>, vector<80x64xf32> -> vector<80x64xf32>
    %161 = arith.addf %144, %160 : vector<80x64xf32>
    %162 = vector.extract_strided_slice %8 {offsets = [864, 0], sizes = [80, 32], strides = [1, 1]} : vector<2304x32xbf16> to vector<80x32xbf16>
    %cst_73 = arith.constant dense<0.000000e+00> : vector<80x64xf32>
    %163 = tpu.matmul %162, %158, %cst_73 {dimension_numbers = #tpu.dot_dimension_numbers<[1], [0], [0], [1], [0, 0, 1, 1], [], []>} : vector<80x32xbf16>, vector<32x64xbf16>, vector<80x64xf32> -> vector<80x64xf32>
    %164 = arith.addf %147, %163 : vector<80x64xf32>
    %165 = vector.extract_strided_slice %8 {offsets = [1248, 0], sizes = [80, 32], strides = [1, 1]} : vector<2304x32xbf16> to vector<80x32xbf16>
    %cst_74 = arith.constant dense<0.000000e+00> : vector<80x64xf32>
    %166 = tpu.matmul %165, %158, %cst_74 {dimension_numbers = #tpu.dot_dimension_numbers<[1], [0], [0], [1], [0, 0, 1, 1], [], []>} : vector<80x32xbf16>, vector<32x64xbf16>, vector<80x64xf32> -> vector<80x64xf32>
    %167 = arith.addf %150, %166 : vector<80x64xf32>
    %168 = vector.extract_strided_slice %8 {offsets = [1632, 0], sizes = [80, 32], strides = [1, 1]} : vector<2304x32xbf16> to vector<80x32xbf16>
    %cst_75 = arith.constant dense<0.000000e+00> : vector<80x64xf32>
    %169 = tpu.matmul %168, %158, %cst_75 {dimension_numbers = #tpu.dot_dimension_numbers<[1], [0], [0], [1], [0, 0, 1, 1], [], []>} : vector<80x32xbf16>, vector<32x64xbf16>, vector<80x64xf32> -> vector<80x64xf32>
    %170 = arith.addf %153, %169 : vector<80x64xf32>
    %171 = vector.extract_strided_slice %8 {offsets = [2016, 0], sizes = [80, 32], strides = [1, 1]} : vector<2304x32xbf16> to vector<80x32xbf16>
    %cst_76 = arith.constant dense<0.000000e+00> : vector<80x64xf32>
    %172 = tpu.matmul %171, %158, %cst_76 {dimension_numbers = #tpu.dot_dimension_numbers<[1], [0], [0], [1], [0, 0, 1, 1], [], []>} : vector<80x32xbf16>, vector<32x64xbf16>, vector<80x64xf32> -> vector<80x64xf32>
    %173 = arith.addf %156, %172 : vector<80x64xf32>
    %c10 = arith.constant 10 : index
    %c0_77 = arith.constant 0 : index
    %c0_78 = arith.constant 0 : index
    %174 = vector.load %arg4[%c10, %c0_77, %c0_78] : memref<16x32x64xbf16, #tpu.memory_space<vmem>>, vector<1x32x64xbf16>
    %175 = vector.shape_cast %174 : vector<1x32x64xbf16> to vector<32x64xbf16>
    %176 = vector.extract_strided_slice %8 {offsets = [400, 0], sizes = [80, 32], strides = [1, 1]} : vector<2304x32xbf16> to vector<80x32xbf16>
    %cst_79 = arith.constant dense<0.000000e+00> : vector<80x64xf32>
    %177 = tpu.matmul %176, %175, %cst_79 {dimension_numbers = #tpu.dot_dimension_numbers<[1], [0], [0], [1], [0, 0, 1, 1], [], []>} : vector<80x32xbf16>, vector<32x64xbf16>, vector<80x64xf32> -> vector<80x64xf32>
    %178 = arith.addf %161, %177 : vector<80x64xf32>
    %179 = vector.extract_strided_slice %8 {offsets = [784, 0], sizes = [80, 32], strides = [1, 1]} : vector<2304x32xbf16> to vector<80x32xbf16>
    %cst_80 = arith.constant dense<0.000000e+00> : vector<80x64xf32>
    %180 = tpu.matmul %179, %175, %cst_80 {dimension_numbers = #tpu.dot_dimension_numbers<[1], [0], [0], [1], [0, 0, 1, 1], [], []>} : vector<80x32xbf16>, vector<32x64xbf16>, vector<80x64xf32> -> vector<80x64xf32>
    %181 = arith.addf %164, %180 : vector<80x64xf32>
    %182 = vector.extract_strided_slice %8 {offsets = [1168, 0], sizes = [80, 32], strides = [1, 1]} : vector<2304x32xbf16> to vector<80x32xbf16>
    %cst_81 = arith.constant dense<0.000000e+00> : vector<80x64xf32>
    %183 = tpu.matmul %182, %175, %cst_81 {dimension_numbers = #tpu.dot_dimension_numbers<[1], [0], [0], [1], [0, 0, 1, 1], [], []>} : vector<80x32xbf16>, vector<32x64xbf16>, vector<80x64xf32> -> vector<80x64xf32>
    %184 = arith.addf %167, %183 : vector<80x64xf32>
    %185 = vector.extract_strided_slice %8 {offsets = [1552, 0], sizes = [80, 32], strides = [1, 1]} : vector<2304x32xbf16> to vector<80x32xbf16>
    %cst_82 = arith.constant dense<0.000000e+00> : vector<80x64xf32>
    %186 = tpu.matmul %185, %175, %cst_82 {dimension_numbers = #tpu.dot_dimension_numbers<[1], [0], [0], [1], [0, 0, 1, 1], [], []>} : vector<80x32xbf16>, vector<32x64xbf16>, vector<80x64xf32> -> vector<80x64xf32>
    %187 = arith.addf %170, %186 : vector<80x64xf32>
    %188 = vector.extract_strided_slice %8 {offsets = [1936, 0], sizes = [80, 32], strides = [1, 1]} : vector<2304x32xbf16> to vector<80x32xbf16>
    %cst_83 = arith.constant dense<0.000000e+00> : vector<80x64xf32>
    %189 = tpu.matmul %188, %175, %cst_83 {dimension_numbers = #tpu.dot_dimension_numbers<[1], [0], [0], [1], [0, 0, 1, 1], [], []>} : vector<80x32xbf16>, vector<32x64xbf16>, vector<80x64xf32> -> vector<80x64xf32>
    %190 = arith.addf %173, %189 : vector<80x64xf32>
    %c11 = arith.constant 11 : index
    %c0_84 = arith.constant 0 : index
    %c0_85 = arith.constant 0 : index
    %191 = vector.load %arg4[%c11, %c0_84, %c0_85] : memref<16x32x64xbf16, #tpu.memory_space<vmem>>, vector<1x32x64xbf16>
    %192 = vector.shape_cast %191 : vector<1x32x64xbf16> to vector<32x64xbf16>
    %193 = vector.extract_strided_slice %8 {offsets = [496, 0], sizes = [80, 32], strides = [1, 1]} : vector<2304x32xbf16> to vector<80x32xbf16>
    %cst_86 = arith.constant dense<0.000000e+00> : vector<80x64xf32>
    %194 = tpu.matmul %193, %192, %cst_86 {dimension_numbers = #tpu.dot_dimension_numbers<[1], [0], [0], [1], [0, 0, 1, 1], [], []>} : vector<80x32xbf16>, vector<32x64xbf16>, vector<80x64xf32> -> vector<80x64xf32>
    %195 = arith.addf %178, %194 : vector<80x64xf32>
    %196 = vector.extract_strided_slice %8 {offsets = [880, 0], sizes = [80, 32], strides = [1, 1]} : vector<2304x32xbf16> to vector<80x32xbf16>
    %cst_87 = arith.constant dense<0.000000e+00> : vector<80x64xf32>
    %197 = tpu.matmul %196, %192, %cst_87 {dimension_numbers = #tpu.dot_dimension_numbers<[1], [0], [0], [1], [0, 0, 1, 1], [], []>} : vector<80x32xbf16>, vector<32x64xbf16>, vector<80x64xf32> -> vector<80x64xf32>
    %198 = arith.addf %181, %197 : vector<80x64xf32>
    %199 = vector.extract_strided_slice %8 {offsets = [1264, 0], sizes = [80, 32], strides = [1, 1]} : vector<2304x32xbf16> to vector<80x32xbf16>
    %cst_88 = arith.constant dense<0.000000e+00> : vector<80x64xf32>
    %200 = tpu.matmul %199, %192, %cst_88 {dimension_numbers = #tpu.dot_dimension_numbers<[1], [0], [0], [1], [0, 0, 1, 1], [], []>} : vector<80x32xbf16>, vector<32x64xbf16>, vector<80x64xf32> -> vector<80x64xf32>
    %201 = arith.addf %184, %200 : vector<80x64xf32>
    %202 = vector.extract_strided_slice %8 {offsets = [1648, 0], sizes = [80, 32], strides = [1, 1]} : vector<2304x32xbf16> to vector<80x32xbf16>
    %cst_89 = arith.constant dense<0.000000e+00> : vector<80x64xf32>
    %203 = tpu.matmul %202, %192, %cst_89 {dimension_numbers = #tpu.dot_dimension_numbers<[1], [0], [0], [1], [0, 0, 1, 1], [], []>} : vector<80x32xbf16>, vector<32x64xbf16>, vector<80x64xf32> -> vector<80x64xf32>
    %204 = arith.addf %187, %203 : vector<80x64xf32>
    %205 = vector.extract_strided_slice %8 {offsets = [2032, 0], sizes = [80, 32], strides = [1, 1]} : vector<2304x32xbf16> to vector<80x32xbf16>
    %cst_90 = arith.constant dense<0.000000e+00> : vector<80x64xf32>
    %206 = tpu.matmul %205, %192, %cst_90 {dimension_numbers = #tpu.dot_dimension_numbers<[1], [0], [0], [1], [0, 0, 1, 1], [], []>} : vector<80x32xbf16>, vector<32x64xbf16>, vector<80x64xf32> -> vector<80x64xf32>
    %207 = arith.addf %190, %206 : vector<80x64xf32>
    %c12 = arith.constant 12 : index
    %c0_91 = arith.constant 0 : index
    %c0_92 = arith.constant 0 : index
    %208 = vector.load %arg4[%c12, %c0_91, %c0_92] : memref<16x32x64xbf16, #tpu.memory_space<vmem>>, vector<1x32x64xbf16>
    %209 = vector.shape_cast %208 : vector<1x32x64xbf16> to vector<32x64xbf16>
    %210 = vector.extract_strided_slice %8 {offsets = [576, 0], sizes = [80, 32], strides = [1, 1]} : vector<2304x32xbf16> to vector<80x32xbf16>
    %cst_93 = arith.constant dense<0.000000e+00> : vector<80x64xf32>
    %211 = tpu.matmul %210, %209, %cst_93 {dimension_numbers = #tpu.dot_dimension_numbers<[1], [0], [0], [1], [0, 0, 1, 1], [], []>} : vector<80x32xbf16>, vector<32x64xbf16>, vector<80x64xf32> -> vector<80x64xf32>
    %212 = arith.addf %195, %211 : vector<80x64xf32>
    %213 = vector.extract_strided_slice %8 {offsets = [960, 0], sizes = [80, 32], strides = [1, 1]} : vector<2304x32xbf16> to vector<80x32xbf16>
    %cst_94 = arith.constant dense<0.000000e+00> : vector<80x64xf32>
    %214 = tpu.matmul %213, %209, %cst_94 {dimension_numbers = #tpu.dot_dimension_numbers<[1], [0], [0], [1], [0, 0, 1, 1], [], []>} : vector<80x32xbf16>, vector<32x64xbf16>, vector<80x64xf32> -> vector<80x64xf32>
    %215 = arith.addf %198, %214 : vector<80x64xf32>
    %216 = vector.extract_strided_slice %8 {offsets = [1344, 0], sizes = [80, 32], strides = [1, 1]} : vector<2304x32xbf16> to vector<80x32xbf16>
    %cst_95 = arith.constant dense<0.000000e+00> : vector<80x64xf32>
    %217 = tpu.matmul %216, %209, %cst_95 {dimension_numbers = #tpu.dot_dimension_numbers<[1], [0], [0], [1], [0, 0, 1, 1], [], []>} : vector<80x32xbf16>, vector<32x64xbf16>, vector<80x64xf32> -> vector<80x64xf32>
    %218 = arith.addf %201, %217 : vector<80x64xf32>
    %219 = vector.extract_strided_slice %8 {offsets = [1728, 0], sizes = [80, 32], strides = [1, 1]} : vector<2304x32xbf16> to vector<80x32xbf16>
    %cst_96 = arith.constant dense<0.000000e+00> : vector<80x64xf32>
    %220 = tpu.matmul %219, %209, %cst_96 {dimension_numbers = #tpu.dot_dimension_numbers<[1], [0], [0], [1], [0, 0, 1, 1], [], []>} : vector<80x32xbf16>, vector<32x64xbf16>, vector<80x64xf32> -> vector<80x64xf32>
    %221 = arith.addf %204, %220 : vector<80x64xf32>
    %222 = vector.extract_strided_slice %8 {offsets = [2112, 0], sizes = [80, 32], strides = [1, 1]} : vector<2304x32xbf16> to vector<80x32xbf16>
    %cst_97 = arith.constant dense<0.000000e+00> : vector<80x64xf32>
    %223 = tpu.matmul %222, %209, %cst_97 {dimension_numbers = #tpu.dot_dimension_numbers<[1], [0], [0], [1], [0, 0, 1, 1], [], []>} : vector<80x32xbf16>, vector<32x64xbf16>, vector<80x64xf32> -> vector<80x64xf32>
    %224 = arith.addf %207, %223 : vector<80x64xf32>
    %c13 = arith.constant 13 : index
    %c0_98 = arith.constant 0 : index
    %c0_99 = arith.constant 0 : index
    %225 = vector.load %arg4[%c13, %c0_98, %c0_99] : memref<16x32x64xbf16, #tpu.memory_space<vmem>>, vector<1x32x64xbf16>
    %226 = vector.shape_cast %225 : vector<1x32x64xbf16> to vector<32x64xbf16>
    %227 = vector.extract_strided_slice %8 {offsets = [672, 0], sizes = [80, 32], strides = [1, 1]} : vector<2304x32xbf16> to vector<80x32xbf16>
    %cst_100 = arith.constant dense<0.000000e+00> : vector<80x64xf32>
    %228 = tpu.matmul %227, %226, %cst_100 {dimension_numbers = #tpu.dot_dimension_numbers<[1], [0], [0], [1], [0, 0, 1, 1], [], []>} : vector<80x32xbf16>, vector<32x64xbf16>, vector<80x64xf32> -> vector<80x64xf32>
    %229 = arith.addf %212, %228 : vector<80x64xf32>
    %230 = vector.extract_strided_slice %8 {offsets = [1056, 0], sizes = [80, 32], strides = [1, 1]} : vector<2304x32xbf16> to vector<80x32xbf16>
    %cst_101 = arith.constant dense<0.000000e+00> : vector<80x64xf32>
    %231 = tpu.matmul %230, %226, %cst_101 {dimension_numbers = #tpu.dot_dimension_numbers<[1], [0], [0], [1], [0, 0, 1, 1], [], []>} : vector<80x32xbf16>, vector<32x64xbf16>, vector<80x64xf32> -> vector<80x64xf32>
    %232 = arith.addf %215, %231 : vector<80x64xf32>
    %233 = vector.extract_strided_slice %8 {offsets = [1440, 0], sizes = [80, 32], strides = [1, 1]} : vector<2304x32xbf16> to vector<80x32xbf16>
    %cst_102 = arith.constant dense<0.000000e+00> : vector<80x64xf32>
    %234 = tpu.matmul %233, %226, %cst_102 {dimension_numbers = #tpu.dot_dimension_numbers<[1], [0], [0], [1], [0, 0, 1, 1], [], []>} : vector<80x32xbf16>, vector<32x64xbf16>, vector<80x64xf32> -> vector<80x64xf32>
    %235 = arith.addf %218, %234 : vector<80x64xf32>
    %236 = vector.extract_strided_slice %8 {offsets = [1824, 0], sizes = [80, 32], strides = [1, 1]} : vector<2304x32xbf16> to vector<80x32xbf16>
    %cst_103 = arith.constant dense<0.000000e+00> : vector<80x64xf32>
    %237 = tpu.matmul %236, %226, %cst_103 {dimension_numbers = #tpu.dot_dimension_numbers<[1], [0], [0], [1], [0, 0, 1, 1], [], []>} : vector<80x32xbf16>, vector<32x64xbf16>, vector<80x64xf32> -> vector<80x64xf32>
    %238 = arith.addf %221, %237 : vector<80x64xf32>
    %239 = vector.extract_strided_slice %8 {offsets = [2208, 0], sizes = [80, 32], strides = [1, 1]} : vector<2304x32xbf16> to vector<80x32xbf16>
    %cst_104 = arith.constant dense<0.000000e+00> : vector<80x64xf32>
    %240 = tpu.matmul %239, %226, %cst_104 {dimension_numbers = #tpu.dot_dimension_numbers<[1], [0], [0], [1], [0, 0, 1, 1], [], []>} : vector<80x32xbf16>, vector<32x64xbf16>, vector<80x64xf32> -> vector<80x64xf32>
    %241 = arith.addf %224, %240 : vector<80x64xf32>
    %c14 = arith.constant 14 : index
    %c0_105 = arith.constant 0 : index
    %c0_106 = arith.constant 0 : index
    %242 = vector.load %arg4[%c14, %c0_105, %c0_106] : memref<16x32x64xbf16, #tpu.memory_space<vmem>>, vector<1x32x64xbf16>
    %243 = vector.shape_cast %242 : vector<1x32x64xbf16> to vector<32x64xbf16>
    %244 = vector.extract_strided_slice %8 {offsets = [592, 0], sizes = [80, 32], strides = [1, 1]} : vector<2304x32xbf16> to vector<80x32xbf16>
    %cst_107 = arith.constant dense<0.000000e+00> : vector<80x64xf32>
    %245 = tpu.matmul %244, %243, %cst_107 {dimension_numbers = #tpu.dot_dimension_numbers<[1], [0], [0], [1], [0, 0, 1, 1], [], []>} : vector<80x32xbf16>, vector<32x64xbf16>, vector<80x64xf32> -> vector<80x64xf32>
    %246 = arith.addf %229, %245 : vector<80x64xf32>
    %247 = vector.extract_strided_slice %8 {offsets = [976, 0], sizes = [80, 32], strides = [1, 1]} : vector<2304x32xbf16> to vector<80x32xbf16>
    %cst_108 = arith.constant dense<0.000000e+00> : vector<80x64xf32>
    %248 = tpu.matmul %247, %243, %cst_108 {dimension_numbers = #tpu.dot_dimension_numbers<[1], [0], [0], [1], [0, 0, 1, 1], [], []>} : vector<80x32xbf16>, vector<32x64xbf16>, vector<80x64xf32> -> vector<80x64xf32>
    %249 = arith.addf %232, %248 : vector<80x64xf32>
    %250 = vector.extract_strided_slice %8 {offsets = [1360, 0], sizes = [80, 32], strides = [1, 1]} : vector<2304x32xbf16> to vector<80x32xbf16>
    %cst_109 = arith.constant dense<0.000000e+00> : vector<80x64xf32>
    %251 = tpu.matmul %250, %243, %cst_109 {dimension_numbers = #tpu.dot_dimension_numbers<[1], [0], [0], [1], [0, 0, 1, 1], [], []>} : vector<80x32xbf16>, vector<32x64xbf16>, vector<80x64xf32> -> vector<80x64xf32>
    %252 = arith.addf %235, %251 : vector<80x64xf32>
    %253 = vector.extract_strided_slice %8 {offsets = [1744, 0], sizes = [80, 32], strides = [1, 1]} : vector<2304x32xbf16> to vector<80x32xbf16>
    %cst_110 = arith.constant dense<0.000000e+00> : vector<80x64xf32>
    %254 = tpu.matmul %253, %243, %cst_110 {dimension_numbers = #tpu.dot_dimension_numbers<[1], [0], [0], [1], [0, 0, 1, 1], [], []>} : vector<80x32xbf16>, vector<32x64xbf16>, vector<80x64xf32> -> vector<80x64xf32>
    %255 = arith.addf %238, %254 : vector<80x64xf32>
    %256 = vector.extract_strided_slice %8 {offsets = [2128, 0], sizes = [80, 32], strides = [1, 1]} : vector<2304x32xbf16> to vector<80x32xbf16>
    %cst_111 = arith.constant dense<0.000000e+00> : vector<80x64xf32>
    %257 = tpu.matmul %256, %243, %cst_111 {dimension_numbers = #tpu.dot_dimension_numbers<[1], [0], [0], [1], [0, 0, 1, 1], [], []>} : vector<80x32xbf16>, vector<32x64xbf16>, vector<80x64xf32> -> vector<80x64xf32>
    %258 = arith.addf %241, %257 : vector<80x64xf32>
    %c15 = arith.constant 15 : index
    %c0_112 = arith.constant 0 : index
    %c0_113 = arith.constant 0 : index
    %259 = vector.load %arg4[%c15, %c0_112, %c0_113] : memref<16x32x64xbf16, #tpu.memory_space<vmem>>, vector<1x32x64xbf16>
    %260 = vector.shape_cast %259 : vector<1x32x64xbf16> to vector<32x64xbf16>
    %261 = vector.extract_strided_slice %8 {offsets = [688, 0], sizes = [80, 32], strides = [1, 1]} : vector<2304x32xbf16> to vector<80x32xbf16>
    %cst_114 = arith.constant dense<0.000000e+00> : vector<80x64xf32>
    %262 = tpu.matmul %261, %260, %cst_114 {dimension_numbers = #tpu.dot_dimension_numbers<[1], [0], [0], [1], [0, 0, 1, 1], [], []>} : vector<80x32xbf16>, vector<32x64xbf16>, vector<80x64xf32> -> vector<80x64xf32>
    %263 = arith.addf %246, %262 : vector<80x64xf32>
    %264 = vector.extract_strided_slice %8 {offsets = [1072, 0], sizes = [80, 32], strides = [1, 1]} : vector<2304x32xbf16> to vector<80x32xbf16>
    %cst_115 = arith.constant dense<0.000000e+00> : vector<80x64xf32>
    %265 = tpu.matmul %264, %260, %cst_115 {dimension_numbers = #tpu.dot_dimension_numbers<[1], [0], [0], [1], [0, 0, 1, 1], [], []>} : vector<80x32xbf16>, vector<32x64xbf16>, vector<80x64xf32> -> vector<80x64xf32>
    %266 = arith.addf %249, %265 : vector<80x64xf32>
    %267 = vector.extract_strided_slice %8 {offsets = [1456, 0], sizes = [80, 32], strides = [1, 1]} : vector<2304x32xbf16> to vector<80x32xbf16>
    %cst_116 = arith.constant dense<0.000000e+00> : vector<80x64xf32>
    %268 = tpu.matmul %267, %260, %cst_116 {dimension_numbers = #tpu.dot_dimension_numbers<[1], [0], [0], [1], [0, 0, 1, 1], [], []>} : vector<80x32xbf16>, vector<32x64xbf16>, vector<80x64xf32> -> vector<80x64xf32>
    %269 = arith.addf %252, %268 : vector<80x64xf32>
    %270 = vector.extract_strided_slice %8 {offsets = [1840, 0], sizes = [80, 32], strides = [1, 1]} : vector<2304x32xbf16> to vector<80x32xbf16>
    %cst_117 = arith.constant dense<0.000000e+00> : vector<80x64xf32>
    %271 = tpu.matmul %270, %260, %cst_117 {dimension_numbers = #tpu.dot_dimension_numbers<[1], [0], [0], [1], [0, 0, 1, 1], [], []>} : vector<80x32xbf16>, vector<32x64xbf16>, vector<80x64xf32> -> vector<80x64xf32>
    %272 = arith.addf %255, %271 : vector<80x64xf32>
    %273 = vector.extract_strided_slice %8 {offsets = [2224, 0], sizes = [80, 32], strides = [1, 1]} : vector<2304x32xbf16> to vector<80x32xbf16>
    %cst_118 = arith.constant dense<0.000000e+00> : vector<80x64xf32>
    %274 = tpu.matmul %273, %260, %cst_118 {dimension_numbers = #tpu.dot_dimension_numbers<[1], [0], [0], [1], [0, 0, 1, 1], [], []>} : vector<80x32xbf16>, vector<32x64xbf16>, vector<80x64xf32> -> vector<80x64xf32>
    %275 = arith.addf %258, %274 : vector<80x64xf32>
    %c0_119 = arith.constant 0 : index
    %c0_120 = arith.constant 0 : index
    %276 = vector.load %arg5[%c0_119, %c0_120] : memref<1x64xf32, #tpu.memory_space<vmem>>, vector<1x64xf32>
    %277 = vector.broadcast %276 : vector<1x64xf32> to vector<80x64xf32>
    %278 = arith.addf %263, %277 : vector<80x64xf32>
    %cst_121 = arith.constant 0.000000e+00 : f32
    %279 = vector.broadcast %cst_121 : f32 to vector<80x64xf32>
    %280 = arith.maximumf %278, %279 : vector<80x64xf32>
    %281 = arith.truncf %280 : vector<80x64xf32> to vector<80x64xbf16>
    %c0_122 = arith.constant 0 : index
    %c0_123 = arith.constant 0 : index
    %282 = vector.load %arg5[%c0_122, %c0_123] : memref<1x64xf32, #tpu.memory_space<vmem>>, vector<1x64xf32>
    %283 = vector.broadcast %282 : vector<1x64xf32> to vector<80x64xf32>
    %284 = arith.addf %266, %283 : vector<80x64xf32>
    %cst_124 = arith.constant 0.000000e+00 : f32
    %285 = vector.broadcast %cst_124 : f32 to vector<80x64xf32>
    %286 = arith.maximumf %284, %285 : vector<80x64xf32>
    %287 = arith.truncf %286 : vector<80x64xf32> to vector<80x64xbf16>
    %c0_125 = arith.constant 0 : index
    %c0_126 = arith.constant 0 : index
    %288 = vector.load %arg5[%c0_125, %c0_126] : memref<1x64xf32, #tpu.memory_space<vmem>>, vector<1x64xf32>
    %289 = vector.broadcast %288 : vector<1x64xf32> to vector<80x64xf32>
    %290 = arith.addf %269, %289 : vector<80x64xf32>
    %cst_127 = arith.constant 0.000000e+00 : f32
    %291 = vector.broadcast %cst_127 : f32 to vector<80x64xf32>
    %292 = arith.maximumf %290, %291 : vector<80x64xf32>
    %293 = arith.truncf %292 : vector<80x64xf32> to vector<80x64xbf16>
    %c0_128 = arith.constant 0 : index
    %c0_129 = arith.constant 0 : index
    %294 = vector.load %arg5[%c0_128, %c0_129] : memref<1x64xf32, #tpu.memory_space<vmem>>, vector<1x64xf32>
    %295 = vector.broadcast %294 : vector<1x64xf32> to vector<80x64xf32>
    %296 = arith.addf %272, %295 : vector<80x64xf32>
    %cst_130 = arith.constant 0.000000e+00 : f32
    %297 = vector.broadcast %cst_130 : f32 to vector<80x64xf32>
    %298 = arith.maximumf %296, %297 : vector<80x64xf32>
    %299 = arith.truncf %298 : vector<80x64xf32> to vector<80x64xbf16>
    %c0_131 = arith.constant 0 : index
    %c0_132 = arith.constant 0 : index
    %300 = vector.load %arg5[%c0_131, %c0_132] : memref<1x64xf32, #tpu.memory_space<vmem>>, vector<1x64xf32>
    %301 = vector.broadcast %300 : vector<1x64xf32> to vector<80x64xf32>
    %302 = arith.addf %275, %301 : vector<80x64xf32>
    %cst_133 = arith.constant 0.000000e+00 : f32
    %303 = vector.broadcast %cst_133 : f32 to vector<80x64xf32>
    %304 = arith.maximumf %302, %303 : vector<80x64xf32>
    %305 = arith.truncf %304 : vector<80x64xf32> to vector<80x64xbf16>
    %c0_134 = arith.constant 0 : index
    %c0_135 = arith.constant 0 : index
    %c0_136 = arith.constant 0 : index
    %306 = vector.load %arg6[%c0_134, %c0_135, %c0_136] : memref<9x64x64xbf16, #tpu.memory_space<vmem>>, vector<1x64x64xbf16>
    %307 = vector.shape_cast %306 : vector<1x64x64xbf16> to vector<64x64xbf16>
    %308 = vector.extract_strided_slice %281 {offsets = [0, 0], sizes = [48, 64], strides = [1, 1]} : vector<80x64xbf16> to vector<48x64xbf16>
    %cst_137 = arith.constant dense<0.000000e+00> : vector<48x64xf32>
    %309 = tpu.matmul %308, %307, %cst_137 {dimension_numbers = #tpu.dot_dimension_numbers<[1], [0], [0], [1], [0, 0, 1, 1], [], []>} : vector<48x64xbf16>, vector<64x64xbf16>, vector<48x64xf32> -> vector<48x64xf32>
    %310 = vector.extract_strided_slice %287 {offsets = [0, 0], sizes = [48, 64], strides = [1, 1]} : vector<80x64xbf16> to vector<48x64xbf16>
    %cst_138 = arith.constant dense<0.000000e+00> : vector<48x64xf32>
    %311 = tpu.matmul %310, %307, %cst_138 {dimension_numbers = #tpu.dot_dimension_numbers<[1], [0], [0], [1], [0, 0, 1, 1], [], []>} : vector<48x64xbf16>, vector<64x64xbf16>, vector<48x64xf32> -> vector<48x64xf32>
    %312 = vector.extract_strided_slice %293 {offsets = [0, 0], sizes = [48, 64], strides = [1, 1]} : vector<80x64xbf16> to vector<48x64xbf16>
    %cst_139 = arith.constant dense<0.000000e+00> : vector<48x64xf32>
    %313 = tpu.matmul %312, %307, %cst_139 {dimension_numbers = #tpu.dot_dimension_numbers<[1], [0], [0], [1], [0, 0, 1, 1], [], []>} : vector<48x64xbf16>, vector<64x64xbf16>, vector<48x64xf32> -> vector<48x64xf32>
    %c1_140 = arith.constant 1 : index
    %c0_141 = arith.constant 0 : index
    %c0_142 = arith.constant 0 : index
    %314 = vector.load %arg6[%c1_140, %c0_141, %c0_142] : memref<9x64x64xbf16, #tpu.memory_space<vmem>>, vector<1x64x64xbf16>
    %315 = vector.shape_cast %314 : vector<1x64x64xbf16> to vector<64x64xbf16>
    %316 = vector.extract_strided_slice %281 {offsets = [16, 0], sizes = [48, 64], strides = [1, 1]} : vector<80x64xbf16> to vector<48x64xbf16>
    %cst_143 = arith.constant dense<0.000000e+00> : vector<48x64xf32>
    %317 = tpu.matmul %316, %315, %cst_143 {dimension_numbers = #tpu.dot_dimension_numbers<[1], [0], [0], [1], [0, 0, 1, 1], [], []>} : vector<48x64xbf16>, vector<64x64xbf16>, vector<48x64xf32> -> vector<48x64xf32>
    %318 = arith.addf %309, %317 : vector<48x64xf32>
    %319 = vector.extract_strided_slice %287 {offsets = [16, 0], sizes = [48, 64], strides = [1, 1]} : vector<80x64xbf16> to vector<48x64xbf16>
    %cst_144 = arith.constant dense<0.000000e+00> : vector<48x64xf32>
    %320 = tpu.matmul %319, %315, %cst_144 {dimension_numbers = #tpu.dot_dimension_numbers<[1], [0], [0], [1], [0, 0, 1, 1], [], []>} : vector<48x64xbf16>, vector<64x64xbf16>, vector<48x64xf32> -> vector<48x64xf32>
    %321 = arith.addf %311, %320 : vector<48x64xf32>
    %322 = vector.extract_strided_slice %293 {offsets = [16, 0], sizes = [48, 64], strides = [1, 1]} : vector<80x64xbf16> to vector<48x64xbf16>
    %cst_145 = arith.constant dense<0.000000e+00> : vector<48x64xf32>
    %323 = tpu.matmul %322, %315, %cst_145 {dimension_numbers = #tpu.dot_dimension_numbers<[1], [0], [0], [1], [0, 0, 1, 1], [], []>} : vector<48x64xbf16>, vector<64x64xbf16>, vector<48x64xf32> -> vector<48x64xf32>
    %324 = arith.addf %313, %323 : vector<48x64xf32>
    %c2_146 = arith.constant 2 : index
    %c0_147 = arith.constant 0 : index
    %c0_148 = arith.constant 0 : index
    %325 = vector.load %arg6[%c2_146, %c0_147, %c0_148] : memref<9x64x64xbf16, #tpu.memory_space<vmem>>, vector<1x64x64xbf16>
    %326 = vector.shape_cast %325 : vector<1x64x64xbf16> to vector<64x64xbf16>
    %327 = vector.extract_strided_slice %281 {offsets = [32, 0], sizes = [48, 64], strides = [1, 1]} : vector<80x64xbf16> to vector<48x64xbf16>
    %cst_149 = arith.constant dense<0.000000e+00> : vector<48x64xf32>
    %328 = tpu.matmul %327, %326, %cst_149 {dimension_numbers = #tpu.dot_dimension_numbers<[1], [0], [0], [1], [0, 0, 1, 1], [], []>} : vector<48x64xbf16>, vector<64x64xbf16>, vector<48x64xf32> -> vector<48x64xf32>
    %329 = arith.addf %318, %328 : vector<48x64xf32>
    %330 = vector.extract_strided_slice %287 {offsets = [32, 0], sizes = [48, 64], strides = [1, 1]} : vector<80x64xbf16> to vector<48x64xbf16>
    %cst_150 = arith.constant dense<0.000000e+00> : vector<48x64xf32>
    %331 = tpu.matmul %330, %326, %cst_150 {dimension_numbers = #tpu.dot_dimension_numbers<[1], [0], [0], [1], [0, 0, 1, 1], [], []>} : vector<48x64xbf16>, vector<64x64xbf16>, vector<48x64xf32> -> vector<48x64xf32>
    %332 = arith.addf %321, %331 : vector<48x64xf32>
    %333 = vector.extract_strided_slice %293 {offsets = [32, 0], sizes = [48, 64], strides = [1, 1]} : vector<80x64xbf16> to vector<48x64xbf16>
    %cst_151 = arith.constant dense<0.000000e+00> : vector<48x64xf32>
    %334 = tpu.matmul %333, %326, %cst_151 {dimension_numbers = #tpu.dot_dimension_numbers<[1], [0], [0], [1], [0, 0, 1, 1], [], []>} : vector<48x64xbf16>, vector<64x64xbf16>, vector<48x64xf32> -> vector<48x64xf32>
    %335 = arith.addf %324, %334 : vector<48x64xf32>
    %c3_152 = arith.constant 3 : index
    %c0_153 = arith.constant 0 : index
    %c0_154 = arith.constant 0 : index
    %336 = vector.load %arg6[%c3_152, %c0_153, %c0_154] : memref<9x64x64xbf16, #tpu.memory_space<vmem>>, vector<1x64x64xbf16>
    %337 = vector.shape_cast %336 : vector<1x64x64xbf16> to vector<64x64xbf16>
    %338 = vector.extract_strided_slice %287 {offsets = [0, 0], sizes = [48, 64], strides = [1, 1]} : vector<80x64xbf16> to vector<48x64xbf16>
    %cst_155 = arith.constant dense<0.000000e+00> : vector<48x64xf32>
    %339 = tpu.matmul %338, %337, %cst_155 {dimension_numbers = #tpu.dot_dimension_numbers<[1], [0], [0], [1], [0, 0, 1, 1], [], []>} : vector<48x64xbf16>, vector<64x64xbf16>, vector<48x64xf32> -> vector<48x64xf32>
    %340 = arith.addf %329, %339 : vector<48x64xf32>
    %341 = vector.extract_strided_slice %293 {offsets = [0, 0], sizes = [48, 64], strides = [1, 1]} : vector<80x64xbf16> to vector<48x64xbf16>
    %cst_156 = arith.constant dense<0.000000e+00> : vector<48x64xf32>
    %342 = tpu.matmul %341, %337, %cst_156 {dimension_numbers = #tpu.dot_dimension_numbers<[1], [0], [0], [1], [0, 0, 1, 1], [], []>} : vector<48x64xbf16>, vector<64x64xbf16>, vector<48x64xf32> -> vector<48x64xf32>
    %343 = arith.addf %332, %342 : vector<48x64xf32>
    %344 = vector.extract_strided_slice %299 {offsets = [0, 0], sizes = [48, 64], strides = [1, 1]} : vector<80x64xbf16> to vector<48x64xbf16>
    %cst_157 = arith.constant dense<0.000000e+00> : vector<48x64xf32>
    %345 = tpu.matmul %344, %337, %cst_157 {dimension_numbers = #tpu.dot_dimension_numbers<[1], [0], [0], [1], [0, 0, 1, 1], [], []>} : vector<48x64xbf16>, vector<64x64xbf16>, vector<48x64xf32> -> vector<48x64xf32>
    %346 = arith.addf %335, %345 : vector<48x64xf32>
    %c4_158 = arith.constant 4 : index
    %c0_159 = arith.constant 0 : index
    %c0_160 = arith.constant 0 : index
    %347 = vector.load %arg6[%c4_158, %c0_159, %c0_160] : memref<9x64x64xbf16, #tpu.memory_space<vmem>>, vector<1x64x64xbf16>
    %348 = vector.shape_cast %347 : vector<1x64x64xbf16> to vector<64x64xbf16>
    %349 = vector.extract_strided_slice %287 {offsets = [16, 0], sizes = [48, 64], strides = [1, 1]} : vector<80x64xbf16> to vector<48x64xbf16>
    %cst_161 = arith.constant dense<0.000000e+00> : vector<48x64xf32>
    %350 = tpu.matmul %349, %348, %cst_161 {dimension_numbers = #tpu.dot_dimension_numbers<[1], [0], [0], [1], [0, 0, 1, 1], [], []>} : vector<48x64xbf16>, vector<64x64xbf16>, vector<48x64xf32> -> vector<48x64xf32>
    %351 = arith.addf %340, %350 : vector<48x64xf32>
    %352 = vector.extract_strided_slice %293 {offsets = [16, 0], sizes = [48, 64], strides = [1, 1]} : vector<80x64xbf16> to vector<48x64xbf16>
    %cst_162 = arith.constant dense<0.000000e+00> : vector<48x64xf32>
    %353 = tpu.matmul %352, %348, %cst_162 {dimension_numbers = #tpu.dot_dimension_numbers<[1], [0], [0], [1], [0, 0, 1, 1], [], []>} : vector<48x64xbf16>, vector<64x64xbf16>, vector<48x64xf32> -> vector<48x64xf32>
    %354 = arith.addf %343, %353 : vector<48x64xf32>
    %355 = vector.extract_strided_slice %299 {offsets = [16, 0], sizes = [48, 64], strides = [1, 1]} : vector<80x64xbf16> to vector<48x64xbf16>
    %cst_163 = arith.constant dense<0.000000e+00> : vector<48x64xf32>
    %356 = tpu.matmul %355, %348, %cst_163 {dimension_numbers = #tpu.dot_dimension_numbers<[1], [0], [0], [1], [0, 0, 1, 1], [], []>} : vector<48x64xbf16>, vector<64x64xbf16>, vector<48x64xf32> -> vector<48x64xf32>
    %357 = arith.addf %346, %356 : vector<48x64xf32>
    %c5_164 = arith.constant 5 : index
    %c0_165 = arith.constant 0 : index
    %c0_166 = arith.constant 0 : index
    %358 = vector.load %arg6[%c5_164, %c0_165, %c0_166] : memref<9x64x64xbf16, #tpu.memory_space<vmem>>, vector<1x64x64xbf16>
    %359 = vector.shape_cast %358 : vector<1x64x64xbf16> to vector<64x64xbf16>
    %360 = vector.extract_strided_slice %287 {offsets = [32, 0], sizes = [48, 64], strides = [1, 1]} : vector<80x64xbf16> to vector<48x64xbf16>
    %cst_167 = arith.constant dense<0.000000e+00> : vector<48x64xf32>
    %361 = tpu.matmul %360, %359, %cst_167 {dimension_numbers = #tpu.dot_dimension_numbers<[1], [0], [0], [1], [0, 0, 1, 1], [], []>} : vector<48x64xbf16>, vector<64x64xbf16>, vector<48x64xf32> -> vector<48x64xf32>
    %362 = arith.addf %351, %361 : vector<48x64xf32>
    %363 = vector.extract_strided_slice %293 {offsets = [32, 0], sizes = [48, 64], strides = [1, 1]} : vector<80x64xbf16> to vector<48x64xbf16>
    %cst_168 = arith.constant dense<0.000000e+00> : vector<48x64xf32>
    %364 = tpu.matmul %363, %359, %cst_168 {dimension_numbers = #tpu.dot_dimension_numbers<[1], [0], [0], [1], [0, 0, 1, 1], [], []>} : vector<48x64xbf16>, vector<64x64xbf16>, vector<48x64xf32> -> vector<48x64xf32>
    %365 = arith.addf %354, %364 : vector<48x64xf32>
    %366 = vector.extract_strided_slice %299 {offsets = [32, 0], sizes = [48, 64], strides = [1, 1]} : vector<80x64xbf16> to vector<48x64xbf16>
    %cst_169 = arith.constant dense<0.000000e+00> : vector<48x64xf32>
    %367 = tpu.matmul %366, %359, %cst_169 {dimension_numbers = #tpu.dot_dimension_numbers<[1], [0], [0], [1], [0, 0, 1, 1], [], []>} : vector<48x64xbf16>, vector<64x64xbf16>, vector<48x64xf32> -> vector<48x64xf32>
    %368 = arith.addf %357, %367 : vector<48x64xf32>
    %c6_170 = arith.constant 6 : index
    %c0_171 = arith.constant 0 : index
    %c0_172 = arith.constant 0 : index
    %369 = vector.load %arg6[%c6_170, %c0_171, %c0_172] : memref<9x64x64xbf16, #tpu.memory_space<vmem>>, vector<1x64x64xbf16>
    %370 = vector.shape_cast %369 : vector<1x64x64xbf16> to vector<64x64xbf16>
    %371 = vector.extract_strided_slice %293 {offsets = [0, 0], sizes = [48, 64], strides = [1, 1]} : vector<80x64xbf16> to vector<48x64xbf16>
    %cst_173 = arith.constant dense<0.000000e+00> : vector<48x64xf32>
    %372 = tpu.matmul %371, %370, %cst_173 {dimension_numbers = #tpu.dot_dimension_numbers<[1], [0], [0], [1], [0, 0, 1, 1], [], []>} : vector<48x64xbf16>, vector<64x64xbf16>, vector<48x64xf32> -> vector<48x64xf32>
    %373 = arith.addf %362, %372 : vector<48x64xf32>
    %374 = vector.extract_strided_slice %299 {offsets = [0, 0], sizes = [48, 64], strides = [1, 1]} : vector<80x64xbf16> to vector<48x64xbf16>
    %cst_174 = arith.constant dense<0.000000e+00> : vector<48x64xf32>
    %375 = tpu.matmul %374, %370, %cst_174 {dimension_numbers = #tpu.dot_dimension_numbers<[1], [0], [0], [1], [0, 0, 1, 1], [], []>} : vector<48x64xbf16>, vector<64x64xbf16>, vector<48x64xf32> -> vector<48x64xf32>
    %376 = arith.addf %365, %375 : vector<48x64xf32>
    %377 = vector.extract_strided_slice %305 {offsets = [0, 0], sizes = [48, 64], strides = [1, 1]} : vector<80x64xbf16> to vector<48x64xbf16>
    %cst_175 = arith.constant dense<0.000000e+00> : vector<48x64xf32>
    %378 = tpu.matmul %377, %370, %cst_175 {dimension_numbers = #tpu.dot_dimension_numbers<[1], [0], [0], [1], [0, 0, 1, 1], [], []>} : vector<48x64xbf16>, vector<64x64xbf16>, vector<48x64xf32> -> vector<48x64xf32>
    %379 = arith.addf %368, %378 : vector<48x64xf32>
    %c7_176 = arith.constant 7 : index
    %c0_177 = arith.constant 0 : index
    %c0_178 = arith.constant 0 : index
    %380 = vector.load %arg6[%c7_176, %c0_177, %c0_178] : memref<9x64x64xbf16, #tpu.memory_space<vmem>>, vector<1x64x64xbf16>
    %381 = vector.shape_cast %380 : vector<1x64x64xbf16> to vector<64x64xbf16>
    %382 = vector.extract_strided_slice %293 {offsets = [16, 0], sizes = [48, 64], strides = [1, 1]} : vector<80x64xbf16> to vector<48x64xbf16>
    %cst_179 = arith.constant dense<0.000000e+00> : vector<48x64xf32>
    %383 = tpu.matmul %382, %381, %cst_179 {dimension_numbers = #tpu.dot_dimension_numbers<[1], [0], [0], [1], [0, 0, 1, 1], [], []>} : vector<48x64xbf16>, vector<64x64xbf16>, vector<48x64xf32> -> vector<48x64xf32>
    %384 = arith.addf %373, %383 : vector<48x64xf32>
    %385 = vector.extract_strided_slice %299 {offsets = [16, 0], sizes = [48, 64], strides = [1, 1]} : vector<80x64xbf16> to vector<48x64xbf16>
    %cst_180 = arith.constant dense<0.000000e+00> : vector<48x64xf32>
    %386 = tpu.matmul %385, %381, %cst_180 {dimension_numbers = #tpu.dot_dimension_numbers<[1], [0], [0], [1], [0, 0, 1, 1], [], []>} : vector<48x64xbf16>, vector<64x64xbf16>, vector<48x64xf32> -> vector<48x64xf32>
    %387 = arith.addf %376, %386 : vector<48x64xf32>
    %388 = vector.extract_strided_slice %305 {offsets = [16, 0], sizes = [48, 64], strides = [1, 1]} : vector<80x64xbf16> to vector<48x64xbf16>
    %cst_181 = arith.constant dense<0.000000e+00> : vector<48x64xf32>
    %389 = tpu.matmul %388, %381, %cst_181 {dimension_numbers = #tpu.dot_dimension_numbers<[1], [0], [0], [1], [0, 0, 1, 1], [], []>} : vector<48x64xbf16>, vector<64x64xbf16>, vector<48x64xf32> -> vector<48x64xf32>
    %390 = arith.addf %379, %389 : vector<48x64xf32>
    %c8_182 = arith.constant 8 : index
    %c0_183 = arith.constant 0 : index
    %c0_184 = arith.constant 0 : index
    %391 = vector.load %arg6[%c8_182, %c0_183, %c0_184] : memref<9x64x64xbf16, #tpu.memory_space<vmem>>, vector<1x64x64xbf16>
    %392 = vector.shape_cast %391 : vector<1x64x64xbf16> to vector<64x64xbf16>
    %393 = vector.extract_strided_slice %293 {offsets = [32, 0], sizes = [48, 64], strides = [1, 1]} : vector<80x64xbf16> to vector<48x64xbf16>
    %cst_185 = arith.constant dense<0.000000e+00> : vector<48x64xf32>
    %394 = tpu.matmul %393, %392, %cst_185 {dimension_numbers = #tpu.dot_dimension_numbers<[1], [0], [0], [1], [0, 0, 1, 1], [], []>} : vector<48x64xbf16>, vector<64x64xbf16>, vector<48x64xf32> -> vector<48x64xf32>
    %395 = arith.addf %384, %394 : vector<48x64xf32>
    %396 = vector.extract_strided_slice %299 {offsets = [32, 0], sizes = [48, 64], strides = [1, 1]} : vector<80x64xbf16> to vector<48x64xbf16>
    %cst_186 = arith.constant dense<0.000000e+00> : vector<48x64xf32>
    %397 = tpu.matmul %396, %392, %cst_186 {dimension_numbers = #tpu.dot_dimension_numbers<[1], [0], [0], [1], [0, 0, 1, 1], [], []>} : vector<48x64xbf16>, vector<64x64xbf16>, vector<48x64xf32> -> vector<48x64xf32>
    %398 = arith.addf %387, %397 : vector<48x64xf32>
    %399 = vector.extract_strided_slice %305 {offsets = [32, 0], sizes = [48, 64], strides = [1, 1]} : vector<80x64xbf16> to vector<48x64xbf16>
    %cst_187 = arith.constant dense<0.000000e+00> : vector<48x64xf32>
    %400 = tpu.matmul %399, %392, %cst_187 {dimension_numbers = #tpu.dot_dimension_numbers<[1], [0], [0], [1], [0, 0, 1, 1], [], []>} : vector<48x64xbf16>, vector<64x64xbf16>, vector<48x64xf32> -> vector<48x64xf32>
    %401 = arith.addf %390, %400 : vector<48x64xf32>
    %c0_188 = arith.constant 0 : index
    %c0_189 = arith.constant 0 : index
    %402 = vector.load %arg7[%c0_188, %c0_189] : memref<1x64xf32, #tpu.memory_space<vmem>>, vector<1x64xf32>
    %403 = vector.broadcast %402 : vector<1x64xf32> to vector<48x64xf32>
    %404 = arith.addf %395, %403 : vector<48x64xf32>
    %cst_190 = arith.constant 0.000000e+00 : f32
    %405 = vector.broadcast %cst_190 : f32 to vector<48x64xf32>
    %406 = arith.maximumf %404, %405 : vector<48x64xf32>
    %407 = arith.truncf %406 : vector<48x64xf32> to vector<48x64xbf16>
    %c0_191 = arith.constant 0 : index
    %c0_192 = arith.constant 0 : index
    %408 = vector.load %arg7[%c0_191, %c0_192] : memref<1x64xf32, #tpu.memory_space<vmem>>, vector<1x64xf32>
    %409 = vector.broadcast %408 : vector<1x64xf32> to vector<48x64xf32>
    %410 = arith.addf %398, %409 : vector<48x64xf32>
    %cst_193 = arith.constant 0.000000e+00 : f32
    %411 = vector.broadcast %cst_193 : f32 to vector<48x64xf32>
    %412 = arith.maximumf %410, %411 : vector<48x64xf32>
    %413 = arith.truncf %412 : vector<48x64xf32> to vector<48x64xbf16>
    %c0_194 = arith.constant 0 : index
    %c0_195 = arith.constant 0 : index
    %414 = vector.load %arg7[%c0_194, %c0_195] : memref<1x64xf32, #tpu.memory_space<vmem>>, vector<1x64xf32>
    %415 = vector.broadcast %414 : vector<1x64xf32> to vector<48x64xf32>
    %416 = arith.addf %401, %415 : vector<48x64xf32>
    %cst_196 = arith.constant 0.000000e+00 : f32
    %417 = vector.broadcast %cst_196 : f32 to vector<48x64xf32>
    %418 = arith.maximumf %416, %417 : vector<48x64xf32>
    %419 = arith.truncf %418 : vector<48x64xf32> to vector<48x64xbf16>
    %420 = vector.extract_strided_slice %407 {offsets = [0, 0], sizes = [16, 64], strides = [1, 1]} : vector<48x64xbf16> to vector<16x64xbf16>
    %c0_197 = arith.constant 0 : index
    %c0_198 = arith.constant 0 : index
    %c0_199 = arith.constant 0 : index
    %421 = vector.load %arg8[%c0_197, %c0_198, %c0_199] : memref<9x64x32xbf16, #tpu.memory_space<vmem>>, vector<1x64x32xbf16>
    %422 = vector.shape_cast %421 : vector<1x64x32xbf16> to vector<64x32xbf16>
    %cst_200 = arith.constant dense<0.000000e+00> : vector<16x32xf32>
    %423 = tpu.matmul %420, %422, %cst_200 {dimension_numbers = #tpu.dot_dimension_numbers<[1], [0], [0], [1], [0, 0, 1, 1], [], []>} : vector<16x64xbf16>, vector<64x32xbf16>, vector<16x32xf32> -> vector<16x32xf32>
    %424 = vector.extract_strided_slice %407 {offsets = [16, 0], sizes = [16, 64], strides = [1, 1]} : vector<48x64xbf16> to vector<16x64xbf16>
    %c1_201 = arith.constant 1 : index
    %c0_202 = arith.constant 0 : index
    %c0_203 = arith.constant 0 : index
    %425 = vector.load %arg8[%c1_201, %c0_202, %c0_203] : memref<9x64x32xbf16, #tpu.memory_space<vmem>>, vector<1x64x32xbf16>
    %426 = vector.shape_cast %425 : vector<1x64x32xbf16> to vector<64x32xbf16>
    %cst_204 = arith.constant dense<0.000000e+00> : vector<16x32xf32>
    %427 = tpu.matmul %424, %426, %cst_204 {dimension_numbers = #tpu.dot_dimension_numbers<[1], [0], [0], [1], [0, 0, 1, 1], [], []>} : vector<16x64xbf16>, vector<64x32xbf16>, vector<16x32xf32> -> vector<16x32xf32>
    %428 = arith.addf %423, %427 : vector<16x32xf32>
    %429 = vector.extract_strided_slice %407 {offsets = [32, 0], sizes = [16, 64], strides = [1, 1]} : vector<48x64xbf16> to vector<16x64xbf16>
    %c2_205 = arith.constant 2 : index
    %c0_206 = arith.constant 0 : index
    %c0_207 = arith.constant 0 : index
    %430 = vector.load %arg8[%c2_205, %c0_206, %c0_207] : memref<9x64x32xbf16, #tpu.memory_space<vmem>>, vector<1x64x32xbf16>
    %431 = vector.shape_cast %430 : vector<1x64x32xbf16> to vector<64x32xbf16>
    %cst_208 = arith.constant dense<0.000000e+00> : vector<16x32xf32>
    %432 = tpu.matmul %429, %431, %cst_208 {dimension_numbers = #tpu.dot_dimension_numbers<[1], [0], [0], [1], [0, 0, 1, 1], [], []>} : vector<16x64xbf16>, vector<64x32xbf16>, vector<16x32xf32> -> vector<16x32xf32>
    %433 = arith.addf %428, %432 : vector<16x32xf32>
    %434 = vector.extract_strided_slice %413 {offsets = [0, 0], sizes = [16, 64], strides = [1, 1]} : vector<48x64xbf16> to vector<16x64xbf16>
    %c3_209 = arith.constant 3 : index
    %c0_210 = arith.constant 0 : index
    %c0_211 = arith.constant 0 : index
    %435 = vector.load %arg8[%c3_209, %c0_210, %c0_211] : memref<9x64x32xbf16, #tpu.memory_space<vmem>>, vector<1x64x32xbf16>
    %436 = vector.shape_cast %435 : vector<1x64x32xbf16> to vector<64x32xbf16>
    %cst_212 = arith.constant dense<0.000000e+00> : vector<16x32xf32>
    %437 = tpu.matmul %434, %436, %cst_212 {dimension_numbers = #tpu.dot_dimension_numbers<[1], [0], [0], [1], [0, 0, 1, 1], [], []>} : vector<16x64xbf16>, vector<64x32xbf16>, vector<16x32xf32> -> vector<16x32xf32>
    %438 = arith.addf %433, %437 : vector<16x32xf32>
    %439 = vector.extract_strided_slice %413 {offsets = [16, 0], sizes = [16, 64], strides = [1, 1]} : vector<48x64xbf16> to vector<16x64xbf16>
    %c4_213 = arith.constant 4 : index
    %c0_214 = arith.constant 0 : index
    %c0_215 = arith.constant 0 : index
    %440 = vector.load %arg8[%c4_213, %c0_214, %c0_215] : memref<9x64x32xbf16, #tpu.memory_space<vmem>>, vector<1x64x32xbf16>
    %441 = vector.shape_cast %440 : vector<1x64x32xbf16> to vector<64x32xbf16>
    %cst_216 = arith.constant dense<0.000000e+00> : vector<16x32xf32>
    %442 = tpu.matmul %439, %441, %cst_216 {dimension_numbers = #tpu.dot_dimension_numbers<[1], [0], [0], [1], [0, 0, 1, 1], [], []>} : vector<16x64xbf16>, vector<64x32xbf16>, vector<16x32xf32> -> vector<16x32xf32>
    %443 = arith.addf %438, %442 : vector<16x32xf32>
    %444 = vector.extract_strided_slice %413 {offsets = [32, 0], sizes = [16, 64], strides = [1, 1]} : vector<48x64xbf16> to vector<16x64xbf16>
    %c5_217 = arith.constant 5 : index
    %c0_218 = arith.constant 0 : index
    %c0_219 = arith.constant 0 : index
    %445 = vector.load %arg8[%c5_217, %c0_218, %c0_219] : memref<9x64x32xbf16, #tpu.memory_space<vmem>>, vector<1x64x32xbf16>
    %446 = vector.shape_cast %445 : vector<1x64x32xbf16> to vector<64x32xbf16>
    %cst_220 = arith.constant dense<0.000000e+00> : vector<16x32xf32>
    %447 = tpu.matmul %444, %446, %cst_220 {dimension_numbers = #tpu.dot_dimension_numbers<[1], [0], [0], [1], [0, 0, 1, 1], [], []>} : vector<16x64xbf16>, vector<64x32xbf16>, vector<16x32xf32> -> vector<16x32xf32>
    %448 = arith.addf %443, %447 : vector<16x32xf32>
    %449 = vector.extract_strided_slice %419 {offsets = [0, 0], sizes = [16, 64], strides = [1, 1]} : vector<48x64xbf16> to vector<16x64xbf16>
    %c6_221 = arith.constant 6 : index
    %c0_222 = arith.constant 0 : index
    %c0_223 = arith.constant 0 : index
    %450 = vector.load %arg8[%c6_221, %c0_222, %c0_223] : memref<9x64x32xbf16, #tpu.memory_space<vmem>>, vector<1x64x32xbf16>
    %451 = vector.shape_cast %450 : vector<1x64x32xbf16> to vector<64x32xbf16>
    %cst_224 = arith.constant dense<0.000000e+00> : vector<16x32xf32>
    %452 = tpu.matmul %449, %451, %cst_224 {dimension_numbers = #tpu.dot_dimension_numbers<[1], [0], [0], [1], [0, 0, 1, 1], [], []>} : vector<16x64xbf16>, vector<64x32xbf16>, vector<16x32xf32> -> vector<16x32xf32>
    %453 = arith.addf %448, %452 : vector<16x32xf32>
    %454 = vector.extract_strided_slice %419 {offsets = [16, 0], sizes = [16, 64], strides = [1, 1]} : vector<48x64xbf16> to vector<16x64xbf16>
    %c7_225 = arith.constant 7 : index
    %c0_226 = arith.constant 0 : index
    %c0_227 = arith.constant 0 : index
    %455 = vector.load %arg8[%c7_225, %c0_226, %c0_227] : memref<9x64x32xbf16, #tpu.memory_space<vmem>>, vector<1x64x32xbf16>
    %456 = vector.shape_cast %455 : vector<1x64x32xbf16> to vector<64x32xbf16>
    %cst_228 = arith.constant dense<0.000000e+00> : vector<16x32xf32>
    %457 = tpu.matmul %454, %456, %cst_228 {dimension_numbers = #tpu.dot_dimension_numbers<[1], [0], [0], [1], [0, 0, 1, 1], [], []>} : vector<16x64xbf16>, vector<64x32xbf16>, vector<16x32xf32> -> vector<16x32xf32>
    %458 = arith.addf %453, %457 : vector<16x32xf32>
    %459 = vector.extract_strided_slice %419 {offsets = [32, 0], sizes = [16, 64], strides = [1, 1]} : vector<48x64xbf16> to vector<16x64xbf16>
    %c8_229 = arith.constant 8 : index
    %c0_230 = arith.constant 0 : index
    %c0_231 = arith.constant 0 : index
    %460 = vector.load %arg8[%c8_229, %c0_230, %c0_231] : memref<9x64x32xbf16, #tpu.memory_space<vmem>>, vector<1x64x32xbf16>
    %461 = vector.shape_cast %460 : vector<1x64x32xbf16> to vector<64x32xbf16>
    %cst_232 = arith.constant dense<0.000000e+00> : vector<16x32xf32>
    %462 = tpu.matmul %459, %461, %cst_232 {dimension_numbers = #tpu.dot_dimension_numbers<[1], [0], [0], [1], [0, 0, 1, 1], [], []>} : vector<16x64xbf16>, vector<64x32xbf16>, vector<16x32xf32> -> vector<16x32xf32>
    %463 = arith.addf %458, %462 : vector<16x32xf32>
    %c0_233 = arith.constant 0 : index
    %c0_234 = arith.constant 0 : index
    %464 = vector.load %arg9[%c0_233, %c0_234] : memref<1x32xf32, #tpu.memory_space<vmem>>, vector<1x32xf32>
    %465 = vector.broadcast %464 : vector<1x32xf32> to vector<16x32xf32>
    %466 = arith.addf %463, %465 : vector<16x32xf32>
    %cst_235 = arith.constant 0.000000e+00 : f32
    %467 = vector.broadcast %cst_235 : f32 to vector<16x32xf32>
    %468 = arith.maximumf %466, %467 : vector<16x32xf32>
    %c0_236 = arith.constant 0 : index
    %c0_237 = arith.constant 0 : index
    %469 = vector.load %arg10[%c0_236, %c0_237] : memref<16x32xf32, #tpu.memory_space<vmem>>, vector<16x32xf32>
    tpu.vector_store %arg10[%c0_236, %c0_237], %468 {strides = array<i32>} : memref<16x32xf32, #tpu.memory_space<vmem>>, vector<16x32xf32>,
    return
  }
  func.func @transform_0(%arg0: i32) -> (i32, i32) {
    %c0_i32 = arith.constant 0 : i32
    %c0_i32_0 = arith.constant 0 : i32
    return %arg0, %c0_i32 : i32, i32
  }
  func.func @transform_1(%arg0: i32) -> (i32, i32) {
    %c0_i32 = arith.constant 0 : i32
    %c0_i32_0 = arith.constant 0 : i32
    %c0_i32_1 = arith.constant 0 : i32
    return %c0_i32, %c0_i32_0 : i32, i32
  }
  func.func @transform_2(%arg0: i32) -> (i32, i32) {
    %c0_i32 = arith.constant 0 : i32
    %c0_i32_0 = arith.constant 0 : i32
    %c0_i32_1 = arith.constant 0 : i32
    return %c0_i32, %c0_i32_0 : i32, i32
  }
  func.func @transform_3(%arg0: i32) -> (i32, i32, i32) {
    %c0_i32 = arith.constant 0 : i32
    %c0_i32_0 = arith.constant 0 : i32
    %c0_i32_1 = arith.constant 0 : i32
    %c0_i32_2 = arith.constant 0 : i32
    return %c0_i32, %c0_i32_0, %c0_i32_1 : i32, i32, i32
  }
  func.func @transform_4(%arg0: i32) -> (i32, i32) {
    %c0_i32 = arith.constant 0 : i32
    %c0_i32_0 = arith.constant 0 : i32
    %c0_i32_1 = arith.constant 0 : i32
    return %c0_i32, %c0_i32_0 : i32, i32
  }
  func.func @transform_5(%arg0: i32) -> (i32, i32, i32) {
    %c0_i32 = arith.constant 0 : i32
    %c0_i32_0 = arith.constant 0 : i32
    %c0_i32_1 = arith.constant 0 : i32
    %c0_i32_2 = arith.constant 0 : i32
    return %c0_i32, %c0_i32_0, %c0_i32_1 : i32, i32, i32
  }
  func.func @transform_6(%arg0: i32) -> (i32, i32) {
    %c0_i32 = arith.constant 0 : i32
    %c0_i32_0 = arith.constant 0 : i32
    %c0_i32_1 = arith.constant 0 : i32
    return %c0_i32, %c0_i32_0 : i32, i32
  }
  func.func @transform_7(%arg0: i32) -> (i32, i32, i32) {
    %c0_i32 = arith.constant 0 : i32
    %c0_i32_0 = arith.constant 0 : i32
    %c0_i32_1 = arith.constant 0 : i32
    %c0_i32_2 = arith.constant 0 : i32
    return %c0_i32, %c0_i32_0, %c0_i32_1 : i32, i32, i32
  }
  func.func @transform_8(%arg0: i32) -> (i32, i32) {
    %c0_i32 = arith.constant 0 : i32
    %c0_i32_0 = arith.constant 0 : i32
    %c0_i32_1 = arith.constant 0 : i32
    return %c0_i32, %c0_i32_0 : i32, i32
  }
  func.func @transform_9(%arg0: i32) -> (i32, i32) {
    %c0_i32 = arith.constant 0 : i32
    %c0_i32_0 = arith.constant 0 : i32
    return %arg0, %c0_i32 : i32, i32
  }
}

</mosaic_0001>

<llo_original>
// kernel: state_encoder_forward.1
$region0: #{state_encoder_forward.1}
  #allocation0 [shape = 'u32[]', space=smem, size = 0x4, offset = 0x4, fixed_abs, tag = 'smem constant byte address 0x4 - core index']
  #allocation1 [shape = 'u32[72,128]{1,0:T(1,128)}', space=vmem, size = 0x9000, scoped, tag = 'internal scratch']
  %s0 = inlined_call_operand.vmem [shape: bf16[2304,192], index: 0, kind: input, shape index: {}]
  %s1 = inlined_call_operand.vmem [shape: bf16[192,32], index: 1, kind: input, shape index: {}]
  %s2 = inlined_call_operand.vmem [shape: f32[1,32], index: 2, kind: input, shape index: {}]
  %s3 = inlined_call_operand.vmem [shape: bf16[16,32,64], index: 3, kind: input, shape index: {}]
  %s4 = inlined_call_operand.vmem [shape: f32[1,64], index: 4, kind: input, shape index: {}]
  %s5 = inlined_call_operand.vmem [shape: bf16[9,64,64], index: 5, kind: input, shape index: {}]
  %s6 = inlined_call_operand.vmem [shape: f32[1,64], index: 6, kind: input, shape index: {}]
  %s7 = inlined_call_operand.vmem [shape: bf16[9,64,32], index: 7, kind: input, shape index: {}]
  %s8 = inlined_call_operand.vmem [shape: f32[1,32], index: 8, kind: input, shape index: {}]
  %s9 = inlined_call_operand.vmem [shape: f32[16,32], index: 9, kind: output, shape index: {}]
  %s10 = sld [smem:[#allocation0]]
  $region46: #{state_encoder_forward.1} parent=0
    _
  %s12 = ssub.s32 1, %s10
  %s13 = scalar_select 0, %s12, %s10
  // Predicated region
  $region2: #{state_encoder_forward.1} parent=0 // pred_check
    _
  $region3: #{state_encoder_forward.1} parent=0 // pred_check_branch
    %15 = sbr.rel (0) target = $region5
  $region4: #{state_encoder_forward.1} parent=0 // pred_region
    _
  $region5: #{state_encoder_forward.1} parent=0 // pred_fallthru
    _
  // Predicated region
  $region6: #{state_encoder_forward.1} parent=0 // pred_check
    _
  $region7: #{state_encoder_forward.1} parent=0 // pred_check_branch
    %17 = sbr.rel (0) target = $region9
  $region8: #{state_encoder_forward.1} parent=0 // pred_region
    _
  $region9: #{state_encoder_forward.1} parent=0 // pred_fallthru
    _
  // Predicated region
  $region10: #{state_encoder_forward.1} parent=0 // pred_check
    _
  $region11: #{state_encoder_forward.1} parent=0 // pred_check_branch
    %19 = sbr.rel (0) target = $region13
  $region12: #{state_encoder_forward.1} parent=0 // pred_region
    _
  $region13: #{state_encoder_forward.1} parent=0 // pred_fallthru
    _
  // Predicated region
  $region14: #{state_encoder_forward.1} parent=0 // pred_check
    _
  $region15: #{state_encoder_forward.1} parent=0 // pred_check_branch
    %21 = sbr.rel (0) target = $region17
  $region16: #{state_encoder_forward.1} parent=0 // pred_region
    _
  $region17: #{state_encoder_forward.1} parent=0 // pred_fallthru
    _
  // Predicated region
  $region18: #{state_encoder_forward.1} parent=0 // pred_check
    _
  $region19: #{state_encoder_forward.1} parent=0 // pred_check_branch
    %23 = sbr.rel (0) target = $region21
  $region20: #{state_encoder_forward.1} parent=0 // pred_region
    _
  $region21: #{state_encoder_forward.1} parent=0 // pred_fallthru
    _
  // Predicated region
  $region22: #{state_encoder_forward.1} parent=0 // pred_check
    _
  $region23: #{state_encoder_forward.1} parent=0 // pred_check_branch
    %25 = sbr.rel (0) target = $region25
  $region24: #{state_encoder_forward.1} parent=0 // pred_region
    _
  $region25: #{state_encoder_forward.1} parent=0 // pred_fallthru
    _
  // Predicated region
  $region26: #{state_encoder_forward.1} parent=0 // pred_check
    _
  $region27: #{state_encoder_forward.1} parent=0 // pred_check_branch
    %27 = sbr.rel (0) target = $region29
  $region28: #{state_encoder_forward.1} parent=0 // pred_region
    _
  $region29: #{state_encoder_forward.1} parent=0 // pred_fallthru
    _
  // Predicated region
  $region30: #{state_encoder_forward.1} parent=0 // pred_check
    _
  $region31: #{state_encoder_forward.1} parent=0 // pred_check_branch
    %29 = sbr.rel (0) target = $region33
  $region32: #{state_encoder_forward.1} parent=0 // pred_region
    _
  $region33: #{state_encoder_forward.1} parent=0 // pred_fallthru
    _
  // Predicated region
  $region34: #{state_encoder_forward.1} parent=0 // pred_check
    _
  $region35: #{state_encoder_forward.1} parent=0 // pred_check_branch
    %31 = sbr.rel (0) target = $region37
  $region36: #{state_encoder_forward.1} parent=0 // pred_region
    _
  $region37: #{state_encoder_forward.1} parent=0 // pred_fallthru
    _
  %v33 = vld [vmem:[%s0] sm:$0xff]
  %v34 = vld [vmem:[%s0 + $0x8] sm:$0xff]
  %v35 = vld [vmem:[%s0 + $0x10] sm:$0xff]
  %v36 = vld [vmem:[%s0 + $0x18] sm:$0xff]
  %v37 = vld [vmem:[%s0 + $0x20] sm:$0xff]
  %v38 = vld [vmem:[%s0 + $0x28] sm:$0xff]
  %v39 = vld [vmem:[%s0 + $0x30] sm:$0xff]
  %v40 = vld [vmem:[%s0 + $0x38] sm:$0xff]
  %v41 = vld [vmem:[%s0 + $0x40] sm:$0xff]
  %v42 = vld [vmem:[%s0 + $0x48] sm:$0xff]
  %v43 = vld [vmem:[%s0 + $0x50] sm:$0xff]
  %v44 = vld [vmem:[%s0 + $0x58] sm:$0xff]
  %v45 = vld [vmem:[%s0 + $0x60] sm:$0xff]
  %v46 = vld [vmem:[%s0 + $0x68] sm:$0xff]
  %v47 = vld [vmem:[%s0 + $0x70] sm:$0xff]
  %v48 = vld [vmem:[%s0 + $0x78] sm:$0xff]
  %v49 = vld [vmem:[%s0 + $0x80] sm:$0xff]
  %v50 = vld [vmem:[%s0 + $0x88] sm:$0xff]
  %v51 = vld [vmem:[%s0 + $0x90] sm:$0xff]
  %v52 = vld [vmem:[%s0 + $0x98] sm:$0xff]
  %v53 = vld [vmem:[%s0 + $0xa0] sm:$0xff]
  %v54 = vld [vmem:[%s0 + $0xa8] sm:$0xff]
  %v55 = vld [vmem:[%s0 + $0xb0] sm:$0xff]
  %v56 = vld [vmem:[%s0 + $0xb8] sm:$0xff]
  %v57 = vld [vmem:[%s0 + $0xc0] sm:$0xff]
  %v58 = vld [vmem:[%s0 + $0xc8] sm:$0xff]
  %v59 = vld [vmem:[%s0 + $0xd0] sm:$0xff]
  %v60 = vld [vmem:[%s0 + $0xd8] sm:$0xff]
  %v61 = vld [vmem:[%s0 + $0xe0] sm:$0xff]
  %v62 = vld [vmem:[%s0 + $0xe8] sm:$0xff]
  %v63 = vld [vmem:[%s0 + $0xf0] sm:$0xff]
  %v64 = vld [vmem:[%s0 + $0xf8] sm:$0xff]
  %v65 = vld [vmem:[%s0 + $0x100] sm:$0xff]
  %v66 = vld [vmem:[%s0 + $0x108] sm:$0xff]
  %v67 = vld [vmem:[%s0 + $0x110] sm:$0xff]
  %v68 = vld [vmem:[%s0 + $0x118] sm:$0xff]
  %v69 = vld [vmem:[%s0 + $0x120] sm:$0xff]
  %v70 = vld [vmem:[%s0 + $0x128] sm:$0xff]
  %v71 = vld [vmem:[%s0 + $0x130] sm:$0xff]
  %v72 = vld [vmem:[%s0 + $0x138] sm:$0xff]
  %v73 = vld [vmem:[%s0 + $0x140] sm:$0xff]
  %v74 = vld [vmem:[%s0 + $0x148] sm:$0xff]
  %v75 = vld [vmem:[%s0 + $0x150] sm:$0xff]
  %v76 = vld [vmem:[%s0 + $0x158] sm:$0xff]
  %v77 = vld [vmem:[%s0 + $0x160] sm:$0xff]
  %v78 = vld [vmem:[%s0 + $0x168] sm:$0xff]
  %v79 = vld [vmem:[%s0 + $0x170] sm:$0xff]
  %v80 = vld [vmem:[%s0 + $0x178] sm:$0xff]
  %v81 = vld [vmem:[%s0 + $0x180] sm:$0xff]
  %v82 = vld [vmem:[%s0 + $0x188] sm:$0xff]
  %v83 = vld [vmem:[%s0 + $0x190] sm:$0xff]
  %v84 = vld [vmem:[%s0 + $0x198] sm:$0xff]
  %v85 = vld [vmem:[%s0 + $0x1a0] sm:$0xff]
  %v86 = vld [vmem:[%s0 + $0x1a8] sm:$0xff]
  %v87 = vld [vmem:[%s0 + $0x1b0] sm:$0xff]
  %v88 = vld [vmem:[%s0 + $0x1b8] sm:$0xff]
  %v89 = vld [vmem:[%s0 + $0x1c0] sm:$0xff]
  %v90 = vld [vmem:[%s0 + $0x1c8] sm:$0xff]
  %v91 = vld [vmem:[%s0 + $0x1d0] sm:$0xff]
  %v92 = vld [vmem:[%s0 + $0x1d8] sm:$0xff]
  %v93 = vld [vmem:[%s0 + $0x1e0] sm:$0xff]
  %v94 = vld [vmem:[%s0 + $0x1e8] sm:$0xff]
  %v95 = vld [vmem:[%s0 + $0x1f0] sm:$0xff]
  %v96 = vld [vmem:[%s0 + $0x1f8] sm:$0xff]
  %v97 = vld [vmem:[%s0 + $0x200] sm:$0xff]
  %v98 = vld [vmem:[%s0 + $0x208] sm:$0xff]
  %v99 = vld [vmem:[%s0 + $0x210] sm:$0xff]
  %v100 = vld [vmem:[%s0 + $0x218] sm:$0xff]
  %v101 = vld [vmem:[%s0 + $0x220] sm:$0xff]
  %v102 = vld [vmem:[%s0 + $0x228] sm:$0xff]
  %v103 = vld [vmem:[%s0 + $0x230] sm:$0xff]
  %v104 = vld [vmem:[%s0 + $0x238] sm:$0xff]
  %v105 = vld [vmem:[%s0 + $0x240] sm:$0xff]
  %v106 = vld [vmem:[%s0 + $0x248] sm:$0xff]
  %v107 = vld [vmem:[%s0 + $0x250] sm:$0xff]
  %v108 = vld [vmem:[%s0 + $0x258] sm:$0xff]
  %v109 = vld [vmem:[%s0 + $0x260] sm:$0xff]
  %v110 = vld [vmem:[%s0 + $0x268] sm:$0xff]
  %v111 = vld [vmem:[%s0 + $0x270] sm:$0xff]
  %v112 = vld [vmem:[%s0 + $0x278] sm:$0xff]
  %v113 = vld [vmem:[%s0 + $0x280] sm:$0xff]
  %v114 = vld [vmem:[%s0 + $0x288] sm:$0xff]
  %v115 = vld [vmem:[%s0 + $0x290] sm:$0xff]
  %v116 = vld [vmem:[%s0 + $0x298] sm:$0xff]
  %v117 = vld [vmem:[%s0 + $0x2a0] sm:$0xff]
  %v118 = vld [vmem:[%s0 + $0x2a8] sm:$0xff]
  %v119 = vld [vmem:[%s0 + $0x2b0] sm:$0xff]
  %v120 = vld [vmem:[%s0 + $0x2b8] sm:$0xff]
  %v121 = vld [vmem:[%s0 + $0x2c0] sm:$0xff]
  %v122 = vld [vmem:[%s0 + $0x2c8] sm:$0xff]
  %v123 = vld [vmem:[%s0 + $0x2d0] sm:$0xff]
  %v124 = vld [vmem:[%s0 + $0x2d8] sm:$0xff]
  %v125 = vld [vmem:[%s0 + $0x2e0] sm:$0xff]
  %v126 = vld [vmem:[%s0 + $0x2e8] sm:$0xff]
  %v127 = vld [vmem:[%s0 + $0x2f0] sm:$0xff]
  %v128 = vld [vmem:[%s0 + $0x2f8] sm:$0xff]
  %v129 = vld [vmem:[%s0 + $0x300] sm:$0xff]
  %v130 = vld [vmem:[%s0 + $0x308] sm:$0xff]
  %v131 = vld [vmem:[%s0 + $0x310] sm:$0xff]
  %v132 = vld [vmem:[%s0 + $0x318] sm:$0xff]
  %v133 = vld [vmem:[%s0 + $0x320] sm:$0xff]
  %v134 = vld [vmem:[%s0 + $0x328] sm:$0xff]
  %v135 = vld [vmem:[%s0 + $0x330] sm:$0xff]
  %v136 = vld [vmem:[%s0 + $0x338] sm:$0xff]
  %v137 = vld [vmem:[%s0 + $0x340] sm:$0xff]
  %v138 = vld [vmem:[%s0 + $0x348] sm:$0xff]
  %v139 = vld [vmem:[%s0 + $0x350] sm:$0xff]
  %v140 = vld [vmem:[%s0 + $0x358] sm:$0xff]
  %v141 = vld [vmem:[%s0 + $0x360] sm:$0xff]
  %v142 = vld [vmem:[%s0 + $0x368] sm:$0xff]
  %v143 = vld [vmem:[%s0 + $0x370] sm:$0xff]
  %v144 = vld [vmem:[%s0 + $0x378] sm:$0xff]
  %v145 = vld [vmem:[%s0 + $0x380] sm:$0xff]
  %v146 = vld [vmem:[%s0 + $0x388] sm:$0xff]
  %v147 = vld [vmem:[%s0 + $0x390] sm:$0xff]
  %v148 = vld [vmem:[%s0 + $0x398] sm:$0xff]
  %v149 = vld [vmem:[%s0 + $0x3a0] sm:$0xff]
  %v150 = vld [vmem:[%s0 + $0x3a8] sm:$0xff]
  %v151 = vld [vmem:[%s0 + $0x3b0] sm:$0xff]
  %v152 = vld [vmem:[%s0 + $0x3b8] sm:$0xff]
  %v153 = vld [vmem:[%s0 + $0x3c0] sm:$0xff]
  %v154 = vld [vmem:[%s0 + $0x3c8] sm:$0xff]
  %v155 = vld [vmem:[%s0 + $0x3d0] sm:$0xff]
  %v156 = vld [vmem:[%s0 + $0x3d8] sm:$0xff]
  %v157 = vld [vmem:[%s0 + $0x3e0] sm:$0xff]
  %v158 = vld [vmem:[%s0 + $0x3e8] sm:$0xff]
  %v159 = vld [vmem:[%s0 + $0x3f0] sm:$0xff]
  %v160 = vld [vmem:[%s0 + $0x3f8] sm:$0xff]
  %v161 = vld [vmem:[%s0 + $0x400] sm:$0xff]
  %v162 = vld [vmem:[%s0 + $0x408] sm:$0xff]
  %v163 = vld [vmem:[%s0 + $0x410] sm:$0xff]
  %v164 = vld [vmem:[%s0 + $0x418] sm:$0xff]
  %v165 = vld [vmem:[%s0 + $0x420] sm:$0xff]
  %v166 = vld [vmem:[%s0 + $0x428] sm:$0xff]
  %v167 = vld [vmem:[%s0 + $0x430] sm:$0xff]
  %v168 = vld [vmem:[%s0 + $0x438] sm:$0xff]
  %v169 = vld [vmem:[%s0 + $0x440] sm:$0xff]
  %v170 = vld [vmem:[%s0 + $0x448] sm:$0xff]
  %v171 = vld [vmem:[%s0 + $0x450] sm:$0xff]
  %v172 = vld [vmem:[%s0 + $0x458] sm:$0xff]
  %v173 = vld [vmem:[%s0 + $0x460] sm:$0xff]
  %v174 = vld [vmem:[%s0 + $0x468] sm:$0xff]
  %v175 = vld [vmem:[%s0 + $0x470] sm:$0xff]
  %v176 = vld [vmem:[%s0 + $0x478] sm:$0xff]
  %v177 = vld [vmem:[%s0 + $0x480] sm:$0xff]
  %v178 = vld [vmem:[%s0 + $0x488] sm:$0xff]
  %v179 = vld [vmem:[%s0 + $0x490] sm:$0xff]
  %v180 = vld [vmem:[%s0 + $0x498] sm:$0xff]
  %v181 = vld [vmem:[%s0 + $0x4a0] sm:$0xff]
  %v182 = vld [vmem:[%s0 + $0x4a8] sm:$0xff]
  %v183 = vld [vmem:[%s0 + $0x4b0] sm:$0xff]
  %v184 = vld [vmem:[%s0 + $0x4b8] sm:$0xff]
  %v185 = vld [vmem:[%s0 + $0x4c0] sm:$0xff]
  %v186 = vld [vmem:[%s0 + $0x4c8] sm:$0xff]
  %v187 = vld [vmem:[%s0 + $0x4d0] sm:$0xff]
  %v188 = vld [vmem:[%s0 + $0x4d8] sm:$0xff]
  %v189 = vld [vmem:[%s0 + $0x4e0] sm:$0xff]
  %v190 = vld [vmem:[%s0 + $0x4e8] sm:$0xff]
  %v191 = vld [vmem:[%s0 + $0x4f0] sm:$0xff]
  %v192 = vld [vmem:[%s0 + $0x4f8] sm:$0xff]
  %v193 = vld [vmem:[%s0 + $0x500] sm:$0xff]
  %v194 = vld [vmem:[%s0 + $0x508] sm:$0xff]
  %v195 = vld [vmem:[%s0 + $0x510] sm:$0xff]
  %v196 = vld [vmem:[%s0 + $0x518] sm:$0xff]
  %v197 = vld [vmem:[%s0 + $0x520] sm:$0xff]
  %v198 = vld [vmem:[%s0 + $0x528] sm:$0xff]
  %v199 = vld [vmem:[%s0 + $0x530] sm:$0xff]
  %v200 = vld [vmem:[%s0 + $0x538] sm:$0xff]
  %v201 = vld [vmem:[%s0 + $0x540] sm:$0xff]
  %v202 = vld [vmem:[%s0 + $0x548] sm:$0xff]
  %v203 = vld [vmem:[%s0 + $0x550] sm:$0xff]
  %v204 = vld [vmem:[%s0 + $0x558] sm:$0xff]
  %v205 = vld [vmem:[%s0 + $0x560] sm:$0xff]
  %v206 = vld [vmem:[%s0 + $0x568] sm:$0xff]
  %v207 = vld [vmem:[%s0 + $0x570] sm:$0xff]
  %v208 = vld [vmem:[%s0 + $0x578] sm:$0xff]
  %v209 = vld [vmem:[%s0 + $0x580] sm:$0xff]
  %v210 = vld [vmem:[%s0 + $0x588] sm:$0xff]
  %v211 = vld [vmem:[%s0 + $0x590] sm:$0xff]
  %v212 = vld [vmem:[%s0 + $0x598] sm:$0xff]
  %v213 = vld [vmem:[%s0 + $0x5a0] sm:$0xff]
  %v214 = vld [vmem:[%s0 + $0x5a8] sm:$0xff]
  %v215 = vld [vmem:[%s0 + $0x5b0] sm:$0xff]
  %v216 = vld [vmem:[%s0 + $0x5b8] sm:$0xff]
  %v217 = vld [vmem:[%s0 + $0x5c0] sm:$0xff]
  %v218 = vld [vmem:[%s0 + $0x5c8] sm:$0xff]
  %v219 = vld [vmem:[%s0 + $0x5d0] sm:$0xff]
  %v220 = vld [vmem:[%s0 + $0x5d8] sm:$0xff]
  %v221 = vld [vmem:[%s0 + $0x5e0] sm:$0xff]
  %v222 = vld [vmem:[%s0 + $0x5e8] sm:$0xff]
  %v223 = vld [vmem:[%s0 + $0x5f0] sm:$0xff]
  %v224 = vld [vmem:[%s0 + $0x5f8] sm:$0xff]
  %v225 = vld [vmem:[%s0 + $0x600] sm:$0xff]
  %v226 = vld [vmem:[%s0 + $0x608] sm:$0xff]
  %v227 = vld [vmem:[%s0 + $0x610] sm:$0xff]
  %v228 = vld [vmem:[%s0 + $0x618] sm:$0xff]
  %v229 = vld [vmem:[%s0 + $0x620] sm:$0xff]
  %v230 = vld [vmem:[%s0 + $0x628] sm:$0xff]
  %v231 = vld [vmem:[%s0 + $0x630] sm:$0xff]
  %v232 = vld [vmem:[%s0 + $0x638] sm:$0xff]
  %v233 = vld [vmem:[%s0 + $0x640] sm:$0xff]
  %v234 = vld [vmem:[%s0 + $0x648] sm:$0xff]
  %v235 = vld [vmem:[%s0 + $0x650] sm:$0xff]
  %v236 = vld [vmem:[%s0 + $0x658] sm:$0xff]
  %v237 = vld [vmem:[%s0 + $0x660] sm:$0xff]
  %v238 = vld [vmem:[%s0 + $0x668] sm:$0xff]
  %v239 = vld [vmem:[%s0 + $0x670] sm:$0xff]
  %v240 = vld [vmem:[%s0 + $0x678] sm:$0xff]
  %v241 = vld [vmem:[%s0 + $0x680] sm:$0xff]
  %v242 = vld [vmem:[%s0 + $0x688] sm:$0xff]
  %v243 = vld [vmem:[%s0 + $0x690] sm:$0xff]
  %v244 = vld [vmem:[%s0 + $0x698] sm:$0xff]
  %v245 = vld [vmem:[%s0 + $0x6a0] sm:$0xff]
  %v246 = vld [vmem:[%s0 + $0x6a8] sm:$0xff]
  %v247 = vld [vmem:[%s0 + $0x6b0] sm:$0xff]
  %v248 = vld [vmem:[%s0 + $0x6b8] sm:$0xff]
  %v249 = vld [vmem:[%s0 + $0x6c0] sm:$0xff]
  %v250 = vld [vmem:[%s0 + $0x6c8] sm:$0xff]
  %v251 = vld [vmem:[%s0 + $0x6d0] sm:$0xff]
  %v252 = vld [vmem:[%s0 + $0x6d8] sm:$0xff]
  %v253 = vld [vmem:[%s0 + $0x6e0] sm:$0xff]
  %v254 = vld [vmem:[%s0 + $0x6e8] sm:$0xff]
  %v255 = vld [vmem:[%s0 + $0x6f0] sm:$0xff]
  %v256 = vld [vmem:[%s0 + $0x6f8] sm:$0xff]
  %v257 = vld [vmem:[%s0 + $0x700] sm:$0xff]
  %v258 = vld [vmem:[%s0 + $0x708] sm:$0xff]
  %v259 = vld [vmem:[%s0 + $0x710] sm:$0xff]
  %v260 = vld [vmem:[%s0 + $0x718] sm:$0xff]
  %v261 = vld [vmem:[%s0 + $0x720] sm:$0xff]
  %v262 = vld [vmem:[%s0 + $0x728] sm:$0xff]
  %v263 = vld [vmem:[%s0 + $0x730] sm:$0xff]
  %v264 = vld [vmem:[%s0 + $0x738] sm:$0xff]
  %v265 = vld [vmem:[%s0 + $0x740] sm:$0xff]
  %v266 = vld [vmem:[%s0 + $0x748] sm:$0xff]
  %v267 = vld [vmem:[%s0 + $0x750] sm:$0xff]
  %v268 = vld [vmem:[%s0 + $0x758] sm:$0xff]
  %v269 = vld [vmem:[%s0 + $0x760] sm:$0xff]
  %v270 = vld [vmem:[%s0 + $0x768] sm:$0xff]
  %v271 = vld [vmem:[%s0 + $0x770] sm:$0xff]
  %v272 = vld [vmem:[%s0 + $0x778] sm:$0xff]
  %v273 = vld [vmem:[%s0 + $0x780] sm:$0xff]
  %v274 = vld [vmem:[%s0 + $0x788] sm:$0xff]
  %v275 = vld [vmem:[%s0 + $0x790] sm:$0xff]
  %v276 = vld [vmem:[%s0 + $0x798] sm:$0xff]
  %v277 = vld [vmem:[%s0 + $0x7a0] sm:$0xff]
  %v278 = vld [vmem:[%s0 + $0x7a8] sm:$0xff]
  %v279 = vld [vmem:[%s0 + $0x7b0] sm:$0xff]
  %v280 = vld [vmem:[%s0 + $0x7b8] sm:$0xff]
  %v281 = vld [vmem:[%s0 + $0x7c0] sm:$0xff]
  %v282 = vld [vmem:[%s0 + $0x7c8] sm:$0xff]
  %v283 = vld [vmem:[%s0 + $0x7d0] sm:$0xff]
  %v284 = vld [vmem:[%s0 + $0x7d8] sm:$0xff]
  %v285 = vld [vmem:[%s0 + $0x7e0] sm:$0xff]
  %v286 = vld [vmem:[%s0 + $0x7e8] sm:$0xff]
  %v287 = vld [vmem:[%s0 + $0x7f0] sm:$0xff]
  %v288 = vld [vmem:[%s0 + $0x7f8] sm:$0xff]
  %v289 = vld [vmem:[%s0 + $0x800] sm:$0xff]
  %v290 = vld [vmem:[%s0 + $0x808] sm:$0xff]
  %v291 = vld [vmem:[%s0 + $0x810] sm:$0xff]
  %v292 = vld [vmem:[%s0 + $0x818] sm:$0xff]
  %v293 = vld [vmem:[%s0 + $0x820] sm:$0xff]
  %v294 = vld [vmem:[%s0 + $0x828] sm:$0xff]
  %v295 = vld [vmem:[%s0 + $0x830] sm:$0xff]
  %v296 = vld [vmem:[%s0 + $0x838] sm:$0xff]
  %v297 = vld [vmem:[%s0 + $0x840] sm:$0xff]
  %v298 = vld [vmem:[%s0 + $0x848] sm:$0xff]
  %v299 = vld [vmem:[%s0 + $0x850] sm:$0xff]
  %v300 = vld [vmem:[%s0 + $0x858] sm:$0xff]
  %v301 = vld [vmem:[%s0 + $0x860] sm:$0xff]
  %v302 = vld [vmem:[%s0 + $0x868] sm:$0xff]
  %v303 = vld [vmem:[%s0 + $0x870] sm:$0xff]
  %v304 = vld [vmem:[%s0 + $0x878] sm:$0xff]
  %v305 = vld [vmem:[%s0 + $0x880] sm:$0xff]
  %v306 = vld [vmem:[%s0 + $0x888] sm:$0xff]
  %v307 = vld [vmem:[%s0 + $0x890] sm:$0xff]
  %v308 = vld [vmem:[%s0 + $0x898] sm:$0xff]
  %v309 = vld [vmem:[%s0 + $0x8a0] sm:$0xff]
  %v310 = vld [vmem:[%s0 + $0x8a8] sm:$0xff]
  %v311 = vld [vmem:[%s0 + $0x8b0] sm:$0xff]
  %v312 = vld [vmem:[%s0 + $0x8b8] sm:$0xff]
  %v313 = vld [vmem:[%s0 + $0x8c0] sm:$0xff]
  %v314 = vld [vmem:[%s0 + $0x8c8] sm:$0xff]
  %v315 = vld [vmem:[%s0 + $0x8d0] sm:$0xff]
  %v316 = vld [vmem:[%s0 + $0x8d8] sm:$0xff]
  %v317 = vld [vmem:[%s0 + $0x8e0] sm:$0xff]
  %v318 = vld [vmem:[%s0 + $0x8e8] sm:$0xff]
  %v319 = vld [vmem:[%s0 + $0x8f0] sm:$0xff]
  %v320 = vld [vmem:[%s0 + $0x8f8] sm:$0xff]
  %v321 = vld [vmem:[%s1] sm:$0xf]
  %v322 = vld [vmem:[%s1 + $0x4] sm:$0xf]
  %v323 = vld [vmem:[%s1 + $0x8] sm:$0xf]
  %v324 = vld [vmem:[%s1 + $0xc] sm:$0xf]
  %v325 = vld [vmem:[%s1 + $0x10] sm:$0xf]
  %v326 = vld [vmem:[%s1 + $0x14] sm:$0xf]
  %v327 = vld [vmem:[%s1 + $0x18] sm:$0xf]
  %v328 = vld [vmem:[%s1 + $0x1c] sm:$0xf]
  %v329 = vld [vmem:[%s1 + $0x20] sm:$0xf]
  %v330 = vld [vmem:[%s1 + $0x24] sm:$0xf]
  %v331 = vld [vmem:[%s1 + $0x28] sm:$0xf]
  %v332 = vld [vmem:[%s1 + $0x2c] sm:$0xf]
  %v333 = vld [vmem:[%s1 + $0x30] sm:$0xf]
  %v334 = vld [vmem:[%s1 + $0x34] sm:$0xf]
  %v335 = vld [vmem:[%s1 + $0x38] sm:$0xf]
  %v336 = vld [vmem:[%s1 + $0x3c] sm:$0xf]
  %v337 = vld [vmem:[%s1 + $0x40] sm:$0xf]
  %v338 = vld [vmem:[%s1 + $0x44] sm:$0xf]
  %v339 = vld [vmem:[%s1 + $0x48] sm:$0xf]
  %v340 = vld [vmem:[%s1 + $0x4c] sm:$0xf]
  %v341 = vld [vmem:[%s1 + $0x50] sm:$0xf]
  %v342 = vld [vmem:[%s1 + $0x54] sm:$0xf]
  %v343 = vld [vmem:[%s1 + $0x58] sm:$0xf]
  %v344 = vld [vmem:[%s1 + $0x5c] sm:$0xf]
  %v345 = vld [vmem:[%s2] sm:$0x1]
  %v347 = vperm.slane %v345, 0
  %v637 = vunpack.c.l.b16 %v33
  %v638 = vunpack.c.h.b16 %v33
  %v639 = vunpack.c.l.b16 %v34
  %v640 = vunpack.c.h.b16 %v34
  %v641 = vunpack.c.l.b16 %v35
  %v642 = vunpack.c.h.b16 %v35
  %v643 = vunpack.c.l.b16 %v36
  %v644 = vunpack.c.h.b16 %v36
  %v645 = vunpack.c.l.b16 %v37
  %v646 = vunpack.c.h.b16 %v37
  %v647 = vunpack.c.l.b16 %v38
  %v648 = vunpack.c.h.b16 %v38
  %v649 = vunpack.c.l.b16 %v39
  %v650 = vunpack.c.h.b16 %v39
  %v651 = vunpack.c.l.b16 %v40
  %v652 = vunpack.c.h.b16 %v40
  %v653 = vunpack.c.l.b16 %v41
  %v654 = vunpack.c.h.b16 %v41
  %v655 = vunpack.c.l.b16 %v42
  %v656 = vunpack.c.h.b16 %v42
  %v657 = vunpack.c.l.b16 %v43
  %v658 = vunpack.c.h.b16 %v43
  %v659 = vunpack.c.l.b16 %v44
  %v660 = vunpack.c.h.b16 %v44
  %v661 = vunpack.c.l.b16 %v45
  %v662 = vunpack.c.h.b16 %v45
  %v663 = vunpack.c.l.b16 %v46
  %v664 = vunpack.c.h.b16 %v46
  %v665 = vunpack.c.l.b16 %v47
  %v666 = vunpack.c.h.b16 %v47
  %v667 = vunpack.c.l.b16 %v48
  %v668 = vunpack.c.h.b16 %v48
  %v669 = vunpack.c.l.b16 %v49
  %v670 = vunpack.c.h.b16 %v49
  %v671 = vunpack.c.l.b16 %v50
  %v672 = vunpack.c.h.b16 %v50
  %v673 = vunpack.c.l.b16 %v51
  %v674 = vunpack.c.h.b16 %v51
  %v675 = vunpack.c.l.b16 %v52
  %v676 = vunpack.c.h.b16 %v52
  %v677 = vunpack.c.l.b16 %v53
  %v678 = vunpack.c.h.b16 %v53
  %v679 = vunpack.c.l.b16 %v54
  %v680 = vunpack.c.h.b16 %v54
  %v681 = vunpack.c.l.b16 %v55
  %v682 = vunpack.c.h.b16 %v55
  %v683 = vunpack.c.l.b16 %v56
  %v684 = vunpack.c.h.b16 %v56
  %v685 = vunpack.c.l.b16 %v57
  %v686 = vunpack.c.h.b16 %v57
  %v687 = vunpack.c.l.b16 %v58
  %v688 = vunpack.c.h.b16 %v58
  %v689 = vunpack.c.l.b16 %v59
  %v690 = vunpack.c.h.b16 %v59
  %v691 = vunpack.c.l.b16 %v60
  %v692 = vunpack.c.h.b16 %v60
  %v693 = vunpack.c.l.b16 %v61
  %v694 = vunpack.c.h.b16 %v61
  %v695 = vunpack.c.l.b16 %v62
  %v696 = vunpack.c.h.b16 %v62
  %v697 = vunpack.c.l.b16 %v63
  %v698 = vunpack.c.h.b16 %v63
  %v699 = vunpack.c.l.b16 %v64
  %v700 = vunpack.c.h.b16 %v64
  %v701 = vunpack.c.l.b16 %v65
  %v702 = vunpack.c.h.b16 %v65
  %v703 = vunpack.c.l.b16 %v66
  %v704 = vunpack.c.h.b16 %v66
  %v705 = vunpack.c.l.b16 %v67
  %v706 = vunpack.c.h.b16 %v67
  %v707 = vunpack.c.l.b16 %v68
  %v708 = vunpack.c.h.b16 %v68
  %v709 = vunpack.c.l.b16 %v69
  %v710 = vunpack.c.h.b16 %v69
  %v711 = vunpack.c.l.b16 %v70
  %v712 = vunpack.c.h.b16 %v70
  %v713 = vunpack.c.l.b16 %v71
  %v714 = vunpack.c.h.b16 %v71
  %v715 = vunpack.c.l.b16 %v72
  %v716 = vunpack.c.h.b16 %v72
  %v717 = vunpack.c.l.b16 %v73
  %v718 = vunpack.c.h.b16 %v73
  %v719 = vunpack.c.l.b16 %v74
  %v720 = vunpack.c.h.b16 %v74
  %v721 = vunpack.c.l.b16 %v75
  %v722 = vunpack.c.h.b16 %v75
  %v723 = vunpack.c.l.b16 %v76
  %v724 = vunpack.c.h.b16 %v76
  %v725 = vunpack.c.l.b16 %v77
  %v726 = vunpack.c.h.b16 %v77
  %v727 = vunpack.c.l.b16 %v78
  %v728 = vunpack.c.h.b16 %v78
  %v729 = vunpack.c.l.b16 %v79
  %v730 = vunpack.c.h.b16 %v79
  %v731 = vunpack.c.l.b16 %v80
  %v732 = vunpack.c.h.b16 %v80
  %v733 = vunpack.c.l.b16 %v81
  %v734 = vunpack.c.h.b16 %v81
  %v735 = vunpack.c.l.b16 %v82
  %v736 = vunpack.c.h.b16 %v82
  %v737 = vunpack.c.l.b16 %v83
  %v738 = vunpack.c.h.b16 %v83
  %v739 = vunpack.c.l.b16 %v84
  %v740 = vunpack.c.h.b16 %v84
  %v741 = vunpack.c.l.b16 %v85
  %v742 = vunpack.c.h.b16 %v85
  %v743 = vunpack.c.l.b16 %v86
  %v744 = vunpack.c.h.b16 %v86
  %v745 = vunpack.c.l.b16 %v87
  %v746 = vunpack.c.h.b16 %v87
  %v747 = vunpack.c.l.b16 %v88
  %v748 = vunpack.c.h.b16 %v88
  %v749 = vunpack.c.l.b16 %v89
  %v750 = vunpack.c.h.b16 %v89
  %v751 = vunpack.c.l.b16 %v90
  %v752 = vunpack.c.h.b16 %v90
  %v753 = vunpack.c.l.b16 %v91
  %v754 = vunpack.c.h.b16 %v91
  %v755 = vunpack.c.l.b16 %v92
  %v756 = vunpack.c.h.b16 %v92
  %v757 = vunpack.c.l.b16 %v93
  %v758 = vunpack.c.h.b16 %v93
  %v759 = vunpack.c.l.b16 %v94
  %v760 = vunpack.c.h.b16 %v94
  %v761 = vunpack.c.l.b16 %v95
  %v762 = vunpack.c.h.b16 %v95
  %v763 = vunpack.c.l.b16 %v96
  %v764 = vunpack.c.h.b16 %v96
  %v765 = vunpack.c.l.b16 %v97
  %v766 = vunpack.c.h.b16 %v97
  %v767 = vunpack.c.l.b16 %v98
  %v768 = vunpack.c.h.b16 %v98
  %v769 = vunpack.c.l.b16 %v99
  %v770 = vunpack.c.h.b16 %v99
  %v771 = vunpack.c.l.b16 %v100
  %v772 = vunpack.c.h.b16 %v100
  %v773 = vunpack.c.l.b16 %v101
  %v774 = vunpack.c.h.b16 %v101
  %v775 = vunpack.c.l.b16 %v102
  %v776 = vunpack.c.h.b16 %v102
  %v777 = vunpack.c.l.b16 %v103
  %v778 = vunpack.c.h.b16 %v103
  %v779 = vunpack.c.l.b16 %v104
  %v780 = vunpack.c.h.b16 %v104
  %v781 = vunpack.c.l.b16 %v105
  %v782 = vunpack.c.h.b16 %v105
  %v783 = vunpack.c.l.b16 %v106
  %v784 = vunpack.c.h.b16 %v106
  %v785 = vunpack.c.l.b16 %v107
  %v786 = vunpack.c.h.b16 %v107
  %v787 = vunpack.c.l.b16 %v108
  %v788 = vunpack.c.h.b16 %v108
  %v789 = vunpack.c.l.b16 %v109
  %v790 = vunpack.c.h.b16 %v109
  %v791 = vunpack.c.l.b16 %v110
  %v792 = vunpack.c.h.b16 %v110
  %v793 = vunpack.c.l.b16 %v111
  %v794 = vunpack.c.h.b16 %v111
  %v795 = vunpack.c.l.b16 %v112
  %v796 = vunpack.c.h.b16 %v112
  %v797 = vunpack.c.l.b16 %v113
  %v798 = vunpack.c.h.b16 %v113
  %v799 = vunpack.c.l.b16 %v114
  %v800 = vunpack.c.h.b16 %v114
  %v801 = vunpack.c.l.b16 %v115
  %v802 = vunpack.c.h.b16 %v115
  %v803 = vunpack.c.l.b16 %v116
  %v804 = vunpack.c.h.b16 %v116
  %v805 = vunpack.c.l.b16 %v117
  %v806 = vunpack.c.h.b16 %v117
  %v807 = vunpack.c.l.b16 %v118
  %v808 = vunpack.c.h.b16 %v118
  %v809 = vunpack.c.l.b16 %v119
  %v810 = vunpack.c.h.b16 %v119
  %v811 = vunpack.c.l.b16 %v120
  %v812 = vunpack.c.h.b16 %v120
  %v813 = vunpack.c.l.b16 %v121
  %v814 = vunpack.c.h.b16 %v121
  %v815 = vunpack.c.l.b16 %v122
  %v816 = vunpack.c.h.b16 %v122
  %v817 = vunpack.c.l.b16 %v123
  %v818 = vunpack.c.h.b16 %v123
  %v819 = vunpack.c.l.b16 %v124
  %v820 = vunpack.c.h.b16 %v124
  %v821 = vunpack.c.l.b16 %v125
  %v822 = vunpack.c.h.b16 %v125
  %v823 = vunpack.c.l.b16 %v126
  %v824 = vunpack.c.h.b16 %v126
  %v825 = vunpack.c.l.b16 %v127
  %v826 = vunpack.c.h.b16 %v127
  %v827 = vunpack.c.l.b16 %v128
  %v828 = vunpack.c.h.b16 %v128
  %v829 = vunpack.c.l.b16 %v129
  %v830 = vunpack.c.h.b16 %v129
  %v831 = vunpack.c.l.b16 %v130
  %v832 = vunpack.c.h.b16 %v130
  %v833 = vunpack.c.l.b16 %v131
  %v834 = vunpack.c.h.b16 %v131
  %v835 = vunpack.c.l.b16 %v132
  %v836 = vunpack.c.h.b16 %v132
  %v837 = vunpack.c.l.b16 %v133
  %v838 = vunpack.c.h.b16 %v133
  %v839 = vunpack.c.l.b16 %v134
  %v840 = vunpack.c.h.b16 %v134
  %v841 = vunpack.c.l.b16 %v135
  %v842 = vunpack.c.h.b16 %v135
  %v843 = vunpack.c.l.b16 %v136
  %v844 = vunpack.c.h.b16 %v136
  %v845 = vunpack.c.l.b16 %v137
  %v846 = vunpack.c.h.b16 %v137
  %v847 = vunpack.c.l.b16 %v138
  %v848 = vunpack.c.h.b16 %v138
  %v849 = vunpack.c.l.b16 %v139
  %v850 = vunpack.c.h.b16 %v139
  %v851 = vunpack.c.l.b16 %v140
  %v852 = vunpack.c.h.b16 %v140
  %v853 = vunpack.c.l.b16 %v141
  %v854 = vunpack.c.h.b16 %v141
  %v855 = vunpack.c.l.b16 %v142
  %v856 = vunpack.c.h.b16 %v142
  %v857 = vunpack.c.l.b16 %v143
  %v858 = vunpack.c.h.b16 %v143
  %v859 = vunpack.c.l.b16 %v144
  %v860 = vunpack.c.h.b16 %v144
  %v861 = vunpack.c.l.b16 %v145
  %v862 = vunpack.c.h.b16 %v145
  %v863 = vunpack.c.l.b16 %v146
  %v864 = vunpack.c.h.b16 %v146
  %v865 = vunpack.c.l.b16 %v147
  %v866 = vunpack.c.h.b16 %v147
  %v867 = vunpack.c.l.b16 %v148
  %v868 = vunpack.c.h.b16 %v148
  %v869 = vunpack.c.l.b16 %v149
  %v870 = vunpack.c.h.b16 %v149
  %v871 = vunpack.c.l.b16 %v150
  %v872 = vunpack.c.h.b16 %v150
  %v873 = vunpack.c.l.b16 %v151
  %v874 = vunpack.c.h.b16 %v151
  %v875 = vunpack.c.l.b16 %v152
  %v876 = vunpack.c.h.b16 %v152
  %v877 = vunpack.c.l.b16 %v153
  %v878 = vunpack.c.h.b16 %v153
  %v879 = vunpack.c.l.b16 %v154
  %v880 = vunpack.c.h.b16 %v154
  %v881 = vunpack.c.l.b16 %v155
  %v882 = vunpack.c.h.b16 %v155
  %v883 = vunpack.c.l.b16 %v156
  %v884 = vunpack.c.h.b16 %v156
  %v885 = vunpack.c.l.b16 %v157
  %v886 = vunpack.c.h.b16 %v157
  %v887 = vunpack.c.l.b16 %v158
  %v888 = vunpack.c.h.b16 %v158
  %v889 = vunpack.c.l.b16 %v159
  %v890 = vunpack.c.h.b16 %v159
  %v891 = vunpack.c.l.b16 %v160
  %v892 = vunpack.c.h.b16 %v160
  %v893 = vunpack.c.l.b16 %v161
  %v894 = vunpack.c.h.b16 %v161
  %v895 = vunpack.c.l.b16 %v162
  %v896 = vunpack.c.h.b16 %v162
  %v897 = vunpack.c.l.b16 %v163
  %v898 = vunpack.c.h.b16 %v163
  %v899 = vunpack.c.l.b16 %v164
  %v900 = vunpack.c.h.b16 %v164
  %v901 = vunpack.c.l.b16 %v165
  %v902 = vunpack.c.h.b16 %v165
  %v903 = vunpack.c.l.b16 %v166
  %v904 = vunpack.c.h.b16 %v166
  %v905 = vunpack.c.l.b16 %v167
  %v906 = vunpack.c.h.b16 %v167
  %v907 = vunpack.c.l.b16 %v168
  %v908 = vunpack.c.h.b16 %v168
  %v909 = vunpack.c.l.b16 %v169
  %v910 = vunpack.c.h.b16 %v169
  %v911 = vunpack.c.l.b16 %v170
  %v912 = vunpack.c.h.b16 %v170
  %v913 = vunpack.c.l.b16 %v171
  %v914 = vunpack.c.h.b16 %v171
  %v915 = vunpack.c.l.b16 %v172
  %v916 = vunpack.c.h.b16 %v172
  %v917 = vunpack.c.l.b16 %v173
  %v918 = vunpack.c.h.b16 %v173
  %v919 = vunpack.c.l.b16 %v174
  %v920 = vunpack.c.h.b16 %v174
  %v921 = vunpack.c.l.b16 %v175
  %v922 = vunpack.c.h.b16 %v175
  %v923 = vunpack.c.l.b16 %v176
  %v924 = vunpack.c.h.b16 %v176
  %v925 = vunpack.c.l.b16 %v177
  %v926 = vunpack.c.h.b16 %v177
  %v927 = vunpack.c.l.b16 %v178
  %v928 = vunpack.c.h.b16 %v178
  %v929 = vunpack.c.l.b16 %v179
  %v930 = vunpack.c.h.b16 %v179
  %v931 = vunpack.c.l.b16 %v180
  %v932 = vunpack.c.h.b16 %v180
  %v933 = vunpack.c.l.b16 %v181
  %v934 = vunpack.c.h.b16 %v181
  %v935 = vunpack.c.l.b16 %v182
  %v936 = vunpack.c.h.b16 %v182
  %v937 = vunpack.c.l.b16 %v183
  %v938 = vunpack.c.h.b16 %v183
  %v939 = vunpack.c.l.b16 %v184
  %v940 = vunpack.c.h.b16 %v184
  %v941 = vunpack.c.l.b16 %v185
  %v942 = vunpack.c.h.b16 %v185
  %v943 = vunpack.c.l.b16 %v186
  %v944 = vunpack.c.h.b16 %v186
  %v945 = vunpack.c.l.b16 %v187
  %v946 = vunpack.c.h.b16 %v187
  %v947 = vunpack.c.l.b16 %v188
  %v948 = vunpack.c.h.b16 %v188
  %v949 = vunpack.c.l.b16 %v189
  %v950 = vunpack.c.h.b16 %v189
  %v951 = vunpack.c.l.b16 %v190
  %v952 = vunpack.c.h.b16 %v190
  %v953 = vunpack.c.l.b16 %v191
  %v954 = vunpack.c.h.b16 %v191
  %v955 = vunpack.c.l.b16 %v192
  %v956 = vunpack.c.h.b16 %v192
  %v957 = vunpack.c.l.b16 %v193
  %v958 = vunpack.c.h.b16 %v193
  %v959 = vunpack.c.l.b16 %v194
  %v960 = vunpack.c.h.b16 %v194
  %v961 = vunpack.c.l.b16 %v195
  %v962 = vunpack.c.h.b16 %v195
  %v963 = vunpack.c.l.b16 %v196
  %v964 = vunpack.c.h.b16 %v196
  %v965 = vunpack.c.l.b16 %v197
  %v966 = vunpack.c.h.b16 %v197
  %v967 = vunpack.c.l.b16 %v198
  %v968 = vunpack.c.h.b16 %v198
  %v969 = vunpack.c.l.b16 %v199
  %v970 = vunpack.c.h.b16 %v199
  %v971 = vunpack.c.l.b16 %v200
  %v972 = vunpack.c.h.b16 %v200
  %v973 = vunpack.c.l.b16 %v201
  %v974 = vunpack.c.h.b16 %v201
  %v975 = vunpack.c.l.b16 %v202
  %v976 = vunpack.c.h.b16 %v202
  %v977 = vunpack.c.l.b16 %v203
  %v978 = vunpack.c.h.b16 %v203
  %v979 = vunpack.c.l.b16 %v204
  %v980 = vunpack.c.h.b16 %v204
  %v981 = vunpack.c.l.b16 %v205
  %v982 = vunpack.c.h.b16 %v205
  %v983 = vunpack.c.l.b16 %v206
  %v984 = vunpack.c.h.b16 %v206
  %v985 = vunpack.c.l.b16 %v207
  %v986 = vunpack.c.h.b16 %v207
  %v987 = vunpack.c.l.b16 %v208
  %v988 = vunpack.c.h.b16 %v208
  %v989 = vunpack.c.l.b16 %v209
  %v990 = vunpack.c.h.b16 %v209
  %v991 = vunpack.c.l.b16 %v210
  %v992 = vunpack.c.h.b16 %v210
  %v993 = vunpack.c.l.b16 %v211
  %v994 = vunpack.c.h.b16 %v211
  %v995 = vunpack.c.l.b16 %v212
  %v996 = vunpack.c.h.b16 %v212
  %v997 = vunpack.c.l.b16 %v213
  %v998 = vunpack.c.h.b16 %v213
  %v999 = vunpack.c.l.b16 %v214
  %v1000 = vunpack.c.h.b16 %v214
  %v1001 = vunpack.c.l.b16 %v215
  %v1002 = vunpack.c.h.b16 %v215
  %v1003 = vunpack.c.l.b16 %v216
  %v1004 = vunpack.c.h.b16 %v216
  %v1005 = vunpack.c.l.b16 %v217
  %v1006 = vunpack.c.h.b16 %v217
  %v1007 = vunpack.c.l.b16 %v218
  %v1008 = vunpack.c.h.b16 %v218
  %v1009 = vunpack.c.l.b16 %v219
  %v1010 = vunpack.c.h.b16 %v219
  %v1011 = vunpack.c.l.b16 %v220
  %v1012 = vunpack.c.h.b16 %v220
  %v1013 = vunpack.c.l.b16 %v221
  %v1014 = vunpack.c.h.b16 %v221
  %v1015 = vunpack.c.l.b16 %v222
  %v1016 = vunpack.c.h.b16 %v222
  %v1017 = vunpack.c.l.b16 %v223
  %v1018 = vunpack.c.h.b16 %v223
  %v1019 = vunpack.c.l.b16 %v224
  %v1020 = vunpack.c.h.b16 %v224
  %v1021 = vunpack.c.l.b16 %v225
  %v1022 = vunpack.c.h.b16 %v225
  %v1023 = vunpack.c.l.b16 %v226
  %v1024 = vunpack.c.h.b16 %v226
  %v1025 = vunpack.c.l.b16 %v227
  %v1026 = vunpack.c.h.b16 %v227
  %v1027 = vunpack.c.l.b16 %v228
  %v1028 = vunpack.c.h.b16 %v228
  %v1029 = vunpack.c.l.b16 %v229
  %v1030 = vunpack.c.h.b16 %v229
  %v1031 = vunpack.c.l.b16 %v230
  %v1032 = vunpack.c.h.b16 %v230
  %v1033 = vunpack.c.l.b16 %v231
  %v1034 = vunpack.c.h.b16 %v231
  %v1035 = vunpack.c.l.b16 %v232
  %v1036 = vunpack.c.h.b16 %v232
  %v1037 = vunpack.c.l.b16 %v233
  %v1038 = vunpack.c.h.b16 %v233
  %v1039 = vunpack.c.l.b16 %v234
  %v1040 = vunpack.c.h.b16 %v234
  %v1041 = vunpack.c.l.b16 %v235
  %v1042 = vunpack.c.h.b16 %v235
  %v1043 = vunpack.c.l.b16 %v236
  %v1044 = vunpack.c.h.b16 %v236
  %v1045 = vunpack.c.l.b16 %v237
  %v1046 = vunpack.c.h.b16 %v237
  %v1047 = vunpack.c.l.b16 %v238
  %v1048 = vunpack.c.h.b16 %v238
  %v1049 = vunpack.c.l.b16 %v239
  %v1050 = vunpack.c.h.b16 %v239
  %v1051 = vunpack.c.l.b16 %v240
  %v1052 = vunpack.c.h.b16 %v240
  %v1053 = vunpack.c.l.b16 %v241
  %v1054 = vunpack.c.h.b16 %v241
  %v1055 = vunpack.c.l.b16 %v242
  %v1056 = vunpack.c.h.b16 %v242
  %v1057 = vunpack.c.l.b16 %v243
  %v1058 = vunpack.c.h.b16 %v243
  %v1059 = vunpack.c.l.b16 %v244
  %v1060 = vunpack.c.h.b16 %v244
  %v1061 = vunpack.c.l.b16 %v245
  %v1062 = vunpack.c.h.b16 %v245
  %v1063 = vunpack.c.l.b16 %v246
  %v1064 = vunpack.c.h.b16 %v246
  %v1065 = vunpack.c.l.b16 %v247
  %v1066 = vunpack.c.h.b16 %v247
  %v1067 = vunpack.c.l.b16 %v248
  %v1068 = vunpack.c.h.b16 %v248
  %v1069 = vunpack.c.l.b16 %v249
  %v1070 = vunpack.c.h.b16 %v249
  %v1071 = vunpack.c.l.b16 %v250
  %v1072 = vunpack.c.h.b16 %v250
  %v1073 = vunpack.c.l.b16 %v251
  %v1074 = vunpack.c.h.b16 %v251
  %v1075 = vunpack.c.l.b16 %v252
  %v1076 = vunpack.c.h.b16 %v252
  %v1077 = vunpack.c.l.b16 %v253
  %v1078 = vunpack.c.h.b16 %v253
  %v1079 = vunpack.c.l.b16 %v254
  %v1080 = vunpack.c.h.b16 %v254
  %v1081 = vunpack.c.l.b16 %v255
  %v1082 = vunpack.c.h.b16 %v255
  %v1083 = vunpack.c.l.b16 %v256
  %v1084 = vunpack.c.h.b16 %v256
  %v1085 = vunpack.c.l.b16 %v257
  %v1086 = vunpack.c.h.b16 %v257
  %v1087 = vunpack.c.l.b16 %v258
  %v1088 = vunpack.c.h.b16 %v258
  %v1089 = vunpack.c.l.b16 %v259
  %v1090 = vunpack.c.h.b16 %v259
  %v1091 = vunpack.c.l.b16 %v260
  %v1092 = vunpack.c.h.b16 %v260
  %v1093 = vunpack.c.l.b16 %v261
  %v1094 = vunpack.c.h.b16 %v261
  %v1095 = vunpack.c.l.b16 %v262
  %v1096 = vunpack.c.h.b16 %v262
  %v1097 = vunpack.c.l.b16 %v263
  %v1098 = vunpack.c.h.b16 %v263
  %v1099 = vunpack.c.l.b16 %v264
  %v1100 = vunpack.c.h.b16 %v264
  %v1101 = vunpack.c.l.b16 %v265
  %v1102 = vunpack.c.h.b16 %v265
  %v1103 = vunpack.c.l.b16 %v266
  %v1104 = vunpack.c.h.b16 %v266
  %v1105 = vunpack.c.l.b16 %v267
  %v1106 = vunpack.c.h.b16 %v267
  %v1107 = vunpack.c.l.b16 %v268
  %v1108 = vunpack.c.h.b16 %v268
  %v1109 = vunpack.c.l.b16 %v269
  %v1110 = vunpack.c.h.b16 %v269
  %v1111 = vunpack.c.l.b16 %v270
  %v1112 = vunpack.c.h.b16 %v270
  %v1113 = vunpack.c.l.b16 %v271
  %v1114 = vunpack.c.h.b16 %v271
  %v1115 = vunpack.c.l.b16 %v272
  %v1116 = vunpack.c.h.b16 %v272
  %v1117 = vunpack.c.l.b16 %v273
  %v1118 = vunpack.c.h.b16 %v273
  %v1119 = vunpack.c.l.b16 %v274
  %v1120 = vunpack.c.h.b16 %v274
  %v1121 = vunpack.c.l.b16 %v275
  %v1122 = vunpack.c.h.b16 %v275
  %v1123 = vunpack.c.l.b16 %v276
  %v1124 = vunpack.c.h.b16 %v276
  %v1125 = vunpack.c.l.b16 %v277
  %v1126 = vunpack.c.h.b16 %v277
  %v1127 = vunpack.c.l.b16 %v278
  %v1128 = vunpack.c.h.b16 %v278
  %v1129 = vunpack.c.l.b16 %v279
  %v1130 = vunpack.c.h.b16 %v279
  %v1131 = vunpack.c.l.b16 %v280
  %v1132 = vunpack.c.h.b16 %v280
  %v1133 = vunpack.c.l.b16 %v281
  %v1134 = vunpack.c.h.b16 %v281
  %v1135 = vunpack.c.l.b16 %v282
  %v1136 = vunpack.c.h.b16 %v282
  %v1137 = vunpack.c.l.b16 %v283
  %v1138 = vunpack.c.h.b16 %v283
  %v1139 = vunpack.c.l.b16 %v284
  %v1140 = vunpack.c.h.b16 %v284
  %v1141 = vunpack.c.l.b16 %v285
  %v1142 = vunpack.c.h.b16 %v285
  %v1143 = vunpack.c.l.b16 %v286
  %v1144 = vunpack.c.h.b16 %v286
  %v1145 = vunpack.c.l.b16 %v287
  %v1146 = vunpack.c.h.b16 %v287
  %v1147 = vunpack.c.l.b16 %v288
  %v1148 = vunpack.c.h.b16 %v288
  %v1149 = vunpack.c.l.b16 %v289
  %v1150 = vunpack.c.h.b16 %v289
  %v1151 = vunpack.c.l.b16 %v290
  %v1152 = vunpack.c.h.b16 %v290
  %v1153 = vunpack.c.l.b16 %v291
  %v1154 = vunpack.c.h.b16 %v291
  %v1155 = vunpack.c.l.b16 %v292
  %v1156 = vunpack.c.h.b16 %v292
  %v1157 = vunpack.c.l.b16 %v293
  %v1158 = vunpack.c.h.b16 %v293
  %v1159 = vunpack.c.l.b16 %v294
  %v1160 = vunpack.c.h.b16 %v294
  %v1161 = vunpack.c.l.b16 %v295
  %v1162 = vunpack.c.h.b16 %v295
  %v1163 = vunpack.c.l.b16 %v296
  %v1164 = vunpack.c.h.b16 %v296
  %v1165 = vunpack.c.l.b16 %v297
  %v1166 = vunpack.c.h.b16 %v297
  %v1167 = vunpack.c.l.b16 %v298
  %v1168 = vunpack.c.h.b16 %v298
  %v1169 = vunpack.c.l.b16 %v299
  %v1170 = vunpack.c.h.b16 %v299
  %v1171 = vunpack.c.l.b16 %v300
  %v1172 = vunpack.c.h.b16 %v300
  %v1173 = vunpack.c.l.b16 %v301
  %v1174 = vunpack.c.h.b16 %v301
  %v1175 = vunpack.c.l.b16 %v302
  %v1176 = vunpack.c.h.b16 %v302
  %v1177 = vunpack.c.l.b16 %v303
  %v1178 = vunpack.c.h.b16 %v303
  %v1179 = vunpack.c.l.b16 %v304
  %v1180 = vunpack.c.h.b16 %v304
  %v1181 = vunpack.c.l.b16 %v305
  %v1182 = vunpack.c.h.b16 %v305
  %v1183 = vunpack.c.l.b16 %v306
  %v1184 = vunpack.c.h.b16 %v306
  %v1185 = vunpack.c.l.b16 %v307
  %v1186 = vunpack.c.h.b16 %v307
  %v1187 = vunpack.c.l.b16 %v308
  %v1188 = vunpack.c.h.b16 %v308
  %v1189 = vunpack.c.l.b16 %v309
  %v1190 = vunpack.c.h.b16 %v309
  %v1191 = vunpack.c.l.b16 %v310
  %v1192 = vunpack.c.h.b16 %v310
  %v1193 = vunpack.c.l.b16 %v311
  %v1194 = vunpack.c.h.b16 %v311
  %v1195 = vunpack.c.l.b16 %v312
  %v1196 = vunpack.c.h.b16 %v312
  %v1197 = vunpack.c.l.b16 %v313
  %v1198 = vunpack.c.h.b16 %v313
  %v1199 = vunpack.c.l.b16 %v314
  %v1200 = vunpack.c.h.b16 %v314
  %v1201 = vunpack.c.l.b16 %v315
  %v1202 = vunpack.c.h.b16 %v315
  %v1203 = vunpack.c.l.b16 %v316
  %v1204 = vunpack.c.h.b16 %v316
  %v1205 = vunpack.c.l.b16 %v317
  %v1206 = vunpack.c.h.b16 %v317
  %v1207 = vunpack.c.l.b16 %v318
  %v1208 = vunpack.c.h.b16 %v318
  %v1209 = vunpack.c.l.b16 %v319
  %v1210 = vunpack.c.h.b16 %v319
  %v1211 = vunpack.c.l.b16 %v320
  %v1212 = vunpack.c.h.b16 %v320
  %v1213 = vpack.c.b16 %v639, %v637
  %v1214 = vpack.c.b16 %v640, %v638
  %v1215 = vpack.c.b16 %v643, %v641
  %v1216 = vpack.c.b16 %v644, %v642
  %v1217 = vpack.c.b16 %v647, %v645
  %v1218 = vpack.c.b16 %v648, %v646
  %v1219 = vpack.c.b16 %v651, %v649
  %v1220 = vpack.c.b16 %v652, %v650
  %v1221 = vpack.c.b16 %v655, %v653
  %v1222 = vpack.c.b16 %v656, %v654
  %v1223 = vpack.c.b16 %v659, %v657
  %v1224 = vpack.c.b16 %v660, %v658
  %v1225 = vpack.c.b16 %v663, %v661
  %v1226 = vpack.c.b16 %v664, %v662
  %v1227 = vpack.c.b16 %v667, %v665
  %v1228 = vpack.c.b16 %v668, %v666
  %v1229 = vpack.c.b16 %v671, %v669
  %v1230 = vpack.c.b16 %v672, %v670
  %v1231 = vpack.c.b16 %v675, %v673
  %v1232 = vpack.c.b16 %v676, %v674
  %v1233 = vpack.c.b16 %v679, %v677
  %v1234 = vpack.c.b16 %v680, %v678
  %v1235 = vpack.c.b16 %v683, %v681
  %v1236 = vpack.c.b16 %v684, %v682
  %v1237 = vpack.c.b16 %v687, %v685
  %v1238 = vpack.c.b16 %v688, %v686
  %v1239 = vpack.c.b16 %v691, %v689
  %v1240 = vpack.c.b16 %v692, %v690
  %v1241 = vpack.c.b16 %v695, %v693
  %v1242 = vpack.c.b16 %v696, %v694
  %v1243 = vpack.c.b16 %v699, %v697
  %v1244 = vpack.c.b16 %v700, %v698
  %v1245 = vpack.c.b16 %v703, %v701
  %v1246 = vpack.c.b16 %v704, %v702
  %v1247 = vpack.c.b16 %v707, %v705
  %v1248 = vpack.c.b16 %v708, %v706
  %v1249 = vpack.c.b16 %v711, %v709
  %v1250 = vpack.c.b16 %v712, %v710
  %v1251 = vpack.c.b16 %v715, %v713
  %v1252 = vpack.c.b16 %v716, %v714
  %v1253 = vpack.c.b16 %v719, %v717
  %v1254 = vpack.c.b16 %v720, %v718
  %v1255 = vpack.c.b16 %v723, %v721
  %v1256 = vpack.c.b16 %v724, %v722
  %v1257 = vpack.c.b16 %v727, %v725
  %v1258 = vpack.c.b16 %v728, %v726
  %v1259 = vpack.c.b16 %v731, %v729
  %v1260 = vpack.c.b16 %v732, %v730
  %v1261 = vpack.c.b16 %v735, %v733
  %v1262 = vpack.c.b16 %v736, %v734
  %v1263 = vpack.c.b16 %v739, %v737
  %v1264 = vpack.c.b16 %v740, %v738
  %v1265 = vpack.c.b16 %v743, %v741
  %v1266 = vpack.c.b16 %v744, %v742
  %v1267 = vpack.c.b16 %v747, %v745
  %v1268 = vpack.c.b16 %v748, %v746
  %v1269 = vpack.c.b16 %v751, %v749
  %v1270 = vpack.c.b16 %v752, %v750
  %v1271 = vpack.c.b16 %v755, %v753
  %v1272 = vpack.c.b16 %v756, %v754
  %v1273 = vpack.c.b16 %v759, %v757
  %v1274 = vpack.c.b16 %v760, %v758
  %v1275 = vpack.c.b16 %v763, %v761
  %v1276 = vpack.c.b16 %v764, %v762
  %v1277 = vpack.c.b16 %v767, %v765
  %v1278 = vpack.c.b16 %v768, %v766
  %v1279 = vpack.c.b16 %v771, %v769
  %v1280 = vpack.c.b16 %v772, %v770
  %v1281 = vpack.c.b16 %v775, %v773
  %v1282 = vpack.c.b16 %v776, %v774
  %v1283 = vpack.c.b16 %v779, %v777
  %v1284 = vpack.c.b16 %v780, %v778
  %v1285 = vpack.c.b16 %v783, %v781
  %v1286 = vpack.c.b16 %v784, %v782
  %v1287 = vpack.c.b16 %v787, %v785
  %v1288 = vpack.c.b16 %v788, %v786
  %v1289 = vpack.c.b16 %v791, %v789
  %v1290 = vpack.c.b16 %v792, %v790
  %v1291 = vpack.c.b16 %v795, %v793
  %v1292 = vpack.c.b16 %v796, %v794
  %v1293 = vpack.c.b16 %v799, %v797
  %v1294 = vpack.c.b16 %v800, %v798
  %v1295 = vpack.c.b16 %v803, %v801
  %v1296 = vpack.c.b16 %v804, %v802
  %v1297 = vpack.c.b16 %v807, %v805
  %v1298 = vpack.c.b16 %v808, %v806
  %v1299 = vpack.c.b16 %v811, %v809
  %v1300 = vpack.c.b16 %v812, %v810
  %v1301 = vpack.c.b16 %v815, %v813
  %v1302 = vpack.c.b16 %v816, %v814
  %v1303 = vpack.c.b16 %v819, %v817
  %v1304 = vpack.c.b16 %v820, %v818
  %v1305 = vpack.c.b16 %v823, %v821
  %v1306 = vpack.c.b16 %v824, %v822
  %v1307 = vpack.c.b16 %v827, %v825
  %v1308 = vpack.c.b16 %v828, %v826
  %v1309 = vpack.c.b16 %v831, %v829
  %v1310 = vpack.c.b16 %v832, %v830
  %v1311 = vpack.c.b16 %v835, %v833
  %v1312 = vpack.c.b16 %v836, %v834
  %v1313 = vpack.c.b16 %v839, %v837
  %v1314 = vpack.c.b16 %v840, %v838
  %v1315 = vpack.c.b16 %v843, %v841
  %v1316 = vpack.c.b16 %v844, %v842
  %v1317 = vpack.c.b16 %v847, %v845
  %v1318 = vpack.c.b16 %v848, %v846
  %v1319 = vpack.c.b16 %v851, %v849
  %v1320 = vpack.c.b16 %v852, %v850
  %v1321 = vpack.c.b16 %v855, %v853
  %v1322 = vpack.c.b16 %v856, %v854
  %v1323 = vpack.c.b16 %v859, %v857
  %v1324 = vpack.c.b16 %v860, %v858
  %v1325 = vpack.c.b16 %v863, %v861
  %v1326 = vpack.c.b16 %v864, %v862
  %v1327 = vpack.c.b16 %v867, %v865
  %v1328 = vpack.c.b16 %v868, %v866
  %v1329 = vpack.c.b16 %v871, %v869
  %v1330 = vpack.c.b16 %v872, %v870
  %v1331 = vpack.c.b16 %v875, %v873
  %v1332 = vpack.c.b16 %v876, %v874
  %v1333 = vpack.c.b16 %v879, %v877
  %v1334 = vpack.c.b16 %v880, %v878
  %v1335 = vpack.c.b16 %v883, %v881
  %v1336 = vpack.c.b16 %v884, %v882
  %v1337 = vpack.c.b16 %v887, %v885
  %v1338 = vpack.c.b16 %v888, %v886
  %v1339 = vpack.c.b16 %v891, %v889
  %v1340 = vpack.c.b16 %v892, %v890
  %v1341 = vpack.c.b16 %v895, %v893
  %v1342 = vpack.c.b16 %v896, %v894
  %v1343 = vpack.c.b16 %v899, %v897
  %v1344 = vpack.c.b16 %v900, %v898
  %v1345 = vpack.c.b16 %v903, %v901
  %v1346 = vpack.c.b16 %v904, %v902
  %v1347 = vpack.c.b16 %v907, %v905
  %v1348 = vpack.c.b16 %v908, %v906
  %v1349 = vpack.c.b16 %v911, %v909
  %v1350 = vpack.c.b16 %v912, %v910
  %v1351 = vpack.c.b16 %v915, %v913
  %v1352 = vpack.c.b16 %v916, %v914
  %v1353 = vpack.c.b16 %v919, %v917
  %v1354 = vpack.c.b16 %v920, %v918
  %v1355 = vpack.c.b16 %v923, %v921
  %v1356 = vpack.c.b16 %v924, %v922
  %v1357 = vpack.c.b16 %v927, %v925
  %v1358 = vpack.c.b16 %v928, %v926
  %v1359 = vpack.c.b16 %v931, %v929
  %v1360 = vpack.c.b16 %v932, %v930
  %v1361 = vpack.c.b16 %v935, %v933
  %v1362 = vpack.c.b16 %v936, %v934
  %v1363 = vpack.c.b16 %v939, %v937
  %v1364 = vpack.c.b16 %v940, %v938
  %v1365 = vpack.c.b16 %v943, %v941
  %v1366 = vpack.c.b16 %v944, %v942
  %v1367 = vpack.c.b16 %v947, %v945
  %v1368 = vpack.c.b16 %v948, %v946
  %v1369 = vpack.c.b16 %v951, %v949
  %v1370 = vpack.c.b16 %v952, %v950
  %v1371 = vpack.c.b16 %v955, %v953
  %v1372 = vpack.c.b16 %v956, %v954
  %v1373 = vpack.c.b16 %v959, %v957
  %v1374 = vpack.c.b16 %v960, %v958
  %v1375 = vpack.c.b16 %v963, %v961
  %v1376 = vpack.c.b16 %v964, %v962
  %v1377 = vpack.c.b16 %v967, %v965
  %v1378 = vpack.c.b16 %v968, %v966
  %v1379 = vpack.c.b16 %v971, %v969
  %v1380 = vpack.c.b16 %v972, %v970
  %v1381 = vpack.c.b16 %v975, %v973
  %v1382 = vpack.c.b16 %v976, %v974
  %v1383 = vpack.c.b16 %v979, %v977
  %v1384 = vpack.c.b16 %v980, %v978
  %v1385 = vpack.c.b16 %v983, %v981
  %v1386 = vpack.c.b16 %v984, %v982
  %v1387 = vpack.c.b16 %v987, %v985
  %v1388 = vpack.c.b16 %v988, %v986
  %v1389 = vpack.c.b16 %v991, %v989
  %v1390 = vpack.c.b16 %v992, %v990
  %v1391 = vpack.c.b16 %v995, %v993
  %v1392 = vpack.c.b16 %v996, %v994
  %v1393 = vpack.c.b16 %v999, %v997
  %v1394 = vpack.c.b16 %v1000, %v998
  %v1395 = vpack.c.b16 %v1003, %v1001
  %v1396 = vpack.c.b16 %v1004, %v1002
  %v1397 = vpack.c.b16 %v1007, %v1005
  %v1398 = vpack.c.b16 %v1008, %v1006
  %v1399 = vpack.c.b16 %v1011, %v1009
  %v1400 = vpack.c.b16 %v1012, %v1010
  %v1401 = vpack.c.b16 %v1015, %v1013
  %v1402 = vpack.c.b16 %v1016, %v1014
  %v1403 = vpack.c.b16 %v1019, %v1017
  %v1404 = vpack.c.b16 %v1020, %v1018
  %v1405 = vpack.c.b16 %v1023, %v1021
  %v1406 = vpack.c.b16 %v1024, %v1022
  %v1407 = vpack.c.b16 %v1027, %v1025
  %v1408 = vpack.c.b16 %v1028, %v1026
  %v1409 = vpack.c.b16 %v1031, %v1029
  %v1410 = vpack.c.b16 %v1032, %v1030
  %v1411 = vpack.c.b16 %v1035, %v1033
  %v1412 = vpack.c.b16 %v1036, %v1034
  %v1413 = vpack.c.b16 %v1039, %v1037
  %v1414 = vpack.c.b16 %v1040, %v1038
  %v1415 = vpack.c.b16 %v1043, %v1041
  %v1416 = vpack.c.b16 %v1044, %v1042
  %v1417 = vpack.c.b16 %v1047, %v1045
  %v1418 = vpack.c.b16 %v1048, %v1046
  %v1419 = vpack.c.b16 %v1051, %v1049
  %v1420 = vpack.c.b16 %v1052, %v1050
  %v1421 = vpack.c.b16 %v1055, %v1053
  %v1422 = vpack.c.b16 %v1056, %v1054
  %v1423 = vpack.c.b16 %v1059, %v1057
  %v1424 = vpack.c.b16 %v1060, %v1058
  %v1425 = vpack.c.b16 %v1063, %v1061
  %v1426 = vpack.c.b16 %v1064, %v1062
  %v1427 = vpack.c.b16 %v1067, %v1065
  %v1428 = vpack.c.b16 %v1068, %v1066
  %v1429 = vpack.c.b16 %v1071, %v1069
  %v1430 = vpack.c.b16 %v1072, %v1070
  %v1431 = vpack.c.b16 %v1075, %v1073
  %v1432 = vpack.c.b16 %v1076, %v1074
  %v1433 = vpack.c.b16 %v1079, %v1077
  %v1434 = vpack.c.b16 %v1080, %v1078
  %v1435 = vpack.c.b16 %v1083, %v1081
  %v1436 = vpack.c.b16 %v1084, %v1082
  %v1437 = vpack.c.b16 %v1087, %v1085
  %v1438 = vpack.c.b16 %v1088, %v1086
  %v1439 = vpack.c.b16 %v1091, %v1089
  %v1440 = vpack.c.b16 %v1092, %v1090
  %v1441 = vpack.c.b16 %v1095, %v1093
  %v1442 = vpack.c.b16 %v1096, %v1094
  %v1443 = vpack.c.b16 %v1099, %v1097
  %v1444 = vpack.c.b16 %v1100, %v1098
  %v1445 = vpack.c.b16 %v1103, %v1101
  %v1446 = vpack.c.b16 %v1104, %v1102
  %v1447 = vpack.c.b16 %v1107, %v1105
  %v1448 = vpack.c.b16 %v1108, %v1106
  %v1449 = vpack.c.b16 %v1111, %v1109
  %v1450 = vpack.c.b16 %v1112, %v1110
  %v1451 = vpack.c.b16 %v1115, %v1113
  %v1452 = vpack.c.b16 %v1116, %v1114
  %v1453 = vpack.c.b16 %v1119, %v1117
  %v1454 = vpack.c.b16 %v1120, %v1118
  %v1455 = vpack.c.b16 %v1123, %v1121
  %v1456 = vpack.c.b16 %v1124, %v1122
  %v1457 = vpack.c.b16 %v1127, %v1125
  %v1458 = vpack.c.b16 %v1128, %v1126
  %v1459 = vpack.c.b16 %v1131, %v1129
  %v1460 = vpack.c.b16 %v1132, %v1130
  %v1461 = vpack.c.b16 %v1135, %v1133
  %v1462 = vpack.c.b16 %v1136, %v1134
  %v1463 = vpack.c.b16 %v1139, %v1137
  %v1464 = vpack.c.b16 %v1140, %v1138
  %v1465 = vpack.c.b16 %v1143, %v1141
  %v1466 = vpack.c.b16 %v1144, %v1142
  %v1467 = vpack.c.b16 %v1147, %v1145
  %v1468 = vpack.c.b16 %v1148, %v1146
  %v1469 = vpack.c.b16 %v1151, %v1149
  %v1470 = vpack.c.b16 %v1152, %v1150
  %v1471 = vpack.c.b16 %v1155, %v1153
  %v1472 = vpack.c.b16 %v1156, %v1154
  %v1473 = vpack.c.b16 %v1159, %v1157
  %v1474 = vpack.c.b16 %v1160, %v1158
  %v1475 = vpack.c.b16 %v1163, %v1161
  %v1476 = vpack.c.b16 %v1164, %v1162
  %v1477 = vpack.c.b16 %v1167, %v1165
  %v1478 = vpack.c.b16 %v1168, %v1166
  %v1479 = vpack.c.b16 %v1171, %v1169
  %v1480 = vpack.c.b16 %v1172, %v1170
  %v1481 = vpack.c.b16 %v1175, %v1173
  %v1482 = vpack.c.b16 %v1176, %v1174
  %v1483 = vpack.c.b16 %v1179, %v1177
  %v1484 = vpack.c.b16 %v1180, %v1178
  %v1485 = vpack.c.b16 %v1183, %v1181
  %v1486 = vpack.c.b16 %v1184, %v1182
  %v1487 = vpack.c.b16 %v1187, %v1185
  %v1488 = vpack.c.b16 %v1188, %v1186
  %v1489 = vpack.c.b16 %v1191, %v1189
  %v1490 = vpack.c.b16 %v1192, %v1190
  %v1491 = vpack.c.b16 %v1195, %v1193
  %v1492 = vpack.c.b16 %v1196, %v1194
  %v1493 = vpack.c.b16 %v1199, %v1197
  %v1494 = vpack.c.b16 %v1200, %v1198
  %v1495 = vpack.c.b16 %v1203, %v1201
  %v1496 = vpack.c.b16 %v1204, %v1202
  %v1497 = vpack.c.b16 %v1207, %v1205
  %v1498 = vpack.c.b16 %v1208, %v1206
  %v1499 = vpack.c.b16 %v1211, %v1209
  %v1500 = vpack.c.b16 %v1212, %v1210
  %v1669 = vunpack.c.l.b16 %v321
  %v1670 = vunpack.c.l.b16 %v322
  %v1671 = vunpack.c.l.b16 %v323
  %v1672 = vunpack.c.l.b16 %v324
  %v1673 = vunpack.c.l.b16 %v325
  %v1674 = vunpack.c.l.b16 %v326
  %v1675 = vunpack.c.l.b16 %v327
  %v1676 = vunpack.c.l.b16 %v328
  %v1677 = vunpack.c.l.b16 %v329
  %v1678 = vunpack.c.l.b16 %v330
  %v1679 = vunpack.c.l.b16 %v331
  %v1680 = vunpack.c.l.b16 %v332
  %v1681 = vunpack.c.l.b16 %v333
  %v1682 = vunpack.c.l.b16 %v334
  %v1683 = vunpack.c.l.b16 %v335
  %v1684 = vunpack.c.l.b16 %v336
  %v1685 = vunpack.c.l.b16 %v337
  %v1686 = vunpack.c.l.b16 %v338
  %v1687 = vunpack.c.l.b16 %v339
  %v1688 = vunpack.c.l.b16 %v340
  %v1689 = vunpack.c.l.b16 %v341
  %v1690 = vunpack.c.l.b16 %v342
  %v1691 = vunpack.c.l.b16 %v343
  %v1692 = vunpack.c.l.b16 %v344
  %v1693 = vpack.c.b16 %v1670, %v1669
  %v1694 = vpack.c.b16 %v1672, %v1671
  %v1695 = vpack.c.b16 %v1674, %v1673
  %v1696 = vpack.c.b16 %v1676, %v1675
  %v1697 = vpack.c.b16 %v1678, %v1677
  %v1698 = vpack.c.b16 %v1680, %v1679
  %v1699 = vpack.c.b16 %v1682, %v1681
  %v1700 = vpack.c.b16 %v1684, %v1683
  %v1701 = vpack.c.b16 %v1686, %v1685
  %v1702 = vpack.c.b16 %v1688, %v1687
  %v1703 = vpack.c.b16 %v1690, %v1689
  %v1704 = vpack.c.b16 %v1692, %v1691
  %vm1717 = vcmask 523264
  %v1719 = vsel %vm1717, %v1214, 0
  %v1722 = vsel %vm1717, %v1216, 0
  %v1725 = vsel %vm1717, %v1218, 0
  %v1728 = vsel %vm1717, %v1220, 0
  %v1731 = vsel %vm1717, %v1222, 0
  %v1734 = vsel %vm1717, %v1224, 0
  %v1737 = vsel %vm1717, %v1226, 0
  %v1740 = vsel %vm1717, %v1228, 0
  %v1743 = vsel %vm1717, %v1230, 0
  %v1746 = vsel %vm1717, %v1232, 0
  %v1749 = vsel %vm1717, %v1234, 0
  %v1752 = vsel %vm1717, %v1236, 0
  %v1755 = vsel %vm1717, %v1238, 0
  %v1758 = vsel %vm1717, %v1240, 0
  %v1761 = vsel %vm1717, %v1242, 0
  %v1764 = vsel %vm1717, %v1244, 0
  %v1767 = vsel %vm1717, %v1246, 0
  %v1770 = vsel %vm1717, %v1248, 0
  %v1773 = vsel %vm1717, %v1250, 0
  %v1776 = vsel %vm1717, %v1252, 0
  %v1779 = vsel %vm1717, %v1254, 0
  %v1782 = vsel %vm1717, %v1256, 0
  %v1785 = vsel %vm1717, %v1258, 0
  %v1788 = vsel %vm1717, %v1260, 0
  %v1791 = vsel %vm1717, %v1262, 0
  %v1794 = vsel %vm1717, %v1264, 0
  %v1797 = vsel %vm1717, %v1266, 0
  %v1800 = vsel %vm1717, %v1268, 0
  %v1803 = vsel %vm1717, %v1270, 0
  %v1806 = vsel %vm1717, %v1272, 0
  %v1809 = vsel %vm1717, %v1274, 0
  %v1812 = vsel %vm1717, %v1276, 0
  %v1815 = vsel %vm1717, %v1278, 0
  %v1818 = vsel %vm1717, %v1280, 0
  %v1821 = vsel %vm1717, %v1282, 0
  %v1824 = vsel %vm1717, %v1284, 0
  %v1827 = vsel %vm1717, %v1286, 0
  %v1830 = vsel %vm1717, %v1288, 0
  %v1833 = vsel %vm1717, %v1290, 0
  %v1836 = vsel %vm1717, %v1292, 0
  %v1839 = vsel %vm1717, %v1294, 0
  %v1842 = vsel %vm1717, %v1296, 0
  %v1845 = vsel %vm1717, %v1298, 0
  %v1848 = vsel %vm1717, %v1300, 0
  %v1851 = vsel %vm1717, %v1302, 0
  %v1854 = vsel %vm1717, %v1304, 0
  %v1857 = vsel %vm1717, %v1306, 0
  %v1860 = vsel %vm1717, %v1308, 0
  %v1863 = vsel %vm1717, %v1310, 0
  %v1866 = vsel %vm1717, %v1312, 0
  %v1869 = vsel %vm1717, %v1314, 0
  %v1872 = vsel %vm1717, %v1316, 0
  %v1875 = vsel %vm1717, %v1318, 0
  %v1878 = vsel %vm1717, %v1320, 0
  %v1881 = vsel %vm1717, %v1322, 0
  %v1884 = vsel %vm1717, %v1324, 0
  %v1887 = vsel %vm1717, %v1326, 0
  %v1890 = vsel %vm1717, %v1328, 0
  %v1893 = vsel %vm1717, %v1330, 0
  %v1896 = vsel %vm1717, %v1332, 0
  %v1899 = vsel %vm1717, %v1334, 0
  %v1902 = vsel %vm1717, %v1336, 0
  %v1905 = vsel %vm1717, %v1338, 0
  %v1908 = vsel %vm1717, %v1340, 0
  %v1911 = vsel %vm1717, %v1342, 0
  %v1914 = vsel %vm1717, %v1344, 0
  %v1917 = vsel %vm1717, %v1346, 0
  %v1920 = vsel %vm1717, %v1348, 0
  %v1923 = vsel %vm1717, %v1350, 0
  %v1926 = vsel %vm1717, %v1352, 0
  %v1929 = vsel %vm1717, %v1354, 0
  %v1932 = vsel %vm1717, %v1356, 0
  %v1935 = vsel %vm1717, %v1358, 0
  %v1938 = vsel %vm1717, %v1360, 0
  %v1941 = vsel %vm1717, %v1362, 0
  %v1944 = vsel %vm1717, %v1364, 0
  %v1947 = vsel %vm1717, %v1366, 0
  %v1950 = vsel %vm1717, %v1368, 0
  %v1953 = vsel %vm1717, %v1370, 0
  %v1956 = vsel %vm1717, %v1372, 0
  %v1959 = vsel %vm1717, %v1374, 0
  %v1962 = vsel %vm1717, %v1376, 0
  %v1965 = vsel %vm1717, %v1378, 0
  %v1968 = vsel %vm1717, %v1380, 0
  %v1971 = vsel %vm1717, %v1382, 0
  %v1974 = vsel %vm1717, %v1384, 0
  %v1977 = vsel %vm1717, %v1386, 0
  %v1980 = vsel %vm1717, %v1388, 0
  %v1983 = vsel %vm1717, %v1390, 0
  %v1986 = vsel %vm1717, %v1392, 0
  %v1989 = vsel %vm1717, %v1394, 0
  %v1992 = vsel %vm1717, %v1396, 0
  %v1995 = vsel %vm1717, %v1398, 0
  %v1998 = vsel %vm1717, %v1400, 0
  %v2001 = vsel %vm1717, %v1402, 0
  %v2004 = vsel %vm1717, %v1404, 0
  %v2007 = vsel %vm1717, %v1406, 0
  %v2010 = vsel %vm1717, %v1408, 0
  %v2013 = vsel %vm1717, %v1410, 0
  %v2016 = vsel %vm1717, %v1412, 0
  %v2019 = vsel %vm1717, %v1414, 0
  %v2022 = vsel %vm1717, %v1416, 0
  %v2025 = vsel %vm1717, %v1418, 0
  %v2028 = vsel %vm1717, %v1420, 0
  %v2031 = vsel %vm1717, %v1422, 0
  %v2034 = vsel %vm1717, %v1424, 0
  %v2037 = vsel %vm1717, %v1426, 0
  %v2040 = vsel %vm1717, %v1428, 0
  %v2043 = vsel %vm1717, %v1430, 0
  %v2046 = vsel %vm1717, %v1432, 0
  %v2049 = vsel %vm1717, %v1434, 0
  %v2052 = vsel %vm1717, %v1436, 0
  %v2055 = vsel %vm1717, %v1438, 0
  %v2058 = vsel %vm1717, %v1440, 0
  %v2061 = vsel %vm1717, %v1442, 0
  %v2064 = vsel %vm1717, %v1444, 0
  %v2067 = vsel %vm1717, %v1446, 0
  %v2070 = vsel %vm1717, %v1448, 0
  %v2073 = vsel %vm1717, %v1450, 0
  %v2076 = vsel %vm1717, %v1452, 0
  %v2079 = vsel %vm1717, %v1454, 0
  %v2082 = vsel %vm1717, %v1456, 0
  %v2085 = vsel %vm1717, %v1458, 0
  %v2088 = vsel %vm1717, %v1460, 0
  %v2091 = vsel %vm1717, %v1462, 0
  %v2094 = vsel %vm1717, %v1464, 0
  %v2097 = vsel %vm1717, %v1466, 0
  %v2100 = vsel %vm1717, %v1468, 0
  %v2103 = vsel %vm1717, %v1470, 0
  %v2106 = vsel %vm1717, %v1472, 0
  %v2109 = vsel %vm1717, %v1474, 0
  %v2112 = vsel %vm1717, %v1476, 0
  %v2115 = vsel %vm1717, %v1478, 0
  %v2118 = vsel %vm1717, %v1480, 0
  %v2121 = vsel %vm1717, %v1482, 0
  %v2124 = vsel %vm1717, %v1484, 0
  %v2127 = vsel %vm1717, %v1486, 0
  %v2130 = vsel %vm1717, %v1488, 0
  %v2133 = vsel %vm1717, %v1490, 0
  %v2136 = vsel %vm1717, %v1492, 0
  %v2139 = vsel %vm1717, %v1494, 0
  %v2142 = vsel %vm1717, %v1496, 0
  %v2145 = vsel %vm1717, %v1498, 0
  %v2148 = vsel %vm1717, %v1500, 0
  %2150 = vmatpush.bf16.msra.mxu0 %v1700
  %2151 = vmatpush.bf16.msra.mxu0 %v1699
  %2152 = vmatpush.bf16.msra.mxu0 %v1698
  %2153 = vmatpush.bf16.msra.mxu0 %v1697
  %2154 = vmatpush.bf16.msra.mxu0 %v1696
  %2155 = vmatpush.bf16.msra.mxu0 %v1695
  %2156 = vmatpush.bf16.msra.mxu0 %v1694
  %2157 = vmatpush.bf16.msra.mxu0 %v1693
  %2158 = vmatmul.bf16.gmra.mxu0 %v1213
  %v2159 = vpop.f32.mrf.mxu0
  %v2160 = vadd.f32 %v347, %v2159
  %v2161 = vpop.f32.mrf.mxu0
  %v2162 = vadd.f32 %v347, %v2161
  %2163 = vmatmul.bf16.gmra.mxu0 %v1215
  %v2164 = vpop.f32.mrf.mxu0
  %v2165 = vadd.f32 %v347, %v2164
  %v2166 = vpop.f32.mrf.mxu0
  %v2167 = vadd.f32 %v347, %v2166
  %2168 = vmatmul.bf16.gmra.mxu0 %v1217
  %v2169 = vpop.f32.mrf.mxu0
  %v2170 = vadd.f32 %v347, %v2169
  %v2171 = vpop.f32.mrf.mxu0
  %v2172 = vadd.f32 %v347, %v2171
  %2173 = vmatmul.bf16.gmra.mxu0 %v1219
  %v2174 = vpop.f32.mrf.mxu0
  %v2175 = vadd.f32 %v347, %v2174
  %v2176 = vpop.f32.mrf.mxu0
  %v2177 = vadd.f32 %v347, %v2176
  %2178 = vmatmul.bf16.gmra.mxu0 %v1221
  %v2179 = vpop.f32.mrf.mxu0
  %v2180 = vadd.f32 %v347, %v2179
  %v2181 = vpop.f32.mrf.mxu0
  %v2182 = vadd.f32 %v347, %v2181
  %2183 = vmatmul.bf16.gmra.mxu0 %v1223
  %v2184 = vpop.f32.mrf.mxu0
  %v2185 = vadd.f32 %v347, %v2184
  %v2186 = vpop.f32.mrf.mxu0
  %v2187 = vadd.f32 %v347, %v2186
  %2188 = vmatmul.bf16.gmra.mxu0 %v1225
  %v2189 = vpop.f32.mrf.mxu0
  %v2190 = vadd.f32 %v347, %v2189
  %v2191 = vpop.f32.mrf.mxu0
  %v2192 = vadd.f32 %v347, %v2191
  %2193 = vmatmul.bf16.gmra.mxu0 %v1227
  %v2194 = vpop.f32.mrf.mxu0
  %v2195 = vadd.f32 %v347, %v2194
  %v2196 = vpop.f32.mrf.mxu0
  %v2197 = vadd.f32 %v347, %v2196
  %2198 = vmatmul.bf16.gmra.mxu0 %v1229
  %v2199 = vpop.f32.mrf.mxu0
  %v2200 = vadd.f32 %v347, %v2199
  %v2201 = vpop.f32.mrf.mxu0
  %v2202 = vadd.f32 %v347, %v2201
  %2203 = vmatmul.bf16.gmra.mxu0 %v1231
  %v2204 = vpop.f32.mrf.mxu0
  %v2205 = vadd.f32 %v347, %v2204
  %v2206 = vpop.f32.mrf.mxu0
  %v2207 = vadd.f32 %v347, %v2206
  %2208 = vmatmul.bf16.gmra.mxu0 %v1233
  %v2209 = vpop.f32.mrf.mxu0
  %v2210 = vadd.f32 %v347, %v2209
  %v2211 = vpop.f32.mrf.mxu0
  %v2212 = vadd.f32 %v347, %v2211
  %2213 = vmatmul.bf16.gmra.mxu0 %v1235
  %v2214 = vpop.f32.mrf.mxu0
  %v2215 = vadd.f32 %v347, %v2214
  %v2216 = vpop.f32.mrf.mxu0
  %v2217 = vadd.f32 %v347, %v2216
  %2218 = vmatmul.bf16.gmra.mxu0 %v1237
  %v2219 = vpop.f32.mrf.mxu0
  %v2220 = vadd.f32 %v347, %v2219
  %v2221 = vpop.f32.mrf.mxu0
  %v2222 = vadd.f32 %v347, %v2221
  %2223 = vmatmul.bf16.gmra.mxu0 %v1239
  %v2224 = vpop.f32.mrf.mxu0
  %v2225 = vadd.f32 %v347, %v2224
  %v2226 = vpop.f32.mrf.mxu0
  %v2227 = vadd.f32 %v347, %v2226
  %2228 = vmatmul.bf16.gmra.mxu0 %v1241
  %v2229 = vpop.f32.mrf.mxu0
  %v2230 = vadd.f32 %v347, %v2229
  %v2231 = vpop.f32.mrf.mxu0
  %v2232 = vadd.f32 %v347, %v2231
  %2233 = vmatmul.bf16.gmra.mxu0 %v1243
  %v2234 = vpop.f32.mrf.mxu0
  %v2235 = vadd.f32 %v347, %v2234
  %v2236 = vpop.f32.mrf.mxu0
  %v2237 = vadd.f32 %v347, %v2236
  %2238 = vmatmul.bf16.gmra.mxu0 %v1245
  %v2239 = vpop.f32.mrf.mxu0
  %v2240 = vadd.f32 %v347, %v2239
  %v2241 = vpop.f32.mrf.mxu0
  %v2242 = vadd.f32 %v347, %v2241
  %2243 = vmatmul.bf16.gmra.mxu0 %v1247
  %v2244 = vpop.f32.mrf.mxu0
  %v2245 = vadd.f32 %v347, %v2244
  %v2246 = vpop.f32.mrf.mxu0
  %v2247 = vadd.f32 %v347, %v2246
  %2248 = vmatmul.bf16.gmra.mxu0 %v1249
  %v2249 = vpop.f32.mrf.mxu0
  %v2250 = vadd.f32 %v347, %v2249
  %v2251 = vpop.f32.mrf.mxu0
  %v2252 = vadd.f32 %v347, %v2251
  %2253 = vmatmul.bf16.gmra.mxu0 %v1251
  %v2254 = vpop.f32.mrf.mxu0
  %v2255 = vadd.f32 %v347, %v2254
  %v2256 = vpop.f32.mrf.mxu0
  %v2257 = vadd.f32 %v347, %v2256
  %2258 = vmatmul.bf16.gmra.mxu0 %v1253
  %v2259 = vpop.f32.mrf.mxu0
  %v2260 = vadd.f32 %v347, %v2259
  %v2261 = vpop.f32.mrf.mxu0
  %v2262 = vadd.f32 %v347, %v2261
  %2263 = vmatmul.bf16.gmra.mxu0 %v1255
  %v2264 = vpop.f32.mrf.mxu0
  %v2265 = vadd.f32 %v347, %v2264
  %v2266 = vpop.f32.mrf.mxu0
  %v2267 = vadd.f32 %v347, %v2266
  %2268 = vmatmul.bf16.gmra.mxu0 %v1257
  %v2269 = vpop.f32.mrf.mxu0
  %v2270 = vadd.f32 %v347, %v2269
  %v2271 = vpop.f32.mrf.mxu0
  %v2272 = vadd.f32 %v347, %v2271
  %2273 = vmatmul.bf16.gmra.mxu0 %v1259
  %v2274 = vpop.f32.mrf.mxu0
  %v2275 = vadd.f32 %v347, %v2274
  %v2276 = vpop.f32.mrf.mxu0
  %v2277 = vadd.f32 %v347, %v2276
  %2278 = vmatmul.bf16.gmra.mxu0 %v1261
  %v2279 = vpop.f32.mrf.mxu0
  %v2280 = vadd.f32 %v347, %v2279
  %v2281 = vpop.f32.mrf.mxu0
  %v2282 = vadd.f32 %v347, %v2281
  %2283 = vmatmul.bf16.gmra.mxu0 %v1263
  %v2284 = vpop.f32.mrf.mxu0
  %v2285 = vadd.f32 %v347, %v2284
  %v2286 = vpop.f32.mrf.mxu0
  %v2287 = vadd.f32 %v347, %v2286
  %2288 = vmatmul.bf16.gmra.mxu0 %v1265
  %v2289 = vpop.f32.mrf.mxu0
  %v2290 = vadd.f32 %v347, %v2289
  %v2291 = vpop.f32.mrf.mxu0
  %v2292 = vadd.f32 %v347, %v2291
  %2293 = vmatmul.bf16.gmra.mxu0 %v1267
  %v2294 = vpop.f32.mrf.mxu0
  %v2295 = vadd.f32 %v347, %v2294
  %v2296 = vpop.f32.mrf.mxu0
  %v2297 = vadd.f32 %v347, %v2296
  %2298 = vmatmul.bf16.gmra.mxu0 %v1269
  %v2299 = vpop.f32.mrf.mxu0
  %v2300 = vadd.f32 %v347, %v2299
  %v2301 = vpop.f32.mrf.mxu0
  %v2302 = vadd.f32 %v347, %v2301
  %2303 = vmatmul.bf16.gmra.mxu0 %v1271
  %v2304 = vpop.f32.mrf.mxu0
  %v2305 = vadd.f32 %v347, %v2304
  %v2306 = vpop.f32.mrf.mxu0
  %v2307 = vadd.f32 %v347, %v2306
  %2308 = vmatmul.bf16.gmra.mxu0 %v1273
  %v2309 = vpop.f32.mrf.mxu0
  %v2310 = vadd.f32 %v347, %v2309
  %v2311 = vpop.f32.mrf.mxu0
  %v2312 = vadd.f32 %v347, %v2311
  %2313 = vmatmul.bf16.gmra.mxu0 %v1275
  %v2314 = vpop.f32.mrf.mxu0
  %v2315 = vadd.f32 %v347, %v2314
  %v2316 = vpop.f32.mrf.mxu0
  %v2317 = vadd.f32 %v347, %v2316
  %2318 = vmatmul.bf16.gmra.mxu0 %v1277
  %v2319 = vpop.f32.mrf.mxu0
  %v2320 = vadd.f32 %v347, %v2319
  %v2321 = vpop.f32.mrf.mxu0
  %v2322 = vadd.f32 %v347, %v2321
  %2323 = vmatmul.bf16.gmra.mxu0 %v1279
  %v2324 = vpop.f32.mrf.mxu0
  %v2325 = vadd.f32 %v347, %v2324
  %v2326 = vpop.f32.mrf.mxu0
  %v2327 = vadd.f32 %v347, %v2326
  %2328 = vmatmul.bf16.gmra.mxu0 %v1281
  %v2329 = vpop.f32.mrf.mxu0
  %v2330 = vadd.f32 %v347, %v2329
  %v2331 = vpop.f32.mrf.mxu0
  %v2332 = vadd.f32 %v347, %v2331
  %2333 = vmatmul.bf16.gmra.mxu0 %v1283
  %v2334 = vpop.f32.mrf.mxu0
  %v2335 = vadd.f32 %v347, %v2334
  %v2336 = vpop.f32.mrf.mxu0
  %v2337 = vadd.f32 %v347, %v2336
  %2338 = vmatmul.bf16.gmra.mxu0 %v1285
  %v2339 = vpop.f32.mrf.mxu0
  %v2340 = vadd.f32 %v347, %v2339
  %v2341 = vpop.f32.mrf.mxu0
  %v2342 = vadd.f32 %v347, %v2341
  %2343 = vmatmul.bf16.gmra.mxu0 %v1287
  %v2344 = vpop.f32.mrf.mxu0
  %v2345 = vadd.f32 %v347, %v2344
  %v2346 = vpop.f32.mrf.mxu0
  %v2347 = vadd.f32 %v347, %v2346
  %2348 = vmatmul.bf16.gmra.mxu0 %v1289
  %v2349 = vpop.f32.mrf.mxu0
  %v2350 = vadd.f32 %v347, %v2349
  %v2351 = vpop.f32.mrf.mxu0
  %v2352 = vadd.f32 %v347, %v2351
  %2353 = vmatmul.bf16.gmra.mxu0 %v1291
  %v2354 = vpop.f32.mrf.mxu0
  %v2355 = vadd.f32 %v347, %v2354
  %v2356 = vpop.f32.mrf.mxu0
  %v2357 = vadd.f32 %v347, %v2356
  %2358 = vmatmul.bf16.gmra.mxu0 %v1293
  %v2359 = vpop.f32.mrf.mxu0
  %v2360 = vadd.f32 %v347, %v2359
  %v2361 = vpop.f32.mrf.mxu0
  %v2362 = vadd.f32 %v347, %v2361
  %2363 = vmatmul.bf16.gmra.mxu0 %v1295
  %v2364 = vpop.f32.mrf.mxu0
  %v2365 = vadd.f32 %v347, %v2364
  %v2366 = vpop.f32.mrf.mxu0
  %v2367 = vadd.f32 %v347, %v2366
  %2368 = vmatmul.bf16.gmra.mxu0 %v1297
  %v2369 = vpop.f32.mrf.mxu0
  %v2370 = vadd.f32 %v347, %v2369
  %v2371 = vpop.f32.mrf.mxu0
  %v2372 = vadd.f32 %v347, %v2371
  %2373 = vmatmul.bf16.gmra.mxu0 %v1299
  %v2374 = vpop.f32.mrf.mxu0
  %v2375 = vadd.f32 %v347, %v2374
  %v2376 = vpop.f32.mrf.mxu0
  %v2377 = vadd.f32 %v347, %v2376
  %2378 = vmatmul.bf16.gmra.mxu0 %v1301
  %v2379 = vpop.f32.mrf.mxu0
  %v2380 = vadd.f32 %v347, %v2379
  %v2381 = vpop.f32.mrf.mxu0
  %v2382 = vadd.f32 %v347, %v2381
  %2383 = vmatmul.bf16.gmra.mxu0 %v1303
  %v2384 = vpop.f32.mrf.mxu0
  %v2385 = vadd.f32 %v347, %v2384
  %v2386 = vpop.f32.mrf.mxu0
  %v2387 = vadd.f32 %v347, %v2386
  %2388 = vmatmul.bf16.gmra.mxu0 %v1305
  %v2389 = vpop.f32.mrf.mxu0
  %v2390 = vadd.f32 %v347, %v2389
  %v2391 = vpop.f32.mrf.mxu0
  %v2392 = vadd.f32 %v347, %v2391
  %2393 = vmatmul.bf16.gmra.mxu0 %v1307
  %v2394 = vpop.f32.mrf.mxu0
  %v2395 = vadd.f32 %v347, %v2394
  %v2396 = vpop.f32.mrf.mxu0
  %v2397 = vadd.f32 %v347, %v2396
  %2398 = vmatmul.bf16.gmra.mxu0 %v1309
  %v2399 = vpop.f32.mrf.mxu0
  %v2400 = vadd.f32 %v347, %v2399
  %v2401 = vpop.f32.mrf.mxu0
  %v2402 = vadd.f32 %v347, %v2401
  %2403 = vmatmul.bf16.gmra.mxu0 %v1311
  %v2404 = vpop.f32.mrf.mxu0
  %v2405 = vadd.f32 %v347, %v2404
  %v2406 = vpop.f32.mrf.mxu0
  %v2407 = vadd.f32 %v347, %v2406
  %2408 = vmatmul.bf16.gmra.mxu0 %v1313
  %v2409 = vpop.f32.mrf.mxu0
  %v2410 = vadd.f32 %v347, %v2409
  %v2411 = vpop.f32.mrf.mxu0
  %v2412 = vadd.f32 %v347, %v2411
  %2413 = vmatmul.bf16.gmra.mxu0 %v1315
  %v2414 = vpop.f32.mrf.mxu0
  %v2415 = vadd.f32 %v347, %v2414
  %v2416 = vpop.f32.mrf.mxu0
  %v2417 = vadd.f32 %v347, %v2416
  %2418 = vmatmul.bf16.gmra.mxu0 %v1317
  %v2419 = vpop.f32.mrf.mxu0
  %v2420 = vadd.f32 %v347, %v2419
  %v2421 = vpop.f32.mrf.mxu0
  %v2422 = vadd.f32 %v347, %v2421
  %2423 = vmatmul.bf16.gmra.mxu0 %v1319
  %v2424 = vpop.f32.mrf.mxu0
  %v2425 = vadd.f32 %v347, %v2424
  %v2426 = vpop.f32.mrf.mxu0
  %v2427 = vadd.f32 %v347, %v2426
  %2428 = vmatmul.bf16.gmra.mxu0 %v1321
  %v2429 = vpop.f32.mrf.mxu0
  %v2430 = vadd.f32 %v347, %v2429
  %v2431 = vpop.f32.mrf.mxu0
  %v2432 = vadd.f32 %v347, %v2431
  %2433 = vmatmul.bf16.gmra.mxu0 %v1323
  %v2434 = vpop.f32.mrf.mxu0
  %v2435 = vadd.f32 %v347, %v2434
  %v2436 = vpop.f32.mrf.mxu0
  %v2437 = vadd.f32 %v347, %v2436
  %2438 = vmatmul.bf16.gmra.mxu0 %v1325
  %v2439 = vpop.f32.mrf.mxu0
  %v2440 = vadd.f32 %v347, %v2439
  %v2441 = vpop.f32.mrf.mxu0
  %v2442 = vadd.f32 %v347, %v2441
  %2443 = vmatmul.bf16.gmra.mxu0 %v1327
  %v2444 = vpop.f32.mrf.mxu0
  %v2445 = vadd.f32 %v347, %v2444
  %v2446 = vpop.f32.mrf.mxu0
  %v2447 = vadd.f32 %v347, %v2446
  %2448 = vmatmul.bf16.gmra.mxu0 %v1329
  %v2449 = vpop.f32.mrf.mxu0
  %v2450 = vadd.f32 %v347, %v2449
  %v2451 = vpop.f32.mrf.mxu0
  %v2452 = vadd.f32 %v347, %v2451
  %2453 = vmatmul.bf16.gmra.mxu0 %v1331
  %v2454 = vpop.f32.mrf.mxu0
  %v2455 = vadd.f32 %v347, %v2454
  %v2456 = vpop.f32.mrf.mxu0
  %v2457 = vadd.f32 %v347, %v2456
  %2458 = vmatmul.bf16.gmra.mxu0 %v1333
  %v2459 = vpop.f32.mrf.mxu0
  %v2460 = vadd.f32 %v347, %v2459
  %v2461 = vpop.f32.mrf.mxu0
  %v2462 = vadd.f32 %v347, %v2461
  %2463 = vmatmul.bf16.gmra.mxu0 %v1335
  %v2464 = vpop.f32.mrf.mxu0
  %v2465 = vadd.f32 %v347, %v2464
  %v2466 = vpop.f32.mrf.mxu0
  %v2467 = vadd.f32 %v347, %v2466
  %2468 = vmatmul.bf16.gmra.mxu0 %v1337
  %v2469 = vpop.f32.mrf.mxu0
  %v2470 = vadd.f32 %v347, %v2469
  %v2471 = vpop.f32.mrf.mxu0
  %v2472 = vadd.f32 %v347, %v2471
  %2473 = vmatmul.bf16.gmra.mxu0 %v1339
  %v2474 = vpop.f32.mrf.mxu0
  %v2475 = vadd.f32 %v347, %v2474
  %v2476 = vpop.f32.mrf.mxu0
  %v2477 = vadd.f32 %v347, %v2476
  %2478 = vmatmul.bf16.gmra.mxu0 %v1341
  %v2479 = vpop.f32.mrf.mxu0
  %v2480 = vadd.f32 %v347, %v2479
  %v2481 = vpop.f32.mrf.mxu0
  %v2482 = vadd.f32 %v347, %v2481
  %2483 = vmatmul.bf16.gmra.mxu0 %v1343
  %v2484 = vpop.f32.mrf.mxu0
  %v2485 = vadd.f32 %v347, %v2484
  %v2486 = vpop.f32.mrf.mxu0
  %v2487 = vadd.f32 %v347, %v2486
  %2488 = vmatmul.bf16.gmra.mxu0 %v1345
  %v2489 = vpop.f32.mrf.mxu0
  %v2490 = vadd.f32 %v347, %v2489
  %v2491 = vpop.f32.mrf.mxu0
  %v2492 = vadd.f32 %v347, %v2491
  %2493 = vmatmul.bf16.gmra.mxu0 %v1347
  %v2494 = vpop.f32.mrf.mxu0
  %v2495 = vadd.f32 %v347, %v2494
  %v2496 = vpop.f32.mrf.mxu0
  %v2497 = vadd.f32 %v347, %v2496
  %2498 = vmatmul.bf16.gmra.mxu0 %v1349
  %v2499 = vpop.f32.mrf.mxu0
  %v2500 = vadd.f32 %v347, %v2499
  %v2501 = vpop.f32.mrf.mxu0
  %v2502 = vadd.f32 %v347, %v2501
  %2503 = vmatmul.bf16.gmra.mxu0 %v1351
  %v2504 = vpop.f32.mrf.mxu0
  %v2505 = vadd.f32 %v347, %v2504
  %v2506 = vpop.f32.mrf.mxu0
  %v2507 = vadd.f32 %v347, %v2506
  %2508 = vmatmul.bf16.gmra.mxu0 %v1353
  %v2509 = vpop.f32.mrf.mxu0
  %v2510 = vadd.f32 %v347, %v2509
  %v2511 = vpop.f32.mrf.mxu0
  %v2512 = vadd.f32 %v347, %v2511
  %2513 = vmatmul.bf16.gmra.mxu0 %v1355
  %v2514 = vpop.f32.mrf.mxu0
  %v2515 = vadd.f32 %v347, %v2514
  %v2516 = vpop.f32.mrf.mxu0
  %v2517 = vadd.f32 %v347, %v2516
  %2518 = vmatmul.bf16.gmra.mxu0 %v1357
  %v2519 = vpop.f32.mrf.mxu0
  %v2520 = vadd.f32 %v347, %v2519
  %v2521 = vpop.f32.mrf.mxu0
  %v2522 = vadd.f32 %v347, %v2521
  %2523 = vmatmul.bf16.gmra.mxu0 %v1359
  %v2524 = vpop.f32.mrf.mxu0
  %v2525 = vadd.f32 %v347, %v2524
  %v2526 = vpop.f32.mrf.mxu0
  %v2527 = vadd.f32 %v347, %v2526
  %2528 = vmatmul.bf16.gmra.mxu0 %v1361
  %v2529 = vpop.f32.mrf.mxu0
  %v2530 = vadd.f32 %v347, %v2529
  %v2531 = vpop.f32.mrf.mxu0
  %v2532 = vadd.f32 %v347, %v2531
  %2533 = vmatmul.bf16.gmra.mxu0 %v1363
  %v2534 = vpop.f32.mrf.mxu0
  %v2535 = vadd.f32 %v347, %v2534
  %v2536 = vpop.f32.mrf.mxu0
  %v2537 = vadd.f32 %v347, %v2536
  %2538 = vmatmul.bf16.gmra.mxu0 %v1365
  %v2539 = vpop.f32.mrf.mxu0
  %v2540 = vadd.f32 %v347, %v2539
  %v2541 = vpop.f32.mrf.mxu0
  %v2542 = vadd.f32 %v347, %v2541
  %2543 = vmatmul.bf16.gmra.mxu0 %v1367
  %v2544 = vpop.f32.mrf.mxu0
  %v2545 = vadd.f32 %v347, %v2544
  %v2546 = vpop.f32.mrf.mxu0
  %v2547 = vadd.f32 %v347, %v2546
  %2548 = vmatmul.bf16.gmra.mxu0 %v1369
  %v2549 = vpop.f32.mrf.mxu0
  %v2550 = vadd.f32 %v347, %v2549
  %v2551 = vpop.f32.mrf.mxu0
  %v2552 = vadd.f32 %v347, %v2551
  %2553 = vmatmul.bf16.gmra.mxu0 %v1371
  %v2554 = vpop.f32.mrf.mxu0
  %v2555 = vadd.f32 %v347, %v2554
  %v2556 = vpop.f32.mrf.mxu0
  %v2557 = vadd.f32 %v347, %v2556
  %2558 = vmatmul.bf16.gmra.mxu0 %v1373
  %v2559 = vpop.f32.mrf.mxu0
  %v2560 = vadd.f32 %v347, %v2559
  %v2561 = vpop.f32.mrf.mxu0
  %v2562 = vadd.f32 %v347, %v2561
  %2563 = vmatmul.bf16.gmra.mxu0 %v1375
  %v2564 = vpop.f32.mrf.mxu0
  %v2565 = vadd.f32 %v347, %v2564
  %v2566 = vpop.f32.mrf.mxu0
  %v2567 = vadd.f32 %v347, %v2566
  %2568 = vmatmul.bf16.gmra.mxu0 %v1377
  %v2569 = vpop.f32.mrf.mxu0
  %v2570 = vadd.f32 %v347, %v2569
  %v2571 = vpop.f32.mrf.mxu0
  %v2572 = vadd.f32 %v347, %v2571
  %2573 = vmatmul.bf16.gmra.mxu0 %v1379
  %v2574 = vpop.f32.mrf.mxu0
  %v2575 = vadd.f32 %v347, %v2574
  %v2576 = vpop.f32.mrf.mxu0
  %v2577 = vadd.f32 %v347, %v2576
  %2578 = vmatmul.bf16.gmra.mxu0 %v1381
  %v2579 = vpop.f32.mrf.mxu0
  %v2580 = vadd.f32 %v347, %v2579
  %v2581 = vpop.f32.mrf.mxu0
  %v2582 = vadd.f32 %v347, %v2581
  %2583 = vmatmul.bf16.gmra.mxu0 %v1383
  %v2584 = vpop.f32.mrf.mxu0
  %v2585 = vadd.f32 %v347, %v2584
  %v2586 = vpop.f32.mrf.mxu0
  %v2587 = vadd.f32 %v347, %v2586
  %2588 = vmatmul.bf16.gmra.mxu0 %v1385
  %v2589 = vpop.f32.mrf.mxu0
  %v2590 = vadd.f32 %v347, %v2589
  %v2591 = vpop.f32.mrf.mxu0
  %v2592 = vadd.f32 %v347, %v2591
  %2593 = vmatmul.bf16.gmra.mxu0 %v1387
  %v2594 = vpop.f32.mrf.mxu0
  %v2595 = vadd.f32 %v347, %v2594
  %v2596 = vpop.f32.mrf.mxu0
  %v2597 = vadd.f32 %v347, %v2596
  %2598 = vmatmul.bf16.gmra.mxu0 %v1389
  %v2599 = vpop.f32.mrf.mxu0
  %v2600 = vadd.f32 %v347, %v2599
  %v2601 = vpop.f32.mrf.mxu0
  %v2602 = vadd.f32 %v347, %v2601
  %2603 = vmatmul.bf16.gmra.mxu0 %v1391
  %v2604 = vpop.f32.mrf.mxu0
  %v2605 = vadd.f32 %v347, %v2604
  %v2606 = vpop.f32.mrf.mxu0
  %v2607 = vadd.f32 %v347, %v2606
  %2608 = vmatmul.bf16.gmra.mxu0 %v1393
  %v2609 = vpop.f32.mrf.mxu0
  %v2610 = vadd.f32 %v347, %v2609
  %v2611 = vpop.f32.mrf.mxu0
  %v2612 = vadd.f32 %v347, %v2611
  %2613 = vmatmul.bf16.gmra.mxu0 %v1395
  %v2614 = vpop.f32.mrf.mxu0
  %v2615 = vadd.f32 %v347, %v2614
  %v2616 = vpop.f32.mrf.mxu0
  %v2617 = vadd.f32 %v347, %v2616
  %2618 = vmatmul.bf16.gmra.mxu0 %v1397
  %v2619 = vpop.f32.mrf.mxu0
  %v2620 = vadd.f32 %v347, %v2619
  %v2621 = vpop.f32.mrf.mxu0
  %v2622 = vadd.f32 %v347, %v2621
  %2623 = vmatmul.bf16.gmra.mxu0 %v1399
  %v2624 = vpop.f32.mrf.mxu0
  %v2625 = vadd.f32 %v347, %v2624
  %v2626 = vpop.f32.mrf.mxu0
  %v2627 = vadd.f32 %v347, %v2626
  %2628 = vmatmul.bf16.gmra.mxu0 %v1401
  %v2629 = vpop.f32.mrf.mxu0
  %v2630 = vadd.f32 %v347, %v2629
  %v2631 = vpop.f32.mrf.mxu0
  %v2632 = vadd.f32 %v347, %v2631
  %2633 = vmatmul.bf16.gmra.mxu0 %v1403
  %v2634 = vpop.f32.mrf.mxu0
  %v2635 = vadd.f32 %v347, %v2634
  %v2636 = vpop.f32.mrf.mxu0
  %v2637 = vadd.f32 %v347, %v2636
  %2638 = vmatmul.bf16.gmra.mxu0 %v1405
  %v2639 = vpop.f32.mrf.mxu0
  %v2640 = vadd.f32 %v347, %v2639
  %v2641 = vpop.f32.mrf.mxu0
  %v2642 = vadd.f32 %v347, %v2641
  %2643 = vmatmul.bf16.gmra.mxu0 %v1407
  %v2644 = vpop.f32.mrf.mxu0
  %v2645 = vadd.f32 %v347, %v2644
  %v2646 = vpop.f32.mrf.mxu0
  %v2647 = vadd.f32 %v347, %v2646
  %2648 = vmatmul.bf16.gmra.mxu0 %v1409
  %v2649 = vpop.f32.mrf.mxu0
  %v2650 = vadd.f32 %v347, %v2649
  %v2651 = vpop.f32.mrf.mxu0
  %v2652 = vadd.f32 %v347, %v2651
  %2653 = vmatmul.bf16.gmra.mxu0 %v1411
  %v2654 = vpop.f32.mrf.mxu0
  %v2655 = vadd.f32 %v347, %v2654
  %v2656 = vpop.f32.mrf.mxu0
  %v2657 = vadd.f32 %v347, %v2656
  %2658 = vmatmul.bf16.gmra.mxu0 %v1413
  %v2659 = vpop.f32.mrf.mxu0
  %v2660 = vadd.f32 %v347, %v2659
  %v2661 = vpop.f32.mrf.mxu0
  %v2662 = vadd.f32 %v347, %v2661
  %2663 = vmatmul.bf16.gmra.mxu0 %v1415
  %v2664 = vpop.f32.mrf.mxu0
  %v2665 = vadd.f32 %v347, %v2664
  %v2666 = vpop.f32.mrf.mxu0
  %v2667 = vadd.f32 %v347, %v2666
  %2668 = vmatmul.bf16.gmra.mxu0 %v1417
  %v2669 = vpop.f32.mrf.mxu0
  %v2670 = vadd.f32 %v347, %v2669
  %v2671 = vpop.f32.mrf.mxu0
  %v2672 = vadd.f32 %v347, %v2671
  %2673 = vmatmul.bf16.gmra.mxu0 %v1419
  %v2674 = vpop.f32.mrf.mxu0
  %v2675 = vadd.f32 %v347, %v2674
  %v2676 = vpop.f32.mrf.mxu0
  %v2677 = vadd.f32 %v347, %v2676
  %2678 = vmatmul.bf16.gmra.mxu0 %v1421
  %v2679 = vpop.f32.mrf.mxu0
  %v2680 = vadd.f32 %v347, %v2679
  %v2681 = vpop.f32.mrf.mxu0
  %v2682 = vadd.f32 %v347, %v2681
  %2683 = vmatmul.bf16.gmra.mxu0 %v1423
  %v2684 = vpop.f32.mrf.mxu0
  %v2685 = vadd.f32 %v347, %v2684
  %v2686 = vpop.f32.mrf.mxu0
  %v2687 = vadd.f32 %v347, %v2686
  %2688 = vmatmul.bf16.gmra.mxu0 %v1425
  %v2689 = vpop.f32.mrf.mxu0
  %v2690 = vadd.f32 %v347, %v2689
  %v2691 = vpop.f32.mrf.mxu0
  %v2692 = vadd.f32 %v347, %v2691
  %2693 = vmatmul.bf16.gmra.mxu0 %v1427
  %v2694 = vpop.f32.mrf.mxu0
  %v2695 = vadd.f32 %v347, %v2694
  %v2696 = vpop.f32.mrf.mxu0
  %v2697 = vadd.f32 %v347, %v2696
  %2698 = vmatmul.bf16.gmra.mxu0 %v1429
  %v2699 = vpop.f32.mrf.mxu0
  %v2700 = vadd.f32 %v347, %v2699
  %v2701 = vpop.f32.mrf.mxu0
  %v2702 = vadd.f32 %v347, %v2701
  %2703 = vmatmul.bf16.gmra.mxu0 %v1431
  %v2704 = vpop.f32.mrf.mxu0
  %v2705 = vadd.f32 %v347, %v2704
  %v2706 = vpop.f32.mrf.mxu0
  %v2707 = vadd.f32 %v347, %v2706
  %2708 = vmatmul.bf16.gmra.mxu0 %v1433
  %v2709 = vpop.f32.mrf.mxu0
  %v2710 = vadd.f32 %v347, %v2709
  %v2711 = vpop.f32.mrf.mxu0
  %v2712 = vadd.f32 %v347, %v2711
  %2713 = vmatmul.bf16.gmra.mxu0 %v1435
  %v2714 = vpop.f32.mrf.mxu0
  %v2715 = vadd.f32 %v347, %v2714
  %v2716 = vpop.f32.mrf.mxu0
  %v2717 = vadd.f32 %v347, %v2716
  %2718 = vmatmul.bf16.gmra.mxu0 %v1437
  %v2719 = vpop.f32.mrf.mxu0
  %v2720 = vadd.f32 %v347, %v2719
  %v2721 = vpop.f32.mrf.mxu0
  %v2722 = vadd.f32 %v347, %v2721
  %2723 = vmatmul.bf16.gmra.mxu0 %v1439
  %v2724 = vpop.f32.mrf.mxu0
  %v2725 = vadd.f32 %v347, %v2724
  %v2726 = vpop.f32.mrf.mxu0
  %v2727 = vadd.f32 %v347, %v2726
  %2728 = vmatmul.bf16.gmra.mxu0 %v1441
  %v2729 = vpop.f32.mrf.mxu0
  %v2730 = vadd.f32 %v347, %v2729
  %v2731 = vpop.f32.mrf.mxu0
  %v2732 = vadd.f32 %v347, %v2731
  %2733 = vmatmul.bf16.gmra.mxu0 %v1443
  %v2734 = vpop.f32.mrf.mxu0
  %v2735 = vadd.f32 %v347, %v2734
  %v2736 = vpop.f32.mrf.mxu0
  %v2737 = vadd.f32 %v347, %v2736
  %2738 = vmatmul.bf16.gmra.mxu0 %v1445
  %v2739 = vpop.f32.mrf.mxu0
  %v2740 = vadd.f32 %v347, %v2739
  %v2741 = vpop.f32.mrf.mxu0
  %v2742 = vadd.f32 %v347, %v2741
  %2743 = vmatmul.bf16.gmra.mxu0 %v1447
  %v2744 = vpop.f32.mrf.mxu0
  %v2745 = vadd.f32 %v347, %v2744
  %v2746 = vpop.f32.mrf.mxu0
  %v2747 = vadd.f32 %v347, %v2746
  %2748 = vmatmul.bf16.gmra.mxu0 %v1449
  %v2749 = vpop.f32.mrf.mxu0
  %v2750 = vadd.f32 %v347, %v2749
  %v2751 = vpop.f32.mrf.mxu0
  %v2752 = vadd.f32 %v347, %v2751
  %2753 = vmatmul.bf16.gmra.mxu0 %v1451
  %v2754 = vpop.f32.mrf.mxu0
  %v2755 = vadd.f32 %v347, %v2754
  %v2756 = vpop.f32.mrf.mxu0
  %v2757 = vadd.f32 %v347, %v2756
  %2758 = vmatmul.bf16.gmra.mxu0 %v1453
  %v2759 = vpop.f32.mrf.mxu0
  %v2760 = vadd.f32 %v347, %v2759
  %v2761 = vpop.f32.mrf.mxu0
  %v2762 = vadd.f32 %v347, %v2761
  %2763 = vmatmul.bf16.gmra.mxu0 %v1455
  %v2764 = vpop.f32.mrf.mxu0
  %v2765 = vadd.f32 %v347, %v2764
  %v2766 = vpop.f32.mrf.mxu0
  %v2767 = vadd.f32 %v347, %v2766
  %2768 = vmatmul.bf16.gmra.mxu0 %v1457
  %v2769 = vpop.f32.mrf.mxu0
  %v2770 = vadd.f32 %v347, %v2769
  %v2771 = vpop.f32.mrf.mxu0
  %v2772 = vadd.f32 %v347, %v2771
  %2773 = vmatmul.bf16.gmra.mxu0 %v1459
  %v2774 = vpop.f32.mrf.mxu0
  %v2775 = vadd.f32 %v347, %v2774
  %v2776 = vpop.f32.mrf.mxu0
  %v2777 = vadd.f32 %v347, %v2776
  %2778 = vmatmul.bf16.gmra.mxu0 %v1461
  %v2779 = vpop.f32.mrf.mxu0
  %v2780 = vadd.f32 %v347, %v2779
  %v2781 = vpop.f32.mrf.mxu0
  %v2782 = vadd.f32 %v347, %v2781
  %2783 = vmatmul.bf16.gmra.mxu0 %v1463
  %v2784 = vpop.f32.mrf.mxu0
  %v2785 = vadd.f32 %v347, %v2784
  %v2786 = vpop.f32.mrf.mxu0
  %v2787 = vadd.f32 %v347, %v2786
  %2788 = vmatmul.bf16.gmra.mxu0 %v1465
  %v2789 = vpop.f32.mrf.mxu0
  %v2790 = vadd.f32 %v347, %v2789
  %v2791 = vpop.f32.mrf.mxu0
  %v2792 = vadd.f32 %v347, %v2791
  %2793 = vmatmul.bf16.gmra.mxu0 %v1467
  %v2794 = vpop.f32.mrf.mxu0
  %v2795 = vadd.f32 %v347, %v2794
  %v2796 = vpop.f32.mrf.mxu0
  %v2797 = vadd.f32 %v347, %v2796
  %2798 = vmatmul.bf16.gmra.mxu0 %v1469
  %v2799 = vpop.f32.mrf.mxu0
  %v2800 = vadd.f32 %v347, %v2799
  %v2801 = vpop.f32.mrf.mxu0
  %v2802 = vadd.f32 %v347, %v2801
  %2803 = vmatmul.bf16.gmra.mxu0 %v1471
  %v2804 = vpop.f32.mrf.mxu0
  %v2805 = vadd.f32 %v347, %v2804
  %v2806 = vpop.f32.mrf.mxu0
  %v2807 = vadd.f32 %v347, %v2806
  %2808 = vmatmul.bf16.gmra.mxu0 %v1473
  %v2809 = vpop.f32.mrf.mxu0
  %v2810 = vadd.f32 %v347, %v2809
  %v2811 = vpop.f32.mrf.mxu0
  %v2812 = vadd.f32 %v347, %v2811
  %2813 = vmatmul.bf16.gmra.mxu0 %v1475
  %v2814 = vpop.f32.mrf.mxu0
  %v2815 = vadd.f32 %v347, %v2814
  %v2816 = vpop.f32.mrf.mxu0
  %v2817 = vadd.f32 %v347, %v2816
  %2818 = vmatmul.bf16.gmra.mxu0 %v1477
  %v2819 = vpop.f32.mrf.mxu0
  %v2820 = vadd.f32 %v347, %v2819
  %v2821 = vpop.f32.mrf.mxu0
  %v2822 = vadd.f32 %v347, %v2821
  %2823 = vmatmul.bf16.gmra.mxu0 %v1479
  %v2824 = vpop.f32.mrf.mxu0
  %v2825 = vadd.f32 %v347, %v2824
  %v2826 = vpop.f32.mrf.mxu0
  %v2827 = vadd.f32 %v347, %v2826
  %2828 = vmatmul.bf16.gmra.mxu0 %v1481
  %v2829 = vpop.f32.mrf.mxu0
  %v2830 = vadd.f32 %v347, %v2829
  %v2831 = vpop.f32.mrf.mxu0
  %v2832 = vadd.f32 %v347, %v2831
  %2833 = vmatmul.bf16.gmra.mxu0 %v1483
  %v2834 = vpop.f32.mrf.mxu0
  %v2835 = vadd.f32 %v347, %v2834
  %v2836 = vpop.f32.mrf.mxu0
  %v2837 = vadd.f32 %v347, %v2836
  %2838 = vmatmul.bf16.gmra.mxu0 %v1485
  %v2839 = vpop.f32.mrf.mxu0
  %v2840 = vadd.f32 %v347, %v2839
  %v2841 = vpop.f32.mrf.mxu0
  %v2842 = vadd.f32 %v347, %v2841
  %2843 = vmatmul.bf16.gmra.mxu0 %v1487
  %v2844 = vpop.f32.mrf.mxu0
  %v2845 = vadd.f32 %v347, %v2844
  %v2846 = vpop.f32.mrf.mxu0
  %v2847 = vadd.f32 %v347, %v2846
  %2848 = vmatmul.bf16.gmra.mxu0 %v1489
  %v2849 = vpop.f32.mrf.mxu0
  %v2850 = vadd.f32 %v347, %v2849
  %v2851 = vpop.f32.mrf.mxu0
  %v2852 = vadd.f32 %v347, %v2851
  %2853 = vmatmul.bf16.gmra.mxu0 %v1491
  %v2854 = vpop.f32.mrf.mxu0
  %v2855 = vadd.f32 %v347, %v2854
  %v2856 = vpop.f32.mrf.mxu0
  %v2857 = vadd.f32 %v347, %v2856
  %2858 = vmatmul.bf16.gmra.mxu0 %v1493
  %v2859 = vpop.f32.mrf.mxu0
  %v2860 = vadd.f32 %v347, %v2859
  %v2861 = vpop.f32.mrf.mxu0
  %v2862 = vadd.f32 %v347, %v2861
  %2863 = vmatmul.bf16.gmra.mxu0 %v1495
  %v2864 = vpop.f32.mrf.mxu0
  %v2865 = vadd.f32 %v347, %v2864
  %v2866 = vpop.f32.mrf.mxu0
  %v2867 = vadd.f32 %v347, %v2866
  %2868 = vmatmul.bf16.gmra.mxu0 %v1497
  %v2869 = vpop.f32.mrf.mxu0
  %v2870 = vadd.f32 %v347, %v2869
  %v2871 = vpop.f32.mrf.mxu0
  %v2872 = vadd.f32 %v347, %v2871
  %2873 = vmatmul.bf16.gmra.mxu0 %v1499
  %v2874 = vpop.f32.mrf.mxu0
  %v2875 = vadd.f32 %v347, %v2874
  %v2876 = vpop.f32.mrf.mxu0
  %v2877 = vadd.f32 %v347, %v2876
  %2878 = vdwg.mxu0
  %2879 = vmatpush.bf16.msra.mxu0 0
  %2880 = vmatpush.bf16.msra.mxu0 0
  %2881 = vmatpush.bf16.msra.mxu0 0
  %2882 = vmatpush.bf16.msra.mxu0 0
  %2883 = vmatpush.bf16.msra.mxu0 %v1704
  %2884 = vmatpush.bf16.msra.mxu0 %v1703
  %2885 = vmatpush.bf16.msra.mxu0 %v1702
  %2886 = vmatpush.bf16.msra.mxu0 %v1701
  %2887 = vmatmul.bf16.gmra.mxu0 %v1719
  %v2888 = vpop.f32.mrf.mxu0
  %v2889 = vadd.f32 %v2160, %v2888
  %v2890 = vpop.f32.mrf.mxu0
  %v2891 = vadd.f32 %v2162, %v2890
  %2892 = vmatmul.bf16.gmra.mxu0 %v1722
  %v2893 = vpop.f32.mrf.mxu0
  %v2894 = vadd.f32 %v2165, %v2893
  %v2895 = vpop.f32.mrf.mxu0
  %v2896 = vadd.f32 %v2167, %v2895
  %2897 = vmatmul.bf16.gmra.mxu0 %v1725
  %v2898 = vpop.f32.mrf.mxu0
  %v2899 = vadd.f32 %v2170, %v2898
  %v2900 = vpop.f32.mrf.mxu0
  %v2901 = vadd.f32 %v2172, %v2900
  %2902 = vmatmul.bf16.gmra.mxu0 %v1728
  %v2903 = vpop.f32.mrf.mxu0
  %v2904 = vadd.f32 %v2175, %v2903
  %v2905 = vpop.f32.mrf.mxu0
  %v2906 = vadd.f32 %v2177, %v2905
  %2907 = vmatmul.bf16.gmra.mxu0 %v1731
  %v2908 = vpop.f32.mrf.mxu0
  %v2909 = vadd.f32 %v2180, %v2908
  %v2910 = vpop.f32.mrf.mxu0
  %v2911 = vadd.f32 %v2182, %v2910
  %2912 = vmatmul.bf16.gmra.mxu0 %v1734
  %v2913 = vpop.f32.mrf.mxu0
  %v2914 = vadd.f32 %v2185, %v2913
  %v2915 = vpop.f32.mrf.mxu0
  %v2916 = vadd.f32 %v2187, %v2915
  %2917 = vmatmul.bf16.gmra.mxu0 %v1737
  %v2918 = vpop.f32.mrf.mxu0
  %v2919 = vadd.f32 %v2190, %v2918
  %v2920 = vpop.f32.mrf.mxu0
  %v2921 = vadd.f32 %v2192, %v2920
  %2922 = vmatmul.bf16.gmra.mxu0 %v1740
  %v2923 = vpop.f32.mrf.mxu0
  %v2924 = vadd.f32 %v2195, %v2923
  %v2925 = vpop.f32.mrf.mxu0
  %v2926 = vadd.f32 %v2197, %v2925
  %2927 = vmatmul.bf16.gmra.mxu0 %v1743
  %v2928 = vpop.f32.mrf.mxu0
  %v2929 = vadd.f32 %v2200, %v2928
  %v2930 = vpop.f32.mrf.mxu0
  %v2931 = vadd.f32 %v2202, %v2930
  %2932 = vmatmul.bf16.gmra.mxu0 %v1746
  %v2933 = vpop.f32.mrf.mxu0
  %v2934 = vadd.f32 %v2205, %v2933
  %v2935 = vpop.f32.mrf.mxu0
  %v2936 = vadd.f32 %v2207, %v2935
  %2937 = vmatmul.bf16.gmra.mxu0 %v1749
  %v2938 = vpop.f32.mrf.mxu0
  %v2939 = vadd.f32 %v2210, %v2938
  %v2940 = vpop.f32.mrf.mxu0
  %v2941 = vadd.f32 %v2212, %v2940
  %2942 = vmatmul.bf16.gmra.mxu0 %v1752
  %v2943 = vpop.f32.mrf.mxu0
  %v2944 = vadd.f32 %v2215, %v2943
  %v2945 = vpop.f32.mrf.mxu0
  %v2946 = vadd.f32 %v2217, %v2945
  %2947 = vmatmul.bf16.gmra.mxu0 %v1755
  %v2948 = vpop.f32.mrf.mxu0
  %v2949 = vadd.f32 %v2220, %v2948
  %v2950 = vpop.f32.mrf.mxu0
  %v2951 = vadd.f32 %v2222, %v2950
  %2952 = vmatmul.bf16.gmra.mxu0 %v1758
  %v2953 = vpop.f32.mrf.mxu0
  %v2954 = vadd.f32 %v2225, %v2953
  %v2955 = vpop.f32.mrf.mxu0
  %v2956 = vadd.f32 %v2227, %v2955
  %2957 = vmatmul.bf16.gmra.mxu0 %v1761
  %v2958 = vpop.f32.mrf.mxu0
  %v2959 = vadd.f32 %v2230, %v2958
  %v2960 = vpop.f32.mrf.mxu0
  %v2961 = vadd.f32 %v2232, %v2960
  %2962 = vmatmul.bf16.gmra.mxu0 %v1764
  %v2963 = vpop.f32.mrf.mxu0
  %v2964 = vadd.f32 %v2235, %v2963
  %v2965 = vpop.f32.mrf.mxu0
  %v2966 = vadd.f32 %v2237, %v2965
  %2967 = vmatmul.bf16.gmra.mxu0 %v1767
  %v2968 = vpop.f32.mrf.mxu0
  %v2969 = vadd.f32 %v2240, %v2968
  %v2970 = vpop.f32.mrf.mxu0
  %v2971 = vadd.f32 %v2242, %v2970
  %2972 = vmatmul.bf16.gmra.mxu0 %v1770
  %v2973 = vpop.f32.mrf.mxu0
  %v2974 = vadd.f32 %v2245, %v2973
  %v2975 = vpop.f32.mrf.mxu0
  %v2976 = vadd.f32 %v2247, %v2975
  %2977 = vmatmul.bf16.gmra.mxu0 %v1773
  %v2978 = vpop.f32.mrf.mxu0
  %v2979 = vadd.f32 %v2250, %v2978
  %v2980 = vpop.f32.mrf.mxu0
  %v2981 = vadd.f32 %v2252, %v2980
  %2982 = vmatmul.bf16.gmra.mxu0 %v1776
  %v2983 = vpop.f32.mrf.mxu0
  %v2984 = vadd.f32 %v2255, %v2983
  %v2985 = vpop.f32.mrf.mxu0
  %v2986 = vadd.f32 %v2257, %v2985
  %2987 = vmatmul.bf16.gmra.mxu0 %v1779
  %v2988 = vpop.f32.mrf.mxu0
  %v2989 = vadd.f32 %v2260, %v2988
  %v2990 = vpop.f32.mrf.mxu0
  %v2991 = vadd.f32 %v2262, %v2990
  %2992 = vmatmul.bf16.gmra.mxu0 %v1782
  %v2993 = vpop.f32.mrf.mxu0
  %v2994 = vadd.f32 %v2265, %v2993
  %v2995 = vpop.f32.mrf.mxu0
  %v2996 = vadd.f32 %v2267, %v2995
  %2997 = vmatmul.bf16.gmra.mxu0 %v1785
  %v2998 = vpop.f32.mrf.mxu0
  %v2999 = vadd.f32 %v2270, %v2998
  %v3000 = vpop.f32.mrf.mxu0
  %v3001 = vadd.f32 %v2272, %v3000
  %3002 = vmatmul.bf16.gmra.mxu0 %v1788
  %v3003 = vpop.f32.mrf.mxu0
  %v3004 = vadd.f32 %v2275, %v3003
  %v3005 = vpop.f32.mrf.mxu0
  %v3006 = vadd.f32 %v2277, %v3005
  %3007 = vmatmul.bf16.gmra.mxu0 %v1791
  %v3008 = vpop.f32.mrf.mxu0
  %v3009 = vadd.f32 %v2280, %v3008
  %v3010 = vpop.f32.mrf.mxu0
  %v3011 = vadd.f32 %v2282, %v3010
  %3012 = vmatmul.bf16.gmra.mxu0 %v1794
  %v3013 = vpop.f32.mrf.mxu0
  %v3014 = vadd.f32 %v2285, %v3013
  %v3015 = vpop.f32.mrf.mxu0
  %v3016 = vadd.f32 %v2287, %v3015
  %3017 = vmatmul.bf16.gmra.mxu0 %v1797
  %v3018 = vpop.f32.mrf.mxu0
  %v3019 = vadd.f32 %v2290, %v3018
  %v3020 = vpop.f32.mrf.mxu0
  %v3021 = vadd.f32 %v2292, %v3020
  %3022 = vmatmul.bf16.gmra.mxu0 %v1800
  %v3023 = vpop.f32.mrf.mxu0
  %v3024 = vadd.f32 %v2295, %v3023
  %v3025 = vpop.f32.mrf.mxu0
  %v3026 = vadd.f32 %v2297, %v3025
  %3027 = vmatmul.bf16.gmra.mxu0 %v1803
  %v3028 = vpop.f32.mrf.mxu0
  %v3029 = vadd.f32 %v2300, %v3028
  %v3030 = vpop.f32.mrf.mxu0
  %v3031 = vadd.f32 %v2302, %v3030
  %3032 = vmatmul.bf16.gmra.mxu0 %v1806
  %v3033 = vpop.f32.mrf.mxu0
  %v3034 = vadd.f32 %v2305, %v3033
  %v3035 = vpop.f32.mrf.mxu0
  %v3036 = vadd.f32 %v2307, %v3035
  %3037 = vmatmul.bf16.gmra.mxu0 %v1809
  %v3038 = vpop.f32.mrf.mxu0
  %v3039 = vadd.f32 %v2310, %v3038
  %v3040 = vpop.f32.mrf.mxu0
  %v3041 = vadd.f32 %v2312, %v3040
  %3042 = vmatmul.bf16.gmra.mxu0 %v1812
  %v3043 = vpop.f32.mrf.mxu0
  %v3044 = vadd.f32 %v2315, %v3043
  %v3045 = vpop.f32.mrf.mxu0
  %v3046 = vadd.f32 %v2317, %v3045
  %3047 = vmatmul.bf16.gmra.mxu0 %v1815
  %v3048 = vpop.f32.mrf.mxu0
  %v3049 = vadd.f32 %v2320, %v3048
  %v3050 = vpop.f32.mrf.mxu0
  %v3051 = vadd.f32 %v2322, %v3050
  %3052 = vmatmul.bf16.gmra.mxu0 %v1818
  %v3053 = vpop.f32.mrf.mxu0
  %v3054 = vadd.f32 %v2325, %v3053
  %v3055 = vpop.f32.mrf.mxu0
  %v3056 = vadd.f32 %v2327, %v3055
  %3057 = vmatmul.bf16.gmra.mxu0 %v1821
  %v3058 = vpop.f32.mrf.mxu0
  %v3059 = vadd.f32 %v2330, %v3058
  %v3060 = vpop.f32.mrf.mxu0
  %v3061 = vadd.f32 %v2332, %v3060
  %3062 = vmatmul.bf16.gmra.mxu0 %v1824
  %v3063 = vpop.f32.mrf.mxu0
  %v3064 = vadd.f32 %v2335, %v3063
  %v3065 = vpop.f32.mrf.mxu0
  %v3066 = vadd.f32 %v2337, %v3065
  %3067 = vmatmul.bf16.gmra.mxu0 %v1827
  %v3068 = vpop.f32.mrf.mxu0
  %v3069 = vadd.f32 %v2340, %v3068
  %v3070 = vpop.f32.mrf.mxu0
  %v3071 = vadd.f32 %v2342, %v3070
  %3072 = vmatmul.bf16.gmra.mxu0 %v1830
  %v3073 = vpop.f32.mrf.mxu0
  %v3074 = vadd.f32 %v2345, %v3073
  %v3075 = vpop.f32.mrf.mxu0
  %v3076 = vadd.f32 %v2347, %v3075
  %3077 = vmatmul.bf16.gmra.mxu0 %v1833
  %v3078 = vpop.f32.mrf.mxu0
  %v3079 = vadd.f32 %v2350, %v3078
  %v3080 = vpop.f32.mrf.mxu0
  %v3081 = vadd.f32 %v2352, %v3080
  %3082 = vmatmul.bf16.gmra.mxu0 %v1836
  %v3083 = vpop.f32.mrf.mxu0
  %v3084 = vadd.f32 %v2355, %v3083
  %v3085 = vpop.f32.mrf.mxu0
  %v3086 = vadd.f32 %v2357, %v3085
  %3087 = vmatmul.bf16.gmra.mxu0 %v1839
  %v3088 = vpop.f32.mrf.mxu0
  %v3089 = vadd.f32 %v2360, %v3088
  %v3090 = vpop.f32.mrf.mxu0
  %v3091 = vadd.f32 %v2362, %v3090
  %3092 = vmatmul.bf16.gmra.mxu0 %v1842
  %v3093 = vpop.f32.mrf.mxu0
  %v3094 = vadd.f32 %v2365, %v3093
  %v3095 = vpop.f32.mrf.mxu0
  %v3096 = vadd.f32 %v2367, %v3095
  %3097 = vmatmul.bf16.gmra.mxu0 %v1845
  %v3098 = vpop.f32.mrf.mxu0
  %v3099 = vadd.f32 %v2370, %v3098
  %v3100 = vpop.f32.mrf.mxu0
  %v3101 = vadd.f32 %v2372, %v3100
  %3102 = vmatmul.bf16.gmra.mxu0 %v1848
  %v3103 = vpop.f32.mrf.mxu0
  %v3104 = vadd.f32 %v2375, %v3103
  %v3105 = vpop.f32.mrf.mxu0
  %v3106 = vadd.f32 %v2377, %v3105
  %3107 = vmatmul.bf16.gmra.mxu0 %v1851
  %v3108 = vpop.f32.mrf.mxu0
  %v3109 = vadd.f32 %v2380, %v3108
  %v3110 = vpop.f32.mrf.mxu0
  %v3111 = vadd.f32 %v2382, %v3110
  %3112 = vmatmul.bf16.gmra.mxu0 %v1854
  %v3113 = vpop.f32.mrf.mxu0
  %v3114 = vadd.f32 %v2385, %v3113
  %v3115 = vpop.f32.mrf.mxu0
  %v3116 = vadd.f32 %v2387, %v3115
  %3117 = vmatmul.bf16.gmra.mxu0 %v1857
  %v3118 = vpop.f32.mrf.mxu0
  %v3119 = vadd.f32 %v2390, %v3118
  %v3120 = vpop.f32.mrf.mxu0
  %v3121 = vadd.f32 %v2392, %v3120
  %3122 = vmatmul.bf16.gmra.mxu0 %v1860
  %v3123 = vpop.f32.mrf.mxu0
  %v3124 = vadd.f32 %v2395, %v3123
  %v3125 = vpop.f32.mrf.mxu0
  %v3126 = vadd.f32 %v2397, %v3125
  %3127 = vmatmul.bf16.gmra.mxu0 %v1863
  %v3128 = vpop.f32.mrf.mxu0
  %v3129 = vadd.f32 %v2400, %v3128
  %v3130 = vpop.f32.mrf.mxu0
  %v3131 = vadd.f32 %v2402, %v3130
  %3132 = vmatmul.bf16.gmra.mxu0 %v1866
  %v3133 = vpop.f32.mrf.mxu0
  %v3134 = vadd.f32 %v2405, %v3133
  %v3135 = vpop.f32.mrf.mxu0
  %v3136 = vadd.f32 %v2407, %v3135
  %3137 = vmatmul.bf16.gmra.mxu0 %v1869
  %v3138 = vpop.f32.mrf.mxu0
  %v3139 = vadd.f32 %v2410, %v3138
  %v3140 = vpop.f32.mrf.mxu0
  %v3141 = vadd.f32 %v2412, %v3140
  %3142 = vmatmul.bf16.gmra.mxu0 %v1872
  %v3143 = vpop.f32.mrf.mxu0
  %v3144 = vadd.f32 %v2415, %v3143
  %v3145 = vpop.f32.mrf.mxu0
  %v3146 = vadd.f32 %v2417, %v3145
  %3147 = vmatmul.bf16.gmra.mxu0 %v1875
  %v3148 = vpop.f32.mrf.mxu0
  %v3149 = vadd.f32 %v2420, %v3148
  %v3150 = vpop.f32.mrf.mxu0
  %v3151 = vadd.f32 %v2422, %v3150
  %3152 = vmatmul.bf16.gmra.mxu0 %v1878
  %v3153 = vpop.f32.mrf.mxu0
  %v3154 = vadd.f32 %v2425, %v3153
  %v3155 = vpop.f32.mrf.mxu0
  %v3156 = vadd.f32 %v2427, %v3155
  %3157 = vmatmul.bf16.gmra.mxu0 %v1881
  %v3158 = vpop.f32.mrf.mxu0
  %v3159 = vadd.f32 %v2430, %v3158
  %v3160 = vpop.f32.mrf.mxu0
  %v3161 = vadd.f32 %v2432, %v3160
  %3162 = vmatmul.bf16.gmra.mxu0 %v1884
  %v3163 = vpop.f32.mrf.mxu0
  %v3164 = vadd.f32 %v2435, %v3163
  %v3165 = vpop.f32.mrf.mxu0
  %v3166 = vadd.f32 %v2437, %v3165
  %3167 = vmatmul.bf16.gmra.mxu0 %v1887
  %v3168 = vpop.f32.mrf.mxu0
  %v3169 = vadd.f32 %v2440, %v3168
  %v3170 = vpop.f32.mrf.mxu0
  %v3171 = vadd.f32 %v2442, %v3170
  %3172 = vmatmul.bf16.gmra.mxu0 %v1890
  %v3173 = vpop.f32.mrf.mxu0
  %v3174 = vadd.f32 %v2445, %v3173
  %v3175 = vpop.f32.mrf.mxu0
  %v3176 = vadd.f32 %v2447, %v3175
  %3177 = vmatmul.bf16.gmra.mxu0 %v1893
  %v3178 = vpop.f32.mrf.mxu0
  %v3179 = vadd.f32 %v2450, %v3178
  %v3180 = vpop.f32.mrf.mxu0
  %v3181 = vadd.f32 %v2452, %v3180
  %3182 = vmatmul.bf16.gmra.mxu0 %v1896
  %v3183 = vpop.f32.mrf.mxu0
  %v3184 = vadd.f32 %v2455, %v3183
  %v3185 = vpop.f32.mrf.mxu0
  %v3186 = vadd.f32 %v2457, %v3185
  %3187 = vmatmul.bf16.gmra.mxu0 %v1899
  %v3188 = vpop.f32.mrf.mxu0
  %v3189 = vadd.f32 %v2460, %v3188
  %v3190 = vpop.f32.mrf.mxu0
  %v3191 = vadd.f32 %v2462, %v3190
  %3192 = vmatmul.bf16.gmra.mxu0 %v1902
  %v3193 = vpop.f32.mrf.mxu0
  %v3194 = vadd.f32 %v2465, %v3193
  %v3195 = vpop.f32.mrf.mxu0
  %v3196 = vadd.f32 %v2467, %v3195
  %3197 = vmatmul.bf16.gmra.mxu0 %v1905
  %v3198 = vpop.f32.mrf.mxu0
  %v3199 = vadd.f32 %v2470, %v3198
  %v3200 = vpop.f32.mrf.mxu0
  %v3201 = vadd.f32 %v2472, %v3200
  %3202 = vmatmul.bf16.gmra.mxu0 %v1908
  %v3203 = vpop.f32.mrf.mxu0
  %v3204 = vadd.f32 %v2475, %v3203
  %v3205 = vpop.f32.mrf.mxu0
  %v3206 = vadd.f32 %v2477, %v3205
  %3207 = vmatmul.bf16.gmra.mxu0 %v1911
  %v3208 = vpop.f32.mrf.mxu0
  %v3209 = vadd.f32 %v2480, %v3208
  %v3210 = vpop.f32.mrf.mxu0
  %v3211 = vadd.f32 %v2482, %v3210
  %3212 = vmatmul.bf16.gmra.mxu0 %v1914
  %v3213 = vpop.f32.mrf.mxu0
  %v3214 = vadd.f32 %v2485, %v3213
  %v3215 = vpop.f32.mrf.mxu0
  %v3216 = vadd.f32 %v2487, %v3215
  %3217 = vmatmul.bf16.gmra.mxu0 %v1917
  %v3218 = vpop.f32.mrf.mxu0
  %v3219 = vadd.f32 %v2490, %v3218
  %v3220 = vpop.f32.mrf.mxu0
  %v3221 = vadd.f32 %v2492, %v3220
  %3222 = vmatmul.bf16.gmra.mxu0 %v1920
  %v3223 = vpop.f32.mrf.mxu0
  %v3224 = vadd.f32 %v2495, %v3223
  %v3225 = vpop.f32.mrf.mxu0
  %v3226 = vadd.f32 %v2497, %v3225
  %3227 = vmatmul.bf16.gmra.mxu0 %v1923
  %v3228 = vpop.f32.mrf.mxu0
  %v3229 = vadd.f32 %v2500, %v3228
  %v3230 = vpop.f32.mrf.mxu0
  %v3231 = vadd.f32 %v2502, %v3230
  %3232 = vmatmul.bf16.gmra.mxu0 %v1926
  %v3233 = vpop.f32.mrf.mxu0
  %v3234 = vadd.f32 %v2505, %v3233
  %v3235 = vpop.f32.mrf.mxu0
  %v3236 = vadd.f32 %v2507, %v3235
  %3237 = vmatmul.bf16.gmra.mxu0 %v1929
  %v3238 = vpop.f32.mrf.mxu0
  %v3239 = vadd.f32 %v2510, %v3238
  %v3240 = vpop.f32.mrf.mxu0
  %v3241 = vadd.f32 %v2512, %v3240
  %3242 = vmatmul.bf16.gmra.mxu0 %v1932
  %v3243 = vpop.f32.mrf.mxu0
  %v3244 = vadd.f32 %v2515, %v3243
  %v3245 = vpop.f32.mrf.mxu0
  %v3246 = vadd.f32 %v2517, %v3245
  %3247 = vmatmul.bf16.gmra.mxu0 %v1935
  %v3248 = vpop.f32.mrf.mxu0
  %v3249 = vadd.f32 %v2520, %v3248
  %v3250 = vpop.f32.mrf.mxu0
  %v3251 = vadd.f32 %v2522, %v3250
  %3252 = vmatmul.bf16.gmra.mxu0 %v1938
  %v3253 = vpop.f32.mrf.mxu0
  %v3254 = vadd.f32 %v2525, %v3253
  %v3255 = vpop.f32.mrf.mxu0
  %v3256 = vadd.f32 %v2527, %v3255
  %3257 = vmatmul.bf16.gmra.mxu0 %v1941
  %v3258 = vpop.f32.mrf.mxu0
  %v3259 = vadd.f32 %v2530, %v3258
  %v3260 = vpop.f32.mrf.mxu0
  %v3261 = vadd.f32 %v2532, %v3260
  %3262 = vmatmul.bf16.gmra.mxu0 %v1944
  %v3263 = vpop.f32.mrf.mxu0
  %v3264 = vadd.f32 %v2535, %v3263
  %v3265 = vpop.f32.mrf.mxu0
  %v3266 = vadd.f32 %v2537, %v3265
  %3267 = vmatmul.bf16.gmra.mxu0 %v1947
  %v3268 = vpop.f32.mrf.mxu0
  %v3269 = vadd.f32 %v2540, %v3268
  %v3270 = vpop.f32.mrf.mxu0
  %v3271 = vadd.f32 %v2542, %v3270
  %3272 = vmatmul.bf16.gmra.mxu0 %v1950
  %v3273 = vpop.f32.mrf.mxu0
  %v3274 = vadd.f32 %v2545, %v3273
  %v3275 = vpop.f32.mrf.mxu0
  %v3276 = vadd.f32 %v2547, %v3275
  %3277 = vmatmul.bf16.gmra.mxu0 %v1953
  %v3278 = vpop.f32.mrf.mxu0
  %v3279 = vadd.f32 %v2550, %v3278
  %v3280 = vpop.f32.mrf.mxu0
  %v3281 = vadd.f32 %v2552, %v3280
  %3282 = vmatmul.bf16.gmra.mxu0 %v1956
  %v3283 = vpop.f32.mrf.mxu0
  %v3284 = vadd.f32 %v2555, %v3283
  %v3285 = vpop.f32.mrf.mxu0
  %v3286 = vadd.f32 %v2557, %v3285
  %3287 = vmatmul.bf16.gmra.mxu0 %v1959
  %v3288 = vpop.f32.mrf.mxu0
  %v3289 = vadd.f32 %v2560, %v3288
  %v3290 = vpop.f32.mrf.mxu0
  %v3291 = vadd.f32 %v2562, %v3290
  %3292 = vmatmul.bf16.gmra.mxu0 %v1962
  %v3293 = vpop.f32.mrf.mxu0
  %v3294 = vadd.f32 %v2565, %v3293
  %v3295 = vpop.f32.mrf.mxu0
  %v3296 = vadd.f32 %v2567, %v3295
  %3297 = vmatmul.bf16.gmra.mxu0 %v1965
  %v3298 = vpop.f32.mrf.mxu0
  %v3299 = vadd.f32 %v2570, %v3298
  %v3300 = vpop.f32.mrf.mxu0
  %v3301 = vadd.f32 %v2572, %v3300
  %3302 = vmatmul.bf16.gmra.mxu0 %v1968
  %v3303 = vpop.f32.mrf.mxu0
  %v3304 = vadd.f32 %v2575, %v3303
  %v3305 = vpop.f32.mrf.mxu0
  %v3306 = vadd.f32 %v2577, %v3305
  %3307 = vmatmul.bf16.gmra.mxu0 %v1971
  %v3308 = vpop.f32.mrf.mxu0
  %v3309 = vadd.f32 %v2580, %v3308
  %v3310 = vpop.f32.mrf.mxu0
  %v3311 = vadd.f32 %v2582, %v3310
  %3312 = vmatmul.bf16.gmra.mxu0 %v1974
  %v3313 = vpop.f32.mrf.mxu0
  %v3314 = vadd.f32 %v2585, %v3313
  %v3315 = vpop.f32.mrf.mxu0
  %v3316 = vadd.f32 %v2587, %v3315
  %3317 = vmatmul.bf16.gmra.mxu0 %v1977
  %v3318 = vpop.f32.mrf.mxu0
  %v3319 = vadd.f32 %v2590, %v3318
  %v3320 = vpop.f32.mrf.mxu0
  %v3321 = vadd.f32 %v2592, %v3320
  %3322 = vmatmul.bf16.gmra.mxu0 %v1980
  %v3323 = vpop.f32.mrf.mxu0
  %v3324 = vadd.f32 %v2595, %v3323
  %v3325 = vpop.f32.mrf.mxu0
  %v3326 = vadd.f32 %v2597, %v3325
  %3327 = vmatmul.bf16.gmra.mxu0 %v1983
  %v3328 = vpop.f32.mrf.mxu0
  %v3329 = vadd.f32 %v2600, %v3328
  %v3330 = vpop.f32.mrf.mxu0
  %v3331 = vadd.f32 %v2602, %v3330
  %3332 = vmatmul.bf16.gmra.mxu0 %v1986
  %v3333 = vpop.f32.mrf.mxu0
  %v3334 = vadd.f32 %v2605, %v3333
  %v3335 = vpop.f32.mrf.mxu0
  %v3336 = vadd.f32 %v2607, %v3335
  %3337 = vmatmul.bf16.gmra.mxu0 %v1989
  %v3338 = vpop.f32.mrf.mxu0
  %v3339 = vadd.f32 %v2610, %v3338
  %v3340 = vpop.f32.mrf.mxu0
  %v3341 = vadd.f32 %v2612, %v3340
  %3342 = vmatmul.bf16.gmra.mxu0 %v1992
  %v3343 = vpop.f32.mrf.mxu0
  %v3344 = vadd.f32 %v2615, %v3343
  %v3345 = vpop.f32.mrf.mxu0
  %v3346 = vadd.f32 %v2617, %v3345
  %3347 = vmatmul.bf16.gmra.mxu0 %v1995
  %v3348 = vpop.f32.mrf.mxu0
  %v3349 = vadd.f32 %v2620, %v3348
  %v3350 = vpop.f32.mrf.mxu0
  %v3351 = vadd.f32 %v2622, %v3350
  %3352 = vmatmul.bf16.gmra.mxu0 %v1998
  %v3353 = vpop.f32.mrf.mxu0
  %v3354 = vadd.f32 %v2625, %v3353
  %v3355 = vpop.f32.mrf.mxu0
  %v3356 = vadd.f32 %v2627, %v3355
  %3357 = vmatmul.bf16.gmra.mxu0 %v2001
  %v3358 = vpop.f32.mrf.mxu0
  %v3359 = vadd.f32 %v2630, %v3358
  %v3360 = vpop.f32.mrf.mxu0
  %v3361 = vadd.f32 %v2632, %v3360
  %3362 = vmatmul.bf16.gmra.mxu0 %v2004
  %v3363 = vpop.f32.mrf.mxu0
  %v3364 = vadd.f32 %v2635, %v3363
  %v3365 = vpop.f32.mrf.mxu0
  %v3366 = vadd.f32 %v2637, %v3365
  %3367 = vmatmul.bf16.gmra.mxu0 %v2007
  %v3368 = vpop.f32.mrf.mxu0
  %v3369 = vadd.f32 %v2640, %v3368
  %v3370 = vpop.f32.mrf.mxu0
  %v3371 = vadd.f32 %v2642, %v3370
  %3372 = vmatmul.bf16.gmra.mxu0 %v2010
  %v3373 = vpop.f32.mrf.mxu0
  %v3374 = vadd.f32 %v2645, %v3373
  %v3375 = vpop.f32.mrf.mxu0
  %v3376 = vadd.f32 %v2647, %v3375
  %3377 = vmatmul.bf16.gmra.mxu0 %v2013
  %v3378 = vpop.f32.mrf.mxu0
  %v3379 = vadd.f32 %v2650, %v3378
  %v3380 = vpop.f32.mrf.mxu0
  %v3381 = vadd.f32 %v2652, %v3380
  %3382 = vmatmul.bf16.gmra.mxu0 %v2016
  %v3383 = vpop.f32.mrf.mxu0
  %v3384 = vadd.f32 %v2655, %v3383
  %v3385 = vpop.f32.mrf.mxu0
  %v3386 = vadd.f32 %v2657, %v3385
  %3387 = vmatmul.bf16.gmra.mxu0 %v2019
  %v3388 = vpop.f32.mrf.mxu0
  %v3389 = vadd.f32 %v2660, %v3388
  %v3390 = vpop.f32.mrf.mxu0
  %v3391 = vadd.f32 %v2662, %v3390
  %3392 = vmatmul.bf16.gmra.mxu0 %v2022
  %v3393 = vpop.f32.mrf.mxu0
  %v3394 = vadd.f32 %v2665, %v3393
  %v3395 = vpop.f32.mrf.mxu0
  %v3396 = vadd.f32 %v2667, %v3395
  %3397 = vmatmul.bf16.gmra.mxu0 %v2025
  %v3398 = vpop.f32.mrf.mxu0
  %v3399 = vadd.f32 %v2670, %v3398
  %v3400 = vpop.f32.mrf.mxu0
  %v3401 = vadd.f32 %v2672, %v3400
  %3402 = vmatmul.bf16.gmra.mxu0 %v2028
  %v3403 = vpop.f32.mrf.mxu0
  %v3404 = vadd.f32 %v2675, %v3403
  %v3405 = vpop.f32.mrf.mxu0
  %v3406 = vadd.f32 %v2677, %v3405
  %3407 = vmatmul.bf16.gmra.mxu0 %v2031
  %v3408 = vpop.f32.mrf.mxu0
  %v3409 = vadd.f32 %v2680, %v3408
  %v3410 = vpop.f32.mrf.mxu0
  %v3411 = vadd.f32 %v2682, %v3410
  %3412 = vmatmul.bf16.gmra.mxu0 %v2034
  %v3413 = vpop.f32.mrf.mxu0
  %v3414 = vadd.f32 %v2685, %v3413
  %v3415 = vpop.f32.mrf.mxu0
  %v3416 = vadd.f32 %v2687, %v3415
  %3417 = vmatmul.bf16.gmra.mxu0 %v2037
  %v3418 = vpop.f32.mrf.mxu0
  %v3419 = vadd.f32 %v2690, %v3418
  %v3420 = vpop.f32.mrf.mxu0
  %v3421 = vadd.f32 %v2692, %v3420
  %3422 = vmatmul.bf16.gmra.mxu0 %v2040
  %v3423 = vpop.f32.mrf.mxu0
  %v3424 = vadd.f32 %v2695, %v3423
  %v3425 = vpop.f32.mrf.mxu0
  %v3426 = vadd.f32 %v2697, %v3425
  %3427 = vmatmul.bf16.gmra.mxu0 %v2043
  %v3428 = vpop.f32.mrf.mxu0
  %v3429 = vadd.f32 %v2700, %v3428
  %v3430 = vpop.f32.mrf.mxu0
  %v3431 = vadd.f32 %v2702, %v3430
  %3432 = vmatmul.bf16.gmra.mxu0 %v2046
  %v3433 = vpop.f32.mrf.mxu0
  %v3434 = vadd.f32 %v2705, %v3433
  %v3435 = vpop.f32.mrf.mxu0
  %v3436 = vadd.f32 %v2707, %v3435
  %3437 = vmatmul.bf16.gmra.mxu0 %v2049
  %v3438 = vpop.f32.mrf.mxu0
  %v3439 = vadd.f32 %v2710, %v3438
  %v3440 = vpop.f32.mrf.mxu0
  %v3441 = vadd.f32 %v2712, %v3440
  %3442 = vmatmul.bf16.gmra.mxu0 %v2052
  %v3443 = vpop.f32.mrf.mxu0
  %v3444 = vadd.f32 %v2715, %v3443
  %v3445 = vpop.f32.mrf.mxu0
  %v3446 = vadd.f32 %v2717, %v3445
  %3447 = vmatmul.bf16.gmra.mxu0 %v2055
  %v3448 = vpop.f32.mrf.mxu0
  %v3449 = vadd.f32 %v2720, %v3448
  %v3450 = vpop.f32.mrf.mxu0
  %v3451 = vadd.f32 %v2722, %v3450
  %3452 = vmatmul.bf16.gmra.mxu0 %v2058
  %v3453 = vpop.f32.mrf.mxu0
  %v3454 = vadd.f32 %v2725, %v3453
  %v3455 = vpop.f32.mrf.mxu0
  %v3456 = vadd.f32 %v2727, %v3455
  %3457 = vmatmul.bf16.gmra.mxu0 %v2061
  %v3458 = vpop.f32.mrf.mxu0
  %v3459 = vadd.f32 %v2730, %v3458
  %v3460 = vpop.f32.mrf.mxu0
  %v3461 = vadd.f32 %v2732, %v3460
  %3462 = vmatmul.bf16.gmra.mxu0 %v2064
  %v3463 = vpop.f32.mrf.mxu0
  %v3464 = vadd.f32 %v2735, %v3463
  %v3465 = vpop.f32.mrf.mxu0
  %v3466 = vadd.f32 %v2737, %v3465
  %3467 = vmatmul.bf16.gmra.mxu0 %v2067
  %v3468 = vpop.f32.mrf.mxu0
  %v3469 = vadd.f32 %v2740, %v3468
  %v3470 = vpop.f32.mrf.mxu0
  %v3471 = vadd.f32 %v2742, %v3470
  %3472 = vmatmul.bf16.gmra.mxu0 %v2070
  %v3473 = vpop.f32.mrf.mxu0
  %v3474 = vadd.f32 %v2745, %v3473
  %v3475 = vpop.f32.mrf.mxu0
  %v3476 = vadd.f32 %v2747, %v3475
  %3477 = vmatmul.bf16.gmra.mxu0 %v2073
  %v3478 = vpop.f32.mrf.mxu0
  %v3479 = vadd.f32 %v2750, %v3478
  %v3480 = vpop.f32.mrf.mxu0
  %v3481 = vadd.f32 %v2752, %v3480
  %3482 = vmatmul.bf16.gmra.mxu0 %v2076
  %v3483 = vpop.f32.mrf.mxu0
  %v3484 = vadd.f32 %v2755, %v3483
  %v3485 = vpop.f32.mrf.mxu0
  %v3486 = vadd.f32 %v2757, %v3485
  %3487 = vmatmul.bf16.gmra.mxu0 %v2079
  %v3488 = vpop.f32.mrf.mxu0
  %v3489 = vadd.f32 %v2760, %v3488
  %v3490 = vpop.f32.mrf.mxu0
  %v3491 = vadd.f32 %v2762, %v3490
  %3492 = vmatmul.bf16.gmra.mxu0 %v2082
  %v3493 = vpop.f32.mrf.mxu0
  %v3494 = vadd.f32 %v2765, %v3493
  %v3495 = vpop.f32.mrf.mxu0
  %v3496 = vadd.f32 %v2767, %v3495
  %3497 = vmatmul.bf16.gmra.mxu0 %v2085
  %v3498 = vpop.f32.mrf.mxu0
  %v3499 = vadd.f32 %v2770, %v3498
  %v3500 = vpop.f32.mrf.mxu0
  %v3501 = vadd.f32 %v2772, %v3500
  %3502 = vmatmul.bf16.gmra.mxu0 %v2088
  %v3503 = vpop.f32.mrf.mxu0
  %v3504 = vadd.f32 %v2775, %v3503
  %v3505 = vpop.f32.mrf.mxu0
  %v3506 = vadd.f32 %v2777, %v3505
  %3507 = vmatmul.bf16.gmra.mxu0 %v2091
  %v3508 = vpop.f32.mrf.mxu0
  %v3509 = vadd.f32 %v2780, %v3508
  %v3510 = vpop.f32.mrf.mxu0
  %v3511 = vadd.f32 %v2782, %v3510
  %3512 = vmatmul.bf16.gmra.mxu0 %v2094
  %v3513 = vpop.f32.mrf.mxu0
  %v3514 = vadd.f32 %v2785, %v3513
  %v3515 = vpop.f32.mrf.mxu0
  %v3516 = vadd.f32 %v2787, %v3515
  %3517 = vmatmul.bf16.gmra.mxu0 %v2097
  %v3518 = vpop.f32.mrf.mxu0
  %v3519 = vadd.f32 %v2790, %v3518
  %v3520 = vpop.f32.mrf.mxu0
  %v3521 = vadd.f32 %v2792, %v3520
  %3522 = vmatmul.bf16.gmra.mxu0 %v2100
  %v3523 = vpop.f32.mrf.mxu0
  %v3524 = vadd.f32 %v2795, %v3523
  %v3525 = vpop.f32.mrf.mxu0
  %v3526 = vadd.f32 %v2797, %v3525
  %3527 = vmatmul.bf16.gmra.mxu0 %v2103
  %v3528 = vpop.f32.mrf.mxu0
  %v3529 = vadd.f32 %v2800, %v3528
  %v3530 = vpop.f32.mrf.mxu0
  %v3531 = vadd.f32 %v2802, %v3530
  %3532 = vmatmul.bf16.gmra.mxu0 %v2106
  %v3533 = vpop.f32.mrf.mxu0
  %v3534 = vadd.f32 %v2805, %v3533
  %v3535 = vpop.f32.mrf.mxu0
  %v3536 = vadd.f32 %v2807, %v3535
  %3537 = vmatmul.bf16.gmra.mxu0 %v2109
  %v3538 = vpop.f32.mrf.mxu0
  %v3539 = vadd.f32 %v2810, %v3538
  %v3540 = vpop.f32.mrf.mxu0
  %v3541 = vadd.f32 %v2812, %v3540
  %3542 = vmatmul.bf16.gmra.mxu0 %v2112
  %v3543 = vpop.f32.mrf.mxu0
  %v3544 = vadd.f32 %v2815, %v3543
  %v3545 = vpop.f32.mrf.mxu0
  %v3546 = vadd.f32 %v2817, %v3545
  %3547 = vmatmul.bf16.gmra.mxu0 %v2115
  %v3548 = vpop.f32.mrf.mxu0
  %v3549 = vadd.f32 %v2820, %v3548
  %v3550 = vpop.f32.mrf.mxu0
  %v3551 = vadd.f32 %v2822, %v3550
  %3552 = vmatmul.bf16.gmra.mxu0 %v2118
  %v3553 = vpop.f32.mrf.mxu0
  %v3554 = vadd.f32 %v2825, %v3553
  %v3555 = vpop.f32.mrf.mxu0
  %v3556 = vadd.f32 %v2827, %v3555
  %3557 = vmatmul.bf16.gmra.mxu0 %v2121
  %v3558 = vpop.f32.mrf.mxu0
  %v3559 = vadd.f32 %v2830, %v3558
  %v3560 = vpop.f32.mrf.mxu0
  %v3561 = vadd.f32 %v2832, %v3560
  %3562 = vmatmul.bf16.gmra.mxu0 %v2124
  %v3563 = vpop.f32.mrf.mxu0
  %v3564 = vadd.f32 %v2835, %v3563
  %v3565 = vpop.f32.mrf.mxu0
  %v3566 = vadd.f32 %v2837, %v3565
  %3567 = vmatmul.bf16.gmra.mxu0 %v2127
  %v3568 = vpop.f32.mrf.mxu0
  %v3569 = vadd.f32 %v2840, %v3568
  %v3570 = vpop.f32.mrf.mxu0
  %v3571 = vadd.f32 %v2842, %v3570
  %3572 = vmatmul.bf16.gmra.mxu0 %v2130
  %v3573 = vpop.f32.mrf.mxu0
  %v3574 = vadd.f32 %v2845, %v3573
  %v3575 = vpop.f32.mrf.mxu0
  %v3576 = vadd.f32 %v2847, %v3575
  %3577 = vmatmul.bf16.gmra.mxu0 %v2133
  %v3578 = vpop.f32.mrf.mxu0
  %v3579 = vadd.f32 %v2850, %v3578
  %v3580 = vpop.f32.mrf.mxu0
  %v3581 = vadd.f32 %v2852, %v3580
  %3582 = vmatmul.bf16.gmra.mxu0 %v2136
  %v3583 = vpop.f32.mrf.mxu0
  %v3584 = vadd.f32 %v2855, %v3583
  %v3585 = vpop.f32.mrf.mxu0
  %v3586 = vadd.f32 %v2857, %v3585
  %3587 = vmatmul.bf16.gmra.mxu0 %v2139
  %v3588 = vpop.f32.mrf.mxu0
  %v3589 = vadd.f32 %v2860, %v3588
  %v3590 = vpop.f32.mrf.mxu0
  %v3591 = vadd.f32 %v2862, %v3590
  %3592 = vmatmul.bf16.gmra.mxu0 %v2142
  %v3593 = vpop.f32.mrf.mxu0
  %v3594 = vadd.f32 %v2865, %v3593
  %v3595 = vpop.f32.mrf.mxu0
  %v3596 = vadd.f32 %v2867, %v3595
  %3597 = vmatmul.bf16.gmra.mxu0 %v2145
  %v3598 = vpop.f32.mrf.mxu0
  %v3599 = vadd.f32 %v2870, %v3598
  %v3600 = vpop.f32.mrf.mxu0
  %v3601 = vadd.f32 %v2872, %v3600
  %3602 = vmatmul.bf16.gmra.mxu0 %v2148
  %v3603 = vpop.f32.mrf.mxu0
  %v3604 = vadd.f32 %v2875, %v3603
  %v3605 = vpop.f32.mrf.mxu0
  %v3606 = vadd.f32 %v2877, %v3605
  %3607 = vdwg.mxu0
  %v3608 = vmax.f32 %v2889, 0.0
  %v3609 = vmax.f32 %v2891, 0.0
  %v3610 = vmax.f32 %v2894, 0.0
  %v3611 = vmax.f32 %v2896, 0.0
  %v3612 = vmax.f32 %v2899, 0.0
  %v3613 = vmax.f32 %v2901, 0.0
  %v3614 = vmax.f32 %v2904, 0.0
  %v3615 = vmax.f32 %v2906, 0.0
  %v3616 = vmax.f32 %v2909, 0.0
  %v3617 = vmax.f32 %v2911, 0.0
  %v3618 = vmax.f32 %v2914, 0.0
  %v3619 = vmax.f32 %v2916, 0.0
  %v3620 = vmax.f32 %v2919, 0.0
  %v3621 = vmax.f32 %v2921, 0.0
  %v3622 = vmax.f32 %v2924, 0.0
  %v3623 = vmax.f32 %v2926, 0.0
  %v3624 = vmax.f32 %v2929, 0.0
  %v3625 = vmax.f32 %v2931, 0.0
  %v3626 = vmax.f32 %v2934, 0.0
  %v3627 = vmax.f32 %v2936, 0.0
  %v3628 = vmax.f32 %v2939, 0.0
  %v3629 = vmax.f32 %v2941, 0.0
  %v3630 = vmax.f32 %v2944, 0.0
  %v3631 = vmax.f32 %v2946, 0.0
  %v3632 = vmax.f32 %v2949, 0.0
  %v3633 = vmax.f32 %v2951, 0.0
  %v3634 = vmax.f32 %v2954, 0.0
  %v3635 = vmax.f32 %v2956, 0.0
  %v3636 = vmax.f32 %v2959, 0.0
  %v3637 = vmax.f32 %v2961, 0.0
  %v3638 = vmax.f32 %v2964, 0.0
  %v3639 = vmax.f32 %v2966, 0.0
  %v3640 = vmax.f32 %v2969, 0.0
  %v3641 = vmax.f32 %v2971, 0.0
  %v3642 = vmax.f32 %v2974, 0.0
  %v3643 = vmax.f32 %v2976, 0.0
  %v3644 = vmax.f32 %v2979, 0.0
  %v3645 = vmax.f32 %v2981, 0.0
  %v3646 = vmax.f32 %v2984, 0.0
  %v3647 = vmax.f32 %v2986, 0.0
  %v3648 = vmax.f32 %v2989, 0.0
  %v3649 = vmax.f32 %v2991, 0.0
  %v3650 = vmax.f32 %v2994, 0.0
  %v3651 = vmax.f32 %v2996, 0.0
  %v3652 = vmax.f32 %v2999, 0.0
  %v3653 = vmax.f32 %v3001, 0.0
  %v3654 = vmax.f32 %v3004, 0.0
  %v3655 = vmax.f32 %v3006, 0.0
  %v3656 = vmax.f32 %v3009, 0.0
  %v3657 = vmax.f32 %v3011, 0.0
  %v3658 = vmax.f32 %v3014, 0.0
  %v3659 = vmax.f32 %v3016, 0.0
  %v3660 = vmax.f32 %v3019, 0.0
  %v3661 = vmax.f32 %v3021, 0.0
  %v3662 = vmax.f32 %v3024, 0.0
  %v3663 = vmax.f32 %v3026, 0.0
  %v3664 = vmax.f32 %v3029, 0.0
  %v3665 = vmax.f32 %v3031, 0.0
  %v3666 = vmax.f32 %v3034, 0.0
  %v3667 = vmax.f32 %v3036, 0.0
  %v3668 = vmax.f32 %v3039, 0.0
  %v3669 = vmax.f32 %v3041, 0.0
  %v3670 = vmax.f32 %v3044, 0.0
  %v3671 = vmax.f32 %v3046, 0.0
  %v3672 = vmax.f32 %v3049, 0.0
  %v3673 = vmax.f32 %v3051, 0.0
  %v3674 = vmax.f32 %v3054, 0.0
  %v3675 = vmax.f32 %v3056, 0.0
  %v3676 = vmax.f32 %v3059, 0.0
  %v3677 = vmax.f32 %v3061, 0.0
  %v3678 = vmax.f32 %v3064, 0.0
  %v3679 = vmax.f32 %v3066, 0.0
  %v3680 = vmax.f32 %v3069, 0.0
  %v3681 = vmax.f32 %v3071, 0.0
  %v3682 = vmax.f32 %v3074, 0.0
  %v3683 = vmax.f32 %v3076, 0.0
  %v3684 = vmax.f32 %v3079, 0.0
  %v3685 = vmax.f32 %v3081, 0.0
  %v3686 = vmax.f32 %v3084, 0.0
  %v3687 = vmax.f32 %v3086, 0.0
  %v3688 = vmax.f32 %v3089, 0.0
  %v3689 = vmax.f32 %v3091, 0.0
  %v3690 = vmax.f32 %v3094, 0.0
  %v3691 = vmax.f32 %v3096, 0.0
  %v3692 = vmax.f32 %v3099, 0.0
  %v3693 = vmax.f32 %v3101, 0.0
  %v3694 = vmax.f32 %v3104, 0.0
  %v3695 = vmax.f32 %v3106, 0.0
  %v3696 = vmax.f32 %v3109, 0.0
  %v3697 = vmax.f32 %v3111, 0.0
  %v3698 = vmax.f32 %v3114, 0.0
  %v3699 = vmax.f32 %v3116, 0.0
  %v3700 = vmax.f32 %v3119, 0.0
  %v3701 = vmax.f32 %v3121, 0.0
  %v3702 = vmax.f32 %v3124, 0.0
  %v3703 = vmax.f32 %v3126, 0.0
  %v3704 = vmax.f32 %v3129, 0.0
  %v3705 = vmax.f32 %v3131, 0.0
  %v3706 = vmax.f32 %v3134, 0.0
  %v3707 = vmax.f32 %v3136, 0.0
  %v3708 = vmax.f32 %v3139, 0.0
  %v3709 = vmax.f32 %v3141, 0.0
  %v3710 = vmax.f32 %v3144, 0.0
  %v3711 = vmax.f32 %v3146, 0.0
  %v3712 = vmax.f32 %v3149, 0.0
  %v3713 = vmax.f32 %v3151, 0.0
  %v3714 = vmax.f32 %v3154, 0.0
  %v3715 = vmax.f32 %v3156, 0.0
  %v3716 = vmax.f32 %v3159, 0.0
  %v3717 = vmax.f32 %v3161, 0.0
  %v3718 = vmax.f32 %v3164, 0.0
  %v3719 = vmax.f32 %v3166, 0.0
  %v3720 = vmax.f32 %v3169, 0.0
  %v3721 = vmax.f32 %v3171, 0.0
  %v3722 = vmax.f32 %v3174, 0.0
  %v3723 = vmax.f32 %v3176, 0.0
  %v3724 = vmax.f32 %v3179, 0.0
  %v3725 = vmax.f32 %v3181, 0.0
  %v3726 = vmax.f32 %v3184, 0.0
  %v3727 = vmax.f32 %v3186, 0.0
  %v3728 = vmax.f32 %v3189, 0.0
  %v3729 = vmax.f32 %v3191, 0.0
  %v3730 = vmax.f32 %v3194, 0.0
  %v3731 = vmax.f32 %v3196, 0.0
  %v3732 = vmax.f32 %v3199, 0.0
  %v3733 = vmax.f32 %v3201, 0.0
  %v3734 = vmax.f32 %v3204, 0.0
  %v3735 = vmax.f32 %v3206, 0.0
  %v3736 = vmax.f32 %v3209, 0.0
  %v3737 = vmax.f32 %v3211, 0.0
  %v3738 = vmax.f32 %v3214, 0.0
  %v3739 = vmax.f32 %v3216, 0.0
  %v3740 = vmax.f32 %v3219, 0.0
  %v3741 = vmax.f32 %v3221, 0.0
  %v3742 = vmax.f32 %v3224, 0.0
  %v3743 = vmax.f32 %v3226, 0.0
  %v3744 = vmax.f32 %v3229, 0.0
  %v3745 = vmax.f32 %v3231, 0.0
  %v3746 = vmax.f32 %v3234, 0.0
  %v3747 = vmax.f32 %v3236, 0.0
  %v3748 = vmax.f32 %v3239, 0.0
  %v3749 = vmax.f32 %v3241, 0.0
  %v3750 = vmax.f32 %v3244, 0.0
  %v3751 = vmax.f32 %v3246, 0.0
  %v3752 = vmax.f32 %v3249, 0.0
  %v3753 = vmax.f32 %v3251, 0.0
  %v3754 = vmax.f32 %v3254, 0.0
  %v3755 = vmax.f32 %v3256, 0.0
  %v3756 = vmax.f32 %v3259, 0.0
  %v3757 = vmax.f32 %v3261, 0.0
  %v3758 = vmax.f32 %v3264, 0.0
  %v3759 = vmax.f32 %v3266, 0.0
  %v3760 = vmax.f32 %v3269, 0.0
  %v3761 = vmax.f32 %v3271, 0.0
  %v3762 = vmax.f32 %v3274, 0.0
  %v3763 = vmax.f32 %v3276, 0.0
  %v3764 = vmax.f32 %v3279, 0.0
  %v3765 = vmax.f32 %v3281, 0.0
  %v3766 = vmax.f32 %v3284, 0.0
  %v3767 = vmax.f32 %v3286, 0.0
  %v3768 = vmax.f32 %v3289, 0.0
  %v3769 = vmax.f32 %v3291, 0.0
  %v3770 = vmax.f32 %v3294, 0.0
  %v3771 = vmax.f32 %v3296, 0.0
  %v3772 = vmax.f32 %v3299, 0.0
  %v3773 = vmax.f32 %v3301, 0.0
  %v3774 = vmax.f32 %v3304, 0.0
  %v3775 = vmax.f32 %v3306, 0.0
  %v3776 = vmax.f32 %v3309, 0.0
  %v3777 = vmax.f32 %v3311, 0.0
  %v3778 = vmax.f32 %v3314, 0.0
  %v3779 = vmax.f32 %v3316, 0.0
  %v3780 = vmax.f32 %v3319, 0.0
  %v3781 = vmax.f32 %v3321, 0.0
  %v3782 = vmax.f32 %v3324, 0.0
  %v3783 = vmax.f32 %v3326, 0.0
  %v3784 = vmax.f32 %v3329, 0.0
  %v3785 = vmax.f32 %v3331, 0.0
  %v3786 = vmax.f32 %v3334, 0.0
  %v3787 = vmax.f32 %v3336, 0.0
  %v3788 = vmax.f32 %v3339, 0.0
  %v3789 = vmax.f32 %v3341, 0.0
  %v3790 = vmax.f32 %v3344, 0.0
  %v3791 = vmax.f32 %v3346, 0.0
  %v3792 = vmax.f32 %v3349, 0.0
  %v3793 = vmax.f32 %v3351, 0.0
  %v3794 = vmax.f32 %v3354, 0.0
  %v3795 = vmax.f32 %v3356, 0.0
  %v3796 = vmax.f32 %v3359, 0.0
  %v3797 = vmax.f32 %v3361, 0.0
  %v3798 = vmax.f32 %v3364, 0.0
  %v3799 = vmax.f32 %v3366, 0.0
  %v3800 = vmax.f32 %v3369, 0.0
  %v3801 = vmax.f32 %v3371, 0.0
  %v3802 = vmax.f32 %v3374, 0.0
  %v3803 = vmax.f32 %v3376, 0.0
  %v3804 = vmax.f32 %v3379, 0.0
  %v3805 = vmax.f32 %v3381, 0.0
  %v3806 = vmax.f32 %v3384, 0.0
  %v3807 = vmax.f32 %v3386, 0.0
  %v3808 = vmax.f32 %v3389, 0.0
  %v3809 = vmax.f32 %v3391, 0.0
  %v3810 = vmax.f32 %v3394, 0.0
  %v3811 = vmax.f32 %v3396, 0.0
  %v3812 = vmax.f32 %v3399, 0.0
  %v3813 = vmax.f32 %v3401, 0.0
  %v3814 = vmax.f32 %v3404, 0.0
  %v3815 = vmax.f32 %v3406, 0.0
  %v3816 = vmax.f32 %v3409, 0.0
  %v3817 = vmax.f32 %v3411, 0.0
  %v3818 = vmax.f32 %v3414, 0.0
  %v3819 = vmax.f32 %v3416, 0.0
  %v3820 = vmax.f32 %v3419, 0.0
  %v3821 = vmax.f32 %v3421, 0.0
  %v3822 = vmax.f32 %v3424, 0.0
  %v3823 = vmax.f32 %v3426, 0.0
  %v3824 = vmax.f32 %v3429, 0.0
  %v3825 = vmax.f32 %v3431, 0.0
  %v3826 = vmax.f32 %v3434, 0.0
  %v3827 = vmax.f32 %v3436, 0.0
  %v3828 = vmax.f32 %v3439, 0.0
  %v3829 = vmax.f32 %v3441, 0.0
  %v3830 = vmax.f32 %v3444, 0.0
  %v3831 = vmax.f32 %v3446, 0.0
  %v3832 = vmax.f32 %v3449, 0.0
  %v3833 = vmax.f32 %v3451, 0.0
  %v3834 = vmax.f32 %v3454, 0.0
  %v3835 = vmax.f32 %v3456, 0.0
  %v3836 = vmax.f32 %v3459, 0.0
  %v3837 = vmax.f32 %v3461, 0.0
  %v3838 = vmax.f32 %v3464, 0.0
  %v3839 = vmax.f32 %v3466, 0.0
  %v3840 = vmax.f32 %v3469, 0.0
  %v3841 = vmax.f32 %v3471, 0.0
  %v3842 = vmax.f32 %v3474, 0.0
  %v3843 = vmax.f32 %v3476, 0.0
  %v3844 = vmax.f32 %v3479, 0.0
  %v3845 = vmax.f32 %v3481, 0.0
  %v3846 = vmax.f32 %v3484, 0.0
  %v3847 = vmax.f32 %v3486, 0.0
  %v3848 = vmax.f32 %v3489, 0.0
  %v3849 = vmax.f32 %v3491, 0.0
  %v3850 = vmax.f32 %v3494, 0.0
  %v3851 = vmax.f32 %v3496, 0.0
  %v3852 = vmax.f32 %v3499, 0.0
  %v3853 = vmax.f32 %v3501, 0.0
  %v3854 = vmax.f32 %v3504, 0.0
  %v3855 = vmax.f32 %v3506, 0.0
  %v3856 = vmax.f32 %v3509, 0.0
  %v3857 = vmax.f32 %v3511, 0.0
  %v3858 = vmax.f32 %v3514, 0.0
  %v3859 = vmax.f32 %v3516, 0.0
  %v3860 = vmax.f32 %v3519, 0.0
  %v3861 = vmax.f32 %v3521, 0.0
  %v3862 = vmax.f32 %v3524, 0.0
  %v3863 = vmax.f32 %v3526, 0.0
  %v3864 = vmax.f32 %v3529, 0.0
  %v3865 = vmax.f32 %v3531, 0.0
  %v3866 = vmax.f32 %v3534, 0.0
  %v3867 = vmax.f32 %v3536, 0.0
  %v3868 = vmax.f32 %v3539, 0.0
  %v3869 = vmax.f32 %v3541, 0.0
  %v3870 = vmax.f32 %v3544, 0.0
  %v3871 = vmax.f32 %v3546, 0.0
  %v3872 = vmax.f32 %v3549, 0.0
  %v3873 = vmax.f32 %v3551, 0.0
  %v3874 = vmax.f32 %v3554, 0.0
  %v3875 = vmax.f32 %v3556, 0.0
  %v3876 = vmax.f32 %v3559, 0.0
  %v3877 = vmax.f32 %v3561, 0.0
  %v3878 = vmax.f32 %v3564, 0.0
  %v3879 = vmax.f32 %v3566, 0.0
  %v3880 = vmax.f32 %v3569, 0.0
  %v3881 = vmax.f32 %v3571, 0.0
  %v3882 = vmax.f32 %v3574, 0.0
  %v3883 = vmax.f32 %v3576, 0.0
  %v3884 = vmax.f32 %v3579, 0.0
  %v3885 = vmax.f32 %v3581, 0.0
  %v3886 = vmax.f32 %v3584, 0.0
  %v3887 = vmax.f32 %v3586, 0.0
  %v3888 = vmax.f32 %v3589, 0.0
  %v3889 = vmax.f32 %v3591, 0.0
  %v3890 = vmax.f32 %v3594, 0.0
  %v3891 = vmax.f32 %v3596, 0.0
  %v3892 = vmax.f32 %v3599, 0.0
  %v3893 = vmax.f32 %v3601, 0.0
  %v3894 = vmax.f32 %v3604, 0.0
  %v3895 = vmax.f32 %v3606, 0.0
  %v3896 = vpack.c.bf16 %v3608, %v3608
  %v3897 = vpack.c.bf16 %v3609, %v3609
  %v3898 = vpack.c.bf16 %v3610, %v3610
  %v3899 = vpack.c.bf16 %v3611, %v3611
  %v3900 = vpack.c.bf16 %v3612, %v3612
  %v3901 = vpack.c.bf16 %v3613, %v3613
  %v3902 = vpack.c.bf16 %v3614, %v3614
  %v3903 = vpack.c.bf16 %v3615, %v3615
  %v3904 = vpack.c.bf16 %v3616, %v3616
  %v3905 = vpack.c.bf16 %v3617, %v3617
  %v3906 = vpack.c.bf16 %v3618, %v3618
  %v3907 = vpack.c.bf16 %v3619, %v3619
  %v3908 = vpack.c.bf16 %v3620, %v3620
  %v3909 = vpack.c.bf16 %v3621, %v3621
  %v3910 = vpack.c.bf16 %v3622, %v3622
  %v3911 = vpack.c.bf16 %v3623, %v3623
  %v3912 = vpack.c.bf16 %v3624, %v3624
  %v3913 = vpack.c.bf16 %v3625, %v3625
  %v3914 = vpack.c.bf16 %v3626, %v3626
  %v3915 = vpack.c.bf16 %v3627, %v3627
  %v3916 = vpack.c.bf16 %v3628, %v3628
  %v3917 = vpack.c.bf16 %v3629, %v3629
  %v3918 = vpack.c.bf16 %v3630, %v3630
  %v3919 = vpack.c.bf16 %v3631, %v3631
  %v3920 = vpack.c.bf16 %v3632, %v3632
  %v3921 = vpack.c.bf16 %v3633, %v3633
  %v3922 = vpack.c.bf16 %v3634, %v3634
  %v3923 = vpack.c.bf16 %v3635, %v3635
  %v3924 = vpack.c.bf16 %v3636, %v3636
  %v3925 = vpack.c.bf16 %v3637, %v3637
  %v3926 = vpack.c.bf16 %v3638, %v3638
  %v3927 = vpack.c.bf16 %v3639, %v3639
  %v3928 = vpack.c.bf16 %v3640, %v3640
  %v3929 = vpack.c.bf16 %v3641, %v3641
  %v3930 = vpack.c.bf16 %v3642, %v3642
  %v3931 = vpack.c.bf16 %v3643, %v3643
  %v3932 = vpack.c.bf16 %v3644, %v3644
  %v3933 = vpack.c.bf16 %v3645, %v3645
  %v3934 = vpack.c.bf16 %v3646, %v3646
  %v3935 = vpack.c.bf16 %v3647, %v3647
  %v3936 = vpack.c.bf16 %v3648, %v3648
  %v3937 = vpack.c.bf16 %v3649, %v3649
  %v3938 = vpack.c.bf16 %v3650, %v3650
  %v3939 = vpack.c.bf16 %v3651, %v3651
  %v3940 = vpack.c.bf16 %v3652, %v3652
  %v3941 = vpack.c.bf16 %v3653, %v3653
  %v3942 = vpack.c.bf16 %v3654, %v3654
  %v3943 = vpack.c.bf16 %v3655, %v3655
  %v3944 = vpack.c.bf16 %v3656, %v3656
  %v3945 = vpack.c.bf16 %v3657, %v3657
  %v3946 = vpack.c.bf16 %v3658, %v3658
  %v3947 = vpack.c.bf16 %v3659, %v3659
  %v3948 = vpack.c.bf16 %v3660, %v3660
  %v3949 = vpack.c.bf16 %v3661, %v3661
  %v3950 = vpack.c.bf16 %v3662, %v3662
  %v3951 = vpack.c.bf16 %v3663, %v3663
  %v3952 = vpack.c.bf16 %v3664, %v3664
  %v3953 = vpack.c.bf16 %v3665, %v3665
  %v3954 = vpack.c.bf16 %v3666, %v3666
  %v3955 = vpack.c.bf16 %v3667, %v3667
  %v3956 = vpack.c.bf16 %v3668, %v3668
  %v3957 = vpack.c.bf16 %v3669, %v3669
  %v3958 = vpack.c.bf16 %v3670, %v3670
  %v3959 = vpack.c.bf16 %v3671, %v3671
  %v3960 = vpack.c.bf16 %v3672, %v3672
  %v3961 = vpack.c.bf16 %v3673, %v3673
  %v3962 = vpack.c.bf16 %v3674, %v3674
  %v3963 = vpack.c.bf16 %v3675, %v3675
  %v3964 = vpack.c.bf16 %v3676, %v3676
  %v3965 = vpack.c.bf16 %v3677, %v3677
  %v3966 = vpack.c.bf16 %v3678, %v3678
  %v3967 = vpack.c.bf16 %v3679, %v3679
  %v3968 = vpack.c.bf16 %v3680, %v3680
  %v3969 = vpack.c.bf16 %v3681, %v3681
  %v3970 = vpack.c.bf16 %v3682, %v3682
  %v3971 = vpack.c.bf16 %v3683, %v3683
  %v3972 = vpack.c.bf16 %v3684, %v3684
  %v3973 = vpack.c.bf16 %v3685, %v3685
  %v3974 = vpack.c.bf16 %v3686, %v3686
  %v3975 = vpack.c.bf16 %v3687, %v3687
  %v3976 = vpack.c.bf16 %v3688, %v3688
  %v3977 = vpack.c.bf16 %v3689, %v3689
  %v3978 = vpack.c.bf16 %v3690, %v3690
  %v3979 = vpack.c.bf16 %v3691, %v3691
  %v3980 = vpack.c.bf16 %v3692, %v3692
  %v3981 = vpack.c.bf16 %v3693, %v3693
  %v3982 = vpack.c.bf16 %v3694, %v3694
  %v3983 = vpack.c.bf16 %v3695, %v3695
  %v3984 = vpack.c.bf16 %v3696, %v3696
  %v3985 = vpack.c.bf16 %v3697, %v3697
  %v3986 = vpack.c.bf16 %v3698, %v3698
  %v3987 = vpack.c.bf16 %v3699, %v3699
  %v3988 = vpack.c.bf16 %v3700, %v3700
  %v3989 = vpack.c.bf16 %v3701, %v3701
  %v3990 = vpack.c.bf16 %v3702, %v3702
  %v3991 = vpack.c.bf16 %v3703, %v3703
  %v3992 = vpack.c.bf16 %v3704, %v3704
  %v3993 = vpack.c.bf16 %v3705, %v3705
  %v3994 = vpack.c.bf16 %v3706, %v3706
  %v3995 = vpack.c.bf16 %v3707, %v3707
  %v3996 = vpack.c.bf16 %v3708, %v3708
  %v3997 = vpack.c.bf16 %v3709, %v3709
  %v3998 = vpack.c.bf16 %v3710, %v3710
  %v3999 = vpack.c.bf16 %v3711, %v3711
  %v4000 = vpack.c.bf16 %v3712, %v3712
  %v4001 = vpack.c.bf16 %v3713, %v3713
  %v4002 = vpack.c.bf16 %v3714, %v3714
  %v4003 = vpack.c.bf16 %v3715, %v3715
  %v4004 = vpack.c.bf16 %v3716, %v3716
  %v4005 = vpack.c.bf16 %v3717, %v3717
  %v4006 = vpack.c.bf16 %v3718, %v3718
  %v4007 = vpack.c.bf16 %v3719, %v3719
  %v4008 = vpack.c.bf16 %v3720, %v3720
  %v4009 = vpack.c.bf16 %v3721, %v3721
  %v4010 = vpack.c.bf16 %v3722, %v3722
  %v4011 = vpack.c.bf16 %v3723, %v3723
  %v4012 = vpack.c.bf16 %v3724, %v3724
  %v4013 = vpack.c.bf16 %v3725, %v3725
  %v4014 = vpack.c.bf16 %v3726, %v3726
  %v4015 = vpack.c.bf16 %v3727, %v3727
  %v4016 = vpack.c.bf16 %v3728, %v3728
  %v4017 = vpack.c.bf16 %v3729, %v3729
  %v4018 = vpack.c.bf16 %v3730, %v3730
  %v4019 = vpack.c.bf16 %v3731, %v3731
  %v4020 = vpack.c.bf16 %v3732, %v3732
  %v4021 = vpack.c.bf16 %v3733, %v3733
  %v4022 = vpack.c.bf16 %v3734, %v3734
  %v4023 = vpack.c.bf16 %v3735, %v3735
  %v4024 = vpack.c.bf16 %v3736, %v3736
  %v4025 = vpack.c.bf16 %v3737, %v3737
  %v4026 = vpack.c.bf16 %v3738, %v3738
  %v4027 = vpack.c.bf16 %v3739, %v3739
  %v4028 = vpack.c.bf16 %v3740, %v3740
  %v4029 = vpack.c.bf16 %v3741, %v3741
  %v4030 = vpack.c.bf16 %v3742, %v3742
  %v4031 = vpack.c.bf16 %v3743, %v3743
  %v4032 = vpack.c.bf16 %v3744, %v3744
  %v4033 = vpack.c.bf16 %v3745, %v3745
  %v4034 = vpack.c.bf16 %v3746, %v3746
  %v4035 = vpack.c.bf16 %v3747, %v3747
  %v4036 = vpack.c.bf16 %v3748, %v3748
  %v4037 = vpack.c.bf16 %v3749, %v3749
  %v4038 = vpack.c.bf16 %v3750, %v3750
  %v4039 = vpack.c.bf16 %v3751, %v3751
  %v4040 = vpack.c.bf16 %v3752, %v3752
  %v4041 = vpack.c.bf16 %v3753, %v3753
  %v4042 = vpack.c.bf16 %v3754, %v3754
  %v4043 = vpack.c.bf16 %v3755, %v3755
  %v4044 = vpack.c.bf16 %v3756, %v3756
  %v4045 = vpack.c.bf16 %v3757, %v3757
  %v4046 = vpack.c.bf16 %v3758, %v3758
  %v4047 = vpack.c.bf16 %v3759, %v3759
  %v4048 = vpack.c.bf16 %v3760, %v3760
  %v4049 = vpack.c.bf16 %v3761, %v3761
  %v4050 = vpack.c.bf16 %v3762, %v3762
  %v4051 = vpack.c.bf16 %v3763, %v3763
  %v4052 = vpack.c.bf16 %v3764, %v3764
  %v4053 = vpack.c.bf16 %v3765, %v3765
  %v4054 = vpack.c.bf16 %v3766, %v3766
  %v4055 = vpack.c.bf16 %v3767, %v3767
  %v4056 = vpack.c.bf16 %v3768, %v3768
  %v4057 = vpack.c.bf16 %v3769, %v3769
  %v4058 = vpack.c.bf16 %v3770, %v3770
  %v4059 = vpack.c.bf16 %v3771, %v3771
  %v4060 = vpack.c.bf16 %v3772, %v3772
  %v4061 = vpack.c.bf16 %v3773, %v3773
  %v4062 = vpack.c.bf16 %v3774, %v3774
  %v4063 = vpack.c.bf16 %v3775, %v3775
  %v4064 = vpack.c.bf16 %v3776, %v3776
  %v4065 = vpack.c.bf16 %v3777, %v3777
  %v4066 = vpack.c.bf16 %v3778, %v3778
  %v4067 = vpack.c.bf16 %v3779, %v3779
  %v4068 = vpack.c.bf16 %v3780, %v3780
  %v4069 = vpack.c.bf16 %v3781, %v3781
  %v4070 = vpack.c.bf16 %v3782, %v3782
  %v4071 = vpack.c.bf16 %v3783, %v3783
  %v4072 = vpack.c.bf16 %v3784, %v3784
  %v4073 = vpack.c.bf16 %v3785, %v3785
  %v4074 = vpack.c.bf16 %v3786, %v3786
  %v4075 = vpack.c.bf16 %v3787, %v3787
  %v4076 = vpack.c.bf16 %v3788, %v3788
  %v4077 = vpack.c.bf16 %v3789, %v3789
  %v4078 = vpack.c.bf16 %v3790, %v3790
  %v4079 = vpack.c.bf16 %v3791, %v3791
  %v4080 = vpack.c.bf16 %v3792, %v3792
  %v4081 = vpack.c.bf16 %v3793, %v3793
  %v4082 = vpack.c.bf16 %v3794, %v3794
  %v4083 = vpack.c.bf16 %v3795, %v3795
  %v4084 = vpack.c.bf16 %v3796, %v3796
  %v4085 = vpack.c.bf16 %v3797, %v3797
  %v4086 = vpack.c.bf16 %v3798, %v3798
  %v4087 = vpack.c.bf16 %v3799, %v3799
  %v4088 = vpack.c.bf16 %v3800, %v3800
  %v4089 = vpack.c.bf16 %v3801, %v3801
  %v4090 = vpack.c.bf16 %v3802, %v3802
  %v4091 = vpack.c.bf16 %v3803, %v3803
  %v4092 = vpack.c.bf16 %v3804, %v3804
  %v4093 = vpack.c.bf16 %v3805, %v3805
  %v4094 = vpack.c.bf16 %v3806, %v3806
  %v4095 = vpack.c.bf16 %v3807, %v3807
  %v4096 = vpack.c.bf16 %v3808, %v3808
  %v4097 = vpack.c.bf16 %v3809, %v3809
  %v4098 = vpack.c.bf16 %v3810, %v3810
  %v4099 = vpack.c.bf16 %v3811, %v3811
  %v4100 = vpack.c.bf16 %v3812, %v3812
  %v4101 = vpack.c.bf16 %v3813, %v3813
  %v4102 = vpack.c.bf16 %v3814, %v3814
  %v4103 = vpack.c.bf16 %v3815, %v3815
  %v4104 = vpack.c.bf16 %v3816, %v3816
  %v4105 = vpack.c.bf16 %v3817, %v3817
  %v4106 = vpack.c.bf16 %v3818, %v3818
  %v4107 = vpack.c.bf16 %v3819, %v3819
  %v4108 = vpack.c.bf16 %v3820, %v3820
  %v4109 = vpack.c.bf16 %v3821, %v3821
  %v4110 = vpack.c.bf16 %v3822, %v3822
  %v4111 = vpack.c.bf16 %v3823, %v3823
  %v4112 = vpack.c.bf16 %v3824, %v3824
  %v4113 = vpack.c.bf16 %v3825, %v3825
  %v4114 = vpack.c.bf16 %v3826, %v3826
  %v4115 = vpack.c.bf16 %v3827, %v3827
  %v4116 = vpack.c.bf16 %v3828, %v3828
  %v4117 = vpack.c.bf16 %v3829, %v3829
  %v4118 = vpack.c.bf16 %v3830, %v3830
  %v4119 = vpack.c.bf16 %v3831, %v3831
  %v4120 = vpack.c.bf16 %v3832, %v3832
  %v4121 = vpack.c.bf16 %v3833, %v3833
  %v4122 = vpack.c.bf16 %v3834, %v3834
  %v4123 = vpack.c.bf16 %v3835, %v3835
  %v4124 = vpack.c.bf16 %v3836, %v3836
  %v4125 = vpack.c.bf16 %v3837, %v3837
  %v4126 = vpack.c.bf16 %v3838, %v3838
  %v4127 = vpack.c.bf16 %v3839, %v3839
  %v4128 = vpack.c.bf16 %v3840, %v3840
  %v4129 = vpack.c.bf16 %v3841, %v3841
  %v4130 = vpack.c.bf16 %v3842, %v3842
  %v4131 = vpack.c.bf16 %v3843, %v3843
  %v4132 = vpack.c.bf16 %v3844, %v3844
  %v4133 = vpack.c.bf16 %v3845, %v3845
  %v4134 = vpack.c.bf16 %v3846, %v3846
  %v4135 = vpack.c.bf16 %v3847, %v3847
  %v4136 = vpack.c.bf16 %v3848, %v3848
  %v4137 = vpack.c.bf16 %v3849, %v3849
  %v4138 = vpack.c.bf16 %v3850, %v3850
  %v4139 = vpack.c.bf16 %v3851, %v3851
  %v4140 = vpack.c.bf16 %v3852, %v3852
  %v4141 = vpack.c.bf16 %v3853, %v3853
  %v4142 = vpack.c.bf16 %v3854, %v3854
  %v4143 = vpack.c.bf16 %v3855, %v3855
  %v4144 = vpack.c.bf16 %v3856, %v3856
  %v4145 = vpack.c.bf16 %v3857, %v3857
  %v4146 = vpack.c.bf16 %v3858, %v3858
  %v4147 = vpack.c.bf16 %v3859, %v3859
  %v4148 = vpack.c.bf16 %v3860, %v3860
  %v4149 = vpack.c.bf16 %v3861, %v3861
  %v4150 = vpack.c.bf16 %v3862, %v3862
  %v4151 = vpack.c.bf16 %v3863, %v3863
  %v4152 = vpack.c.bf16 %v3864, %v3864
  %v4153 = vpack.c.bf16 %v3865, %v3865
  %v4154 = vpack.c.bf16 %v3866, %v3866
  %v4155 = vpack.c.bf16 %v3867, %v3867
  %v4156 = vpack.c.bf16 %v3868, %v3868
  %v4157 = vpack.c.bf16 %v3869, %v3869
  %v4158 = vpack.c.bf16 %v3870, %v3870
  %v4159 = vpack.c.bf16 %v3871, %v3871
  %v4160 = vpack.c.bf16 %v3872, %v3872
  %v4161 = vpack.c.bf16 %v3873, %v3873
  %v4162 = vpack.c.bf16 %v3874, %v3874
  %v4163 = vpack.c.bf16 %v3875, %v3875
  %v4164 = vpack.c.bf16 %v3876, %v3876
  %v4165 = vpack.c.bf16 %v3877, %v3877
  %v4166 = vpack.c.bf16 %v3878, %v3878
  %v4167 = vpack.c.bf16 %v3879, %v3879
  %v4168 = vpack.c.bf16 %v3880, %v3880
  %v4169 = vpack.c.bf16 %v3881, %v3881
  %v4170 = vpack.c.bf16 %v3882, %v3882
  %v4171 = vpack.c.bf16 %v3883, %v3883
  %v4172 = vpack.c.bf16 %v3884, %v3884
  %v4173 = vpack.c.bf16 %v3885, %v3885
  %v4174 = vpack.c.bf16 %v3886, %v3886
  %v4175 = vpack.c.bf16 %v3887, %v3887
  %v4176 = vpack.c.bf16 %v3888, %v3888
  %v4177 = vpack.c.bf16 %v3889, %v3889
  %v4178 = vpack.c.bf16 %v3890, %v3890
  %v4179 = vpack.c.bf16 %v3891, %v3891
  %v4180 = vpack.c.bf16 %v3892, %v3892
  %v4181 = vpack.c.bf16 %v3893, %v3893
  %v4182 = vpack.c.bf16 %v3894, %v3894
  %v4183 = vpack.c.bf16 %v3895, %v3895
  %v4184 = vld [vmem:[%s3] sm:$0xf]
  %v4185 = vld [vmem:[%s3 + $0x4] sm:$0xf]
  %v4186 = vld [vmem:[%s3 + $0x8] sm:$0xf]
  %v4187 = vld [vmem:[%s3 + $0xc] sm:$0xf]
  %s4188 = scalar_lea.vmem %s3, 16
  %v4189 = vld [vmem:[%s4188] sm:$0xf]
  %v4190 = vld [vmem:[%s4188 + $0x4] sm:$0xf]
  %v4191 = vld [vmem:[%s4188 + $0x8] sm:$0xf]
  %v4192 = vld [vmem:[%s4188 + $0xc] sm:$0xf]
  %v4203 = vunpack.c.l.b16 %v3908
  %v4204 = vunpack.c.l.b16 %v3909
  %v4205 = vunpack.c.l.b16 %v3910
  %v4206 = vunpack.c.l.b16 %v3911
  %v4207 = vunpack.c.l.b16 %v3912
  %v4208 = vunpack.c.l.b16 %v3913
  %v4209 = vunpack.c.l.b16 %v3914
  %v4210 = vunpack.c.l.b16 %v3915
  %v4211 = vunpack.c.l.b16 %v3916
  %v4212 = vunpack.c.l.b16 %v3917
  %v4213 = vpack.c.b16 %v4204, %v4203
  %v4214 = vpack.c.b16 %v4206, %v4205
  %v4215 = vpack.c.b16 %v4208, %v4207
  %v4216 = vpack.c.b16 %v4210, %v4209
  %v4217 = vpack.c.b16 %v4212, %v4211
  %v4222 = vunpack.c.l.b16 %v4189
  %v4223 = vunpack.c.l.b16 %v4190
  %v4224 = vunpack.c.l.b16 %v4191
  %v4225 = vunpack.c.l.b16 %v4192
  %v4226 = vpack.c.b16 %v4223, %v4222
  %v4227 = vpack.c.b16 %v4225, %v4224
  %vm4230 = vcmask 261120
  %v4232 = vsel %vm4230, %v4213, 0
  %v4235 = vsel %vm4230, %v4214, 0
  %v4238 = vsel %vm4230, %v4215, 0
  %v4241 = vsel %vm4230, %v4216, 0
  %v4244 = vsel %vm4230, %v4217, 0
  %4246 = vmatpush.bf16.msra.mxu0 0
  %4247 = vmatpush.bf16.msra.mxu0 0
  %4248 = vmatpush.bf16.msra.mxu0 0
  %4249 = vmatpush.bf16.msra.mxu0 0
  %4250 = vmatpush.bf16.msra.mxu0 0
  %4251 = vmatpush.bf16.msra.mxu0 0
  %4252 = vmatpush.bf16.msra.mxu0 %v4227
  %4253 = vmatpush.bf16.msra.mxu0 %v4226
  %4254 = vmatmul.bf16.gmra.mxu0 %v4232
  %v4255 = vpop.f32.mrf.mxu0
  %v4256 = vadd.f32 0.0, %v4255
  %v4257 = vpop.f32.mrf.mxu0
  %v4258 = vadd.f32 0.0, %v4257
  %4259 = vmatmul.bf16.gmra.mxu0 %v4235
  %v4260 = vpop.f32.mrf.mxu0
  %v4261 = vadd.f32 0.0, %v4260
  %v4262 = vpop.f32.mrf.mxu0
  %v4263 = vadd.f32 0.0, %v4262
  %4264 = vmatmul.bf16.gmra.mxu0 %v4238
  %v4265 = vpop.f32.mrf.mxu0
  %v4266 = vadd.f32 0.0, %v4265
  %v4267 = vpop.f32.mrf.mxu0
  %v4268 = vadd.f32 0.0, %v4267
  %4269 = vmatmul.bf16.gmra.mxu0 %v4241
  %v4270 = vpop.f32.mrf.mxu0
  %v4271 = vadd.f32 0.0, %v4270
  %v4272 = vpop.f32.mrf.mxu0
  %v4273 = vadd.f32 0.0, %v4272
  %4274 = vmatmul.bf16.gmra.mxu0 %v4244
  %v4275 = vpop.f32.mrf.mxu0
  %v4276 = vadd.f32 0.0, %v4275
  %v4277 = vpop.f32.mrf.mxu0
  %v4278 = vadd.f32 0.0, %v4277
  %4279 = vdwg.mxu0
  %v4290 = vunpack.c.l.b16 %v3896
  %v4291 = vunpack.c.l.b16 %v3897
  %v4292 = vunpack.c.l.b16 %v3898
  %v4293 = vunpack.c.l.b16 %v3899
  %v4294 = vunpack.c.l.b16 %v3900
  %v4295 = vunpack.c.l.b16 %v3901
  %v4296 = vunpack.c.l.b16 %v3902
  %v4297 = vunpack.c.l.b16 %v3903
  %v4298 = vunpack.c.l.b16 %v3904
  %v4299 = vunpack.c.l.b16 %v3905
  %v4300 = vpack.c.b16 %v4291, %v4290
  %v4301 = vpack.c.b16 %v4293, %v4292
  %v4302 = vpack.c.b16 %v4295, %v4294
  %v4303 = vpack.c.b16 %v4297, %v4296
  %v4304 = vpack.c.b16 %v4299, %v4298
  %v4309 = vunpack.c.l.b16 %v4184
  %v4310 = vunpack.c.l.b16 %v4185
  %v4311 = vunpack.c.l.b16 %v4186
  %v4312 = vunpack.c.l.b16 %v4187
  %v4313 = vpack.c.b16 %v4310, %v4309
  %v4314 = vpack.c.b16 %v4312, %v4311
  %v4318 = vsel %vm4230, %v4300, 0
  %v4321 = vsel %vm4230, %v4301, 0
  %v4324 = vsel %vm4230, %v4302, 0
  %v4327 = vsel %vm4230, %v4303, 0
  %v4330 = vsel %vm4230, %v4304, 0
  %4332 = vmatpush.bf16.msra.mxu0 0
  %4333 = vmatpush.bf16.msra.mxu0 0
  %4334 = vmatpush.bf16.msra.mxu0 0
  %4335 = vmatpush.bf16.msra.mxu0 0
  %4336 = vmatpush.bf16.msra.mxu0 0
  %4337 = vmatpush.bf16.msra.mxu0 0
  %4338 = vmatpush.bf16.msra.mxu0 %v4314
  %4339 = vmatpush.bf16.msra.mxu0 %v4313
  %4340 = vmatmul.bf16.gmra.mxu0 %v4318
  %v4341 = vpop.f32.mrf.mxu0
  %v4342 = vadd.f32 %v4256, %v4341
  %v4343 = vpop.f32.mrf.mxu0
  %v4344 = vadd.f32 %v4258, %v4343
  %4345 = vmatmul.bf16.gmra.mxu0 %v4321
  %v4346 = vpop.f32.mrf.mxu0
  %v4347 = vadd.f32 %v4261, %v4346
  %v4348 = vpop.f32.mrf.mxu0
  %v4349 = vadd.f32 %v4263, %v4348
  %4350 = vmatmul.bf16.gmra.mxu0 %v4324
  %v4351 = vpop.f32.mrf.mxu0
  %v4352 = vadd.f32 %v4266, %v4351
  %v4353 = vpop.f32.mrf.mxu0
  %v4354 = vadd.f32 %v4268, %v4353
  %4355 = vmatmul.bf16.gmra.mxu0 %v4327
  %v4356 = vpop.f32.mrf.mxu0
  %v4357 = vadd.f32 %v4271, %v4356
  %v4358 = vpop.f32.mrf.mxu0
  %v4359 = vadd.f32 %v4273, %v4358
  %4360 = vmatmul.bf16.gmra.mxu0 %v4330
  %v4361 = vpop.f32.mrf.mxu0
  %v4362 = vadd.f32 %v4276, %v4361
  %v4363 = vpop.f32.mrf.mxu0
  %v4364 = vadd.f32 %v4278, %v4363
  %4365 = vdwg.mxu0
  %v4376 = vunpack.c.l.b16 %v3956
  %v4377 = vunpack.c.l.b16 %v3957
  %v4378 = vunpack.c.l.b16 %v3958
  %v4379 = vunpack.c.l.b16 %v3959
  %v4380 = vunpack.c.l.b16 %v3960
  %v4381 = vunpack.c.l.b16 %v3961
  %v4382 = vunpack.c.l.b16 %v3962
  %v4383 = vunpack.c.l.b16 %v3963
  %v4384 = vunpack.c.l.b16 %v3964
  %v4385 = vunpack.c.l.b16 %v3965
  %v4386 = vpack.c.b16 %v4377, %v4376
  %v4387 = vpack.c.b16 %v4379, %v4378
  %v4388 = vpack.c.b16 %v4381, %v4380
  %v4389 = vpack.c.b16 %v4383, %v4382
  %v4390 = vpack.c.b16 %v4385, %v4384
  %v4392 = vsel %vm4230, %v4386, 0
  %v4395 = vsel %vm4230, %v4387, 0
  %v4398 = vsel %vm4230, %v4388, 0
  %v4401 = vsel %vm4230, %v4389, 0
  %v4404 = vsel %vm4230, %v4390, 0
  %4406 = vmatpush.bf16.msra.mxu0 0
  %4407 = vmatpush.bf16.msra.mxu0 0
  %4408 = vmatpush.bf16.msra.mxu0 0
  %4409 = vmatpush.bf16.msra.mxu0 0
  %4410 = vmatpush.bf16.msra.mxu0 0
  %4411 = vmatpush.bf16.msra.mxu0 0
  %4412 = vmatpush.bf16.msra.mxu0 %v4227
  %4413 = vmatpush.bf16.msra.mxu0 %v4226
  %4414 = vmatmul.bf16.gmra.mxu0 %v4392
  %v4415 = vpop.f32.mrf.mxu0
  %v4416 = vadd.f32 0.0, %v4415
  %v4417 = vpop.f32.mrf.mxu0
  %v4418 = vadd.f32 0.0, %v4417
  %4419 = vmatmul.bf16.gmra.mxu0 %v4395
  %v4420 = vpop.f32.mrf.mxu0
  %v4421 = vadd.f32 0.0, %v4420
  %v4422 = vpop.f32.mrf.mxu0
  %v4423 = vadd.f32 0.0, %v4422
  %4424 = vmatmul.bf16.gmra.mxu0 %v4398
  %v4425 = vpop.f32.mrf.mxu0
  %v4426 = vadd.f32 0.0, %v4425
  %v4427 = vpop.f32.mrf.mxu0
  %v4428 = vadd.f32 0.0, %v4427
  %4429 = vmatmul.bf16.gmra.mxu0 %v4401
  %v4430 = vpop.f32.mrf.mxu0
  %v4431 = vadd.f32 0.0, %v4430
  %v4432 = vpop.f32.mrf.mxu0
  %v4433 = vadd.f32 0.0, %v4432
  %4434 = vmatmul.bf16.gmra.mxu0 %v4404
  %v4435 = vpop.f32.mrf.mxu0
  %v4436 = vadd.f32 0.0, %v4435
  %v4437 = vpop.f32.mrf.mxu0
  %v4438 = vadd.f32 0.0, %v4437
  %4439 = vdwg.mxu0
  %v4450 = vunpack.c.l.b16 %v3944
  %v4451 = vunpack.c.l.b16 %v3945
  %v4452 = vunpack.c.l.b16 %v3946
  %v4453 = vunpack.c.l.b16 %v3947
  %v4454 = vunpack.c.l.b16 %v3948
  %v4455 = vunpack.c.l.b16 %v3949
  %v4456 = vunpack.c.l.b16 %v3950
  %v4457 = vunpack.c.l.b16 %v3951
  %v4458 = vunpack.c.l.b16 %v3952
  %v4459 = vunpack.c.l.b16 %v3953
  %v4460 = vpack.c.b16 %v4451, %v4450
  %v4461 = vpack.c.b16 %v4453, %v4452
  %v4462 = vpack.c.b16 %v4455, %v4454
  %v4463 = vpack.c.b16 %v4457, %v4456
  %v4464 = vpack.c.b16 %v4459, %v4458
  %v4466 = vsel %vm4230, %v4460, 0
  %v4469 = vsel %vm4230, %v4461, 0
  %v4472 = vsel %vm4230, %v4462, 0
  %v4475 = vsel %vm4230, %v4463, 0
  %v4478 = vsel %vm4230, %v4464, 0
  %4480 = vmatpush.bf16.msra.mxu0 0
  %4481 = vmatpush.bf16.msra.mxu0 0
  %4482 = vmatpush.bf16.msra.mxu0 0
  %4483 = vmatpush.bf16.msra.mxu0 0
  %4484 = vmatpush.bf16.msra.mxu0 0
  %4485 = vmatpush.bf16.msra.mxu0 0
  %4486 = vmatpush.bf16.msra.mxu0 %v4314
  %4487 = vmatpush.bf16.msra.mxu0 %v4313
  %4488 = vmatmul.bf16.gmra.mxu0 %v4466
  %v4489 = vpop.f32.mrf.mxu0
  %v4490 = vadd.f32 %v4416, %v4489
  %v4491 = vpop.f32.mrf.mxu0
  %v4492 = vadd.f32 %v4418, %v4491
  %4493 = vmatmul.bf16.gmra.mxu0 %v4469
  %v4494 = vpop.f32.mrf.mxu0
  %v4495 = vadd.f32 %v4421, %v4494
  %v4496 = vpop.f32.mrf.mxu0
  %v4497 = vadd.f32 %v4423, %v4496
  %4498 = vmatmul.bf16.gmra.mxu0 %v4472
  %v4499 = vpop.f32.mrf.mxu0
  %v4500 = vadd.f32 %v4426, %v4499
  %v4501 = vpop.f32.mrf.mxu0
  %v4502 = vadd.f32 %v4428, %v4501
  %4503 = vmatmul.bf16.gmra.mxu0 %v4475
  %v4504 = vpop.f32.mrf.mxu0
  %v4505 = vadd.f32 %v4431, %v4504
  %v4506 = vpop.f32.mrf.mxu0
  %v4507 = vadd.f32 %v4433, %v4506
  %4508 = vmatmul.bf16.gmra.mxu0 %v4478
  %v4509 = vpop.f32.mrf.mxu0
  %v4510 = vadd.f32 %v4436, %v4509
  %v4511 = vpop.f32.mrf.mxu0
  %v4512 = vadd.f32 %v4438, %v4511
  %4513 = vdwg.mxu0
  %v4524 = vunpack.c.l.b16 %v4004
  %v4525 = vunpack.c.l.b16 %v4005
  %v4526 = vunpack.c.l.b16 %v4006
  %v4527 = vunpack.c.l.b16 %v4007
  %v4528 = vunpack.c.l.b16 %v4008
  %v4529 = vunpack.c.l.b16 %v4009
  %v4530 = vunpack.c.l.b16 %v4010
  %v4531 = vunpack.c.l.b16 %v4011
  %v4532 = vunpack.c.l.b16 %v4012
  %v4533 = vunpack.c.l.b16 %v4013
  %v4534 = vpack.c.b16 %v4525, %v4524
  %v4535 = vpack.c.b16 %v4527, %v4526
  %v4536 = vpack.c.b16 %v4529, %v4528
  %v4537 = vpack.c.b16 %v4531, %v4530
  %v4538 = vpack.c.b16 %v4533, %v4532
  %v4540 = vsel %vm4230, %v4534, 0
  %v4543 = vsel %vm4230, %v4535, 0
  %v4546 = vsel %vm4230, %v4536, 0
  %v4549 = vsel %vm4230, %v4537, 0
  %v4552 = vsel %vm4230, %v4538, 0
  %4554 = vmatpush.bf16.msra.mxu0 0
  %4555 = vmatpush.bf16.msra.mxu0 0
  %4556 = vmatpush.bf16.msra.mxu0 0
  %4557 = vmatpush.bf16.msra.mxu0 0
  %4558 = vmatpush.bf16.msra.mxu0 0
  %4559 = vmatpush.bf16.msra.mxu0 0
  %4560 = vmatpush.bf16.msra.mxu0 %v4227
  %4561 = vmatpush.bf16.msra.mxu0 %v4226
  %4562 = vmatmul.bf16.gmra.mxu0 %v4540
  %v4563 = vpop.f32.mrf.mxu0
  %v4564 = vadd.f32 0.0, %v4563
  %v4565 = vpop.f32.mrf.mxu0
  %v4566 = vadd.f32 0.0, %v4565
  %4567 = vmatmul.bf16.gmra.mxu0 %v4543
  %v4568 = vpop.f32.mrf.mxu0
  %v4569 = vadd.f32 0.0, %v4568
  %v4570 = vpop.f32.mrf.mxu0
  %v4571 = vadd.f32 0.0, %v4570
  %4572 = vmatmul.bf16.gmra.mxu0 %v4546
  %v4573 = vpop.f32.mrf.mxu0
  %v4574 = vadd.f32 0.0, %v4573
  %v4575 = vpop.f32.mrf.mxu0
  %v4576 = vadd.f32 0.0, %v4575
  %4577 = vmatmul.bf16.gmra.mxu0 %v4549
  %v4578 = vpop.f32.mrf.mxu0
  %v4579 = vadd.f32 0.0, %v4578
  %v4580 = vpop.f32.mrf.mxu0
  %v4581 = vadd.f32 0.0, %v4580
  %4582 = vmatmul.bf16.gmra.mxu0 %v4552
  %v4583 = vpop.f32.mrf.mxu0
  %v4584 = vadd.f32 0.0, %v4583
  %v4585 = vpop.f32.mrf.mxu0
  %v4586 = vadd.f32 0.0, %v4585
  %4587 = vdwg.mxu0
  %v4598 = vunpack.c.l.b16 %v3992
  %v4599 = vunpack.c.l.b16 %v3993
  %v4600 = vunpack.c.l.b16 %v3994
  %v4601 = vunpack.c.l.b16 %v3995
  %v4602 = vunpack.c.l.b16 %v3996
  %v4603 = vunpack.c.l.b16 %v3997
  %v4604 = vunpack.c.l.b16 %v3998
  %v4605 = vunpack.c.l.b16 %v3999
  %v4606 = vunpack.c.l.b16 %v4000
  %v4607 = vunpack.c.l.b16 %v4001
  %v4608 = vpack.c.b16 %v4599, %v4598
  %v4609 = vpack.c.b16 %v4601, %v4600
  %v4610 = vpack.c.b16 %v4603, %v4602
  %v4611 = vpack.c.b16 %v4605, %v4604
  %v4612 = vpack.c.b16 %v4607, %v4606
  %v4614 = vsel %vm4230, %v4608, 0
  %v4617 = vsel %vm4230, %v4609, 0
  %v4620 = vsel %vm4230, %v4610, 0
  %v4623 = vsel %vm4230, %v4611, 0
  %v4626 = vsel %vm4230, %v4612, 0
  %4628 = vmatpush.bf16.msra.mxu0 0
  %4629 = vmatpush.bf16.msra.mxu0 0
  %4630 = vmatpush.bf16.msra.mxu0 0
  %4631 = vmatpush.bf16.msra.mxu0 0
  %4632 = vmatpush.bf16.msra.mxu0 0
  %4633 = vmatpush.bf16.msra.mxu0 0
  %4634 = vmatpush.bf16.msra.mxu0 %v4314
  %4635 = vmatpush.bf16.msra.mxu0 %v4313
  %4636 = vmatmul.bf16.gmra.mxu0 %v4614
  %v4637 = vpop.f32.mrf.mxu0
  %v4638 = vadd.f32 %v4564, %v4637
  %v4639 = vpop.f32.mrf.mxu0
  %v4640 = vadd.f32 %v4566, %v4639
  %4641 = vmatmul.bf16.gmra.mxu0 %v4617
  %v4642 = vpop.f32.mrf.mxu0
  %v4643 = vadd.f32 %v4569, %v4642
  %v4644 = vpop.f32.mrf.mxu0
  %v4645 = vadd.f32 %v4571, %v4644
  %4646 = vmatmul.bf16.gmra.mxu0 %v4620
  %v4647 = vpop.f32.mrf.mxu0
  %v4648 = vadd.f32 %v4574, %v4647
  %v4649 = vpop.f32.mrf.mxu0
  %v4650 = vadd.f32 %v4576, %v4649
  %4651 = vmatmul.bf16.gmra.mxu0 %v4623
  %v4652 = vpop.f32.mrf.mxu0
  %v4653 = vadd.f32 %v4579, %v4652
  %v4654 = vpop.f32.mrf.mxu0
  %v4655 = vadd.f32 %v4581, %v4654
  %4656 = vmatmul.bf16.gmra.mxu0 %v4626
  %v4657 = vpop.f32.mrf.mxu0
  %v4658 = vadd.f32 %v4584, %v4657
  %v4659 = vpop.f32.mrf.mxu0
  %v4660 = vadd.f32 %v4586, %v4659
  %4661 = vdwg.mxu0
  %v4672 = vunpack.c.l.b16 %v4052
  %v4673 = vunpack.c.l.b16 %v4053
  %v4674 = vunpack.c.l.b16 %v4054
  %v4675 = vunpack.c.l.b16 %v4055
  %v4676 = vunpack.c.l.b16 %v4056
  %v4677 = vunpack.c.l.b16 %v4057
  %v4678 = vunpack.c.l.b16 %v4058
  %v4679 = vunpack.c.l.b16 %v4059
  %v4680 = vunpack.c.l.b16 %v4060
  %v4681 = vunpack.c.l.b16 %v4061
  %v4682 = vpack.c.b16 %v4673, %v4672
  %v4683 = vpack.c.b16 %v4675, %v4674
  %v4684 = vpack.c.b16 %v4677, %v4676
  %v4685 = vpack.c.b16 %v4679, %v4678
  %v4686 = vpack.c.b16 %v4681, %v4680
  %v4688 = vsel %vm4230, %v4682, 0
  %v4691 = vsel %vm4230, %v4683, 0
  %v4694 = vsel %vm4230, %v4684, 0
  %v4697 = vsel %vm4230, %v4685, 0
  %v4700 = vsel %vm4230, %v4686, 0
  %4702 = vmatpush.bf16.msra.mxu0 0
  %4703 = vmatpush.bf16.msra.mxu0 0
  %4704 = vmatpush.bf16.msra.mxu0 0
  %4705 = vmatpush.bf16.msra.mxu0 0
  %4706 = vmatpush.bf16.msra.mxu0 0
  %4707 = vmatpush.bf16.msra.mxu0 0
  %4708 = vmatpush.bf16.msra.mxu0 %v4227
  %4709 = vmatpush.bf16.msra.mxu0 %v4226
  %4710 = vmatmul.bf16.gmra.mxu0 %v4688
  %v4711 = vpop.f32.mrf.mxu0
  %v4712 = vadd.f32 0.0, %v4711
  %v4713 = vpop.f32.mrf.mxu0
  %v4714 = vadd.f32 0.0, %v4713
  %4715 = vmatmul.bf16.gmra.mxu0 %v4691
  %v4716 = vpop.f32.mrf.mxu0
  %v4717 = vadd.f32 0.0, %v4716
  %v4718 = vpop.f32.mrf.mxu0
  %v4719 = vadd.f32 0.0, %v4718
  %4720 = vmatmul.bf16.gmra.mxu0 %v4694
  %v4721 = vpop.f32.mrf.mxu0
  %v4722 = vadd.f32 0.0, %v4721
  %v4723 = vpop.f32.mrf.mxu0
  %v4724 = vadd.f32 0.0, %v4723
  %4725 = vmatmul.bf16.gmra.mxu0 %v4697
  %v4726 = vpop.f32.mrf.mxu0
  %v4727 = vadd.f32 0.0, %v4726
  %v4728 = vpop.f32.mrf.mxu0
  %v4729 = vadd.f32 0.0, %v4728
  %4730 = vmatmul.bf16.gmra.mxu0 %v4700
  %v4731 = vpop.f32.mrf.mxu0
  %v4732 = vadd.f32 0.0, %v4731
  %v4733 = vpop.f32.mrf.mxu0
  %v4734 = vadd.f32 0.0, %v4733
  %4735 = vdwg.mxu0
  %v4746 = vunpack.c.l.b16 %v4040
  %v4747 = vunpack.c.l.b16 %v4041
  %v4748 = vunpack.c.l.b16 %v4042
  %v4749 = vunpack.c.l.b16 %v4043
  %v4750 = vunpack.c.l.b16 %v4044
  %v4751 = vunpack.c.l.b16 %v4045
  %v4752 = vunpack.c.l.b16 %v4046
  %v4753 = vunpack.c.l.b16 %v4047
  %v4754 = vunpack.c.l.b16 %v4048
  %v4755 = vunpack.c.l.b16 %v4049
  %v4756 = vpack.c.b16 %v4747, %v4746
  %v4757 = vpack.c.b16 %v4749, %v4748
  %v4758 = vpack.c.b16 %v4751, %v4750
  %v4759 = vpack.c.b16 %v4753, %v4752
  %v4760 = vpack.c.b16 %v4755, %v4754
  %v4762 = vsel %vm4230, %v4756, 0
  %v4765 = vsel %vm4230, %v4757, 0
  %v4768 = vsel %vm4230, %v4758, 0
  %v4771 = vsel %vm4230, %v4759, 0
  %v4774 = vsel %vm4230, %v4760, 0
  %4776 = vmatpush.bf16.msra.mxu0 0
  %4777 = vmatpush.bf16.msra.mxu0 0
  %4778 = vmatpush.bf16.msra.mxu0 0
  %4779 = vmatpush.bf16.msra.mxu0 0
  %4780 = vmatpush.bf16.msra.mxu0 0
  %4781 = vmatpush.bf16.msra.mxu0 0
  %4782 = vmatpush.bf16.msra.mxu0 %v4314
  %4783 = vmatpush.bf16.msra.mxu0 %v4313
  %4784 = vmatmul.bf16.gmra.mxu0 %v4762
  %v4785 = vpop.f32.mrf.mxu0
  %v4786 = vadd.f32 %v4712, %v4785
  %v4787 = vpop.f32.mrf.mxu0
  %v4788 = vadd.f32 %v4714, %v4787
  %4789 = vmatmul.bf16.gmra.mxu0 %v4765
  %v4790 = vpop.f32.mrf.mxu0
  %v4791 = vadd.f32 %v4717, %v4790
  %v4792 = vpop.f32.mrf.mxu0
  %v4793 = vadd.f32 %v4719, %v4792
  %4794 = vmatmul.bf16.gmra.mxu0 %v4768
  %v4795 = vpop.f32.mrf.mxu0
  %v4796 = vadd.f32 %v4722, %v4795
  %v4797 = vpop.f32.mrf.mxu0
  %v4798 = vadd.f32 %v4724, %v4797
  %4799 = vmatmul.bf16.gmra.mxu0 %v4771
  %v4800 = vpop.f32.mrf.mxu0
  %v4801 = vadd.f32 %v4727, %v4800
  %v4802 = vpop.f32.mrf.mxu0
  %v4803 = vadd.f32 %v4729, %v4802
  %4804 = vmatmul.bf16.gmra.mxu0 %v4774
  %v4805 = vpop.f32.mrf.mxu0
  %v4806 = vadd.f32 %v4732, %v4805
  %v4807 = vpop.f32.mrf.mxu0
  %v4808 = vadd.f32 %v4734, %v4807
  %4809 = vdwg.mxu0
  %v4820 = vunpack.c.l.b16 %v4100
  %v4821 = vunpack.c.l.b16 %v4101
  %v4822 = vunpack.c.l.b16 %v4102
  %v4823 = vunpack.c.l.b16 %v4103
  %v4824 = vunpack.c.l.b16 %v4104
  %v4825 = vunpack.c.l.b16 %v4105
  %v4826 = vunpack.c.l.b16 %v4106
  %v4827 = vunpack.c.l.b16 %v4107
  %v4828 = vunpack.c.l.b16 %v4108
  %v4829 = vunpack.c.l.b16 %v4109
  %v4830 = vpack.c.b16 %v4821, %v4820
  %v4831 = vpack.c.b16 %v4823, %v4822
  %v4832 = vpack.c.b16 %v4825, %v4824
  %v4833 = vpack.c.b16 %v4827, %v4826
  %v4834 = vpack.c.b16 %v4829, %v4828
  %v4836 = vsel %vm4230, %v4830, 0
  %v4839 = vsel %vm4230, %v4831, 0
  %v4842 = vsel %vm4230, %v4832, 0
  %v4845 = vsel %vm4230, %v4833, 0
  %v4848 = vsel %vm4230, %v4834, 0
  %4850 = vmatpush.bf16.msra.mxu0 0
  %4851 = vmatpush.bf16.msra.mxu0 0
  %4852 = vmatpush.bf16.msra.mxu0 0
  %4853 = vmatpush.bf16.msra.mxu0 0
  %4854 = vmatpush.bf16.msra.mxu0 0
  %4855 = vmatpush.bf16.msra.mxu0 0
  %4856 = vmatpush.bf16.msra.mxu0 %v4227
  %4857 = vmatpush.bf16.msra.mxu0 %v4226
  %4858 = vmatmul.bf16.gmra.mxu0 %v4836
  %v4859 = vpop.f32.mrf.mxu0
  %v4860 = vadd.f32 0.0, %v4859
  %v4861 = vpop.f32.mrf.mxu0
  %v4862 = vadd.f32 0.0, %v4861
  %4863 = vmatmul.bf16.gmra.mxu0 %v4839
  %v4864 = vpop.f32.mrf.mxu0
  %v4865 = vadd.f32 0.0, %v4864
  %v4866 = vpop.f32.mrf.mxu0
  %v4867 = vadd.f32 0.0, %v4866
  %4868 = vmatmul.bf16.gmra.mxu0 %v4842
  %v4869 = vpop.f32.mrf.mxu0
  %v4870 = vadd.f32 0.0, %v4869
  %v4871 = vpop.f32.mrf.mxu0
  %v4872 = vadd.f32 0.0, %v4871
  %4873 = vmatmul.bf16.gmra.mxu0 %v4845
  %v4874 = vpop.f32.mrf.mxu0
  %v4875 = vadd.f32 0.0, %v4874
  %v4876 = vpop.f32.mrf.mxu0
  %v4877 = vadd.f32 0.0, %v4876
  %4878 = vmatmul.bf16.gmra.mxu0 %v4848
  %v4879 = vpop.f32.mrf.mxu0
  %v4880 = vadd.f32 0.0, %v4879
  %v4881 = vpop.f32.mrf.mxu0
  %v4882 = vadd.f32 0.0, %v4881
  %4883 = vdwg.mxu0
  %v4894 = vunpack.c.l.b16 %v4088
  %v4895 = vunpack.c.l.b16 %v4089
  %v4896 = vunpack.c.l.b16 %v4090
  %v4897 = vunpack.c.l.b16 %v4091
  %v4898 = vunpack.c.l.b16 %v4092
  %v4899 = vunpack.c.l.b16 %v4093
  %v4900 = vunpack.c.l.b16 %v4094
  %v4901 = vunpack.c.l.b16 %v4095
  %v4902 = vunpack.c.l.b16 %v4096
  %v4903 = vunpack.c.l.b16 %v4097
  %v4904 = vpack.c.b16 %v4895, %v4894
  %v4905 = vpack.c.b16 %v4897, %v4896
  %v4906 = vpack.c.b16 %v4899, %v4898
  %v4907 = vpack.c.b16 %v4901, %v4900
  %v4908 = vpack.c.b16 %v4903, %v4902
  %v4910 = vsel %vm4230, %v4904, 0
  %v4913 = vsel %vm4230, %v4905, 0
  %v4916 = vsel %vm4230, %v4906, 0
  %v4919 = vsel %vm4230, %v4907, 0
  %v4922 = vsel %vm4230, %v4908, 0
  %4924 = vmatpush.bf16.msra.mxu0 0
  %4925 = vmatpush.bf16.msra.mxu0 0
  %4926 = vmatpush.bf16.msra.mxu0 0
  %4927 = vmatpush.bf16.msra.mxu0 0
  %4928 = vmatpush.bf16.msra.mxu0 0
  %4929 = vmatpush.bf16.msra.mxu0 0
  %4930 = vmatpush.bf16.msra.mxu0 %v4314
  %4931 = vmatpush.bf16.msra.mxu0 %v4313
  %4932 = vmatmul.bf16.gmra.mxu0 %v4910
  %v4933 = vpop.f32.mrf.mxu0
  %v4934 = vadd.f32 %v4860, %v4933
  %v4935 = vpop.f32.mrf.mxu0
  %v4936 = vadd.f32 %v4862, %v4935
  %4937 = vmatmul.bf16.gmra.mxu0 %v4913
  %v4938 = vpop.f32.mrf.mxu0
  %v4939 = vadd.f32 %v4865, %v4938
  %v4940 = vpop.f32.mrf.mxu0
  %v4941 = vadd.f32 %v4867, %v4940
  %4942 = vmatmul.bf16.gmra.mxu0 %v4916
  %v4943 = vpop.f32.mrf.mxu0
  %v4944 = vadd.f32 %v4870, %v4943
  %v4945 = vpop.f32.mrf.mxu0
  %v4946 = vadd.f32 %v4872, %v4945
  %4947 = vmatmul.bf16.gmra.mxu0 %v4919
  %v4948 = vpop.f32.mrf.mxu0
  %v4949 = vadd.f32 %v4875, %v4948
  %v4950 = vpop.f32.mrf.mxu0
  %v4951 = vadd.f32 %v4877, %v4950
  %4952 = vmatmul.bf16.gmra.mxu0 %v4922
  %v4953 = vpop.f32.mrf.mxu0
  %v4954 = vadd.f32 %v4880, %v4953
  %v4955 = vpop.f32.mrf.mxu0
  %v4956 = vadd.f32 %v4882, %v4955
  %4957 = vdwg.mxu0
  %s4958 = scalar_lea.vmem %s3, 32
  %v4959 = vld [vmem:[%s4958] sm:$0xf]
  %v4960 = vld [vmem:[%s4958 + $0x4] sm:$0xf]
  %v4961 = vld [vmem:[%s4958 + $0x8] sm:$0xf]
  %v4962 = vld [vmem:[%s4958 + $0xc] sm:$0xf]
  %v4965 = vunpack.c.l.b16 %v3906
  %v4966 = vunpack.c.l.b16 %v3907
  %v4967 = vpack.c.b16 %v4966, %v4965
  %v4972 = vunpack.c.l.b16 %v4959
  %v4973 = vunpack.c.l.b16 %v4960
  %v4974 = vunpack.c.l.b16 %v4961
  %v4975 = vunpack.c.l.b16 %v4962
  %v4976 = vpack.c.b16 %v4973, %v4972
  %v4977 = vpack.c.b16 %v4975, %v4974
  %v4981 = vsel %vm4230, %v4967, 0
  %4983 = vmatpush.bf16.msra.mxu0 0
  %4984 = vmatpush.bf16.msra.mxu0 0
  %4985 = vmatpush.bf16.msra.mxu0 0
  %4986 = vmatpush.bf16.msra.mxu0 0
  %4987 = vmatpush.bf16.msra.mxu0 0
  %4988 = vmatpush.bf16.msra.mxu0 0
  %4989 = vmatpush.bf16.msra.mxu0 %v4977
  %4990 = vmatpush.bf16.msra.mxu0 %v4976
  %4991 = vmatmul.bf16.gmra.mxu0 %v4321
  %v4992 = vpop.f32.mrf.mxu0
  %v4993 = vadd.f32 0.0, %v4992
  %v4994 = vpop.f32.mrf.mxu0
  %v4995 = vadd.f32 0.0, %v4994
  %4996 = vmatmul.bf16.gmra.mxu0 %v4324
  %v4997 = vpop.f32.mrf.mxu0
  %v4998 = vadd.f32 0.0, %v4997
  %v4999 = vpop.f32.mrf.mxu0
  %v5000 = vadd.f32 0.0, %v4999
  %5001 = vmatmul.bf16.gmra.mxu0 %v4327
  %v5002 = vpop.f32.mrf.mxu0
  %v5003 = vadd.f32 0.0, %v5002
  %v5004 = vpop.f32.mrf.mxu0
  %v5005 = vadd.f32 0.0, %v5004
  %5006 = vmatmul.bf16.gmra.mxu0 %v4330
  %v5007 = vpop.f32.mrf.mxu0
  %v5008 = vadd.f32 0.0, %v5007
  %v5009 = vpop.f32.mrf.mxu0
  %v5010 = vadd.f32 0.0, %v5009
  %5011 = vmatmul.bf16.gmra.mxu0 %v4981
  %v5012 = vpop.f32.mrf.mxu0
  %v5013 = vadd.f32 0.0, %v5012
  %v5014 = vpop.f32.mrf.mxu0
  %v5015 = vadd.f32 0.0, %v5014
  %5016 = vdwg.mxu0
  %v5017 = vadd.f32 %v4342, %v4993
  %v5018 = vadd.f32 %v4344, %v4995
  %v5019 = vadd.f32 %v4347, %v4998
  %v5020 = vadd.f32 %v4349, %v5000
  %v5021 = vadd.f32 %v4352, %v5003
  %v5022 = vadd.f32 %v4354, %v5005
  %v5023 = vadd.f32 %v4357, %v5008
  %v5024 = vadd.f32 %v4359, %v5010
  %v5025 = vadd.f32 %v4362, %v5013
  %v5026 = vadd.f32 %v4364, %v5015
  %v5029 = vunpack.c.l.b16 %v3954
  %v5030 = vunpack.c.l.b16 %v3955
  %v5031 = vpack.c.b16 %v5030, %v5029
  %v5033 = vsel %vm4230, %v5031, 0
  %5035 = vmatpush.bf16.msra.mxu0 0
  %5036 = vmatpush.bf16.msra.mxu0 0
  %5037 = vmatpush.bf16.msra.mxu0 0
  %5038 = vmatpush.bf16.msra.mxu0 0
  %5039 = vmatpush.bf16.msra.mxu0 0
  %5040 = vmatpush.bf16.msra.mxu0 0
  %5041 = vmatpush.bf16.msra.mxu0 %v4977
  %5042 = vmatpush.bf16.msra.mxu0 %v4976
  %5043 = vmatmul.bf16.gmra.mxu0 %v4469
  %v5044 = vpop.f32.mrf.mxu0
  %v5045 = vadd.f32 0.0, %v5044
  %v5046 = vpop.f32.mrf.mxu0
  %v5047 = vadd.f32 0.0, %v5046
  %5048 = vmatmul.bf16.gmra.mxu0 %v4472
  %v5049 = vpop.f32.mrf.mxu0
  %v5050 = vadd.f32 0.0, %v5049
  %v5051 = vpop.f32.mrf.mxu0
  %v5052 = vadd.f32 0.0, %v5051
  %5053 = vmatmul.bf16.gmra.mxu0 %v4475
  %v5054 = vpop.f32.mrf.mxu0
  %v5055 = vadd.f32 0.0, %v5054
  %v5056 = vpop.f32.mrf.mxu0
  %v5057 = vadd.f32 0.0, %v5056
  %5058 = vmatmul.bf16.gmra.mxu0 %v4478
  %v5059 = vpop.f32.mrf.mxu0
  %v5060 = vadd.f32 0.0, %v5059
  %v5061 = vpop.f32.mrf.mxu0
  %v5062 = vadd.f32 0.0, %v5061
  %5063 = vmatmul.bf16.gmra.mxu0 %v5033
  %v5064 = vpop.f32.mrf.mxu0
  %v5065 = vadd.f32 0.0, %v5064
  %v5066 = vpop.f32.mrf.mxu0
  %v5067 = vadd.f32 0.0, %v5066
  %5068 = vdwg.mxu0
  %v5069 = vadd.f32 %v4490, %v5045
  %v5070 = vadd.f32 %v4492, %v5047
  %v5071 = vadd.f32 %v4495, %v5050
  %v5072 = vadd.f32 %v4497, %v5052
  %v5073 = vadd.f32 %v4500, %v5055
  %v5074 = vadd.f32 %v4502, %v5057
  %v5075 = vadd.f32 %v4505, %v5060
  %v5076 = vadd.f32 %v4507, %v5062
  %v5077 = vadd.f32 %v4510, %v5065
  %v5078 = vadd.f32 %v4512, %v5067
  %v5081 = vunpack.c.l.b16 %v4002
  %v5082 = vunpack.c.l.b16 %v4003
  %v5083 = vpack.c.b16 %v5082, %v5081
  %v5085 = vsel %vm4230, %v5083, 0
  %5087 = vmatpush.bf16.msra.mxu0 0
  %5088 = vmatpush.bf16.msra.mxu0 0
  %5089 = vmatpush.bf16.msra.mxu0 0
  %5090 = vmatpush.bf16.msra.mxu0 0
  %5091 = vmatpush.bf16.msra.mxu0 0
  %5092 = vmatpush.bf16.msra.mxu0 0
  %5093 = vmatpush.bf16.msra.mxu0 %v4977
  %5094 = vmatpush.bf16.msra.mxu0 %v4976
  %5095 = vmatmul.bf16.gmra.mxu0 %v4617
  %v5096 = vpop.f32.mrf.mxu0
  %v5097 = vadd.f32 0.0, %v5096
  %v5098 = vpop.f32.mrf.mxu0
  %v5099 = vadd.f32 0.0, %v5098
  %5100 = vmatmul.bf16.gmra.mxu0 %v4620
  %v5101 = vpop.f32.mrf.mxu0
  %v5102 = vadd.f32 0.0, %v5101
  %v5103 = vpop.f32.mrf.mxu0
  %v5104 = vadd.f32 0.0, %v5103
  %5105 = vmatmul.bf16.gmra.mxu0 %v4623
  %v5106 = vpop.f32.mrf.mxu0
  %v5107 = vadd.f32 0.0, %v5106
  %v5108 = vpop.f32.mrf.mxu0
  %v5109 = vadd.f32 0.0, %v5108
  %5110 = vmatmul.bf16.gmra.mxu0 %v4626
  %v5111 = vpop.f32.mrf.mxu0
  %v5112 = vadd.f32 0.0, %v5111
  %v5113 = vpop.f32.mrf.mxu0
  %v5114 = vadd.f32 0.0, %v5113
  %5115 = vmatmul.bf16.gmra.mxu0 %v5085
  %v5116 = vpop.f32.mrf.mxu0
  %v5117 = vadd.f32 0.0, %v5116
  %v5118 = vpop.f32.mrf.mxu0
  %v5119 = vadd.f32 0.0, %v5118
  %5120 = vdwg.mxu0
  %v5121 = vadd.f32 %v4638, %v5097
  %v5122 = vadd.f32 %v4640, %v5099
  %v5123 = vadd.f32 %v4643, %v5102
  %v5124 = vadd.f32 %v4645, %v5104
  %v5125 = vadd.f32 %v4648, %v5107
  %v5126 = vadd.f32 %v4650, %v5109
  %v5127 = vadd.f32 %v4653, %v5112
  %v5128 = vadd.f32 %v4655, %v5114
  %v5129 = vadd.f32 %v4658, %v5117
  %v5130 = vadd.f32 %v4660, %v5119
  %v5133 = vunpack.c.l.b16 %v4050
  %v5134 = vunpack.c.l.b16 %v4051
  %v5135 = vpack.c.b16 %v5134, %v5133
  %v5137 = vsel %vm4230, %v5135, 0
  %5139 = vmatpush.bf16.msra.mxu0 0
  %5140 = vmatpush.bf16.msra.mxu0 0
  %5141 = vmatpush.bf16.msra.mxu0 0
  %5142 = vmatpush.bf16.msra.mxu0 0
  %5143 = vmatpush.bf16.msra.mxu0 0
  %5144 = vmatpush.bf16.msra.mxu0 0
  %5145 = vmatpush.bf16.msra.mxu0 %v4977
  %5146 = vmatpush.bf16.msra.mxu0 %v4976
  %5147 = vmatmul.bf16.gmra.mxu0 %v4765
  %v5148 = vpop.f32.mrf.mxu0
  %v5149 = vadd.f32 0.0, %v5148
  %v5150 = vpop.f32.mrf.mxu0
  %v5151 = vadd.f32 0.0, %v5150
  %5152 = vmatmul.bf16.gmra.mxu0 %v4768
  %v5153 = vpop.f32.mrf.mxu0
  %v5154 = vadd.f32 0.0, %v5153
  %v5155 = vpop.f32.mrf.mxu0
  %v5156 = vadd.f32 0.0, %v5155
  %5157 = vmatmul.bf16.gmra.mxu0 %v4771
  %v5158 = vpop.f32.mrf.mxu0
  %v5159 = vadd.f32 0.0, %v5158
  %v5160 = vpop.f32.mrf.mxu0
  %v5161 = vadd.f32 0.0, %v5160
  %5162 = vmatmul.bf16.gmra.mxu0 %v4774
  %v5163 = vpop.f32.mrf.mxu0
  %v5164 = vadd.f32 0.0, %v5163
  %v5165 = vpop.f32.mrf.mxu0
  %v5166 = vadd.f32 0.0, %v5165
  %5167 = vmatmul.bf16.gmra.mxu0 %v5137
  %v5168 = vpop.f32.mrf.mxu0
  %v5169 = vadd.f32 0.0, %v5168
  %v5170 = vpop.f32.mrf.mxu0
  %v5171 = vadd.f32 0.0, %v5170
  %5172 = vdwg.mxu0
  %v5173 = vadd.f32 %v4786, %v5149
  %v5174 = vadd.f32 %v4788, %v5151
  %v5175 = vadd.f32 %v4791, %v5154
  %v5176 = vadd.f32 %v4793, %v5156
  %v5177 = vadd.f32 %v4796, %v5159
  %v5178 = vadd.f32 %v4798, %v5161
  %v5179 = vadd.f32 %v4801, %v5164
  %v5180 = vadd.f32 %v4803, %v5166
  %v5181 = vadd.f32 %v4806, %v5169
  %v5182 = vadd.f32 %v4808, %v5171
  %v5185 = vunpack.c.l.b16 %v4098
  %v5186 = vunpack.c.l.b16 %v4099
  %v5187 = vpack.c.b16 %v5186, %v5185
  %v5189 = vsel %vm4230, %v5187, 0
  %5191 = vmatpush.bf16.msra.mxu0 0
  %5192 = vmatpush.bf16.msra.mxu0 0
  %5193 = vmatpush.bf16.msra.mxu0 0
  %5194 = vmatpush.bf16.msra.mxu0 0
  %5195 = vmatpush.bf16.msra.mxu0 0
  %5196 = vmatpush.bf16.msra.mxu0 0
  %5197 = vmatpush.bf16.msra.mxu0 %v4977
  %5198 = vmatpush.bf16.msra.mxu0 %v4976
  %5199 = vmatmul.bf16.gmra.mxu0 %v4913
  %v5200 = vpop.f32.mrf.mxu0
  %v5201 = vadd.f32 0.0, %v5200
  %v5202 = vpop.f32.mrf.mxu0
  %v5203 = vadd.f32 0.0, %v5202
  %5204 = vmatmul.bf16.gmra.mxu0 %v4916
  %v5205 = vpop.f32.mrf.mxu0
  %v5206 = vadd.f32 0.0, %v5205
  %v5207 = vpop.f32.mrf.mxu0
  %v5208 = vadd.f32 0.0, %v5207
  %5209 = vmatmul.bf16.gmra.mxu0 %v4919
  %v5210 = vpop.f32.mrf.mxu0
  %v5211 = vadd.f32 0.0, %v5210
  %v5212 = vpop.f32.mrf.mxu0
  %v5213 = vadd.f32 0.0, %v5212
  %5214 = vmatmul.bf16.gmra.mxu0 %v4922
  %v5215 = vpop.f32.mrf.mxu0
  %v5216 = vadd.f32 0.0, %v5215
  %v5217 = vpop.f32.mrf.mxu0
  %v5218 = vadd.f32 0.0, %v5217
  %5219 = vmatmul.bf16.gmra.mxu0 %v5189
  %v5220 = vpop.f32.mrf.mxu0
  %v5221 = vadd.f32 0.0, %v5220
  %v5222 = vpop.f32.mrf.mxu0
  %v5223 = vadd.f32 0.0, %v5222
  %5224 = vdwg.mxu0
  %v5225 = vadd.f32 %v4934, %v5201
  %v5226 = vadd.f32 %v4936, %v5203
  %v5227 = vadd.f32 %v4939, %v5206
  %v5228 = vadd.f32 %v4941, %v5208
  %v5229 = vadd.f32 %v4944, %v5211
  %v5230 = vadd.f32 %v4946, %v5213
  %v5231 = vadd.f32 %v4949, %v5216
  %v5232 = vadd.f32 %v4951, %v5218
  %v5233 = vadd.f32 %v4954, %v5221
  %v5234 = vadd.f32 %v4956, %v5223
  %s5235 = scalar_lea.vmem %s3, 48
  %v5236 = vld [vmem:[%s5235] sm:$0xf]
  %v5237 = vld [vmem:[%s5235 + $0x4] sm:$0xf]
  %v5238 = vld [vmem:[%s5235 + $0x8] sm:$0xf]
  %v5239 = vld [vmem:[%s5235 + $0xc] sm:$0xf]
  %v5242 = vunpack.c.l.b16 %v3918
  %v5243 = vunpack.c.l.b16 %v3919
  %v5244 = vpack.c.b16 %v5243, %v5242
  %v5249 = vunpack.c.l.b16 %v5236
  %v5250 = vunpack.c.l.b16 %v5237
  %v5251 = vunpack.c.l.b16 %v5238
  %v5252 = vunpack.c.l.b16 %v5239
  %v5253 = vpack.c.b16 %v5250, %v5249
  %v5254 = vpack.c.b16 %v5252, %v5251
  %v5258 = vsel %vm4230, %v5244, 0
  %5260 = vmatpush.bf16.msra.mxu0 0
  %5261 = vmatpush.bf16.msra.mxu0 0
  %5262 = vmatpush.bf16.msra.mxu0 0
  %5263 = vmatpush.bf16.msra.mxu0 0
  %5264 = vmatpush.bf16.msra.mxu0 0
  %5265 = vmatpush.bf16.msra.mxu0 0
  %5266 = vmatpush.bf16.msra.mxu0 %v5254
  %5267 = vmatpush.bf16.msra.mxu0 %v5253
  %5268 = vmatmul.bf16.gmra.mxu0 %v4235
  %v5269 = vpop.f32.mrf.mxu0
  %v5270 = vadd.f32 0.0, %v5269
  %v5271 = vpop.f32.mrf.mxu0
  %v5272 = vadd.f32 0.0, %v5271
  %5273 = vmatmul.bf16.gmra.mxu0 %v4238
  %v5274 = vpop.f32.mrf.mxu0
  %v5275 = vadd.f32 0.0, %v5274
  %v5276 = vpop.f32.mrf.mxu0
  %v5277 = vadd.f32 0.0, %v5276
  %5278 = vmatmul.bf16.gmra.mxu0 %v4241
  %v5279 = vpop.f32.mrf.mxu0
  %v5280 = vadd.f32 0.0, %v5279
  %v5281 = vpop.f32.mrf.mxu0
  %v5282 = vadd.f32 0.0, %v5281
  %5283 = vmatmul.bf16.gmra.mxu0 %v4244
  %v5284 = vpop.f32.mrf.mxu0
  %v5285 = vadd.f32 0.0, %v5284
  %v5286 = vpop.f32.mrf.mxu0
  %v5287 = vadd.f32 0.0, %v5286
  %5288 = vmatmul.bf16.gmra.mxu0 %v5258
  %v5289 = vpop.f32.mrf.mxu0
  %v5290 = vadd.f32 0.0, %v5289
  %v5291 = vpop.f32.mrf.mxu0
  %v5292 = vadd.f32 0.0, %v5291
  %5293 = vdwg.mxu0
  %v5294 = vadd.f32 %v5017, %v5270
  %v5295 = vadd.f32 %v5018, %v5272
  %v5296 = vadd.f32 %v5019, %v5275
  %v5297 = vadd.f32 %v5020, %v5277
  %v5298 = vadd.f32 %v5021, %v5280
  %v5299 = vadd.f32 %v5022, %v5282
  %v5300 = vadd.f32 %v5023, %v5285
  %v5301 = vadd.f32 %v5024, %v5287
  %v5302 = vadd.f32 %v5025, %v5290
  %v5303 = vadd.f32 %v5026, %v5292
  %v5306 = vunpack.c.l.b16 %v3966
  %v5307 = vunpack.c.l.b16 %v3967
  %v5308 = vpack.c.b16 %v5307, %v5306
  %v5310 = vsel %vm4230, %v5308, 0
  %5312 = vmatpush.bf16.msra.mxu0 0
  %5313 = vmatpush.bf16.msra.mxu0 0
  %5314 = vmatpush.bf16.msra.mxu0 0
  %5315 = vmatpush.bf16.msra.mxu0 0
  %5316 = vmatpush.bf16.msra.mxu0 0
  %5317 = vmatpush.bf16.msra.mxu0 0
  %5318 = vmatpush.bf16.msra.mxu0 %v5254
  %5319 = vmatpush.bf16.msra.mxu0 %v5253
  %5320 = vmatmul.bf16.gmra.mxu0 %v4395
  %v5321 = vpop.f32.mrf.mxu0
  %v5322 = vadd.f32 0.0, %v5321
  %v5323 = vpop.f32.mrf.mxu0
  %v5324 = vadd.f32 0.0, %v5323
  %5325 = vmatmul.bf16.gmra.mxu0 %v4398
  %v5326 = vpop.f32.mrf.mxu0
  %v5327 = vadd.f32 0.0, %v5326
  %v5328 = vpop.f32.mrf.mxu0
  %v5329 = vadd.f32 0.0, %v5328
  %5330 = vmatmul.bf16.gmra.mxu0 %v4401
  %v5331 = vpop.f32.mrf.mxu0
  %v5332 = vadd.f32 0.0, %v5331
  %v5333 = vpop.f32.mrf.mxu0
  %v5334 = vadd.f32 0.0, %v5333
  %5335 = vmatmul.bf16.gmra.mxu0 %v4404
  %v5336 = vpop.f32.mrf.mxu0
  %v5337 = vadd.f32 0.0, %v5336
  %v5338 = vpop.f32.mrf.mxu0
  %v5339 = vadd.f32 0.0, %v5338
  %5340 = vmatmul.bf16.gmra.mxu0 %v5310
  %v5341 = vpop.f32.mrf.mxu0
  %v5342 = vadd.f32 0.0, %v5341
  %v5343 = vpop.f32.mrf.mxu0
  %v5344 = vadd.f32 0.0, %v5343
  %5345 = vdwg.mxu0
  %v5346 = vadd.f32 %v5069, %v5322
  %v5347 = vadd.f32 %v5070, %v5324
  %v5348 = vadd.f32 %v5071, %v5327
  %v5349 = vadd.f32 %v5072, %v5329
  %v5350 = vadd.f32 %v5073, %v5332
  %v5351 = vadd.f32 %v5074, %v5334
  %v5352 = vadd.f32 %v5075, %v5337
  %v5353 = vadd.f32 %v5076, %v5339
  %v5354 = vadd.f32 %v5077, %v5342
  %v5355 = vadd.f32 %v5078, %v5344
  %v5358 = vunpack.c.l.b16 %v4014
  %v5359 = vunpack.c.l.b16 %v4015
  %v5360 = vpack.c.b16 %v5359, %v5358
  %v5362 = vsel %vm4230, %v5360, 0
  %5364 = vmatpush.bf16.msra.mxu0 0
  %5365 = vmatpush.bf16.msra.mxu0 0
  %5366 = vmatpush.bf16.msra.mxu0 0
  %5367 = vmatpush.bf16.msra.mxu0 0
  %5368 = vmatpush.bf16.msra.mxu0 0
  %5369 = vmatpush.bf16.msra.mxu0 0
  %5370 = vmatpush.bf16.msra.mxu0 %v5254
  %5371 = vmatpush.bf16.msra.mxu0 %v5253
  %5372 = vmatmul.bf16.gmra.mxu0 %v4543
  %v5373 = vpop.f32.mrf.mxu0
  %v5374 = vadd.f32 0.0, %v5373
  %v5375 = vpop.f32.mrf.mxu0
  %v5376 = vadd.f32 0.0, %v5375
  %5377 = vmatmul.bf16.gmra.mxu0 %v4546
  %v5378 = vpop.f32.mrf.mxu0
  %v5379 = vadd.f32 0.0, %v5378
  %v5380 = vpop.f32.mrf.mxu0
  %v5381 = vadd.f32 0.0, %v5380
  %5382 = vmatmul.bf16.gmra.mxu0 %v4549
  %v5383 = vpop.f32.mrf.mxu0
  %v5384 = vadd.f32 0.0, %v5383
  %v5385 = vpop.f32.mrf.mxu0
  %v5386 = vadd.f32 0.0, %v5385
  %5387 = vmatmul.bf16.gmra.mxu0 %v4552
  %v5388 = vpop.f32.mrf.mxu0
  %v5389 = vadd.f32 0.0, %v5388
  %v5390 = vpop.f32.mrf.mxu0
  %v5391 = vadd.f32 0.0, %v5390
  %5392 = vmatmul.bf16.gmra.mxu0 %v5362
  %v5393 = vpop.f32.mrf.mxu0
  %v5394 = vadd.f32 0.0, %v5393
  %v5395 = vpop.f32.mrf.mxu0
  %v5396 = vadd.f32 0.0, %v5395
  %5397 = vdwg.mxu0
  %v5398 = vadd.f32 %v5121, %v5374
  %v5399 = vadd.f32 %v5122, %v5376
  %v5400 = vadd.f32 %v5123, %v5379
  %v5401 = vadd.f32 %v5124, %v5381
  %v5402 = vadd.f32 %v5125, %v5384
  %v5403 = vadd.f32 %v5126, %v5386
  %v5404 = vadd.f32 %v5127, %v5389
  %v5405 = vadd.f32 %v5128, %v5391
  %v5406 = vadd.f32 %v5129, %v5394
  %v5407 = vadd.f32 %v5130, %v5396
  %v5410 = vunpack.c.l.b16 %v4062
  %v5411 = vunpack.c.l.b16 %v4063
  %v5412 = vpack.c.b16 %v5411, %v5410
  %v5414 = vsel %vm4230, %v5412, 0
  %5416 = vmatpush.bf16.msra.mxu0 0
  %5417 = vmatpush.bf16.msra.mxu0 0
  %5418 = vmatpush.bf16.msra.mxu0 0
  %5419 = vmatpush.bf16.msra.mxu0 0
  %5420 = vmatpush.bf16.msra.mxu0 0
  %5421 = vmatpush.bf16.msra.mxu0 0
  %5422 = vmatpush.bf16.msra.mxu0 %v5254
  %5423 = vmatpush.bf16.msra.mxu0 %v5253
  %5424 = vmatmul.bf16.gmra.mxu0 %v4691
  %v5425 = vpop.f32.mrf.mxu0
  %v5426 = vadd.f32 0.0, %v5425
  %v5427 = vpop.f32.mrf.mxu0
  %v5428 = vadd.f32 0.0, %v5427
  %5429 = vmatmul.bf16.gmra.mxu0 %v4694
  %v5430 = vpop.f32.mrf.mxu0
  %v5431 = vadd.f32 0.0, %v5430
  %v5432 = vpop.f32.mrf.mxu0
  %v5433 = vadd.f32 0.0, %v5432
  %5434 = vmatmul.bf16.gmra.mxu0 %v4697
  %v5435 = vpop.f32.mrf.mxu0
  %v5436 = vadd.f32 0.0, %v5435
  %v5437 = vpop.f32.mrf.mxu0
  %v5438 = vadd.f32 0.0, %v5437
  %5439 = vmatmul.bf16.gmra.mxu0 %v4700
  %v5440 = vpop.f32.mrf.mxu0
  %v5441 = vadd.f32 0.0, %v5440
  %v5442 = vpop.f32.mrf.mxu0
  %v5443 = vadd.f32 0.0, %v5442
  %5444 = vmatmul.bf16.gmra.mxu0 %v5414
  %v5445 = vpop.f32.mrf.mxu0
  %v5446 = vadd.f32 0.0, %v5445
  %v5447 = vpop.f32.mrf.mxu0
  %v5448 = vadd.f32 0.0, %v5447
  %5449 = vdwg.mxu0
  %v5450 = vadd.f32 %v5173, %v5426
  %v5451 = vadd.f32 %v5174, %v5428
  %v5452 = vadd.f32 %v5175, %v5431
  %v5453 = vadd.f32 %v5176, %v5433
  %v5454 = vadd.f32 %v5177, %v5436
  %v5455 = vadd.f32 %v5178, %v5438
  %v5456 = vadd.f32 %v5179, %v5441
  %v5457 = vadd.f32 %v5180, %v5443
  %v5458 = vadd.f32 %v5181, %v5446
  %v5459 = vadd.f32 %v5182, %v5448
  %v5462 = vunpack.c.l.b16 %v4110
  %v5463 = vunpack.c.l.b16 %v4111
  %v5464 = vpack.c.b16 %v5463, %v5462
  %v5466 = vsel %vm4230, %v5464, 0
  %5468 = vmatpush.bf16.msra.mxu0 0
  %5469 = vmatpush.bf16.msra.mxu0 0
  %5470 = vmatpush.bf16.msra.mxu0 0
  %5471 = vmatpush.bf16.msra.mxu0 0
  %5472 = vmatpush.bf16.msra.mxu0 0
  %5473 = vmatpush.bf16.msra.mxu0 0
  %5474 = vmatpush.bf16.msra.mxu0 %v5254
  %5475 = vmatpush.bf16.msra.mxu0 %v5253
  %5476 = vmatmul.bf16.gmra.mxu0 %v4839
  %v5477 = vpop.f32.mrf.mxu0
  %v5478 = vadd.f32 0.0, %v5477
  %v5479 = vpop.f32.mrf.mxu0
  %v5480 = vadd.f32 0.0, %v5479
  %5481 = vmatmul.bf16.gmra.mxu0 %v4842
  %v5482 = vpop.f32.mrf.mxu0
  %v5483 = vadd.f32 0.0, %v5482
  %v5484 = vpop.f32.mrf.mxu0
  %v5485 = vadd.f32 0.0, %v5484
  %5486 = vmatmul.bf16.gmra.mxu0 %v4845
  %v5487 = vpop.f32.mrf.mxu0
  %v5488 = vadd.f32 0.0, %v5487
  %v5489 = vpop.f32.mrf.mxu0
  %v5490 = vadd.f32 0.0, %v5489
  %5491 = vmatmul.bf16.gmra.mxu0 %v4848
  %v5492 = vpop.f32.mrf.mxu0
  %v5493 = vadd.f32 0.0, %v5492
  %v5494 = vpop.f32.mrf.mxu0
  %v5495 = vadd.f32 0.0, %v5494
  %5496 = vmatmul.bf16.gmra.mxu0 %v5466
  %v5497 = vpop.f32.mrf.mxu0
  %v5498 = vadd.f32 0.0, %v5497
  %v5499 = vpop.f32.mrf.mxu0
  %v5500 = vadd.f32 0.0, %v5499
  %5501 = vdwg.mxu0
  %v5502 = vadd.f32 %v5225, %v5478
  %v5503 = vadd.f32 %v5226, %v5480
  %v5504 = vadd.f32 %v5227, %v5483
  %v5505 = vadd.f32 %v5228, %v5485
  %v5506 = vadd.f32 %v5229, %v5488
  %v5507 = vadd.f32 %v5230, %v5490
  %v5508 = vadd.f32 %v5231, %v5493
  %v5509 = vadd.f32 %v5232, %v5495
  %v5510 = vadd.f32 %v5233, %v5498
  %v5511 = vadd.f32 %v5234, %v5500
  %s5512 = scalar_lea.vmem %s3, 64
  %v5513 = vld [vmem:[%s5512] sm:$0xf]
  %v5514 = vld [vmem:[%s5512 + $0x4] sm:$0xf]
  %v5515 = vld [vmem:[%s5512 + $0x8] sm:$0xf]
  %v5516 = vld [vmem:[%s5512 + $0xc] sm:$0xf]
  %v5527 = vunpack.c.l.b16 %v3920
  %v5528 = vunpack.c.l.b16 %v3921
  %v5529 = vunpack.c.l.b16 %v3922
  %v5530 = vunpack.c.l.b16 %v3923
  %v5531 = vunpack.c.l.b16 %v3924
  %v5532 = vunpack.c.l.b16 %v3925
  %v5533 = vunpack.c.l.b16 %v3926
  %v5534 = vunpack.c.l.b16 %v3927
  %v5535 = vunpack.c.l.b16 %v3928
  %v5536 = vunpack.c.l.b16 %v3929
  %v5537 = vpack.c.b16 %v5528, %v5527
  %v5538 = vpack.c.b16 %v5530, %v5529
  %v5539 = vpack.c.b16 %v5532, %v5531
  %v5540 = vpack.c.b16 %v5534, %v5533
  %v5541 = vpack.c.b16 %v5536, %v5535
  %v5546 = vunpack.c.l.b16 %v5513
  %v5547 = vunpack.c.l.b16 %v5514
  %v5548 = vunpack.c.l.b16 %v5515
  %v5549 = vunpack.c.l.b16 %v5516
  %v5550 = vpack.c.b16 %v5547, %v5546
  %v5551 = vpack.c.b16 %v5549, %v5548
  %v5555 = vsel %vm4230, %v5537, 0
  %v5558 = vsel %vm4230, %v5538, 0
  %v5561 = vsel %vm4230, %v5539, 0
  %v5564 = vsel %vm4230, %v5540, 0
  %v5567 = vsel %vm4230, %v5541, 0
  %5569 = vmatpush.bf16.msra.mxu0 0
  %5570 = vmatpush.bf16.msra.mxu0 0
  %5571 = vmatpush.bf16.msra.mxu0 0
  %5572 = vmatpush.bf16.msra.mxu0 0
  %5573 = vmatpush.bf16.msra.mxu0 0
  %5574 = vmatpush.bf16.msra.mxu0 0
  %5575 = vmatpush.bf16.msra.mxu0 %v5551
  %5576 = vmatpush.bf16.msra.mxu0 %v5550
  %5577 = vmatmul.bf16.gmra.mxu0 %v5555
  %v5578 = vpop.f32.mrf.mxu0
  %v5579 = vadd.f32 0.0, %v5578
  %v5580 = vpop.f32.mrf.mxu0
  %v5581 = vadd.f32 0.0, %v5580
  %5582 = vmatmul.bf16.gmra.mxu0 %v5558
  %v5583 = vpop.f32.mrf.mxu0
  %v5584 = vadd.f32 0.0, %v5583
  %v5585 = vpop.f32.mrf.mxu0
  %v5586 = vadd.f32 0.0, %v5585
  %5587 = vmatmul.bf16.gmra.mxu0 %v5561
  %v5588 = vpop.f32.mrf.mxu0
  %v5589 = vadd.f32 0.0, %v5588
  %v5590 = vpop.f32.mrf.mxu0
  %v5591 = vadd.f32 0.0, %v5590
  %5592 = vmatmul.bf16.gmra.mxu0 %v5564
  %v5593 = vpop.f32.mrf.mxu0
  %v5594 = vadd.f32 0.0, %v5593
  %v5595 = vpop.f32.mrf.mxu0
  %v5596 = vadd.f32 0.0, %v5595
  %5597 = vmatmul.bf16.gmra.mxu0 %v5567
  %v5598 = vpop.f32.mrf.mxu0
  %v5599 = vadd.f32 0.0, %v5598
  %v5600 = vpop.f32.mrf.mxu0
  %v5601 = vadd.f32 0.0, %v5600
  %5602 = vdwg.mxu0
  %v5603 = vadd.f32 %v5294, %v5579
  %v5604 = vadd.f32 %v5295, %v5581
  %v5605 = vadd.f32 %v5296, %v5584
  %v5606 = vadd.f32 %v5297, %v5586
  %v5607 = vadd.f32 %v5298, %v5589
  %v5608 = vadd.f32 %v5299, %v5591
  %v5609 = vadd.f32 %v5300, %v5594
  %v5610 = vadd.f32 %v5301, %v5596
  %v5611 = vadd.f32 %v5302, %v5599
  %v5612 = vadd.f32 %v5303, %v5601
  %v5623 = vunpack.c.l.b16 %v3968
  %v5624 = vunpack.c.l.b16 %v3969
  %v5625 = vunpack.c.l.b16 %v3970
  %v5626 = vunpack.c.l.b16 %v3971
  %v5627 = vunpack.c.l.b16 %v3972
  %v5628 = vunpack.c.l.b16 %v3973
  %v5629 = vunpack.c.l.b16 %v3974
  %v5630 = vunpack.c.l.b16 %v3975
  %v5631 = vunpack.c.l.b16 %v3976
  %v5632 = vunpack.c.l.b16 %v3977
  %v5633 = vpack.c.b16 %v5624, %v5623
  %v5634 = vpack.c.b16 %v5626, %v5625
  %v5635 = vpack.c.b16 %v5628, %v5627
  %v5636 = vpack.c.b16 %v5630, %v5629
  %v5637 = vpack.c.b16 %v5632, %v5631
  %v5639 = vsel %vm4230, %v5633, 0
  %v5642 = vsel %vm4230, %v5634, 0
  %v5645 = vsel %vm4230, %v5635, 0
  %v5648 = vsel %vm4230, %v5636, 0
  %v5651 = vsel %vm4230, %v5637, 0
  %5653 = vmatpush.bf16.msra.mxu0 0
  %5654 = vmatpush.bf16.msra.mxu0 0
  %5655 = vmatpush.bf16.msra.mxu0 0
  %5656 = vmatpush.bf16.msra.mxu0 0
  %5657 = vmatpush.bf16.msra.mxu0 0
  %5658 = vmatpush.bf16.msra.mxu0 0
  %5659 = vmatpush.bf16.msra.mxu0 %v5551
  %5660 = vmatpush.bf16.msra.mxu0 %v5550
  %5661 = vmatmul.bf16.gmra.mxu0 %v5639
  %v5662 = vpop.f32.mrf.mxu0
  %v5663 = vadd.f32 0.0, %v5662
  %v5664 = vpop.f32.mrf.mxu0
  %v5665 = vadd.f32 0.0, %v5664
  %5666 = vmatmul.bf16.gmra.mxu0 %v5642
  %v5667 = vpop.f32.mrf.mxu0
  %v5668 = vadd.f32 0.0, %v5667
  %v5669 = vpop.f32.mrf.mxu0
  %v5670 = vadd.f32 0.0, %v5669
  %5671 = vmatmul.bf16.gmra.mxu0 %v5645
  %v5672 = vpop.f32.mrf.mxu0
  %v5673 = vadd.f32 0.0, %v5672
  %v5674 = vpop.f32.mrf.mxu0
  %v5675 = vadd.f32 0.0, %v5674
  %5676 = vmatmul.bf16.gmra.mxu0 %v5648
  %v5677 = vpop.f32.mrf.mxu0
  %v5678 = vadd.f32 0.0, %v5677
  %v5679 = vpop.f32.mrf.mxu0
  %v5680 = vadd.f32 0.0, %v5679
  %5681 = vmatmul.bf16.gmra.mxu0 %v5651
  %v5682 = vpop.f32.mrf.mxu0
  %v5683 = vadd.f32 0.0, %v5682
  %v5684 = vpop.f32.mrf.mxu0
  %v5685 = vadd.f32 0.0, %v5684
  %5686 = vdwg.mxu0
  %v5687 = vadd.f32 %v5346, %v5663
  %v5688 = vadd.f32 %v5347, %v5665
  %v5689 = vadd.f32 %v5348, %v5668
  %v5690 = vadd.f32 %v5349, %v5670
  %v5691 = vadd.f32 %v5350, %v5673
  %v5692 = vadd.f32 %v5351, %v5675
  %v5693 = vadd.f32 %v5352, %v5678
  %v5694 = vadd.f32 %v5353, %v5680
  %v5695 = vadd.f32 %v5354, %v5683
  %v5696 = vadd.f32 %v5355, %v5685
  %v5707 = vunpack.c.l.b16 %v4016
  %v5708 = vunpack.c.l.b16 %v4017
  %v5709 = vunpack.c.l.b16 %v4018
  %v5710 = vunpack.c.l.b16 %v4019
  %v5711 = vunpack.c.l.b16 %v4020
  %v5712 = vunpack.c.l.b16 %v4021
  %v5713 = vunpack.c.l.b16 %v4022
  %v5714 = vunpack.c.l.b16 %v4023
  %v5715 = vunpack.c.l.b16 %v4024
  %v5716 = vunpack.c.l.b16 %v4025
  %v5717 = vpack.c.b16 %v5708, %v5707
  %v5718 = vpack.c.b16 %v5710, %v5709
  %v5719 = vpack.c.b16 %v5712, %v5711
  %v5720 = vpack.c.b16 %v5714, %v5713
  %v5721 = vpack.c.b16 %v5716, %v5715
  %v5723 = vsel %vm4230, %v5717, 0
  %v5726 = vsel %vm4230, %v5718, 0
  %v5729 = vsel %vm4230, %v5719, 0
  %v5732 = vsel %vm4230, %v5720, 0
  %v5735 = vsel %vm4230, %v5721, 0
  %5737 = vmatpush.bf16.msra.mxu0 0
  %5738 = vmatpush.bf16.msra.mxu0 0
  %5739 = vmatpush.bf16.msra.mxu0 0
  %5740 = vmatpush.bf16.msra.mxu0 0
  %5741 = vmatpush.bf16.msra.mxu0 0
  %5742 = vmatpush.bf16.msra.mxu0 0
  %5743 = vmatpush.bf16.msra.mxu0 %v5551
  %5744 = vmatpush.bf16.msra.mxu0 %v5550
  %5745 = vmatmul.bf16.gmra.mxu0 %v5723
  %v5746 = vpop.f32.mrf.mxu0
  %v5747 = vadd.f32 0.0, %v5746
  %v5748 = vpop.f32.mrf.mxu0
  %v5749 = vadd.f32 0.0, %v5748
  %5750 = vmatmul.bf16.gmra.mxu0 %v5726
  %v5751 = vpop.f32.mrf.mxu0
  %v5752 = vadd.f32 0.0, %v5751
  %v5753 = vpop.f32.mrf.mxu0
  %v5754 = vadd.f32 0.0, %v5753
  %5755 = vmatmul.bf16.gmra.mxu0 %v5729
  %v5756 = vpop.f32.mrf.mxu0
  %v5757 = vadd.f32 0.0, %v5756
  %v5758 = vpop.f32.mrf.mxu0
  %v5759 = vadd.f32 0.0, %v5758
  %5760 = vmatmul.bf16.gmra.mxu0 %v5732
  %v5761 = vpop.f32.mrf.mxu0
  %v5762 = vadd.f32 0.0, %v5761
  %v5763 = vpop.f32.mrf.mxu0
  %v5764 = vadd.f32 0.0, %v5763
  %5765 = vmatmul.bf16.gmra.mxu0 %v5735
  %v5766 = vpop.f32.mrf.mxu0
  %v5767 = vadd.f32 0.0, %v5766
  %v5768 = vpop.f32.mrf.mxu0
  %v5769 = vadd.f32 0.0, %v5768
  %5770 = vdwg.mxu0
  %v5771 = vadd.f32 %v5398, %v5747
  %v5772 = vadd.f32 %v5399, %v5749
  %v5773 = vadd.f32 %v5400, %v5752
  %v5774 = vadd.f32 %v5401, %v5754
  %v5775 = vadd.f32 %v5402, %v5757
  %v5776 = vadd.f32 %v5403, %v5759
  %v5777 = vadd.f32 %v5404, %v5762
  %v5778 = vadd.f32 %v5405, %v5764
  %v5779 = vadd.f32 %v5406, %v5767
  %v5780 = vadd.f32 %v5407, %v5769
  %v5791 = vunpack.c.l.b16 %v4064
  %v5792 = vunpack.c.l.b16 %v4065
  %v5793 = vunpack.c.l.b16 %v4066
  %v5794 = vunpack.c.l.b16 %v4067
  %v5795 = vunpack.c.l.b16 %v4068
  %v5796 = vunpack.c.l.b16 %v4069
  %v5797 = vunpack.c.l.b16 %v4070
  %v5798 = vunpack.c.l.b16 %v4071
  %v5799 = vunpack.c.l.b16 %v4072
  %v5800 = vunpack.c.l.b16 %v4073
  %v5801 = vpack.c.b16 %v5792, %v5791
  %v5802 = vpack.c.b16 %v5794, %v5793
  %v5803 = vpack.c.b16 %v5796, %v5795
  %v5804 = vpack.c.b16 %v5798, %v5797
  %v5805 = vpack.c.b16 %v5800, %v5799
  %v5807 = vsel %vm4230, %v5801, 0
  %v5810 = vsel %vm4230, %v5802, 0
  %v5813 = vsel %vm4230, %v5803, 0
  %v5816 = vsel %vm4230, %v5804, 0
  %v5819 = vsel %vm4230, %v5805, 0
  %5821 = vmatpush.bf16.msra.mxu0 0
  %5822 = vmatpush.bf16.msra.mxu0 0
  %5823 = vmatpush.bf16.msra.mxu0 0
  %5824 = vmatpush.bf16.msra.mxu0 0
  %5825 = vmatpush.bf16.msra.mxu0 0
  %5826 = vmatpush.bf16.msra.mxu0 0
  %5827 = vmatpush.bf16.msra.mxu0 %v5551
  %5828 = vmatpush.bf16.msra.mxu0 %v5550
  %5829 = vmatmul.bf16.gmra.mxu0 %v5807
  %v5830 = vpop.f32.mrf.mxu0
  %v5831 = vadd.f32 0.0, %v5830
  %v5832 = vpop.f32.mrf.mxu0
  %v5833 = vadd.f32 0.0, %v5832
  %5834 = vmatmul.bf16.gmra.mxu0 %v5810
  %v5835 = vpop.f32.mrf.mxu0
  %v5836 = vadd.f32 0.0, %v5835
  %v5837 = vpop.f32.mrf.mxu0
  %v5838 = vadd.f32 0.0, %v5837
  %5839 = vmatmul.bf16.gmra.mxu0 %v5813
  %v5840 = vpop.f32.mrf.mxu0
  %v5841 = vadd.f32 0.0, %v5840
  %v5842 = vpop.f32.mrf.mxu0
  %v5843 = vadd.f32 0.0, %v5842
  %5844 = vmatmul.bf16.gmra.mxu0 %v5816
  %v5845 = vpop.f32.mrf.mxu0
  %v5846 = vadd.f32 0.0, %v5845
  %v5847 = vpop.f32.mrf.mxu0
  %v5848 = vadd.f32 0.0, %v5847
  %5849 = vmatmul.bf16.gmra.mxu0 %v5819
  %v5850 = vpop.f32.mrf.mxu0
  %v5851 = vadd.f32 0.0, %v5850
  %v5852 = vpop.f32.mrf.mxu0
  %v5853 = vadd.f32 0.0, %v5852
  %5854 = vdwg.mxu0
  %v5855 = vadd.f32 %v5450, %v5831
  %v5856 = vadd.f32 %v5451, %v5833
  %v5857 = vadd.f32 %v5452, %v5836
  %v5858 = vadd.f32 %v5453, %v5838
  %v5859 = vadd.f32 %v5454, %v5841
  %v5860 = vadd.f32 %v5455, %v5843
  %v5861 = vadd.f32 %v5456, %v5846
  %v5862 = vadd.f32 %v5457, %v5848
  %v5863 = vadd.f32 %v5458, %v5851
  %v5864 = vadd.f32 %v5459, %v5853
  %v5875 = vunpack.c.l.b16 %v4112
  %v5876 = vunpack.c.l.b16 %v4113
  %v5877 = vunpack.c.l.b16 %v4114
  %v5878 = vunpack.c.l.b16 %v4115
  %v5879 = vunpack.c.l.b16 %v4116
  %v5880 = vunpack.c.l.b16 %v4117
  %v5881 = vunpack.c.l.b16 %v4118
  %v5882 = vunpack.c.l.b16 %v4119
  %v5883 = vunpack.c.l.b16 %v4120
  %v5884 = vunpack.c.l.b16 %v4121
  %v5885 = vpack.c.b16 %v5876, %v5875
  %v5886 = vpack.c.b16 %v5878, %v5877
  %v5887 = vpack.c.b16 %v5880, %v5879
  %v5888 = vpack.c.b16 %v5882, %v5881
  %v5889 = vpack.c.b16 %v5884, %v5883
  %v5891 = vsel %vm4230, %v5885, 0
  %v5894 = vsel %vm4230, %v5886, 0
  %v5897 = vsel %vm4230, %v5887, 0
  %v5900 = vsel %vm4230, %v5888, 0
  %v5903 = vsel %vm4230, %v5889, 0
  %5905 = vmatpush.bf16.msra.mxu0 0
  %5906 = vmatpush.bf16.msra.mxu0 0
  %5907 = vmatpush.bf16.msra.mxu0 0
  %5908 = vmatpush.bf16.msra.mxu0 0
  %5909 = vmatpush.bf16.msra.mxu0 0
  %5910 = vmatpush.bf16.msra.mxu0 0
  %5911 = vmatpush.bf16.msra.mxu0 %v5551
  %5912 = vmatpush.bf16.msra.mxu0 %v5550
  %5913 = vmatmul.bf16.gmra.mxu0 %v5891
  %v5914 = vpop.f32.mrf.mxu0
  %v5915 = vadd.f32 0.0, %v5914
  %v5916 = vpop.f32.mrf.mxu0
  %v5917 = vadd.f32 0.0, %v5916
  %5918 = vmatmul.bf16.gmra.mxu0 %v5894
  %v5919 = vpop.f32.mrf.mxu0
  %v5920 = vadd.f32 0.0, %v5919
  %v5921 = vpop.f32.mrf.mxu0
  %v5922 = vadd.f32 0.0, %v5921
  %5923 = vmatmul.bf16.gmra.mxu0 %v5897
  %v5924 = vpop.f32.mrf.mxu0
  %v5925 = vadd.f32 0.0, %v5924
  %v5926 = vpop.f32.mrf.mxu0
  %v5927 = vadd.f32 0.0, %v5926
  %5928 = vmatmul.bf16.gmra.mxu0 %v5900
  %v5929 = vpop.f32.mrf.mxu0
  %v5930 = vadd.f32 0.0, %v5929
  %v5931 = vpop.f32.mrf.mxu0
  %v5932 = vadd.f32 0.0, %v5931
  %5933 = vmatmul.bf16.gmra.mxu0 %v5903
  %v5934 = vpop.f32.mrf.mxu0
  %v5935 = vadd.f32 0.0, %v5934
  %v5936 = vpop.f32.mrf.mxu0
  %v5937 = vadd.f32 0.0, %v5936
  %5938 = vdwg.mxu0
  %v5939 = vadd.f32 %v5502, %v5915
  %v5940 = vadd.f32 %v5503, %v5917
  %v5941 = vadd.f32 %v5504, %v5920
  %v5942 = vadd.f32 %v5505, %v5922
  %v5943 = vadd.f32 %v5506, %v5925
  %v5944 = vadd.f32 %v5507, %v5927
  %v5945 = vadd.f32 %v5508, %v5930
  %v5946 = vadd.f32 %v5509, %v5932
  %v5947 = vadd.f32 %v5510, %v5935
  %v5948 = vadd.f32 %v5511, %v5937
  %s5949 = scalar_lea.vmem %s3, 80
  %v5950 = vld [vmem:[%s5949] sm:$0xf]
  %v5951 = vld [vmem:[%s5949 + $0x4] sm:$0xf]
  %v5952 = vld [vmem:[%s5949 + $0x8] sm:$0xf]
  %v5953 = vld [vmem:[%s5949 + $0xc] sm:$0xf]
  %v5964 = vunpack.c.l.b16 %v3932
  %v5965 = vunpack.c.l.b16 %v3933
  %v5966 = vunpack.c.l.b16 %v3934
  %v5967 = vunpack.c.l.b16 %v3935
  %v5968 = vunpack.c.l.b16 %v3936
  %v5969 = vunpack.c.l.b16 %v3937
  %v5970 = vunpack.c.l.b16 %v3938
  %v5971 = vunpack.c.l.b16 %v3939
  %v5972 = vunpack.c.l.b16 %v3940
  %v5973 = vunpack.c.l.b16 %v3941
  %v5974 = vpack.c.b16 %v5965, %v5964
  %v5975 = vpack.c.b16 %v5967, %v5966
  %v5976 = vpack.c.b16 %v5969, %v5968
  %v5977 = vpack.c.b16 %v5971, %v5970
  %v5978 = vpack.c.b16 %v5973, %v5972
  %v5983 = vunpack.c.l.b16 %v5950
  %v5984 = vunpack.c.l.b16 %v5951
  %v5985 = vunpack.c.l.b16 %v5952
  %v5986 = vunpack.c.l.b16 %v5953
  %v5987 = vpack.c.b16 %v5984, %v5983
  %v5988 = vpack.c.b16 %v5986, %v5985
  %v5992 = vsel %vm4230, %v5974, 0
  %v5995 = vsel %vm4230, %v5975, 0
  %v5998 = vsel %vm4230, %v5976, 0
  %v6001 = vsel %vm4230, %v5977, 0
  %v6004 = vsel %vm4230, %v5978, 0
  %6006 = vmatpush.bf16.msra.mxu0 0
  %6007 = vmatpush.bf16.msra.mxu0 0
  %6008 = vmatpush.bf16.msra.mxu0 0
  %6009 = vmatpush.bf16.msra.mxu0 0
  %6010 = vmatpush.bf16.msra.mxu0 0
  %6011 = vmatpush.bf16.msra.mxu0 0
  %6012 = vmatpush.bf16.msra.mxu0 %v5988
  %6013 = vmatpush.bf16.msra.mxu0 %v5987
  %6014 = vmatmul.bf16.gmra.mxu0 %v5992
  %v6015 = vpop.f32.mrf.mxu0
  %v6016 = vadd.f32 0.0, %v6015
  %v6017 = vpop.f32.mrf.mxu0
  %v6018 = vadd.f32 0.0, %v6017
  %6019 = vmatmul.bf16.gmra.mxu0 %v5995
  %v6020 = vpop.f32.mrf.mxu0
  %v6021 = vadd.f32 0.0, %v6020
  %v6022 = vpop.f32.mrf.mxu0
  %v6023 = vadd.f32 0.0, %v6022
  %6024 = vmatmul.bf16.gmra.mxu0 %v5998
  %v6025 = vpop.f32.mrf.mxu0
  %v6026 = vadd.f32 0.0, %v6025
  %v6027 = vpop.f32.mrf.mxu0
  %v6028 = vadd.f32 0.0, %v6027
  %6029 = vmatmul.bf16.gmra.mxu0 %v6001
  %v6030 = vpop.f32.mrf.mxu0
  %v6031 = vadd.f32 0.0, %v6030
  %v6032 = vpop.f32.mrf.mxu0
  %v6033 = vadd.f32 0.0, %v6032
  %6034 = vmatmul.bf16.gmra.mxu0 %v6004
  %v6035 = vpop.f32.mrf.mxu0
  %v6036 = vadd.f32 0.0, %v6035
  %v6037 = vpop.f32.mrf.mxu0
  %v6038 = vadd.f32 0.0, %v6037
  %6039 = vdwg.mxu0
  %v6040 = vadd.f32 %v5603, %v6016
  %v6041 = vadd.f32 %v5604, %v6018
  %v6042 = vadd.f32 %v5605, %v6021
  %v6043 = vadd.f32 %v5606, %v6023
  %v6044 = vadd.f32 %v5607, %v6026
  %v6045 = vadd.f32 %v5608, %v6028
  %v6046 = vadd.f32 %v5609, %v6031
  %v6047 = vadd.f32 %v5610, %v6033
  %v6048 = vadd.f32 %v5611, %v6036
  %v6049 = vadd.f32 %v5612, %v6038
  %v6060 = vunpack.c.l.b16 %v3980
  %v6061 = vunpack.c.l.b16 %v3981
  %v6062 = vunpack.c.l.b16 %v3982
  %v6063 = vunpack.c.l.b16 %v3983
  %v6064 = vunpack.c.l.b16 %v3984
  %v6065 = vunpack.c.l.b16 %v3985
  %v6066 = vunpack.c.l.b16 %v3986
  %v6067 = vunpack.c.l.b16 %v3987
  %v6068 = vunpack.c.l.b16 %v3988
  %v6069 = vunpack.c.l.b16 %v3989
  %v6070 = vpack.c.b16 %v6061, %v6060
  %v6071 = vpack.c.b16 %v6063, %v6062
  %v6072 = vpack.c.b16 %v6065, %v6064
  %v6073 = vpack.c.b16 %v6067, %v6066
  %v6074 = vpack.c.b16 %v6069, %v6068
  %v6076 = vsel %vm4230, %v6070, 0
  %v6079 = vsel %vm4230, %v6071, 0
  %v6082 = vsel %vm4230, %v6072, 0
  %v6085 = vsel %vm4230, %v6073, 0
  %v6088 = vsel %vm4230, %v6074, 0
  %6090 = vmatpush.bf16.msra.mxu0 0
  %6091 = vmatpush.bf16.msra.mxu0 0
  %6092 = vmatpush.bf16.msra.mxu0 0
  %6093 = vmatpush.bf16.msra.mxu0 0
  %6094 = vmatpush.bf16.msra.mxu0 0
  %6095 = vmatpush.bf16.msra.mxu0 0
  %6096 = vmatpush.bf16.msra.mxu0 %v5988
  %6097 = vmatpush.bf16.msra.mxu0 %v5987
  %6098 = vmatmul.bf16.gmra.mxu0 %v6076
  %v6099 = vpop.f32.mrf.mxu0
  %v6100 = vadd.f32 0.0, %v6099
  %v6101 = vpop.f32.mrf.mxu0
  %v6102 = vadd.f32 0.0, %v6101
  %6103 = vmatmul.bf16.gmra.mxu0 %v6079
  %v6104 = vpop.f32.mrf.mxu0
  %v6105 = vadd.f32 0.0, %v6104
  %v6106 = vpop.f32.mrf.mxu0
  %v6107 = vadd.f32 0.0, %v6106
  %6108 = vmatmul.bf16.gmra.mxu0 %v6082
  %v6109 = vpop.f32.mrf.mxu0
  %v6110 = vadd.f32 0.0, %v6109
  %v6111 = vpop.f32.mrf.mxu0
  %v6112 = vadd.f32 0.0, %v6111
  %6113 = vmatmul.bf16.gmra.mxu0 %v6085
  %v6114 = vpop.f32.mrf.mxu0
  %v6115 = vadd.f32 0.0, %v6114
  %v6116 = vpop.f32.mrf.mxu0
  %v6117 = vadd.f32 0.0, %v6116
  %6118 = vmatmul.bf16.gmra.mxu0 %v6088
  %v6119 = vpop.f32.mrf.mxu0
  %v6120 = vadd.f32 0.0, %v6119
  %v6121 = vpop.f32.mrf.mxu0
  %v6122 = vadd.f32 0.0, %v6121
  %6123 = vdwg.mxu0
  %v6124 = vadd.f32 %v5687, %v6100
  %v6125 = vadd.f32 %v5688, %v6102
  %v6126 = vadd.f32 %v5689, %v6105
  %v6127 = vadd.f32 %v5690, %v6107
  %v6128 = vadd.f32 %v5691, %v6110
  %v6129 = vadd.f32 %v5692, %v6112
  %v6130 = vadd.f32 %v5693, %v6115
  %v6131 = vadd.f32 %v5694, %v6117
  %v6132 = vadd.f32 %v5695, %v6120
  %v6133 = vadd.f32 %v5696, %v6122
  %v6144 = vunpack.c.l.b16 %v4028
  %v6145 = vunpack.c.l.b16 %v4029
  %v6146 = vunpack.c.l.b16 %v4030
  %v6147 = vunpack.c.l.b16 %v4031
  %v6148 = vunpack.c.l.b16 %v4032
  %v6149 = vunpack.c.l.b16 %v4033
  %v6150 = vunpack.c.l.b16 %v4034
  %v6151 = vunpack.c.l.b16 %v4035
  %v6152 = vunpack.c.l.b16 %v4036
  %v6153 = vunpack.c.l.b16 %v4037
  %v6154 = vpack.c.b16 %v6145, %v6144
  %v6155 = vpack.c.b16 %v6147, %v6146
  %v6156 = vpack.c.b16 %v6149, %v6148
  %v6157 = vpack.c.b16 %v6151, %v6150
  %v6158 = vpack.c.b16 %v6153, %v6152
  %v6160 = vsel %vm4230, %v6154, 0
  %v6163 = vsel %vm4230, %v6155, 0
  %v6166 = vsel %vm4230, %v6156, 0
  %v6169 = vsel %vm4230, %v6157, 0
  %v6172 = vsel %vm4230, %v6158, 0
  %6174 = vmatpush.bf16.msra.mxu0 0
  %6175 = vmatpush.bf16.msra.mxu0 0
  %6176 = vmatpush.bf16.msra.mxu0 0
  %6177 = vmatpush.bf16.msra.mxu0 0
  %6178 = vmatpush.bf16.msra.mxu0 0
  %6179 = vmatpush.bf16.msra.mxu0 0
  %6180 = vmatpush.bf16.msra.mxu0 %v5988
  %6181 = vmatpush.bf16.msra.mxu0 %v5987
  %6182 = vmatmul.bf16.gmra.mxu0 %v6160
  %v6183 = vpop.f32.mrf.mxu0
  %v6184 = vadd.f32 0.0, %v6183
  %v6185 = vpop.f32.mrf.mxu0
  %v6186 = vadd.f32 0.0, %v6185
  %6187 = vmatmul.bf16.gmra.mxu0 %v6163
  %v6188 = vpop.f32.mrf.mxu0
  %v6189 = vadd.f32 0.0, %v6188
  %v6190 = vpop.f32.mrf.mxu0
  %v6191 = vadd.f32 0.0, %v6190
  %6192 = vmatmul.bf16.gmra.mxu0 %v6166
  %v6193 = vpop.f32.mrf.mxu0
  %v6194 = vadd.f32 0.0, %v6193
  %v6195 = vpop.f32.mrf.mxu0
  %v6196 = vadd.f32 0.0, %v6195
  %6197 = vmatmul.bf16.gmra.mxu0 %v6169
  %v6198 = vpop.f32.mrf.mxu0
  %v6199 = vadd.f32 0.0, %v6198
  %v6200 = vpop.f32.mrf.mxu0
  %v6201 = vadd.f32 0.0, %v6200
  %6202 = vmatmul.bf16.gmra.mxu0 %v6172
  %v6203 = vpop.f32.mrf.mxu0
  %v6204 = vadd.f32 0.0, %v6203
  %v6205 = vpop.f32.mrf.mxu0
  %v6206 = vadd.f32 0.0, %v6205
  %6207 = vdwg.mxu0
  %v6208 = vadd.f32 %v5771, %v6184
  %v6209 = vadd.f32 %v5772, %v6186
  %v6210 = vadd.f32 %v5773, %v6189
  %v6211 = vadd.f32 %v5774, %v6191
  %v6212 = vadd.f32 %v5775, %v6194
  %v6213 = vadd.f32 %v5776, %v6196
  %v6214 = vadd.f32 %v5777, %v6199
  %v6215 = vadd.f32 %v5778, %v6201
  %v6216 = vadd.f32 %v5779, %v6204
  %v6217 = vadd.f32 %v5780, %v6206
  %v6228 = vunpack.c.l.b16 %v4076
  %v6229 = vunpack.c.l.b16 %v4077
  %v6230 = vunpack.c.l.b16 %v4078
  %v6231 = vunpack.c.l.b16 %v4079
  %v6232 = vunpack.c.l.b16 %v4080
  %v6233 = vunpack.c.l.b16 %v4081
  %v6234 = vunpack.c.l.b16 %v4082
  %v6235 = vunpack.c.l.b16 %v4083
  %v6236 = vunpack.c.l.b16 %v4084
  %v6237 = vunpack.c.l.b16 %v4085
  %v6238 = vpack.c.b16 %v6229, %v6228
  %v6239 = vpack.c.b16 %v6231, %v6230
  %v6240 = vpack.c.b16 %v6233, %v6232
  %v6241 = vpack.c.b16 %v6235, %v6234
  %v6242 = vpack.c.b16 %v6237, %v6236
  %v6244 = vsel %vm4230, %v6238, 0
  %v6247 = vsel %vm4230, %v6239, 0
  %v6250 = vsel %vm4230, %v6240, 0
  %v6253 = vsel %vm4230, %v6241, 0
  %v6256 = vsel %vm4230, %v6242, 0
  %6258 = vmatpush.bf16.msra.mxu0 0
  %6259 = vmatpush.bf16.msra.mxu0 0
  %6260 = vmatpush.bf16.msra.mxu0 0
  %6261 = vmatpush.bf16.msra.mxu0 0
  %6262 = vmatpush.bf16.msra.mxu0 0
  %6263 = vmatpush.bf16.msra.mxu0 0
  %6264 = vmatpush.bf16.msra.mxu0 %v5988
  %6265 = vmatpush.bf16.msra.mxu0 %v5987
  %6266 = vmatmul.bf16.gmra.mxu0 %v6244
  %v6267 = vpop.f32.mrf.mxu0
  %v6268 = vadd.f32 0.0, %v6267
  %v6269 = vpop.f32.mrf.mxu0
  %v6270 = vadd.f32 0.0, %v6269
  %6271 = vmatmul.bf16.gmra.mxu0 %v6247
  %v6272 = vpop.f32.mrf.mxu0
  %v6273 = vadd.f32 0.0, %v6272
  %v6274 = vpop.f32.mrf.mxu0
  %v6275 = vadd.f32 0.0, %v6274
  %6276 = vmatmul.bf16.gmra.mxu0 %v6250
  %v6277 = vpop.f32.mrf.mxu0
  %v6278 = vadd.f32 0.0, %v6277
  %v6279 = vpop.f32.mrf.mxu0
  %v6280 = vadd.f32 0.0, %v6279
  %6281 = vmatmul.bf16.gmra.mxu0 %v6253
  %v6282 = vpop.f32.mrf.mxu0
  %v6283 = vadd.f32 0.0, %v6282
  %v6284 = vpop.f32.mrf.mxu0
  %v6285 = vadd.f32 0.0, %v6284
  %6286 = vmatmul.bf16.gmra.mxu0 %v6256
  %v6287 = vpop.f32.mrf.mxu0
  %v6288 = vadd.f32 0.0, %v6287
  %v6289 = vpop.f32.mrf.mxu0
  %v6290 = vadd.f32 0.0, %v6289
  %6291 = vdwg.mxu0
  %v6292 = vadd.f32 %v5855, %v6268
  %v6293 = vadd.f32 %v5856, %v6270
  %v6294 = vadd.f32 %v5857, %v6273
  %v6295 = vadd.f32 %v5858, %v6275
  %v6296 = vadd.f32 %v5859, %v6278
  %v6297 = vadd.f32 %v5860, %v6280
  %v6298 = vadd.f32 %v5861, %v6283
  %v6299 = vadd.f32 %v5862, %v6285
  %v6300 = vadd.f32 %v5863, %v6288
  %v6301 = vadd.f32 %v5864, %v6290
  %v6312 = vunpack.c.l.b16 %v4124
  %v6313 = vunpack.c.l.b16 %v4125
  %v6314 = vunpack.c.l.b16 %v4126
  %v6315 = vunpack.c.l.b16 %v4127
  %v6316 = vunpack.c.l.b16 %v4128
  %v6317 = vunpack.c.l.b16 %v4129
  %v6318 = vunpack.c.l.b16 %v4130
  %v6319 = vunpack.c.l.b16 %v4131
  %v6320 = vunpack.c.l.b16 %v4132
  %v6321 = vunpack.c.l.b16 %v4133
  %v6322 = vpack.c.b16 %v6313, %v6312
  %v6323 = vpack.c.b16 %v6315, %v6314
  %v6324 = vpack.c.b16 %v6317, %v6316
  %v6325 = vpack.c.b16 %v6319, %v6318
  %v6326 = vpack.c.b16 %v6321, %v6320
  %v6328 = vsel %vm4230, %v6322, 0
  %v6331 = vsel %vm4230, %v6323, 0
  %v6334 = vsel %vm4230, %v6324, 0
  %v6337 = vsel %vm4230, %v6325, 0
  %v6340 = vsel %vm4230, %v6326, 0
  %6342 = vmatpush.bf16.msra.mxu0 0
  %6343 = vmatpush.bf16.msra.mxu0 0
  %6344 = vmatpush.bf16.msra.mxu0 0
  %6345 = vmatpush.bf16.msra.mxu0 0
  %6346 = vmatpush.bf16.msra.mxu0 0
  %6347 = vmatpush.bf16.msra.mxu0 0
  %6348 = vmatpush.bf16.msra.mxu0 %v5988
  %6349 = vmatpush.bf16.msra.mxu0 %v5987
  %6350 = vmatmul.bf16.gmra.mxu0 %v6328
  %v6351 = vpop.f32.mrf.mxu0
  %v6352 = vadd.f32 0.0, %v6351
  %v6353 = vpop.f32.mrf.mxu0
  %v6354 = vadd.f32 0.0, %v6353
  %6355 = vmatmul.bf16.gmra.mxu0 %v6331
  %v6356 = vpop.f32.mrf.mxu0
  %v6357 = vadd.f32 0.0, %v6356
  %v6358 = vpop.f32.mrf.mxu0
  %v6359 = vadd.f32 0.0, %v6358
  %6360 = vmatmul.bf16.gmra.mxu0 %v6334
  %v6361 = vpop.f32.mrf.mxu0
  %v6362 = vadd.f32 0.0, %v6361
  %v6363 = vpop.f32.mrf.mxu0
  %v6364 = vadd.f32 0.0, %v6363
  %6365 = vmatmul.bf16.gmra.mxu0 %v6337
  %v6366 = vpop.f32.mrf.mxu0
  %v6367 = vadd.f32 0.0, %v6366
  %v6368 = vpop.f32.mrf.mxu0
  %v6369 = vadd.f32 0.0, %v6368
  %6370 = vmatmul.bf16.gmra.mxu0 %v6340
  %v6371 = vpop.f32.mrf.mxu0
  %v6372 = vadd.f32 0.0, %v6371
  %v6373 = vpop.f32.mrf.mxu0
  %v6374 = vadd.f32 0.0, %v6373
  %6375 = vdwg.mxu0
  %v6376 = vadd.f32 %v5939, %v6352
  %v6377 = vadd.f32 %v5940, %v6354
  %v6378 = vadd.f32 %v5941, %v6357
  %v6379 = vadd.f32 %v5942, %v6359
  %v6380 = vadd.f32 %v5943, %v6362
  %v6381 = vadd.f32 %v5944, %v6364
  %v6382 = vadd.f32 %v5945, %v6367
  %v6383 = vadd.f32 %v5946, %v6369
  %v6384 = vadd.f32 %v5947, %v6372
  %v6385 = vadd.f32 %v5948, %v6374
  %s6386 = scalar_lea.vmem %s3, 96
  %v6387 = vld [vmem:[%s6386] sm:$0xf]
  %v6388 = vld [vmem:[%s6386 + $0x4] sm:$0xf]
  %v6389 = vld [vmem:[%s6386 + $0x8] sm:$0xf]
  %v6390 = vld [vmem:[%s6386 + $0xc] sm:$0xf]
  %v6393 = vunpack.c.l.b16 %v3930
  %v6394 = vunpack.c.l.b16 %v3931
  %v6395 = vpack.c.b16 %v6394, %v6393
  %v6400 = vunpack.c.l.b16 %v6387
  %v6401 = vunpack.c.l.b16 %v6388
  %v6402 = vunpack.c.l.b16 %v6389
  %v6403 = vunpack.c.l.b16 %v6390
  %v6404 = vpack.c.b16 %v6401, %v6400
  %v6405 = vpack.c.b16 %v6403, %v6402
  %v6409 = vsel %vm4230, %v6395, 0
  %6411 = vmatpush.bf16.msra.mxu0 0
  %6412 = vmatpush.bf16.msra.mxu0 0
  %6413 = vmatpush.bf16.msra.mxu0 0
  %6414 = vmatpush.bf16.msra.mxu0 0
  %6415 = vmatpush.bf16.msra.mxu0 0
  %6416 = vmatpush.bf16.msra.mxu0 0
  %6417 = vmatpush.bf16.msra.mxu0 %v6405
  %6418 = vmatpush.bf16.msra.mxu0 %v6404
  %6419 = vmatmul.bf16.gmra.mxu0 %v5558
  %v6420 = vpop.f32.mrf.mxu0
  %v6421 = vadd.f32 0.0, %v6420
  %v6422 = vpop.f32.mrf.mxu0
  %v6423 = vadd.f32 0.0, %v6422
  %6424 = vmatmul.bf16.gmra.mxu0 %v5561
  %v6425 = vpop.f32.mrf.mxu0
  %v6426 = vadd.f32 0.0, %v6425
  %v6427 = vpop.f32.mrf.mxu0
  %v6428 = vadd.f32 0.0, %v6427
  %6429 = vmatmul.bf16.gmra.mxu0 %v5564
  %v6430 = vpop.f32.mrf.mxu0
  %v6431 = vadd.f32 0.0, %v6430
  %v6432 = vpop.f32.mrf.mxu0
  %v6433 = vadd.f32 0.0, %v6432
  %6434 = vmatmul.bf16.gmra.mxu0 %v5567
  %v6435 = vpop.f32.mrf.mxu0
  %v6436 = vadd.f32 0.0, %v6435
  %v6437 = vpop.f32.mrf.mxu0
  %v6438 = vadd.f32 0.0, %v6437
  %6439 = vmatmul.bf16.gmra.mxu0 %v6409
  %v6440 = vpop.f32.mrf.mxu0
  %v6441 = vadd.f32 0.0, %v6440
  %v6442 = vpop.f32.mrf.mxu0
  %v6443 = vadd.f32 0.0, %v6442
  %6444 = vdwg.mxu0
  %v6445 = vadd.f32 %v6040, %v6421
  %v6446 = vadd.f32 %v6041, %v6423
  %v6447 = vadd.f32 %v6042, %v6426
  %v6448 = vadd.f32 %v6043, %v6428
  %v6449 = vadd.f32 %v6044, %v6431
  %v6450 = vadd.f32 %v6045, %v6433
  %v6451 = vadd.f32 %v6046, %v6436
  %v6452 = vadd.f32 %v6047, %v6438
  %v6453 = vadd.f32 %v6048, %v6441
  %v6454 = vadd.f32 %v6049, %v6443
  %v6457 = vunpack.c.l.b16 %v3978
  %v6458 = vunpack.c.l.b16 %v3979
  %v6459 = vpack.c.b16 %v6458, %v6457
  %v6461 = vsel %vm4230, %v6459, 0
  %6463 = vmatpush.bf16.msra.mxu0 0
  %6464 = vmatpush.bf16.msra.mxu0 0
  %6465 = vmatpush.bf16.msra.mxu0 0
  %6466 = vmatpush.bf16.msra.mxu0 0
  %6467 = vmatpush.bf16.msra.mxu0 0
  %6468 = vmatpush.bf16.msra.mxu0 0
  %6469 = vmatpush.bf16.msra.mxu0 %v6405
  %6470 = vmatpush.bf16.msra.mxu0 %v6404
  %6471 = vmatmul.bf16.gmra.mxu0 %v5642
  %v6472 = vpop.f32.mrf.mxu0
  %v6473 = vadd.f32 0.0, %v6472
  %v6474 = vpop.f32.mrf.mxu0
  %v6475 = vadd.f32 0.0, %v6474
  %6476 = vmatmul.bf16.gmra.mxu0 %v5645
  %v6477 = vpop.f32.mrf.mxu0
  %v6478 = vadd.f32 0.0, %v6477
  %v6479 = vpop.f32.mrf.mxu0
  %v6480 = vadd.f32 0.0, %v6479
  %6481 = vmatmul.bf16.gmra.mxu0 %v5648
  %v6482 = vpop.f32.mrf.mxu0
  %v6483 = vadd.f32 0.0, %v6482
  %v6484 = vpop.f32.mrf.mxu0
  %v6485 = vadd.f32 0.0, %v6484
  %6486 = vmatmul.bf16.gmra.mxu0 %v5651
  %v6487 = vpop.f32.mrf.mxu0
  %v6488 = vadd.f32 0.0, %v6487
  %v6489 = vpop.f32.mrf.mxu0
  %v6490 = vadd.f32 0.0, %v6489
  %6491 = vmatmul.bf16.gmra.mxu0 %v6461
  %v6492 = vpop.f32.mrf.mxu0
  %v6493 = vadd.f32 0.0, %v6492
  %v6494 = vpop.f32.mrf.mxu0
  %v6495 = vadd.f32 0.0, %v6494
  %6496 = vdwg.mxu0
  %v6497 = vadd.f32 %v6124, %v6473
  %v6498 = vadd.f32 %v6125, %v6475
  %v6499 = vadd.f32 %v6126, %v6478
  %v6500 = vadd.f32 %v6127, %v6480
  %v6501 = vadd.f32 %v6128, %v6483
  %v6502 = vadd.f32 %v6129, %v6485
  %v6503 = vadd.f32 %v6130, %v6488
  %v6504 = vadd.f32 %v6131, %v6490
  %v6505 = vadd.f32 %v6132, %v6493
  %v6506 = vadd.f32 %v6133, %v6495
  %v6509 = vunpack.c.l.b16 %v4026
  %v6510 = vunpack.c.l.b16 %v4027
  %v6511 = vpack.c.b16 %v6510, %v6509
  %v6513 = vsel %vm4230, %v6511, 0
  %6515 = vmatpush.bf16.msra.mxu0 0
  %6516 = vmatpush.bf16.msra.mxu0 0
  %6517 = vmatpush.bf16.msra.mxu0 0
  %6518 = vmatpush.bf16.msra.mxu0 0
  %6519 = vmatpush.bf16.msra.mxu0 0
  %6520 = vmatpush.bf16.msra.mxu0 0
  %6521 = vmatpush.bf16.msra.mxu0 %v6405
  %6522 = vmatpush.bf16.msra.mxu0 %v6404
  %6523 = vmatmul.bf16.gmra.mxu0 %v5726
  %v6524 = vpop.f32.mrf.mxu0
  %v6525 = vadd.f32 0.0, %v6524
  %v6526 = vpop.f32.mrf.mxu0
  %v6527 = vadd.f32 0.0, %v6526
  %6528 = vmatmul.bf16.gmra.mxu0 %v5729
  %v6529 = vpop.f32.mrf.mxu0
  %v6530 = vadd.f32 0.0, %v6529
  %v6531 = vpop.f32.mrf.mxu0
  %v6532 = vadd.f32 0.0, %v6531
  %6533 = vmatmul.bf16.gmra.mxu0 %v5732
  %v6534 = vpop.f32.mrf.mxu0
  %v6535 = vadd.f32 0.0, %v6534
  %v6536 = vpop.f32.mrf.mxu0
  %v6537 = vadd.f32 0.0, %v6536
  %6538 = vmatmul.bf16.gmra.mxu0 %v5735
  %v6539 = vpop.f32.mrf.mxu0
  %v6540 = vadd.f32 0.0, %v6539
  %v6541 = vpop.f32.mrf.mxu0
  %v6542 = vadd.f32 0.0, %v6541
  %6543 = vmatmul.bf16.gmra.mxu0 %v6513
  %v6544 = vpop.f32.mrf.mxu0
  %v6545 = vadd.f32 0.0, %v6544
  %v6546 = vpop.f32.mrf.mxu0
  %v6547 = vadd.f32 0.0, %v6546
  %6548 = vdwg.mxu0
  %v6549 = vadd.f32 %v6208, %v6525
  %v6550 = vadd.f32 %v6209, %v6527
  %v6551 = vadd.f32 %v6210, %v6530
  %v6552 = vadd.f32 %v6211, %v6532
  %v6553 = vadd.f32 %v6212, %v6535
  %v6554 = vadd.f32 %v6213, %v6537
  %v6555 = vadd.f32 %v6214, %v6540
  %v6556 = vadd.f32 %v6215, %v6542
  %v6557 = vadd.f32 %v6216, %v6545
  %v6558 = vadd.f32 %v6217, %v6547
  %v6561 = vunpack.c.l.b16 %v4074
  %v6562 = vunpack.c.l.b16 %v4075
  %v6563 = vpack.c.b16 %v6562, %v6561
  %v6565 = vsel %vm4230, %v6563, 0
  %6567 = vmatpush.bf16.msra.mxu0 0
  %6568 = vmatpush.bf16.msra.mxu0 0
  %6569 = vmatpush.bf16.msra.mxu0 0
  %6570 = vmatpush.bf16.msra.mxu0 0
  %6571 = vmatpush.bf16.msra.mxu0 0
  %6572 = vmatpush.bf16.msra.mxu0 0
  %6573 = vmatpush.bf16.msra.mxu0 %v6405
  %6574 = vmatpush.bf16.msra.mxu0 %v6404
  %6575 = vmatmul.bf16.gmra.mxu0 %v5810
  %v6576 = vpop.f32.mrf.mxu0
  %v6577 = vadd.f32 0.0, %v6576
  %v6578 = vpop.f32.mrf.mxu0
  %v6579 = vadd.f32 0.0, %v6578
  %6580 = vmatmul.bf16.gmra.mxu0 %v5813
  %v6581 = vpop.f32.mrf.mxu0
  %v6582 = vadd.f32 0.0, %v6581
  %v6583 = vpop.f32.mrf.mxu0
  %v6584 = vadd.f32 0.0, %v6583
  %6585 = vmatmul.bf16.gmra.mxu0 %v5816
  %v6586 = vpop.f32.mrf.mxu0
  %v6587 = vadd.f32 0.0, %v6586
  %v6588 = vpop.f32.mrf.mxu0
  %v6589 = vadd.f32 0.0, %v6588
  %6590 = vmatmul.bf16.gmra.mxu0 %v5819
  %v6591 = vpop.f32.mrf.mxu0
  %v6592 = vadd.f32 0.0, %v6591
  %v6593 = vpop.f32.mrf.mxu0
  %v6594 = vadd.f32 0.0, %v6593
  %6595 = vmatmul.bf16.gmra.mxu0 %v6565
  %v6596 = vpop.f32.mrf.mxu0
  %v6597 = vadd.f32 0.0, %v6596
  %v6598 = vpop.f32.mrf.mxu0
  %v6599 = vadd.f32 0.0, %v6598
  %6600 = vdwg.mxu0
  %v6601 = vadd.f32 %v6292, %v6577
  %v6602 = vadd.f32 %v6293, %v6579
  %v6603 = vadd.f32 %v6294, %v6582
  %v6604 = vadd.f32 %v6295, %v6584
  %v6605 = vadd.f32 %v6296, %v6587
  %v6606 = vadd.f32 %v6297, %v6589
  %v6607 = vadd.f32 %v6298, %v6592
  %v6608 = vadd.f32 %v6299, %v6594
  %v6609 = vadd.f32 %v6300, %v6597
  %v6610 = vadd.f32 %v6301, %v6599
  %v6613 = vunpack.c.l.b16 %v4122
  %v6614 = vunpack.c.l.b16 %v4123
  %v6615 = vpack.c.b16 %v6614, %v6613
  %v6617 = vsel %vm4230, %v6615, 0
  %6619 = vmatpush.bf16.msra.mxu0 0
  %6620 = vmatpush.bf16.msra.mxu0 0
  %6621 = vmatpush.bf16.msra.mxu0 0
  %6622 = vmatpush.bf16.msra.mxu0 0
  %6623 = vmatpush.bf16.msra.mxu0 0
  %6624 = vmatpush.bf16.msra.mxu0 0
  %6625 = vmatpush.bf16.msra.mxu0 %v6405
  %6626 = vmatpush.bf16.msra.mxu0 %v6404
  %6627 = vmatmul.bf16.gmra.mxu0 %v5894
  %v6628 = vpop.f32.mrf.mxu0
  %v6629 = vadd.f32 0.0, %v6628
  %v6630 = vpop.f32.mrf.mxu0
  %v6631 = vadd.f32 0.0, %v6630
  %6632 = vmatmul.bf16.gmra.mxu0 %v5897
  %v6633 = vpop.f32.mrf.mxu0
  %v6634 = vadd.f32 0.0, %v6633
  %v6635 = vpop.f32.mrf.mxu0
  %v6636 = vadd.f32 0.0, %v6635
  %6637 = vmatmul.bf16.gmra.mxu0 %v5900
  %v6638 = vpop.f32.mrf.mxu0
  %v6639 = vadd.f32 0.0, %v6638
  %v6640 = vpop.f32.mrf.mxu0
  %v6641 = vadd.f32 0.0, %v6640
  %6642 = vmatmul.bf16.gmra.mxu0 %v5903
  %v6643 = vpop.f32.mrf.mxu0
  %v6644 = vadd.f32 0.0, %v6643
  %v6645 = vpop.f32.mrf.mxu0
  %v6646 = vadd.f32 0.0, %v6645
  %6647 = vmatmul.bf16.gmra.mxu0 %v6617
  %v6648 = vpop.f32.mrf.mxu0
  %v6649 = vadd.f32 0.0, %v6648
  %v6650 = vpop.f32.mrf.mxu0
  %v6651 = vadd.f32 0.0, %v6650
  %6652 = vdwg.mxu0
  %v6653 = vadd.f32 %v6376, %v6629
  %v6654 = vadd.f32 %v6377, %v6631
  %v6655 = vadd.f32 %v6378, %v6634
  %v6656 = vadd.f32 %v6379, %v6636
  %v6657 = vadd.f32 %v6380, %v6639
  %v6658 = vadd.f32 %v6381, %v6641
  %v6659 = vadd.f32 %v6382, %v6644
  %v6660 = vadd.f32 %v6383, %v6646
  %v6661 = vadd.f32 %v6384, %v6649
  %v6662 = vadd.f32 %v6385, %v6651
  %s6663 = scalar_lea.vmem %s3, 112
  %v6664 = vld [vmem:[%s6663] sm:$0xf]
  %v6665 = vld [vmem:[%s6663 + $0x4] sm:$0xf]
  %v6666 = vld [vmem:[%s6663 + $0x8] sm:$0xf]
  %v6667 = vld [vmem:[%s6663 + $0xc] sm:$0xf]
  %v6670 = vunpack.c.l.b16 %v3942
  %v6671 = vunpack.c.l.b16 %v3943
  %v6672 = vpack.c.b16 %v6671, %v6670
  %v6677 = vunpack.c.l.b16 %v6664
  %v6678 = vunpack.c.l.b16 %v6665
  %v6679 = vunpack.c.l.b16 %v6666
  %v6680 = vunpack.c.l.b16 %v6667
  %v6681 = vpack.c.b16 %v6678, %v6677
  %v6682 = vpack.c.b16 %v6680, %v6679
  %v6686 = vsel %vm4230, %v6672, 0
  %6688 = vmatpush.bf16.msra.mxu0 0
  %6689 = vmatpush.bf16.msra.mxu0 0
  %6690 = vmatpush.bf16.msra.mxu0 0
  %6691 = vmatpush.bf16.msra.mxu0 0
  %6692 = vmatpush.bf16.msra.mxu0 0
  %6693 = vmatpush.bf16.msra.mxu0 0
  %6694 = vmatpush.bf16.msra.mxu0 %v6682
  %6695 = vmatpush.bf16.msra.mxu0 %v6681
  %6696 = vmatmul.bf16.gmra.mxu0 %v5995
  %v6697 = vpop.f32.mrf.mxu0
  %v6698 = vadd.f32 0.0, %v6697
  %v6699 = vpop.f32.mrf.mxu0
  %v6700 = vadd.f32 0.0, %v6699
  %6701 = vmatmul.bf16.gmra.mxu0 %v5998
  %v6702 = vpop.f32.mrf.mxu0
  %v6703 = vadd.f32 0.0, %v6702
  %v6704 = vpop.f32.mrf.mxu0
  %v6705 = vadd.f32 0.0, %v6704
  %6706 = vmatmul.bf16.gmra.mxu0 %v6001
  %v6707 = vpop.f32.mrf.mxu0
  %v6708 = vadd.f32 0.0, %v6707
  %v6709 = vpop.f32.mrf.mxu0
  %v6710 = vadd.f32 0.0, %v6709
  %6711 = vmatmul.bf16.gmra.mxu0 %v6004
  %v6712 = vpop.f32.mrf.mxu0
  %v6713 = vadd.f32 0.0, %v6712
  %v6714 = vpop.f32.mrf.mxu0
  %v6715 = vadd.f32 0.0, %v6714
  %6716 = vmatmul.bf16.gmra.mxu0 %v6686
  %v6717 = vpop.f32.mrf.mxu0
  %v6718 = vadd.f32 0.0, %v6717
  %v6719 = vpop.f32.mrf.mxu0
  %v6720 = vadd.f32 0.0, %v6719
  %6721 = vdwg.mxu0
  %v6722 = vadd.f32 %v6445, %v6698
  %v6723 = vadd.f32 %v6446, %v6700
  %v6724 = vadd.f32 %v6447, %v6703
  %v6725 = vadd.f32 %v6448, %v6705
  %v6726 = vadd.f32 %v6449, %v6708
  %v6727 = vadd.f32 %v6450, %v6710
  %v6728 = vadd.f32 %v6451, %v6713
  %v6729 = vadd.f32 %v6452, %v6715
  %v6730 = vadd.f32 %v6453, %v6718
  %v6731 = vadd.f32 %v6454, %v6720
  %v6734 = vunpack.c.l.b16 %v3990
  %v6735 = vunpack.c.l.b16 %v3991
  %v6736 = vpack.c.b16 %v6735, %v6734
  %v6738 = vsel %vm4230, %v6736, 0
  %6740 = vmatpush.bf16.msra.mxu0 0
  %6741 = vmatpush.bf16.msra.mxu0 0
  %6742 = vmatpush.bf16.msra.mxu0 0
  %6743 = vmatpush.bf16.msra.mxu0 0
  %6744 = vmatpush.bf16.msra.mxu0 0
  %6745 = vmatpush.bf16.msra.mxu0 0
  %6746 = vmatpush.bf16.msra.mxu0 %v6682
  %6747 = vmatpush.bf16.msra.mxu0 %v6681
  %6748 = vmatmul.bf16.gmra.mxu0 %v6079
  %v6749 = vpop.f32.mrf.mxu0
  %v6750 = vadd.f32 0.0, %v6749
  %v6751 = vpop.f32.mrf.mxu0
  %v6752 = vadd.f32 0.0, %v6751
  %6753 = vmatmul.bf16.gmra.mxu0 %v6082
  %v6754 = vpop.f32.mrf.mxu0
  %v6755 = vadd.f32 0.0, %v6754
  %v6756 = vpop.f32.mrf.mxu0
  %v6757 = vadd.f32 0.0, %v6756
  %6758 = vmatmul.bf16.gmra.mxu0 %v6085
  %v6759 = vpop.f32.mrf.mxu0
  %v6760 = vadd.f32 0.0, %v6759
  %v6761 = vpop.f32.mrf.mxu0
  %v6762 = vadd.f32 0.0, %v6761
  %6763 = vmatmul.bf16.gmra.mxu0 %v6088
  %v6764 = vpop.f32.mrf.mxu0
  %v6765 = vadd.f32 0.0, %v6764
  %v6766 = vpop.f32.mrf.mxu0
  %v6767 = vadd.f32 0.0, %v6766
  %6768 = vmatmul.bf16.gmra.mxu0 %v6738
  %v6769 = vpop.f32.mrf.mxu0
  %v6770 = vadd.f32 0.0, %v6769
  %v6771 = vpop.f32.mrf.mxu0
  %v6772 = vadd.f32 0.0, %v6771
  %6773 = vdwg.mxu0
  %v6774 = vadd.f32 %v6497, %v6750
  %v6775 = vadd.f32 %v6498, %v6752
  %v6776 = vadd.f32 %v6499, %v6755
  %v6777 = vadd.f32 %v6500, %v6757
  %v6778 = vadd.f32 %v6501, %v6760
  %v6779 = vadd.f32 %v6502, %v6762
  %v6780 = vadd.f32 %v6503, %v6765
  %v6781 = vadd.f32 %v6504, %v6767
  %v6782 = vadd.f32 %v6505, %v6770
  %v6783 = vadd.f32 %v6506, %v6772
  %v6786 = vunpack.c.l.b16 %v4038
  %v6787 = vunpack.c.l.b16 %v4039
  %v6788 = vpack.c.b16 %v6787, %v6786
  %v6790 = vsel %vm4230, %v6788, 0
  %6792 = vmatpush.bf16.msra.mxu0 0
  %6793 = vmatpush.bf16.msra.mxu0 0
  %6794 = vmatpush.bf16.msra.mxu0 0
  %6795 = vmatpush.bf16.msra.mxu0 0
  %6796 = vmatpush.bf16.msra.mxu0 0
  %6797 = vmatpush.bf16.msra.mxu0 0
  %6798 = vmatpush.bf16.msra.mxu0 %v6682
  %6799 = vmatpush.bf16.msra.mxu0 %v6681
  %6800 = vmatmul.bf16.gmra.mxu0 %v6163
  %v6801 = vpop.f32.mrf.mxu0
  %v6802 = vadd.f32 0.0, %v6801
  %v6803 = vpop.f32.mrf.mxu0
  %v6804 = vadd.f32 0.0, %v6803
  %6805 = vmatmul.bf16.gmra.mxu0 %v6166
  %v6806 = vpop.f32.mrf.mxu0
  %v6807 = vadd.f32 0.0, %v6806
  %v6808 = vpop.f32.mrf.mxu0
  %v6809 = vadd.f32 0.0, %v6808
  %6810 = vmatmul.bf16.gmra.mxu0 %v6169
  %v6811 = vpop.f32.mrf.mxu0
  %v6812 = vadd.f32 0.0, %v6811
  %v6813 = vpop.f32.mrf.mxu0
  %v6814 = vadd.f32 0.0, %v6813
  %6815 = vmatmul.bf16.gmra.mxu0 %v6172
  %v6816 = vpop.f32.mrf.mxu0
  %v6817 = vadd.f32 0.0, %v6816
  %v6818 = vpop.f32.mrf.mxu0
  %v6819 = vadd.f32 0.0, %v6818
  %6820 = vmatmul.bf16.gmra.mxu0 %v6790
  %v6821 = vpop.f32.mrf.mxu0
  %v6822 = vadd.f32 0.0, %v6821
  %v6823 = vpop.f32.mrf.mxu0
  %v6824 = vadd.f32 0.0, %v6823
  %6825 = vdwg.mxu0
  %v6826 = vadd.f32 %v6549, %v6802
  %v6827 = vadd.f32 %v6550, %v6804
  %v6828 = vadd.f32 %v6551, %v6807
  %v6829 = vadd.f32 %v6552, %v6809
  %v6830 = vadd.f32 %v6553, %v6812
  %v6831 = vadd.f32 %v6554, %v6814
  %v6832 = vadd.f32 %v6555, %v6817
  %v6833 = vadd.f32 %v6556, %v6819
  %v6834 = vadd.f32 %v6557, %v6822
  %v6835 = vadd.f32 %v6558, %v6824
  %v6838 = vunpack.c.l.b16 %v4086
  %v6839 = vunpack.c.l.b16 %v4087
  %v6840 = vpack.c.b16 %v6839, %v6838
  %v6842 = vsel %vm4230, %v6840, 0
  %6844 = vmatpush.bf16.msra.mxu0 0
  %6845 = vmatpush.bf16.msra.mxu0 0
  %6846 = vmatpush.bf16.msra.mxu0 0
  %6847 = vmatpush.bf16.msra.mxu0 0
  %6848 = vmatpush.bf16.msra.mxu0 0
  %6849 = vmatpush.bf16.msra.mxu0 0
  %6850 = vmatpush.bf16.msra.mxu0 %v6682
  %6851 = vmatpush.bf16.msra.mxu0 %v6681
  %6852 = vmatmul.bf16.gmra.mxu0 %v6247
  %v6853 = vpop.f32.mrf.mxu0
  %v6854 = vadd.f32 0.0, %v6853
  %v6855 = vpop.f32.mrf.mxu0
  %v6856 = vadd.f32 0.0, %v6855
  %6857 = vmatmul.bf16.gmra.mxu0 %v6250
  %v6858 = vpop.f32.mrf.mxu0
  %v6859 = vadd.f32 0.0, %v6858
  %v6860 = vpop.f32.mrf.mxu0
  %v6861 = vadd.f32 0.0, %v6860
  %6862 = vmatmul.bf16.gmra.mxu0 %v6253
  %v6863 = vpop.f32.mrf.mxu0
  %v6864 = vadd.f32 0.0, %v6863
  %v6865 = vpop.f32.mrf.mxu0
  %v6866 = vadd.f32 0.0, %v6865
  %6867 = vmatmul.bf16.gmra.mxu0 %v6256
  %v6868 = vpop.f32.mrf.mxu0
  %v6869 = vadd.f32 0.0, %v6868
  %v6870 = vpop.f32.mrf.mxu0
  %v6871 = vadd.f32 0.0, %v6870
  %6872 = vmatmul.bf16.gmra.mxu0 %v6842
  %v6873 = vpop.f32.mrf.mxu0
  %v6874 = vadd.f32 0.0, %v6873
  %v6875 = vpop.f32.mrf.mxu0
  %v6876 = vadd.f32 0.0, %v6875
  %6877 = vdwg.mxu0
  %v6878 = vadd.f32 %v6601, %v6854
  %v6879 = vadd.f32 %v6602, %v6856
  %v6880 = vadd.f32 %v6603, %v6859
  %v6881 = vadd.f32 %v6604, %v6861
  %v6882 = vadd.f32 %v6605, %v6864
  %v6883 = vadd.f32 %v6606, %v6866
  %v6884 = vadd.f32 %v6607, %v6869
  %v6885 = vadd.f32 %v6608, %v6871
  %v6886 = vadd.f32 %v6609, %v6874
  %v6887 = vadd.f32 %v6610, %v6876
  %v6890 = vunpack.c.l.b16 %v4134
  %v6891 = vunpack.c.l.b16 %v4135
  %v6892 = vpack.c.b16 %v6891, %v6890
  %v6894 = vsel %vm4230, %v6892, 0
  %6896 = vmatpush.bf16.msra.mxu0 0
  %6897 = vmatpush.bf16.msra.mxu0 0
  %6898 = vmatpush.bf16.msra.mxu0 0
  %6899 = vmatpush.bf16.msra.mxu0 0
  %6900 = vmatpush.bf16.msra.mxu0 0
  %6901 = vmatpush.bf16.msra.mxu0 0
  %6902 = vmatpush.bf16.msra.mxu0 %v6682
  %6903 = vmatpush.bf16.msra.mxu0 %v6681
  %6904 = vmatmul.bf16.gmra.mxu0 %v6331
  %v6905 = vpop.f32.mrf.mxu0
  %v6906 = vadd.f32 0.0, %v6905
  %v6907 = vpop.f32.mrf.mxu0
  %v6908 = vadd.f32 0.0, %v6907
  %6909 = vmatmul.bf16.gmra.mxu0 %v6334
  %v6910 = vpop.f32.mrf.mxu0
  %v6911 = vadd.f32 0.0, %v6910
  %v6912 = vpop.f32.mrf.mxu0
  %v6913 = vadd.f32 0.0, %v6912
  %6914 = vmatmul.bf16.gmra.mxu0 %v6337
  %v6915 = vpop.f32.mrf.mxu0
  %v6916 = vadd.f32 0.0, %v6915
  %v6917 = vpop.f32.mrf.mxu0
  %v6918 = vadd.f32 0.0, %v6917
  %6919 = vmatmul.bf16.gmra.mxu0 %v6340
  %v6920 = vpop.f32.mrf.mxu0
  %v6921 = vadd.f32 0.0, %v6920
  %v6922 = vpop.f32.mrf.mxu0
  %v6923 = vadd.f32 0.0, %v6922
  %6924 = vmatmul.bf16.gmra.mxu0 %v6894
  %v6925 = vpop.f32.mrf.mxu0
  %v6926 = vadd.f32 0.0, %v6925
  %v6927 = vpop.f32.mrf.mxu0
  %v6928 = vadd.f32 0.0, %v6927
  %6929 = vdwg.mxu0
  %v6930 = vadd.f32 %v6653, %v6906
  %v6931 = vadd.f32 %v6654, %v6908
  %v6932 = vadd.f32 %v6655, %v6911
  %v6933 = vadd.f32 %v6656, %v6913
  %v6934 = vadd.f32 %v6657, %v6916
  %v6935 = vadd.f32 %v6658, %v6918
  %v6936 = vadd.f32 %v6659, %v6921
  %v6937 = vadd.f32 %v6660, %v6923
  %v6938 = vadd.f32 %v6661, %v6926
  %v6939 = vadd.f32 %v6662, %v6928
  %s6940 = scalar_lea.vmem %s3, 128
  %v6941 = vld [vmem:[%s6940] sm:$0xf]
  %v6942 = vld [vmem:[%s6940 + $0x4] sm:$0xf]
  %v6943 = vld [vmem:[%s6940 + $0x8] sm:$0xf]
  %v6944 = vld [vmem:[%s6940 + $0xc] sm:$0xf]
  %v6949 = vunpack.c.l.b16 %v6941
  %v6950 = vunpack.c.l.b16 %v6942
  %v6951 = vunpack.c.l.b16 %v6943
  %v6952 = vunpack.c.l.b16 %v6944
  %v6953 = vpack.c.b16 %v6950, %v6949
  %v6954 = vpack.c.b16 %v6952, %v6951
  %6957 = vmatpush.bf16.msra.mxu0 0
  %6958 = vmatpush.bf16.msra.mxu0 0
  %6959 = vmatpush.bf16.msra.mxu0 0
  %6960 = vmatpush.bf16.msra.mxu0 0
  %6961 = vmatpush.bf16.msra.mxu0 0
  %6962 = vmatpush.bf16.msra.mxu0 0
  %6963 = vmatpush.bf16.msra.mxu0 %v6954
  %6964 = vmatpush.bf16.msra.mxu0 %v6953
  %6965 = vmatmul.bf16.gmra.mxu0 %v4466
  %v6966 = vpop.f32.mrf.mxu0
  %v6967 = vadd.f32 0.0, %v6966
  %v6968 = vpop.f32.mrf.mxu0
  %v6969 = vadd.f32 0.0, %v6968
  %6970 = vmatmul.bf16.gmra.mxu0 %v4469
  %v6971 = vpop.f32.mrf.mxu0
  %v6972 = vadd.f32 0.0, %v6971
  %v6973 = vpop.f32.mrf.mxu0
  %v6974 = vadd.f32 0.0, %v6973
  %6975 = vmatmul.bf16.gmra.mxu0 %v4472
  %v6976 = vpop.f32.mrf.mxu0
  %v6977 = vadd.f32 0.0, %v6976
  %v6978 = vpop.f32.mrf.mxu0
  %v6979 = vadd.f32 0.0, %v6978
  %6980 = vmatmul.bf16.gmra.mxu0 %v4475
  %v6981 = vpop.f32.mrf.mxu0
  %v6982 = vadd.f32 0.0, %v6981
  %v6983 = vpop.f32.mrf.mxu0
  %v6984 = vadd.f32 0.0, %v6983
  %6985 = vmatmul.bf16.gmra.mxu0 %v4478
  %v6986 = vpop.f32.mrf.mxu0
  %v6987 = vadd.f32 0.0, %v6986
  %v6988 = vpop.f32.mrf.mxu0
  %v6989 = vadd.f32 0.0, %v6988
  %6990 = vdwg.mxu0
  %v6991 = vadd.f32 %v6722, %v6967
  %v6992 = vadd.f32 %v6723, %v6969
  %v6993 = vadd.f32 %v6724, %v6972
  %v6994 = vadd.f32 %v6725, %v6974
  %v6995 = vadd.f32 %v6726, %v6977
  %v6996 = vadd.f32 %v6727, %v6979
  %v6997 = vadd.f32 %v6728, %v6982
  %v6998 = vadd.f32 %v6729, %v6984
  %v6999 = vadd.f32 %v6730, %v6987
  %v7000 = vadd.f32 %v6731, %v6989
  %7001 = vmatpush.bf16.msra.mxu0 0
  %7002 = vmatpush.bf16.msra.mxu0 0
  %7003 = vmatpush.bf16.msra.mxu0 0
  %7004 = vmatpush.bf16.msra.mxu0 0
  %7005 = vmatpush.bf16.msra.mxu0 0
  %7006 = vmatpush.bf16.msra.mxu0 0
  %7007 = vmatpush.bf16.msra.mxu0 %v6954
  %7008 = vmatpush.bf16.msra.mxu0 %v6953
  %7009 = vmatmul.bf16.gmra.mxu0 %v4614
  %v7010 = vpop.f32.mrf.mxu0
  %v7011 = vadd.f32 0.0, %v7010
  %v7012 = vpop.f32.mrf.mxu0
  %v7013 = vadd.f32 0.0, %v7012
  %7014 = vmatmul.bf16.gmra.mxu0 %v4617
  %v7015 = vpop.f32.mrf.mxu0
  %v7016 = vadd.f32 0.0, %v7015
  %v7017 = vpop.f32.mrf.mxu0
  %v7018 = vadd.f32 0.0, %v7017
  %7019 = vmatmul.bf16.gmra.mxu0 %v4620
  %v7020 = vpop.f32.mrf.mxu0
  %v7021 = vadd.f32 0.0, %v7020
  %v7022 = vpop.f32.mrf.mxu0
  %v7023 = vadd.f32 0.0, %v7022
  %7024 = vmatmul.bf16.gmra.mxu0 %v4623
  %v7025 = vpop.f32.mrf.mxu0
  %v7026 = vadd.f32 0.0, %v7025
  %v7027 = vpop.f32.mrf.mxu0
  %v7028 = vadd.f32 0.0, %v7027
  %7029 = vmatmul.bf16.gmra.mxu0 %v4626
  %v7030 = vpop.f32.mrf.mxu0
  %v7031 = vadd.f32 0.0, %v7030
  %v7032 = vpop.f32.mrf.mxu0
  %v7033 = vadd.f32 0.0, %v7032
  %7034 = vdwg.mxu0
  %v7035 = vadd.f32 %v6774, %v7011
  %v7036 = vadd.f32 %v6775, %v7013
  %v7037 = vadd.f32 %v6776, %v7016
  %v7038 = vadd.f32 %v6777, %v7018
  %v7039 = vadd.f32 %v6778, %v7021
  %v7040 = vadd.f32 %v6779, %v7023
  %v7041 = vadd.f32 %v6780, %v7026
  %v7042 = vadd.f32 %v6781, %v7028
  %v7043 = vadd.f32 %v6782, %v7031
  %v7044 = vadd.f32 %v6783, %v7033
  %7045 = vmatpush.bf16.msra.mxu0 0
  %7046 = vmatpush.bf16.msra.mxu0 0
  %7047 = vmatpush.bf16.msra.mxu0 0
  %7048 = vmatpush.bf16.msra.mxu0 0
  %7049 = vmatpush.bf16.msra.mxu0 0
  %7050 = vmatpush.bf16.msra.mxu0 0
  %7051 = vmatpush.bf16.msra.mxu0 %v6954
  %7052 = vmatpush.bf16.msra.mxu0 %v6953
  %7053 = vmatmul.bf16.gmra.mxu0 %v4762
  %v7054 = vpop.f32.mrf.mxu0
  %v7055 = vadd.f32 0.0, %v7054
  %v7056 = vpop.f32.mrf.mxu0
  %v7057 = vadd.f32 0.0, %v7056
  %7058 = vmatmul.bf16.gmra.mxu0 %v4765
  %v7059 = vpop.f32.mrf.mxu0
  %v7060 = vadd.f32 0.0, %v7059
  %v7061 = vpop.f32.mrf.mxu0
  %v7062 = vadd.f32 0.0, %v7061
  %7063 = vmatmul.bf16.gmra.mxu0 %v4768
  %v7064 = vpop.f32.mrf.mxu0
  %v7065 = vadd.f32 0.0, %v7064
  %v7066 = vpop.f32.mrf.mxu0
  %v7067 = vadd.f32 0.0, %v7066
  %7068 = vmatmul.bf16.gmra.mxu0 %v4771
  %v7069 = vpop.f32.mrf.mxu0
  %v7070 = vadd.f32 0.0, %v7069
  %v7071 = vpop.f32.mrf.mxu0
  %v7072 = vadd.f32 0.0, %v7071
  %7073 = vmatmul.bf16.gmra.mxu0 %v4774
  %v7074 = vpop.f32.mrf.mxu0
  %v7075 = vadd.f32 0.0, %v7074
  %v7076 = vpop.f32.mrf.mxu0
  %v7077 = vadd.f32 0.0, %v7076
  %7078 = vdwg.mxu0
  %v7079 = vadd.f32 %v6826, %v7055
  %v7080 = vadd.f32 %v6827, %v7057
  %v7081 = vadd.f32 %v6828, %v7060
  %v7082 = vadd.f32 %v6829, %v7062
  %v7083 = vadd.f32 %v6830, %v7065
  %v7084 = vadd.f32 %v6831, %v7067
  %v7085 = vadd.f32 %v6832, %v7070
  %v7086 = vadd.f32 %v6833, %v7072
  %v7087 = vadd.f32 %v6834, %v7075
  %v7088 = vadd.f32 %v6835, %v7077
  %7089 = vmatpush.bf16.msra.mxu0 0
  %7090 = vmatpush.bf16.msra.mxu0 0
  %7091 = vmatpush.bf16.msra.mxu0 0
  %7092 = vmatpush.bf16.msra.mxu0 0
  %7093 = vmatpush.bf16.msra.mxu0 0
  %7094 = vmatpush.bf16.msra.mxu0 0
  %7095 = vmatpush.bf16.msra.mxu0 %v6954
  %7096 = vmatpush.bf16.msra.mxu0 %v6953
  %7097 = vmatmul.bf16.gmra.mxu0 %v4910
  %v7098 = vpop.f32.mrf.mxu0
  %v7099 = vadd.f32 0.0, %v7098
  %v7100 = vpop.f32.mrf.mxu0
  %v7101 = vadd.f32 0.0, %v7100
  %7102 = vmatmul.bf16.gmra.mxu0 %v4913
  %v7103 = vpop.f32.mrf.mxu0
  %v7104 = vadd.f32 0.0, %v7103
  %v7105 = vpop.f32.mrf.mxu0
  %v7106 = vadd.f32 0.0, %v7105
  %7107 = vmatmul.bf16.gmra.mxu0 %v4916
  %v7108 = vpop.f32.mrf.mxu0
  %v7109 = vadd.f32 0.0, %v7108
  %v7110 = vpop.f32.mrf.mxu0
  %v7111 = vadd.f32 0.0, %v7110
  %7112 = vmatmul.bf16.gmra.mxu0 %v4919
  %v7113 = vpop.f32.mrf.mxu0
  %v7114 = vadd.f32 0.0, %v7113
  %v7115 = vpop.f32.mrf.mxu0
  %v7116 = vadd.f32 0.0, %v7115
  %7117 = vmatmul.bf16.gmra.mxu0 %v4922
  %v7118 = vpop.f32.mrf.mxu0
  %v7119 = vadd.f32 0.0, %v7118
  %v7120 = vpop.f32.mrf.mxu0
  %v7121 = vadd.f32 0.0, %v7120
  %7122 = vdwg.mxu0
  %v7123 = vadd.f32 %v6878, %v7099
  %v7124 = vadd.f32 %v6879, %v7101
  %v7125 = vadd.f32 %v6880, %v7104
  %v7126 = vadd.f32 %v6881, %v7106
  %v7127 = vadd.f32 %v6882, %v7109
  %v7128 = vadd.f32 %v6883, %v7111
  %v7129 = vadd.f32 %v6884, %v7114
  %v7130 = vadd.f32 %v6885, %v7116
  %v7131 = vadd.f32 %v6886, %v7119
  %v7132 = vadd.f32 %v6887, %v7121
  %v7143 = vunpack.c.l.b16 %v4136
  %v7144 = vunpack.c.l.b16 %v4137
  %v7145 = vunpack.c.l.b16 %v4138
  %v7146 = vunpack.c.l.b16 %v4139
  %v7147 = vunpack.c.l.b16 %v4140
  %v7148 = vunpack.c.l.b16 %v4141
  %v7149 = vunpack.c.l.b16 %v4142
  %v7150 = vunpack.c.l.b16 %v4143
  %v7151 = vunpack.c.l.b16 %v4144
  %v7152 = vunpack.c.l.b16 %v4145
  %v7153 = vpack.c.b16 %v7144, %v7143
  %v7154 = vpack.c.b16 %v7146, %v7145
  %v7155 = vpack.c.b16 %v7148, %v7147
  %v7156 = vpack.c.b16 %v7150, %v7149
  %v7157 = vpack.c.b16 %v7152, %v7151
  %v7159 = vsel %vm4230, %v7153, 0
  %v7162 = vsel %vm4230, %v7154, 0
  %v7165 = vsel %vm4230, %v7155, 0
  %v7168 = vsel %vm4230, %v7156, 0
  %v7171 = vsel %vm4230, %v7157, 0
  %7173 = vmatpush.bf16.msra.mxu0 0
  %7174 = vmatpush.bf16.msra.mxu0 0
  %7175 = vmatpush.bf16.msra.mxu0 0
  %7176 = vmatpush.bf16.msra.mxu0 0
  %7177 = vmatpush.bf16.msra.mxu0 0
  %7178 = vmatpush.bf16.msra.mxu0 0
  %7179 = vmatpush.bf16.msra.mxu0 %v6954
  %7180 = vmatpush.bf16.msra.mxu0 %v6953
  %7181 = vmatmul.bf16.gmra.mxu0 %v7159
  %v7182 = vpop.f32.mrf.mxu0
  %v7183 = vadd.f32 0.0, %v7182
  %v7184 = vpop.f32.mrf.mxu0
  %v7185 = vadd.f32 0.0, %v7184
  %7186 = vmatmul.bf16.gmra.mxu0 %v7162
  %v7187 = vpop.f32.mrf.mxu0
  %v7188 = vadd.f32 0.0, %v7187
  %v7189 = vpop.f32.mrf.mxu0
  %v7190 = vadd.f32 0.0, %v7189
  %7191 = vmatmul.bf16.gmra.mxu0 %v7165
  %v7192 = vpop.f32.mrf.mxu0
  %v7193 = vadd.f32 0.0, %v7192
  %v7194 = vpop.f32.mrf.mxu0
  %v7195 = vadd.f32 0.0, %v7194
  %7196 = vmatmul.bf16.gmra.mxu0 %v7168
  %v7197 = vpop.f32.mrf.mxu0
  %v7198 = vadd.f32 0.0, %v7197
  %v7199 = vpop.f32.mrf.mxu0
  %v7200 = vadd.f32 0.0, %v7199
  %7201 = vmatmul.bf16.gmra.mxu0 %v7171
  %v7202 = vpop.f32.mrf.mxu0
  %v7203 = vadd.f32 0.0, %v7202
  %v7204 = vpop.f32.mrf.mxu0
  %v7205 = vadd.f32 0.0, %v7204
  %7206 = vdwg.mxu0
  %v7207 = vadd.f32 %v6930, %v7183
  %v7208 = vadd.f32 %v6931, %v7185
  %v7209 = vadd.f32 %v6932, %v7188
  %v7210 = vadd.f32 %v6933, %v7190
  %v7211 = vadd.f32 %v6934, %v7193
  %v7212 = vadd.f32 %v6935, %v7195
  %v7213 = vadd.f32 %v6936, %v7198
  %v7214 = vadd.f32 %v6937, %v7200
  %v7215 = vadd.f32 %v6938, %v7203
  %v7216 = vadd.f32 %v6939, %v7205
  %s7217 = scalar_lea.vmem %s3, 144
  %v7218 = vld [vmem:[%s7217] sm:$0xf]
  %v7219 = vld [vmem:[%s7217 + $0x4] sm:$0xf]
  %v7220 = vld [vmem:[%s7217 + $0x8] sm:$0xf]
  %v7221 = vld [vmem:[%s7217 + $0xc] sm:$0xf]
  %v7226 = vunpack.c.l.b16 %v7218
  %v7227 = vunpack.c.l.b16 %v7219
  %v7228 = vunpack.c.l.b16 %v7220
  %v7229 = vunpack.c.l.b16 %v7221
  %v7230 = vpack.c.b16 %v7227, %v7226
  %v7231 = vpack.c.b16 %v7229, %v7228
  %7234 = vmatpush.bf16.msra.mxu0 0
  %7235 = vmatpush.bf16.msra.mxu0 0
  %7236 = vmatpush.bf16.msra.mxu0 0
  %7237 = vmatpush.bf16.msra.mxu0 0
  %7238 = vmatpush.bf16.msra.mxu0 0
  %7239 = vmatpush.bf16.msra.mxu0 0
  %7240 = vmatpush.bf16.msra.mxu0 %v7231
  %7241 = vmatpush.bf16.msra.mxu0 %v7230
  %7242 = vmatmul.bf16.gmra.mxu0 %v4392
  %v7243 = vpop.f32.mrf.mxu0
  %v7244 = vadd.f32 0.0, %v7243
  %v7245 = vpop.f32.mrf.mxu0
  %v7246 = vadd.f32 0.0, %v7245
  %7247 = vmatmul.bf16.gmra.mxu0 %v4395
  %v7248 = vpop.f32.mrf.mxu0
  %v7249 = vadd.f32 0.0, %v7248
  %v7250 = vpop.f32.mrf.mxu0
  %v7251 = vadd.f32 0.0, %v7250
  %7252 = vmatmul.bf16.gmra.mxu0 %v4398
  %v7253 = vpop.f32.mrf.mxu0
  %v7254 = vadd.f32 0.0, %v7253
  %v7255 = vpop.f32.mrf.mxu0
  %v7256 = vadd.f32 0.0, %v7255
  %7257 = vmatmul.bf16.gmra.mxu0 %v4401
  %v7258 = vpop.f32.mrf.mxu0
  %v7259 = vadd.f32 0.0, %v7258
  %v7260 = vpop.f32.mrf.mxu0
  %v7261 = vadd.f32 0.0, %v7260
  %7262 = vmatmul.bf16.gmra.mxu0 %v4404
  %v7263 = vpop.f32.mrf.mxu0
  %v7264 = vadd.f32 0.0, %v7263
  %v7265 = vpop.f32.mrf.mxu0
  %v7266 = vadd.f32 0.0, %v7265
  %7267 = vdwg.mxu0
  %v7268 = vadd.f32 %v6991, %v7244
  %v7269 = vadd.f32 %v6992, %v7246
  %v7270 = vadd.f32 %v6993, %v7249
  %v7271 = vadd.f32 %v6994, %v7251
  %v7272 = vadd.f32 %v6995, %v7254
  %v7273 = vadd.f32 %v6996, %v7256
  %v7274 = vadd.f32 %v6997, %v7259
  %v7275 = vadd.f32 %v6998, %v7261
  %v7276 = vadd.f32 %v6999, %v7264
  %v7277 = vadd.f32 %v7000, %v7266
  %7278 = vmatpush.bf16.msra.mxu0 0
  %7279 = vmatpush.bf16.msra.mxu0 0
  %7280 = vmatpush.bf16.msra.mxu0 0
  %7281 = vmatpush.bf16.msra.mxu0 0
  %7282 = vmatpush.bf16.msra.mxu0 0
  %7283 = vmatpush.bf16.msra.mxu0 0
  %7284 = vmatpush.bf16.msra.mxu0 %v7231
  %7285 = vmatpush.bf16.msra.mxu0 %v7230
  %7286 = vmatmul.bf16.gmra.mxu0 %v4540
  %v7287 = vpop.f32.mrf.mxu0
  %v7288 = vadd.f32 0.0, %v7287
  %v7289 = vpop.f32.mrf.mxu0
  %v7290 = vadd.f32 0.0, %v7289
  %7291 = vmatmul.bf16.gmra.mxu0 %v4543
  %v7292 = vpop.f32.mrf.mxu0
  %v7293 = vadd.f32 0.0, %v7292
  %v7294 = vpop.f32.mrf.mxu0
  %v7295 = vadd.f32 0.0, %v7294
  %7296 = vmatmul.bf16.gmra.mxu0 %v4546
  %v7297 = vpop.f32.mrf.mxu0
  %v7298 = vadd.f32 0.0, %v7297
  %v7299 = vpop.f32.mrf.mxu0
  %v7300 = vadd.f32 0.0, %v7299
  %7301 = vmatmul.bf16.gmra.mxu0 %v4549
  %v7302 = vpop.f32.mrf.mxu0
  %v7303 = vadd.f32 0.0, %v7302
  %v7304 = vpop.f32.mrf.mxu0
  %v7305 = vadd.f32 0.0, %v7304
  %7306 = vmatmul.bf16.gmra.mxu0 %v4552
  %v7307 = vpop.f32.mrf.mxu0
  %v7308 = vadd.f32 0.0, %v7307
  %v7309 = vpop.f32.mrf.mxu0
  %v7310 = vadd.f32 0.0, %v7309
  %7311 = vdwg.mxu0
  %v7312 = vadd.f32 %v7035, %v7288
  %v7313 = vadd.f32 %v7036, %v7290
  %v7314 = vadd.f32 %v7037, %v7293
  %v7315 = vadd.f32 %v7038, %v7295
  %v7316 = vadd.f32 %v7039, %v7298
  %v7317 = vadd.f32 %v7040, %v7300
  %v7318 = vadd.f32 %v7041, %v7303
  %v7319 = vadd.f32 %v7042, %v7305
  %v7320 = vadd.f32 %v7043, %v7308
  %v7321 = vadd.f32 %v7044, %v7310
  %7322 = vmatpush.bf16.msra.mxu0 0
  %7323 = vmatpush.bf16.msra.mxu0 0
  %7324 = vmatpush.bf16.msra.mxu0 0
  %7325 = vmatpush.bf16.msra.mxu0 0
  %7326 = vmatpush.bf16.msra.mxu0 0
  %7327 = vmatpush.bf16.msra.mxu0 0
  %7328 = vmatpush.bf16.msra.mxu0 %v7231
  %7329 = vmatpush.bf16.msra.mxu0 %v7230
  %7330 = vmatmul.bf16.gmra.mxu0 %v4688
  %v7331 = vpop.f32.mrf.mxu0
  %v7332 = vadd.f32 0.0, %v7331
  %v7333 = vpop.f32.mrf.mxu0
  %v7334 = vadd.f32 0.0, %v7333
  %7335 = vmatmul.bf16.gmra.mxu0 %v4691
  %v7336 = vpop.f32.mrf.mxu0
  %v7337 = vadd.f32 0.0, %v7336
  %v7338 = vpop.f32.mrf.mxu0
  %v7339 = vadd.f32 0.0, %v7338
  %7340 = vmatmul.bf16.gmra.mxu0 %v4694
  %v7341 = vpop.f32.mrf.mxu0
  %v7342 = vadd.f32 0.0, %v7341
  %v7343 = vpop.f32.mrf.mxu0
  %v7344 = vadd.f32 0.0, %v7343
  %7345 = vmatmul.bf16.gmra.mxu0 %v4697
  %v7346 = vpop.f32.mrf.mxu0
  %v7347 = vadd.f32 0.0, %v7346
  %v7348 = vpop.f32.mrf.mxu0
  %v7349 = vadd.f32 0.0, %v7348
  %7350 = vmatmul.bf16.gmra.mxu0 %v4700
  %v7351 = vpop.f32.mrf.mxu0
  %v7352 = vadd.f32 0.0, %v7351
  %v7353 = vpop.f32.mrf.mxu0
  %v7354 = vadd.f32 0.0, %v7353
  %7355 = vdwg.mxu0
  %v7356 = vadd.f32 %v7079, %v7332
  %v7357 = vadd.f32 %v7080, %v7334
  %v7358 = vadd.f32 %v7081, %v7337
  %v7359 = vadd.f32 %v7082, %v7339
  %v7360 = vadd.f32 %v7083, %v7342
  %v7361 = vadd.f32 %v7084, %v7344
  %v7362 = vadd.f32 %v7085, %v7347
  %v7363 = vadd.f32 %v7086, %v7349
  %v7364 = vadd.f32 %v7087, %v7352
  %v7365 = vadd.f32 %v7088, %v7354
  %7366 = vmatpush.bf16.msra.mxu0 0
  %7367 = vmatpush.bf16.msra.mxu0 0
  %7368 = vmatpush.bf16.msra.mxu0 0
  %7369 = vmatpush.bf16.msra.mxu0 0
  %7370 = vmatpush.bf16.msra.mxu0 0
  %7371 = vmatpush.bf16.msra.mxu0 0
  %7372 = vmatpush.bf16.msra.mxu0 %v7231
  %7373 = vmatpush.bf16.msra.mxu0 %v7230
  %7374 = vmatmul.bf16.gmra.mxu0 %v4836
  %v7375 = vpop.f32.mrf.mxu0
  %v7376 = vadd.f32 0.0, %v7375
  %v7377 = vpop.f32.mrf.mxu0
  %v7378 = vadd.f32 0.0, %v7377
  %7379 = vmatmul.bf16.gmra.mxu0 %v4839
  %v7380 = vpop.f32.mrf.mxu0
  %v7381 = vadd.f32 0.0, %v7380
  %v7382 = vpop.f32.mrf.mxu0
  %v7383 = vadd.f32 0.0, %v7382
  %7384 = vmatmul.bf16.gmra.mxu0 %v4842
  %v7385 = vpop.f32.mrf.mxu0
  %v7386 = vadd.f32 0.0, %v7385
  %v7387 = vpop.f32.mrf.mxu0
  %v7388 = vadd.f32 0.0, %v7387
  %7389 = vmatmul.bf16.gmra.mxu0 %v4845
  %v7390 = vpop.f32.mrf.mxu0
  %v7391 = vadd.f32 0.0, %v7390
  %v7392 = vpop.f32.mrf.mxu0
  %v7393 = vadd.f32 0.0, %v7392
  %7394 = vmatmul.bf16.gmra.mxu0 %v4848
  %v7395 = vpop.f32.mrf.mxu0
  %v7396 = vadd.f32 0.0, %v7395
  %v7397 = vpop.f32.mrf.mxu0
  %v7398 = vadd.f32 0.0, %v7397
  %7399 = vdwg.mxu0
  %v7400 = vadd.f32 %v7123, %v7376
  %v7401 = vadd.f32 %v7124, %v7378
  %v7402 = vadd.f32 %v7125, %v7381
  %v7403 = vadd.f32 %v7126, %v7383
  %v7404 = vadd.f32 %v7127, %v7386
  %v7405 = vadd.f32 %v7128, %v7388
  %v7406 = vadd.f32 %v7129, %v7391
  %v7407 = vadd.f32 %v7130, %v7393
  %v7408 = vadd.f32 %v7131, %v7396
  %v7409 = vadd.f32 %v7132, %v7398
  %v7420 = vunpack.c.l.b16 %v4148
  %v7421 = vunpack.c.l.b16 %v4149
  %v7422 = vunpack.c.l.b16 %v4150
  %v7423 = vunpack.c.l.b16 %v4151
  %v7424 = vunpack.c.l.b16 %v4152
  %v7425 = vunpack.c.l.b16 %v4153
  %v7426 = vunpack.c.l.b16 %v4154
  %v7427 = vunpack.c.l.b16 %v4155
  %v7428 = vunpack.c.l.b16 %v4156
  %v7429 = vunpack.c.l.b16 %v4157
  %v7430 = vpack.c.b16 %v7421, %v7420
  %v7431 = vpack.c.b16 %v7423, %v7422
  %v7432 = vpack.c.b16 %v7425, %v7424
  %v7433 = vpack.c.b16 %v7427, %v7426
  %v7434 = vpack.c.b16 %v7429, %v7428
  %v7436 = vsel %vm4230, %v7430, 0
  %v7439 = vsel %vm4230, %v7431, 0
  %v7442 = vsel %vm4230, %v7432, 0
  %v7445 = vsel %vm4230, %v7433, 0
  %v7448 = vsel %vm4230, %v7434, 0
  %7450 = vmatpush.bf16.msra.mxu0 0
  %7451 = vmatpush.bf16.msra.mxu0 0
  %7452 = vmatpush.bf16.msra.mxu0 0
  %7453 = vmatpush.bf16.msra.mxu0 0
  %7454 = vmatpush.bf16.msra.mxu0 0
  %7455 = vmatpush.bf16.msra.mxu0 0
  %7456 = vmatpush.bf16.msra.mxu0 %v7231
  %7457 = vmatpush.bf16.msra.mxu0 %v7230
  %7458 = vmatmul.bf16.gmra.mxu0 %v7436
  %v7459 = vpop.f32.mrf.mxu0
  %v7460 = vadd.f32 0.0, %v7459
  %v7461 = vpop.f32.mrf.mxu0
  %v7462 = vadd.f32 0.0, %v7461
  %7463 = vmatmul.bf16.gmra.mxu0 %v7439
  %v7464 = vpop.f32.mrf.mxu0
  %v7465 = vadd.f32 0.0, %v7464
  %v7466 = vpop.f32.mrf.mxu0
  %v7467 = vadd.f32 0.0, %v7466
  %7468 = vmatmul.bf16.gmra.mxu0 %v7442
  %v7469 = vpop.f32.mrf.mxu0
  %v7470 = vadd.f32 0.0, %v7469
  %v7471 = vpop.f32.mrf.mxu0
  %v7472 = vadd.f32 0.0, %v7471
  %7473 = vmatmul.bf16.gmra.mxu0 %v7445
  %v7474 = vpop.f32.mrf.mxu0
  %v7475 = vadd.f32 0.0, %v7474
  %v7476 = vpop.f32.mrf.mxu0
  %v7477 = vadd.f32 0.0, %v7476
  %7478 = vmatmul.bf16.gmra.mxu0 %v7448
  %v7479 = vpop.f32.mrf.mxu0
  %v7480 = vadd.f32 0.0, %v7479
  %v7481 = vpop.f32.mrf.mxu0
  %v7482 = vadd.f32 0.0, %v7481
  %7483 = vdwg.mxu0
  %v7484 = vadd.f32 %v7207, %v7460
  %v7485 = vadd.f32 %v7208, %v7462
  %v7486 = vadd.f32 %v7209, %v7465
  %v7487 = vadd.f32 %v7210, %v7467
  %v7488 = vadd.f32 %v7211, %v7470
  %v7489 = vadd.f32 %v7212, %v7472
  %v7490 = vadd.f32 %v7213, %v7475
  %v7491 = vadd.f32 %v7214, %v7477
  %v7492 = vadd.f32 %v7215, %v7480
  %v7493 = vadd.f32 %v7216, %v7482
  %s7494 = scalar_lea.vmem %s3, 160
  %v7495 = vld [vmem:[%s7494] sm:$0xf]
  %v7496 = vld [vmem:[%s7494 + $0x4] sm:$0xf]
  %v7497 = vld [vmem:[%s7494 + $0x8] sm:$0xf]
  %v7498 = vld [vmem:[%s7494 + $0xc] sm:$0xf]
  %v7503 = vunpack.c.l.b16 %v7495
  %v7504 = vunpack.c.l.b16 %v7496
  %v7505 = vunpack.c.l.b16 %v7497
  %v7506 = vunpack.c.l.b16 %v7498
  %v7507 = vpack.c.b16 %v7504, %v7503
  %v7508 = vpack.c.b16 %v7506, %v7505
  %7511 = vmatpush.bf16.msra.mxu0 0
  %7512 = vmatpush.bf16.msra.mxu0 0
  %7513 = vmatpush.bf16.msra.mxu0 0
  %7514 = vmatpush.bf16.msra.mxu0 0
  %7515 = vmatpush.bf16.msra.mxu0 0
  %7516 = vmatpush.bf16.msra.mxu0 0
  %7517 = vmatpush.bf16.msra.mxu0 %v7508
  %7518 = vmatpush.bf16.msra.mxu0 %v7507
  %7519 = vmatmul.bf16.gmra.mxu0 %v4469
  %v7520 = vpop.f32.mrf.mxu0
  %v7521 = vadd.f32 0.0, %v7520
  %v7522 = vpop.f32.mrf.mxu0
  %v7523 = vadd.f32 0.0, %v7522
  %7524 = vmatmul.bf16.gmra.mxu0 %v4472
  %v7525 = vpop.f32.mrf.mxu0
  %v7526 = vadd.f32 0.0, %v7525
  %v7527 = vpop.f32.mrf.mxu0
  %v7528 = vadd.f32 0.0, %v7527
  %7529 = vmatmul.bf16.gmra.mxu0 %v4475
  %v7530 = vpop.f32.mrf.mxu0
  %v7531 = vadd.f32 0.0, %v7530
  %v7532 = vpop.f32.mrf.mxu0
  %v7533 = vadd.f32 0.0, %v7532
  %7534 = vmatmul.bf16.gmra.mxu0 %v4478
  %v7535 = vpop.f32.mrf.mxu0
  %v7536 = vadd.f32 0.0, %v7535
  %v7537 = vpop.f32.mrf.mxu0
  %v7538 = vadd.f32 0.0, %v7537
  %7539 = vmatmul.bf16.gmra.mxu0 %v5033
  %v7540 = vpop.f32.mrf.mxu0
  %v7541 = vadd.f32 0.0, %v7540
  %v7542 = vpop.f32.mrf.mxu0
  %v7543 = vadd.f32 0.0, %v7542
  %7544 = vdwg.mxu0
  %v7545 = vadd.f32 %v7268, %v7521
  %v7546 = vadd.f32 %v7269, %v7523
  %v7547 = vadd.f32 %v7270, %v7526
  %v7548 = vadd.f32 %v7271, %v7528
  %v7549 = vadd.f32 %v7272, %v7531
  %v7550 = vadd.f32 %v7273, %v7533
  %v7551 = vadd.f32 %v7274, %v7536
  %v7552 = vadd.f32 %v7275, %v7538
  %v7553 = vadd.f32 %v7276, %v7541
  %v7554 = vadd.f32 %v7277, %v7543
  %7555 = vmatpush.bf16.msra.mxu0 0
  %7556 = vmatpush.bf16.msra.mxu0 0
  %7557 = vmatpush.bf16.msra.mxu0 0
  %7558 = vmatpush.bf16.msra.mxu0 0
  %7559 = vmatpush.bf16.msra.mxu0 0
  %7560 = vmatpush.bf16.msra.mxu0 0
  %7561 = vmatpush.bf16.msra.mxu0 %v7508
  %7562 = vmatpush.bf16.msra.mxu0 %v7507
  %7563 = vmatmul.bf16.gmra.mxu0 %v4617
  %v7564 = vpop.f32.mrf.mxu0
  %v7565 = vadd.f32 0.0, %v7564
  %v7566 = vpop.f32.mrf.mxu0
  %v7567 = vadd.f32 0.0, %v7566
  %7568 = vmatmul.bf16.gmra.mxu0 %v4620
  %v7569 = vpop.f32.mrf.mxu0
  %v7570 = vadd.f32 0.0, %v7569
  %v7571 = vpop.f32.mrf.mxu0
  %v7572 = vadd.f32 0.0, %v7571
  %7573 = vmatmul.bf16.gmra.mxu0 %v4623
  %v7574 = vpop.f32.mrf.mxu0
  %v7575 = vadd.f32 0.0, %v7574
  %v7576 = vpop.f32.mrf.mxu0
  %v7577 = vadd.f32 0.0, %v7576
  %7578 = vmatmul.bf16.gmra.mxu0 %v4626
  %v7579 = vpop.f32.mrf.mxu0
  %v7580 = vadd.f32 0.0, %v7579
  %v7581 = vpop.f32.mrf.mxu0
  %v7582 = vadd.f32 0.0, %v7581
  %7583 = vmatmul.bf16.gmra.mxu0 %v5085
  %v7584 = vpop.f32.mrf.mxu0
  %v7585 = vadd.f32 0.0, %v7584
  %v7586 = vpop.f32.mrf.mxu0
  %v7587 = vadd.f32 0.0, %v7586
  %7588 = vdwg.mxu0
  %v7589 = vadd.f32 %v7312, %v7565
  %v7590 = vadd.f32 %v7313, %v7567
  %v7591 = vadd.f32 %v7314, %v7570
  %v7592 = vadd.f32 %v7315, %v7572
  %v7593 = vadd.f32 %v7316, %v7575
  %v7594 = vadd.f32 %v7317, %v7577
  %v7595 = vadd.f32 %v7318, %v7580
  %v7596 = vadd.f32 %v7319, %v7582
  %v7597 = vadd.f32 %v7320, %v7585
  %v7598 = vadd.f32 %v7321, %v7587
  %7599 = vmatpush.bf16.msra.mxu0 0
  %7600 = vmatpush.bf16.msra.mxu0 0
  %7601 = vmatpush.bf16.msra.mxu0 0
  %7602 = vmatpush.bf16.msra.mxu0 0
  %7603 = vmatpush.bf16.msra.mxu0 0
  %7604 = vmatpush.bf16.msra.mxu0 0
  %7605 = vmatpush.bf16.msra.mxu0 %v7508
  %7606 = vmatpush.bf16.msra.mxu0 %v7507
  %7607 = vmatmul.bf16.gmra.mxu0 %v4765
  %v7608 = vpop.f32.mrf.mxu0
  %v7609 = vadd.f32 0.0, %v7608
  %v7610 = vpop.f32.mrf.mxu0
  %v7611 = vadd.f32 0.0, %v7610
  %7612 = vmatmul.bf16.gmra.mxu0 %v4768
  %v7613 = vpop.f32.mrf.mxu0
  %v7614 = vadd.f32 0.0, %v7613
  %v7615 = vpop.f32.mrf.mxu0
  %v7616 = vadd.f32 0.0, %v7615
  %7617 = vmatmul.bf16.gmra.mxu0 %v4771
  %v7618 = vpop.f32.mrf.mxu0
  %v7619 = vadd.f32 0.0, %v7618
  %v7620 = vpop.f32.mrf.mxu0
  %v7621 = vadd.f32 0.0, %v7620
  %7622 = vmatmul.bf16.gmra.mxu0 %v4774
  %v7623 = vpop.f32.mrf.mxu0
  %v7624 = vadd.f32 0.0, %v7623
  %v7625 = vpop.f32.mrf.mxu0
  %v7626 = vadd.f32 0.0, %v7625
  %7627 = vmatmul.bf16.gmra.mxu0 %v5137
  %v7628 = vpop.f32.mrf.mxu0
  %v7629 = vadd.f32 0.0, %v7628
  %v7630 = vpop.f32.mrf.mxu0
  %v7631 = vadd.f32 0.0, %v7630
  %7632 = vdwg.mxu0
  %v7633 = vadd.f32 %v7356, %v7609
  %v7634 = vadd.f32 %v7357, %v7611
  %v7635 = vadd.f32 %v7358, %v7614
  %v7636 = vadd.f32 %v7359, %v7616
  %v7637 = vadd.f32 %v7360, %v7619
  %v7638 = vadd.f32 %v7361, %v7621
  %v7639 = vadd.f32 %v7362, %v7624
  %v7640 = vadd.f32 %v7363, %v7626
  %v7641 = vadd.f32 %v7364, %v7629
  %v7642 = vadd.f32 %v7365, %v7631
  %7643 = vmatpush.bf16.msra.mxu0 0
  %7644 = vmatpush.bf16.msra.mxu0 0
  %7645 = vmatpush.bf16.msra.mxu0 0
  %7646 = vmatpush.bf16.msra.mxu0 0
  %7647 = vmatpush.bf16.msra.mxu0 0
  %7648 = vmatpush.bf16.msra.mxu0 0
  %7649 = vmatpush.bf16.msra.mxu0 %v7508
  %7650 = vmatpush.bf16.msra.mxu0 %v7507
  %7651 = vmatmul.bf16.gmra.mxu0 %v4913
  %v7652 = vpop.f32.mrf.mxu0
  %v7653 = vadd.f32 0.0, %v7652
  %v7654 = vpop.f32.mrf.mxu0
  %v7655 = vadd.f32 0.0, %v7654
  %7656 = vmatmul.bf16.gmra.mxu0 %v4916
  %v7657 = vpop.f32.mrf.mxu0
  %v7658 = vadd.f32 0.0, %v7657
  %v7659 = vpop.f32.mrf.mxu0
  %v7660 = vadd.f32 0.0, %v7659
  %7661 = vmatmul.bf16.gmra.mxu0 %v4919
  %v7662 = vpop.f32.mrf.mxu0
  %v7663 = vadd.f32 0.0, %v7662
  %v7664 = vpop.f32.mrf.mxu0
  %v7665 = vadd.f32 0.0, %v7664
  %7666 = vmatmul.bf16.gmra.mxu0 %v4922
  %v7667 = vpop.f32.mrf.mxu0
  %v7668 = vadd.f32 0.0, %v7667
  %v7669 = vpop.f32.mrf.mxu0
  %v7670 = vadd.f32 0.0, %v7669
  %7671 = vmatmul.bf16.gmra.mxu0 %v5189
  %v7672 = vpop.f32.mrf.mxu0
  %v7673 = vadd.f32 0.0, %v7672
  %v7674 = vpop.f32.mrf.mxu0
  %v7675 = vadd.f32 0.0, %v7674
  %7676 = vdwg.mxu0
  %v7677 = vadd.f32 %v7400, %v7653
  %v7678 = vadd.f32 %v7401, %v7655
  %v7679 = vadd.f32 %v7402, %v7658
  %v7680 = vadd.f32 %v7403, %v7660
  %v7681 = vadd.f32 %v7404, %v7663
  %v7682 = vadd.f32 %v7405, %v7665
  %v7683 = vadd.f32 %v7406, %v7668
  %v7684 = vadd.f32 %v7407, %v7670
  %v7685 = vadd.f32 %v7408, %v7673
  %v7686 = vadd.f32 %v7409, %v7675
  %v7689 = vunpack.c.l.b16 %v4146
  %v7690 = vunpack.c.l.b16 %v4147
  %v7691 = vpack.c.b16 %v7690, %v7689
  %v7693 = vsel %vm4230, %v7691, 0
  %7695 = vmatpush.bf16.msra.mxu0 0
  %7696 = vmatpush.bf16.msra.mxu0 0
  %7697 = vmatpush.bf16.msra.mxu0 0
  %7698 = vmatpush.bf16.msra.mxu0 0
  %7699 = vmatpush.bf16.msra.mxu0 0
  %7700 = vmatpush.bf16.msra.mxu0 0
  %7701 = vmatpush.bf16.msra.mxu0 %v7508
  %7702 = vmatpush.bf16.msra.mxu0 %v7507
  %7703 = vmatmul.bf16.gmra.mxu0 %v7162
  %v7704 = vpop.f32.mrf.mxu0
  %v7705 = vadd.f32 0.0, %v7704
  %v7706 = vpop.f32.mrf.mxu0
  %v7707 = vadd.f32 0.0, %v7706
  %7708 = vmatmul.bf16.gmra.mxu0 %v7165
  %v7709 = vpop.f32.mrf.mxu0
  %v7710 = vadd.f32 0.0, %v7709
  %v7711 = vpop.f32.mrf.mxu0
  %v7712 = vadd.f32 0.0, %v7711
  %7713 = vmatmul.bf16.gmra.mxu0 %v7168
  %v7714 = vpop.f32.mrf.mxu0
  %v7715 = vadd.f32 0.0, %v7714
  %v7716 = vpop.f32.mrf.mxu0
  %v7717 = vadd.f32 0.0, %v7716
  %7718 = vmatmul.bf16.gmra.mxu0 %v7171
  %v7719 = vpop.f32.mrf.mxu0
  %v7720 = vadd.f32 0.0, %v7719
  %v7721 = vpop.f32.mrf.mxu0
  %v7722 = vadd.f32 0.0, %v7721
  %7723 = vmatmul.bf16.gmra.mxu0 %v7693
  %v7724 = vpop.f32.mrf.mxu0
  %v7725 = vadd.f32 0.0, %v7724
  %v7726 = vpop.f32.mrf.mxu0
  %v7727 = vadd.f32 0.0, %v7726
  %7728 = vdwg.mxu0
  %v7729 = vadd.f32 %v7484, %v7705
  %v7730 = vadd.f32 %v7485, %v7707
  %v7731 = vadd.f32 %v7486, %v7710
  %v7732 = vadd.f32 %v7487, %v7712
  %v7733 = vadd.f32 %v7488, %v7715
  %v7734 = vadd.f32 %v7489, %v7717
  %v7735 = vadd.f32 %v7490, %v7720
  %v7736 = vadd.f32 %v7491, %v7722
  %v7737 = vadd.f32 %v7492, %v7725
  %v7738 = vadd.f32 %v7493, %v7727
  %s7739 = scalar_lea.vmem %s3, 176
  %v7740 = vld [vmem:[%s7739] sm:$0xf]
  %v7741 = vld [vmem:[%s7739 + $0x4] sm:$0xf]
  %v7742 = vld [vmem:[%s7739 + $0x8] sm:$0xf]
  %v7743 = vld [vmem:[%s7739 + $0xc] sm:$0xf]
  %v7748 = vunpack.c.l.b16 %v7740
  %v7749 = vunpack.c.l.b16 %v7741
  %v7750 = vunpack.c.l.b16 %v7742
  %v7751 = vunpack.c.l.b16 %v7743
  %v7752 = vpack.c.b16 %v7749, %v7748
  %v7753 = vpack.c.b16 %v7751, %v7750
  %7756 = vmatpush.bf16.msra.mxu0 0
  %7757 = vmatpush.bf16.msra.mxu0 0
  %7758 = vmatpush.bf16.msra.mxu0 0
  %7759 = vmatpush.bf16.msra.mxu0 0
  %7760 = vmatpush.bf16.msra.mxu0 0
  %7761 = vmatpush.bf16.msra.mxu0 0
  %7762 = vmatpush.bf16.msra.mxu0 %v7753
  %7763 = vmatpush.bf16.msra.mxu0 %v7752
  %7764 = vmatmul.bf16.gmra.mxu0 %v4395
  %v7765 = vpop.f32.mrf.mxu0
  %v7766 = vadd.f32 0.0, %v7765
  %v7767 = vpop.f32.mrf.mxu0
  %v7768 = vadd.f32 0.0, %v7767
  %7769 = vmatmul.bf16.gmra.mxu0 %v4398
  %v7770 = vpop.f32.mrf.mxu0
  %v7771 = vadd.f32 0.0, %v7770
  %v7772 = vpop.f32.mrf.mxu0
  %v7773 = vadd.f32 0.0, %v7772
  %7774 = vmatmul.bf16.gmra.mxu0 %v4401
  %v7775 = vpop.f32.mrf.mxu0
  %v7776 = vadd.f32 0.0, %v7775
  %v7777 = vpop.f32.mrf.mxu0
  %v7778 = vadd.f32 0.0, %v7777
  %7779 = vmatmul.bf16.gmra.mxu0 %v4404
  %v7780 = vpop.f32.mrf.mxu0
  %v7781 = vadd.f32 0.0, %v7780
  %v7782 = vpop.f32.mrf.mxu0
  %v7783 = vadd.f32 0.0, %v7782
  %7784 = vmatmul.bf16.gmra.mxu0 %v5310
  %v7785 = vpop.f32.mrf.mxu0
  %v7786 = vadd.f32 0.0, %v7785
  %v7787 = vpop.f32.mrf.mxu0
  %v7788 = vadd.f32 0.0, %v7787
  %7789 = vdwg.mxu0
  %v7790 = vadd.f32 %v7545, %v7766
  %v7791 = vadd.f32 %v7546, %v7768
  %v7792 = vadd.f32 %v7547, %v7771
  %v7793 = vadd.f32 %v7548, %v7773
  %v7794 = vadd.f32 %v7549, %v7776
  %v7795 = vadd.f32 %v7550, %v7778
  %v7796 = vadd.f32 %v7551, %v7781
  %v7797 = vadd.f32 %v7552, %v7783
  %v7798 = vadd.f32 %v7553, %v7786
  %v7799 = vadd.f32 %v7554, %v7788
  %7800 = vmatpush.bf16.msra.mxu0 0
  %7801 = vmatpush.bf16.msra.mxu0 0
  %7802 = vmatpush.bf16.msra.mxu0 0
  %7803 = vmatpush.bf16.msra.mxu0 0
  %7804 = vmatpush.bf16.msra.mxu0 0
  %7805 = vmatpush.bf16.msra.mxu0 0
  %7806 = vmatpush.bf16.msra.mxu0 %v7753
  %7807 = vmatpush.bf16.msra.mxu0 %v7752
  %7808 = vmatmul.bf16.gmra.mxu0 %v4543
  %v7809 = vpop.f32.mrf.mxu0
  %v7810 = vadd.f32 0.0, %v7809
  %v7811 = vpop.f32.mrf.mxu0
  %v7812 = vadd.f32 0.0, %v7811
  %7813 = vmatmul.bf16.gmra.mxu0 %v4546
  %v7814 = vpop.f32.mrf.mxu0
  %v7815 = vadd.f32 0.0, %v7814
  %v7816 = vpop.f32.mrf.mxu0
  %v7817 = vadd.f32 0.0, %v7816
  %7818 = vmatmul.bf16.gmra.mxu0 %v4549
  %v7819 = vpop.f32.mrf.mxu0
  %v7820 = vadd.f32 0.0, %v7819
  %v7821 = vpop.f32.mrf.mxu0
  %v7822 = vadd.f32 0.0, %v7821
  %7823 = vmatmul.bf16.gmra.mxu0 %v4552
  %v7824 = vpop.f32.mrf.mxu0
  %v7825 = vadd.f32 0.0, %v7824
  %v7826 = vpop.f32.mrf.mxu0
  %v7827 = vadd.f32 0.0, %v7826
  %7828 = vmatmul.bf16.gmra.mxu0 %v5362
  %v7829 = vpop.f32.mrf.mxu0
  %v7830 = vadd.f32 0.0, %v7829
  %v7831 = vpop.f32.mrf.mxu0
  %v7832 = vadd.f32 0.0, %v7831
  %7833 = vdwg.mxu0
  %v7834 = vadd.f32 %v7589, %v7810
  %v7835 = vadd.f32 %v7590, %v7812
  %v7836 = vadd.f32 %v7591, %v7815
  %v7837 = vadd.f32 %v7592, %v7817
  %v7838 = vadd.f32 %v7593, %v7820
  %v7839 = vadd.f32 %v7594, %v7822
  %v7840 = vadd.f32 %v7595, %v7825
  %v7841 = vadd.f32 %v7596, %v7827
  %v7842 = vadd.f32 %v7597, %v7830
  %v7843 = vadd.f32 %v7598, %v7832
  %7844 = vmatpush.bf16.msra.mxu0 0
  %7845 = vmatpush.bf16.msra.mxu0 0
  %7846 = vmatpush.bf16.msra.mxu0 0
  %7847 = vmatpush.bf16.msra.mxu0 0
  %7848 = vmatpush.bf16.msra.mxu0 0
  %7849 = vmatpush.bf16.msra.mxu0 0
  %7850 = vmatpush.bf16.msra.mxu0 %v7753
  %7851 = vmatpush.bf16.msra.mxu0 %v7752
  %7852 = vmatmul.bf16.gmra.mxu0 %v4691
  %v7853 = vpop.f32.mrf.mxu0
  %v7854 = vadd.f32 0.0, %v7853
  %v7855 = vpop.f32.mrf.mxu0
  %v7856 = vadd.f32 0.0, %v7855
  %7857 = vmatmul.bf16.gmra.mxu0 %v4694
  %v7858 = vpop.f32.mrf.mxu0
  %v7859 = vadd.f32 0.0, %v7858
  %v7860 = vpop.f32.mrf.mxu0
  %v7861 = vadd.f32 0.0, %v7860
  %7862 = vmatmul.bf16.gmra.mxu0 %v4697
  %v7863 = vpop.f32.mrf.mxu0
  %v7864 = vadd.f32 0.0, %v7863
  %v7865 = vpop.f32.mrf.mxu0
  %v7866 = vadd.f32 0.0, %v7865
  %7867 = vmatmul.bf16.gmra.mxu0 %v4700
  %v7868 = vpop.f32.mrf.mxu0
  %v7869 = vadd.f32 0.0, %v7868
  %v7870 = vpop.f32.mrf.mxu0
  %v7871 = vadd.f32 0.0, %v7870
  %7872 = vmatmul.bf16.gmra.mxu0 %v5414
  %v7873 = vpop.f32.mrf.mxu0
  %v7874 = vadd.f32 0.0, %v7873
  %v7875 = vpop.f32.mrf.mxu0
  %v7876 = vadd.f32 0.0, %v7875
  %7877 = vdwg.mxu0
  %v7878 = vadd.f32 %v7633, %v7854
  %v7879 = vadd.f32 %v7634, %v7856
  %v7880 = vadd.f32 %v7635, %v7859
  %v7881 = vadd.f32 %v7636, %v7861
  %v7882 = vadd.f32 %v7637, %v7864
  %v7883 = vadd.f32 %v7638, %v7866
  %v7884 = vadd.f32 %v7639, %v7869
  %v7885 = vadd.f32 %v7640, %v7871
  %v7886 = vadd.f32 %v7641, %v7874
  %v7887 = vadd.f32 %v7642, %v7876
  %7888 = vmatpush.bf16.msra.mxu0 0
  %7889 = vmatpush.bf16.msra.mxu0 0
  %7890 = vmatpush.bf16.msra.mxu0 0
  %7891 = vmatpush.bf16.msra.mxu0 0
  %7892 = vmatpush.bf16.msra.mxu0 0
  %7893 = vmatpush.bf16.msra.mxu0 0
  %7894 = vmatpush.bf16.msra.mxu0 %v7753
  %7895 = vmatpush.bf16.msra.mxu0 %v7752
  %7896 = vmatmul.bf16.gmra.mxu0 %v4839
  %v7897 = vpop.f32.mrf.mxu0
  %v7898 = vadd.f32 0.0, %v7897
  %v7899 = vpop.f32.mrf.mxu0
  %v7900 = vadd.f32 0.0, %v7899
  %7901 = vmatmul.bf16.gmra.mxu0 %v4842
  %v7902 = vpop.f32.mrf.mxu0
  %v7903 = vadd.f32 0.0, %v7902
  %v7904 = vpop.f32.mrf.mxu0
  %v7905 = vadd.f32 0.0, %v7904
  %7906 = vmatmul.bf16.gmra.mxu0 %v4845
  %v7907 = vpop.f32.mrf.mxu0
  %v7908 = vadd.f32 0.0, %v7907
  %v7909 = vpop.f32.mrf.mxu0
  %v7910 = vadd.f32 0.0, %v7909
  %7911 = vmatmul.bf16.gmra.mxu0 %v4848
  %v7912 = vpop.f32.mrf.mxu0
  %v7913 = vadd.f32 0.0, %v7912
  %v7914 = vpop.f32.mrf.mxu0
  %v7915 = vadd.f32 0.0, %v7914
  %7916 = vmatmul.bf16.gmra.mxu0 %v5466
  %v7917 = vpop.f32.mrf.mxu0
  %v7918 = vadd.f32 0.0, %v7917
  %v7919 = vpop.f32.mrf.mxu0
  %v7920 = vadd.f32 0.0, %v7919
  %7921 = vdwg.mxu0
  %v7922 = vadd.f32 %v7677, %v7898
  %v7923 = vadd.f32 %v7678, %v7900
  %v7924 = vadd.f32 %v7679, %v7903
  %v7925 = vadd.f32 %v7680, %v7905
  %v7926 = vadd.f32 %v7681, %v7908
  %v7927 = vadd.f32 %v7682, %v7910
  %v7928 = vadd.f32 %v7683, %v7913
  %v7929 = vadd.f32 %v7684, %v7915
  %v7930 = vadd.f32 %v7685, %v7918
  %v7931 = vadd.f32 %v7686, %v7920
  %v7934 = vunpack.c.l.b16 %v4158
  %v7935 = vunpack.c.l.b16 %v4159
  %v7936 = vpack.c.b16 %v7935, %v7934
  %v7938 = vsel %vm4230, %v7936, 0
  %7940 = vmatpush.bf16.msra.mxu0 0
  %7941 = vmatpush.bf16.msra.mxu0 0
  %7942 = vmatpush.bf16.msra.mxu0 0
  %7943 = vmatpush.bf16.msra.mxu0 0
  %7944 = vmatpush.bf16.msra.mxu0 0
  %7945 = vmatpush.bf16.msra.mxu0 0
  %7946 = vmatpush.bf16.msra.mxu0 %v7753
  %7947 = vmatpush.bf16.msra.mxu0 %v7752
  %7948 = vmatmul.bf16.gmra.mxu0 %v7439
  %v7949 = vpop.f32.mrf.mxu0
  %v7950 = vadd.f32 0.0, %v7949
  %v7951 = vpop.f32.mrf.mxu0
  %v7952 = vadd.f32 0.0, %v7951
  %7953 = vmatmul.bf16.gmra.mxu0 %v7442
  %v7954 = vpop.f32.mrf.mxu0
  %v7955 = vadd.f32 0.0, %v7954
  %v7956 = vpop.f32.mrf.mxu0
  %v7957 = vadd.f32 0.0, %v7956
  %7958 = vmatmul.bf16.gmra.mxu0 %v7445
  %v7959 = vpop.f32.mrf.mxu0
  %v7960 = vadd.f32 0.0, %v7959
  %v7961 = vpop.f32.mrf.mxu0
  %v7962 = vadd.f32 0.0, %v7961
  %7963 = vmatmul.bf16.gmra.mxu0 %v7448
  %v7964 = vpop.f32.mrf.mxu0
  %v7965 = vadd.f32 0.0, %v7964
  %v7966 = vpop.f32.mrf.mxu0
  %v7967 = vadd.f32 0.0, %v7966
  %7968 = vmatmul.bf16.gmra.mxu0 %v7938
  %v7969 = vpop.f32.mrf.mxu0
  %v7970 = vadd.f32 0.0, %v7969
  %v7971 = vpop.f32.mrf.mxu0
  %v7972 = vadd.f32 0.0, %v7971
  %7973 = vdwg.mxu0
  %v7974 = vadd.f32 %v7729, %v7950
  %v7975 = vadd.f32 %v7730, %v7952
  %v7976 = vadd.f32 %v7731, %v7955
  %v7977 = vadd.f32 %v7732, %v7957
  %v7978 = vadd.f32 %v7733, %v7960
  %v7979 = vadd.f32 %v7734, %v7962
  %v7980 = vadd.f32 %v7735, %v7965
  %v7981 = vadd.f32 %v7736, %v7967
  %v7982 = vadd.f32 %v7737, %v7970
  %v7983 = vadd.f32 %v7738, %v7972
  %s7984 = scalar_lea.vmem %s3, 192
  %v7985 = vld [vmem:[%s7984] sm:$0xf]
  %v7986 = vld [vmem:[%s7984 + $0x4] sm:$0xf]
  %v7987 = vld [vmem:[%s7984 + $0x8] sm:$0xf]
  %v7988 = vld [vmem:[%s7984 + $0xc] sm:$0xf]
  %v7993 = vunpack.c.l.b16 %v7985
  %v7994 = vunpack.c.l.b16 %v7986
  %v7995 = vunpack.c.l.b16 %v7987
  %v7996 = vunpack.c.l.b16 %v7988
  %v7997 = vpack.c.b16 %v7994, %v7993
  %v7998 = vpack.c.b16 %v7996, %v7995
  %8001 = vmatpush.bf16.msra.mxu0 0
  %8002 = vmatpush.bf16.msra.mxu0 0
  %8003 = vmatpush.bf16.msra.mxu0 0
  %8004 = vmatpush.bf16.msra.mxu0 0
  %8005 = vmatpush.bf16.msra.mxu0 0
  %8006 = vmatpush.bf16.msra.mxu0 0
  %8007 = vmatpush.bf16.msra.mxu0 %v7998
  %8008 = vmatpush.bf16.msra.mxu0 %v7997
  %8009 = vmatmul.bf16.gmra.mxu0 %v5639
  %v8010 = vpop.f32.mrf.mxu0
  %v8011 = vadd.f32 0.0, %v8010
  %v8012 = vpop.f32.mrf.mxu0
  %v8013 = vadd.f32 0.0, %v8012
  %8014 = vmatmul.bf16.gmra.mxu0 %v5642
  %v8015 = vpop.f32.mrf.mxu0
  %v8016 = vadd.f32 0.0, %v8015
  %v8017 = vpop.f32.mrf.mxu0
  %v8018 = vadd.f32 0.0, %v8017
  %8019 = vmatmul.bf16.gmra.mxu0 %v5645
  %v8020 = vpop.f32.mrf.mxu0
  %v8021 = vadd.f32 0.0, %v8020
  %v8022 = vpop.f32.mrf.mxu0
  %v8023 = vadd.f32 0.0, %v8022
  %8024 = vmatmul.bf16.gmra.mxu0 %v5648
  %v8025 = vpop.f32.mrf.mxu0
  %v8026 = vadd.f32 0.0, %v8025
  %v8027 = vpop.f32.mrf.mxu0
  %v8028 = vadd.f32 0.0, %v8027
  %8029 = vmatmul.bf16.gmra.mxu0 %v5651
  %v8030 = vpop.f32.mrf.mxu0
  %v8031 = vadd.f32 0.0, %v8030
  %v8032 = vpop.f32.mrf.mxu0
  %v8033 = vadd.f32 0.0, %v8032
  %8034 = vdwg.mxu0
  %v8035 = vadd.f32 %v7790, %v8011
  %v8036 = vadd.f32 %v7791, %v8013
  %v8037 = vadd.f32 %v7792, %v8016
  %v8038 = vadd.f32 %v7793, %v8018
  %v8039 = vadd.f32 %v7794, %v8021
  %v8040 = vadd.f32 %v7795, %v8023
  %v8041 = vadd.f32 %v7796, %v8026
  %v8042 = vadd.f32 %v7797, %v8028
  %v8043 = vadd.f32 %v7798, %v8031
  %v8044 = vadd.f32 %v7799, %v8033
  %8045 = vmatpush.bf16.msra.mxu0 0
  %8046 = vmatpush.bf16.msra.mxu0 0
  %8047 = vmatpush.bf16.msra.mxu0 0
  %8048 = vmatpush.bf16.msra.mxu0 0
  %8049 = vmatpush.bf16.msra.mxu0 0
  %8050 = vmatpush.bf16.msra.mxu0 0
  %8051 = vmatpush.bf16.msra.mxu0 %v7998
  %8052 = vmatpush.bf16.msra.mxu0 %v7997
  %8053 = vmatmul.bf16.gmra.mxu0 %v5723
  %v8054 = vpop.f32.mrf.mxu0
  %v8055 = vadd.f32 0.0, %v8054
  %v8056 = vpop.f32.mrf.mxu0
  %v8057 = vadd.f32 0.0, %v8056
  %8058 = vmatmul.bf16.gmra.mxu0 %v5726
  %v8059 = vpop.f32.mrf.mxu0
  %v8060 = vadd.f32 0.0, %v8059
  %v8061 = vpop.f32.mrf.mxu0
  %v8062 = vadd.f32 0.0, %v8061
  %8063 = vmatmul.bf16.gmra.mxu0 %v5729
  %v8064 = vpop.f32.mrf.mxu0
  %v8065 = vadd.f32 0.0, %v8064
  %v8066 = vpop.f32.mrf.mxu0
  %v8067 = vadd.f32 0.0, %v8066
  %8068 = vmatmul.bf16.gmra.mxu0 %v5732
  %v8069 = vpop.f32.mrf.mxu0
  %v8070 = vadd.f32 0.0, %v8069
  %v8071 = vpop.f32.mrf.mxu0
  %v8072 = vadd.f32 0.0, %v8071
  %8073 = vmatmul.bf16.gmra.mxu0 %v5735
  %v8074 = vpop.f32.mrf.mxu0
  %v8075 = vadd.f32 0.0, %v8074
  %v8076 = vpop.f32.mrf.mxu0
  %v8077 = vadd.f32 0.0, %v8076
  %8078 = vdwg.mxu0
  %v8079 = vadd.f32 %v7834, %v8055
  %v8080 = vadd.f32 %v7835, %v8057
  %v8081 = vadd.f32 %v7836, %v8060
  %v8082 = vadd.f32 %v7837, %v8062
  %v8083 = vadd.f32 %v7838, %v8065
  %v8084 = vadd.f32 %v7839, %v8067
  %v8085 = vadd.f32 %v7840, %v8070
  %v8086 = vadd.f32 %v7841, %v8072
  %v8087 = vadd.f32 %v7842, %v8075
  %v8088 = vadd.f32 %v7843, %v8077
  %8089 = vmatpush.bf16.msra.mxu0 0
  %8090 = vmatpush.bf16.msra.mxu0 0
  %8091 = vmatpush.bf16.msra.mxu0 0
  %8092 = vmatpush.bf16.msra.mxu0 0
  %8093 = vmatpush.bf16.msra.mxu0 0
  %8094 = vmatpush.bf16.msra.mxu0 0
  %8095 = vmatpush.bf16.msra.mxu0 %v7998
  %8096 = vmatpush.bf16.msra.mxu0 %v7997
  %8097 = vmatmul.bf16.gmra.mxu0 %v5807
  %v8098 = vpop.f32.mrf.mxu0
  %v8099 = vadd.f32 0.0, %v8098
  %v8100 = vpop.f32.mrf.mxu0
  %v8101 = vadd.f32 0.0, %v8100
  %8102 = vmatmul.bf16.gmra.mxu0 %v5810
  %v8103 = vpop.f32.mrf.mxu0
  %v8104 = vadd.f32 0.0, %v8103
  %v8105 = vpop.f32.mrf.mxu0
  %v8106 = vadd.f32 0.0, %v8105
  %8107 = vmatmul.bf16.gmra.mxu0 %v5813
  %v8108 = vpop.f32.mrf.mxu0
  %v8109 = vadd.f32 0.0, %v8108
  %v8110 = vpop.f32.mrf.mxu0
  %v8111 = vadd.f32 0.0, %v8110
  %8112 = vmatmul.bf16.gmra.mxu0 %v5816
  %v8113 = vpop.f32.mrf.mxu0
  %v8114 = vadd.f32 0.0, %v8113
  %v8115 = vpop.f32.mrf.mxu0
  %v8116 = vadd.f32 0.0, %v8115
  %8117 = vmatmul.bf16.gmra.mxu0 %v5819
  %v8118 = vpop.f32.mrf.mxu0
  %v8119 = vadd.f32 0.0, %v8118
  %v8120 = vpop.f32.mrf.mxu0
  %v8121 = vadd.f32 0.0, %v8120
  %8122 = vdwg.mxu0
  %v8123 = vadd.f32 %v7878, %v8099
  %v8124 = vadd.f32 %v7879, %v8101
  %v8125 = vadd.f32 %v7880, %v8104
  %v8126 = vadd.f32 %v7881, %v8106
  %v8127 = vadd.f32 %v7882, %v8109
  %v8128 = vadd.f32 %v7883, %v8111
  %v8129 = vadd.f32 %v7884, %v8114
  %v8130 = vadd.f32 %v7885, %v8116
  %v8131 = vadd.f32 %v7886, %v8119
  %v8132 = vadd.f32 %v7887, %v8121
  %8133 = vmatpush.bf16.msra.mxu0 0
  %8134 = vmatpush.bf16.msra.mxu0 0
  %8135 = vmatpush.bf16.msra.mxu0 0
  %8136 = vmatpush.bf16.msra.mxu0 0
  %8137 = vmatpush.bf16.msra.mxu0 0
  %8138 = vmatpush.bf16.msra.mxu0 0
  %8139 = vmatpush.bf16.msra.mxu0 %v7998
  %8140 = vmatpush.bf16.msra.mxu0 %v7997
  %8141 = vmatmul.bf16.gmra.mxu0 %v5891
  %v8142 = vpop.f32.mrf.mxu0
  %v8143 = vadd.f32 0.0, %v8142
  %v8144 = vpop.f32.mrf.mxu0
  %v8145 = vadd.f32 0.0, %v8144
  %8146 = vmatmul.bf16.gmra.mxu0 %v5894
  %v8147 = vpop.f32.mrf.mxu0
  %v8148 = vadd.f32 0.0, %v8147
  %v8149 = vpop.f32.mrf.mxu0
  %v8150 = vadd.f32 0.0, %v8149
  %8151 = vmatmul.bf16.gmra.mxu0 %v5897
  %v8152 = vpop.f32.mrf.mxu0
  %v8153 = vadd.f32 0.0, %v8152
  %v8154 = vpop.f32.mrf.mxu0
  %v8155 = vadd.f32 0.0, %v8154
  %8156 = vmatmul.bf16.gmra.mxu0 %v5900
  %v8157 = vpop.f32.mrf.mxu0
  %v8158 = vadd.f32 0.0, %v8157
  %v8159 = vpop.f32.mrf.mxu0
  %v8160 = vadd.f32 0.0, %v8159
  %8161 = vmatmul.bf16.gmra.mxu0 %v5903
  %v8162 = vpop.f32.mrf.mxu0
  %v8163 = vadd.f32 0.0, %v8162
  %v8164 = vpop.f32.mrf.mxu0
  %v8165 = vadd.f32 0.0, %v8164
  %8166 = vdwg.mxu0
  %v8167 = vadd.f32 %v7922, %v8143
  %v8168 = vadd.f32 %v7923, %v8145
  %v8169 = vadd.f32 %v7924, %v8148
  %v8170 = vadd.f32 %v7925, %v8150
  %v8171 = vadd.f32 %v7926, %v8153
  %v8172 = vadd.f32 %v7927, %v8155
  %v8173 = vadd.f32 %v7928, %v8158
  %v8174 = vadd.f32 %v7929, %v8160
  %v8175 = vadd.f32 %v7930, %v8163
  %v8176 = vadd.f32 %v7931, %v8165
  %v8187 = vunpack.c.l.b16 %v4160
  %v8188 = vunpack.c.l.b16 %v4161
  %v8189 = vunpack.c.l.b16 %v4162
  %v8190 = vunpack.c.l.b16 %v4163
  %v8191 = vunpack.c.l.b16 %v4164
  %v8192 = vunpack.c.l.b16 %v4165
  %v8193 = vunpack.c.l.b16 %v4166
  %v8194 = vunpack.c.l.b16 %v4167
  %v8195 = vunpack.c.l.b16 %v4168
  %v8196 = vunpack.c.l.b16 %v4169
  %v8197 = vpack.c.b16 %v8188, %v8187
  %v8198 = vpack.c.b16 %v8190, %v8189
  %v8199 = vpack.c.b16 %v8192, %v8191
  %v8200 = vpack.c.b16 %v8194, %v8193
  %v8201 = vpack.c.b16 %v8196, %v8195
  %v8203 = vsel %vm4230, %v8197, 0
  %v8206 = vsel %vm4230, %v8198, 0
  %v8209 = vsel %vm4230, %v8199, 0
  %v8212 = vsel %vm4230, %v8200, 0
  %v8215 = vsel %vm4230, %v8201, 0
  %8217 = vmatpush.bf16.msra.mxu0 0
  %8218 = vmatpush.bf16.msra.mxu0 0
  %8219 = vmatpush.bf16.msra.mxu0 0
  %8220 = vmatpush.bf16.msra.mxu0 0
  %8221 = vmatpush.bf16.msra.mxu0 0
  %8222 = vmatpush.bf16.msra.mxu0 0
  %8223 = vmatpush.bf16.msra.mxu0 %v7998
  %8224 = vmatpush.bf16.msra.mxu0 %v7997
  %8225 = vmatmul.bf16.gmra.mxu0 %v8203
  %v8226 = vpop.f32.mrf.mxu0
  %v8227 = vadd.f32 0.0, %v8226
  %v8228 = vpop.f32.mrf.mxu0
  %v8229 = vadd.f32 0.0, %v8228
  %8230 = vmatmul.bf16.gmra.mxu0 %v8206
  %v8231 = vpop.f32.mrf.mxu0
  %v8232 = vadd.f32 0.0, %v8231
  %v8233 = vpop.f32.mrf.mxu0
  %v8234 = vadd.f32 0.0, %v8233
  %8235 = vmatmul.bf16.gmra.mxu0 %v8209
  %v8236 = vpop.f32.mrf.mxu0
  %v8237 = vadd.f32 0.0, %v8236
  %v8238 = vpop.f32.mrf.mxu0
  %v8239 = vadd.f32 0.0, %v8238
  %8240 = vmatmul.bf16.gmra.mxu0 %v8212
  %v8241 = vpop.f32.mrf.mxu0
  %v8242 = vadd.f32 0.0, %v8241
  %v8243 = vpop.f32.mrf.mxu0
  %v8244 = vadd.f32 0.0, %v8243
  %8245 = vmatmul.bf16.gmra.mxu0 %v8215
  %v8246 = vpop.f32.mrf.mxu0
  %v8247 = vadd.f32 0.0, %v8246
  %v8248 = vpop.f32.mrf.mxu0
  %v8249 = vadd.f32 0.0, %v8248
  %8250 = vdwg.mxu0
  %v8251 = vadd.f32 %v7974, %v8227
  %v8252 = vadd.f32 %v7975, %v8229
  %v8253 = vadd.f32 %v7976, %v8232
  %v8254 = vadd.f32 %v7977, %v8234
  %v8255 = vadd.f32 %v7978, %v8237
  %v8256 = vadd.f32 %v7979, %v8239
  %v8257 = vadd.f32 %v7980, %v8242
  %v8258 = vadd.f32 %v7981, %v8244
  %v8259 = vadd.f32 %v7982, %v8247
  %v8260 = vadd.f32 %v7983, %v8249
  %s8261 = scalar_lea.vmem %s3, 208
  %v8262 = vld [vmem:[%s8261] sm:$0xf]
  %v8263 = vld [vmem:[%s8261 + $0x4] sm:$0xf]
  %v8264 = vld [vmem:[%s8261 + $0x8] sm:$0xf]
  %v8265 = vld [vmem:[%s8261 + $0xc] sm:$0xf]
  %v8270 = vunpack.c.l.b16 %v8262
  %v8271 = vunpack.c.l.b16 %v8263
  %v8272 = vunpack.c.l.b16 %v8264
  %v8273 = vunpack.c.l.b16 %v8265
  %v8274 = vpack.c.b16 %v8271, %v8270
  %v8275 = vpack.c.b16 %v8273, %v8272
  %8278 = vmatpush.bf16.msra.mxu0 0
  %8279 = vmatpush.bf16.msra.mxu0 0
  %8280 = vmatpush.bf16.msra.mxu0 0
  %8281 = vmatpush.bf16.msra.mxu0 0
  %8282 = vmatpush.bf16.msra.mxu0 0
  %8283 = vmatpush.bf16.msra.mxu0 0
  %8284 = vmatpush.bf16.msra.mxu0 %v8275
  %8285 = vmatpush.bf16.msra.mxu0 %v8274
  %8286 = vmatmul.bf16.gmra.mxu0 %v6076
  %v8287 = vpop.f32.mrf.mxu0
  %v8288 = vadd.f32 0.0, %v8287
  %v8289 = vpop.f32.mrf.mxu0
  %v8290 = vadd.f32 0.0, %v8289
  %8291 = vmatmul.bf16.gmra.mxu0 %v6079
  %v8292 = vpop.f32.mrf.mxu0
  %v8293 = vadd.f32 0.0, %v8292
  %v8294 = vpop.f32.mrf.mxu0
  %v8295 = vadd.f32 0.0, %v8294
  %8296 = vmatmul.bf16.gmra.mxu0 %v6082
  %v8297 = vpop.f32.mrf.mxu0
  %v8298 = vadd.f32 0.0, %v8297
  %v8299 = vpop.f32.mrf.mxu0
  %v8300 = vadd.f32 0.0, %v8299
  %8301 = vmatmul.bf16.gmra.mxu0 %v6085
  %v8302 = vpop.f32.mrf.mxu0
  %v8303 = vadd.f32 0.0, %v8302
  %v8304 = vpop.f32.mrf.mxu0
  %v8305 = vadd.f32 0.0, %v8304
  %8306 = vmatmul.bf16.gmra.mxu0 %v6088
  %v8307 = vpop.f32.mrf.mxu0
  %v8308 = vadd.f32 0.0, %v8307
  %v8309 = vpop.f32.mrf.mxu0
  %v8310 = vadd.f32 0.0, %v8309
  %8311 = vdwg.mxu0
  %v8312 = vadd.f32 %v8035, %v8288
  %v8313 = vadd.f32 %v8036, %v8290
  %v8314 = vadd.f32 %v8037, %v8293
  %v8315 = vadd.f32 %v8038, %v8295
  %v8316 = vadd.f32 %v8039, %v8298
  %v8317 = vadd.f32 %v8040, %v8300
  %v8318 = vadd.f32 %v8041, %v8303
  %v8319 = vadd.f32 %v8042, %v8305
  %v8320 = vadd.f32 %v8043, %v8308
  %v8321 = vadd.f32 %v8044, %v8310
  %8322 = vmatpush.bf16.msra.mxu0 0
  %8323 = vmatpush.bf16.msra.mxu0 0
  %8324 = vmatpush.bf16.msra.mxu0 0
  %8325 = vmatpush.bf16.msra.mxu0 0
  %8326 = vmatpush.bf16.msra.mxu0 0
  %8327 = vmatpush.bf16.msra.mxu0 0
  %8328 = vmatpush.bf16.msra.mxu0 %v8275
  %8329 = vmatpush.bf16.msra.mxu0 %v8274
  %8330 = vmatmul.bf16.gmra.mxu0 %v6160
  %v8331 = vpop.f32.mrf.mxu0
  %v8332 = vadd.f32 0.0, %v8331
  %v8333 = vpop.f32.mrf.mxu0
  %v8334 = vadd.f32 0.0, %v8333
  %8335 = vmatmul.bf16.gmra.mxu0 %v6163
  %v8336 = vpop.f32.mrf.mxu0
  %v8337 = vadd.f32 0.0, %v8336
  %v8338 = vpop.f32.mrf.mxu0
  %v8339 = vadd.f32 0.0, %v8338
  %8340 = vmatmul.bf16.gmra.mxu0 %v6166
  %v8341 = vpop.f32.mrf.mxu0
  %v8342 = vadd.f32 0.0, %v8341
  %v8343 = vpop.f32.mrf.mxu0
  %v8344 = vadd.f32 0.0, %v8343
  %8345 = vmatmul.bf16.gmra.mxu0 %v6169
  %v8346 = vpop.f32.mrf.mxu0
  %v8347 = vadd.f32 0.0, %v8346
  %v8348 = vpop.f32.mrf.mxu0
  %v8349 = vadd.f32 0.0, %v8348
  %8350 = vmatmul.bf16.gmra.mxu0 %v6172
  %v8351 = vpop.f32.mrf.mxu0
  %v8352 = vadd.f32 0.0, %v8351
  %v8353 = vpop.f32.mrf.mxu0
  %v8354 = vadd.f32 0.0, %v8353
  %8355 = vdwg.mxu0
  %v8356 = vadd.f32 %v8079, %v8332
  %v8357 = vadd.f32 %v8080, %v8334
  %v8358 = vadd.f32 %v8081, %v8337
  %v8359 = vadd.f32 %v8082, %v8339
  %v8360 = vadd.f32 %v8083, %v8342
  %v8361 = vadd.f32 %v8084, %v8344
  %v8362 = vadd.f32 %v8085, %v8347
  %v8363 = vadd.f32 %v8086, %v8349
  %v8364 = vadd.f32 %v8087, %v8352
  %v8365 = vadd.f32 %v8088, %v8354
  %8366 = vmatpush.bf16.msra.mxu0 0
  %8367 = vmatpush.bf16.msra.mxu0 0
  %8368 = vmatpush.bf16.msra.mxu0 0
  %8369 = vmatpush.bf16.msra.mxu0 0
  %8370 = vmatpush.bf16.msra.mxu0 0
  %8371 = vmatpush.bf16.msra.mxu0 0
  %8372 = vmatpush.bf16.msra.mxu0 %v8275
  %8373 = vmatpush.bf16.msra.mxu0 %v8274
  %8374 = vmatmul.bf16.gmra.mxu0 %v6244
  %v8375 = vpop.f32.mrf.mxu0
  %v8376 = vadd.f32 0.0, %v8375
  %v8377 = vpop.f32.mrf.mxu0
  %v8378 = vadd.f32 0.0, %v8377
  %8379 = vmatmul.bf16.gmra.mxu0 %v6247
  %v8380 = vpop.f32.mrf.mxu0
  %v8381 = vadd.f32 0.0, %v8380
  %v8382 = vpop.f32.mrf.mxu0
  %v8383 = vadd.f32 0.0, %v8382
  %8384 = vmatmul.bf16.gmra.mxu0 %v6250
  %v8385 = vpop.f32.mrf.mxu0
  %v8386 = vadd.f32 0.0, %v8385
  %v8387 = vpop.f32.mrf.mxu0
  %v8388 = vadd.f32 0.0, %v8387
  %8389 = vmatmul.bf16.gmra.mxu0 %v6253
  %v8390 = vpop.f32.mrf.mxu0
  %v8391 = vadd.f32 0.0, %v8390
  %v8392 = vpop.f32.mrf.mxu0
  %v8393 = vadd.f32 0.0, %v8392
  %8394 = vmatmul.bf16.gmra.mxu0 %v6256
  %v8395 = vpop.f32.mrf.mxu0
  %v8396 = vadd.f32 0.0, %v8395
  %v8397 = vpop.f32.mrf.mxu0
  %v8398 = vadd.f32 0.0, %v8397
  %8399 = vdwg.mxu0
  %v8400 = vadd.f32 %v8123, %v8376
  %v8401 = vadd.f32 %v8124, %v8378
  %v8402 = vadd.f32 %v8125, %v8381
  %v8403 = vadd.f32 %v8126, %v8383
  %v8404 = vadd.f32 %v8127, %v8386
  %v8405 = vadd.f32 %v8128, %v8388
  %v8406 = vadd.f32 %v8129, %v8391
  %v8407 = vadd.f32 %v8130, %v8393
  %v8408 = vadd.f32 %v8131, %v8396
  %v8409 = vadd.f32 %v8132, %v8398
  %8410 = vmatpush.bf16.msra.mxu0 0
  %8411 = vmatpush.bf16.msra.mxu0 0
  %8412 = vmatpush.bf16.msra.mxu0 0
  %8413 = vmatpush.bf16.msra.mxu0 0
  %8414 = vmatpush.bf16.msra.mxu0 0
  %8415 = vmatpush.bf16.msra.mxu0 0
  %8416 = vmatpush.bf16.msra.mxu0 %v8275
  %8417 = vmatpush.bf16.msra.mxu0 %v8274
  %8418 = vmatmul.bf16.gmra.mxu0 %v6328
  %v8419 = vpop.f32.mrf.mxu0
  %v8420 = vadd.f32 0.0, %v8419
  %v8421 = vpop.f32.mrf.mxu0
  %v8422 = vadd.f32 0.0, %v8421
  %8423 = vmatmul.bf16.gmra.mxu0 %v6331
  %v8424 = vpop.f32.mrf.mxu0
  %v8425 = vadd.f32 0.0, %v8424
  %v8426 = vpop.f32.mrf.mxu0
  %v8427 = vadd.f32 0.0, %v8426
  %8428 = vmatmul.bf16.gmra.mxu0 %v6334
  %v8429 = vpop.f32.mrf.mxu0
  %v8430 = vadd.f32 0.0, %v8429
  %v8431 = vpop.f32.mrf.mxu0
  %v8432 = vadd.f32 0.0, %v8431
  %8433 = vmatmul.bf16.gmra.mxu0 %v6337
  %v8434 = vpop.f32.mrf.mxu0
  %v8435 = vadd.f32 0.0, %v8434
  %v8436 = vpop.f32.mrf.mxu0
  %v8437 = vadd.f32 0.0, %v8436
  %8438 = vmatmul.bf16.gmra.mxu0 %v6340
  %v8439 = vpop.f32.mrf.mxu0
  %v8440 = vadd.f32 0.0, %v8439
  %v8441 = vpop.f32.mrf.mxu0
  %v8442 = vadd.f32 0.0, %v8441
  %8443 = vdwg.mxu0
  %v8444 = vadd.f32 %v8167, %v8420
  %v8445 = vadd.f32 %v8168, %v8422
  %v8446 = vadd.f32 %v8169, %v8425
  %v8447 = vadd.f32 %v8170, %v8427
  %v8448 = vadd.f32 %v8171, %v8430
  %v8449 = vadd.f32 %v8172, %v8432
  %v8450 = vadd.f32 %v8173, %v8435
  %v8451 = vadd.f32 %v8174, %v8437
  %v8452 = vadd.f32 %v8175, %v8440
  %v8453 = vadd.f32 %v8176, %v8442
  %v8464 = vunpack.c.l.b16 %v4172
  %v8465 = vunpack.c.l.b16 %v4173
  %v8466 = vunpack.c.l.b16 %v4174
  %v8467 = vunpack.c.l.b16 %v4175
  %v8468 = vunpack.c.l.b16 %v4176
  %v8469 = vunpack.c.l.b16 %v4177
  %v8470 = vunpack.c.l.b16 %v4178
  %v8471 = vunpack.c.l.b16 %v4179
  %v8472 = vunpack.c.l.b16 %v4180
  %v8473 = vunpack.c.l.b16 %v4181
  %v8474 = vpack.c.b16 %v8465, %v8464
  %v8475 = vpack.c.b16 %v8467, %v8466
  %v8476 = vpack.c.b16 %v8469, %v8468
  %v8477 = vpack.c.b16 %v8471, %v8470
  %v8478 = vpack.c.b16 %v8473, %v8472
  %v8480 = vsel %vm4230, %v8474, 0
  %v8483 = vsel %vm4230, %v8475, 0
  %v8486 = vsel %vm4230, %v8476, 0
  %v8489 = vsel %vm4230, %v8477, 0
  %v8492 = vsel %vm4230, %v8478, 0
  %8494 = vmatpush.bf16.msra.mxu0 0
  %8495 = vmatpush.bf16.msra.mxu0 0
  %8496 = vmatpush.bf16.msra.mxu0 0
  %8497 = vmatpush.bf16.msra.mxu0 0
  %8498 = vmatpush.bf16.msra.mxu0 0
  %8499 = vmatpush.bf16.msra.mxu0 0
  %8500 = vmatpush.bf16.msra.mxu0 %v8275
  %8501 = vmatpush.bf16.msra.mxu0 %v8274
  %8502 = vmatmul.bf16.gmra.mxu0 %v8480
  %v8503 = vpop.f32.mrf.mxu0
  %v8504 = vadd.f32 0.0, %v8503
  %v8505 = vpop.f32.mrf.mxu0
  %v8506 = vadd.f32 0.0, %v8505
  %8507 = vmatmul.bf16.gmra.mxu0 %v8483
  %v8508 = vpop.f32.mrf.mxu0
  %v8509 = vadd.f32 0.0, %v8508
  %v8510 = vpop.f32.mrf.mxu0
  %v8511 = vadd.f32 0.0, %v8510
  %8512 = vmatmul.bf16.gmra.mxu0 %v8486
  %v8513 = vpop.f32.mrf.mxu0
  %v8514 = vadd.f32 0.0, %v8513
  %v8515 = vpop.f32.mrf.mxu0
  %v8516 = vadd.f32 0.0, %v8515
  %8517 = vmatmul.bf16.gmra.mxu0 %v8489
  %v8518 = vpop.f32.mrf.mxu0
  %v8519 = vadd.f32 0.0, %v8518
  %v8520 = vpop.f32.mrf.mxu0
  %v8521 = vadd.f32 0.0, %v8520
  %8522 = vmatmul.bf16.gmra.mxu0 %v8492
  %v8523 = vpop.f32.mrf.mxu0
  %v8524 = vadd.f32 0.0, %v8523
  %v8525 = vpop.f32.mrf.mxu0
  %v8526 = vadd.f32 0.0, %v8525
  %8527 = vdwg.mxu0
  %v8528 = vadd.f32 %v8251, %v8504
  %v8529 = vadd.f32 %v8252, %v8506
  %v8530 = vadd.f32 %v8253, %v8509
  %v8531 = vadd.f32 %v8254, %v8511
  %v8532 = vadd.f32 %v8255, %v8514
  %v8533 = vadd.f32 %v8256, %v8516
  %v8534 = vadd.f32 %v8257, %v8519
  %v8535 = vadd.f32 %v8258, %v8521
  %v8536 = vadd.f32 %v8259, %v8524
  %v8537 = vadd.f32 %v8260, %v8526
  %s8538 = scalar_lea.vmem %s3, 224
  %v8539 = vld [vmem:[%s8538] sm:$0xf]
  %v8540 = vld [vmem:[%s8538 + $0x4] sm:$0xf]
  %v8541 = vld [vmem:[%s8538 + $0x8] sm:$0xf]
  %v8542 = vld [vmem:[%s8538 + $0xc] sm:$0xf]
  %v8547 = vunpack.c.l.b16 %v8539
  %v8548 = vunpack.c.l.b16 %v8540
  %v8549 = vunpack.c.l.b16 %v8541
  %v8550 = vunpack.c.l.b16 %v8542
  %v8551 = vpack.c.b16 %v8548, %v8547
  %v8552 = vpack.c.b16 %v8550, %v8549
  %8555 = vmatpush.bf16.msra.mxu0 0
  %8556 = vmatpush.bf16.msra.mxu0 0
  %8557 = vmatpush.bf16.msra.mxu0 0
  %8558 = vmatpush.bf16.msra.mxu0 0
  %8559 = vmatpush.bf16.msra.mxu0 0
  %8560 = vmatpush.bf16.msra.mxu0 0
  %8561 = vmatpush.bf16.msra.mxu0 %v8552
  %8562 = vmatpush.bf16.msra.mxu0 %v8551
  %8563 = vmatmul.bf16.gmra.mxu0 %v5642
  %v8564 = vpop.f32.mrf.mxu0
  %v8565 = vadd.f32 0.0, %v8564
  %v8566 = vpop.f32.mrf.mxu0
  %v8567 = vadd.f32 0.0, %v8566
  %8568 = vmatmul.bf16.gmra.mxu0 %v5645
  %v8569 = vpop.f32.mrf.mxu0
  %v8570 = vadd.f32 0.0, %v8569
  %v8571 = vpop.f32.mrf.mxu0
  %v8572 = vadd.f32 0.0, %v8571
  %8573 = vmatmul.bf16.gmra.mxu0 %v5648
  %v8574 = vpop.f32.mrf.mxu0
  %v8575 = vadd.f32 0.0, %v8574
  %v8576 = vpop.f32.mrf.mxu0
  %v8577 = vadd.f32 0.0, %v8576
  %8578 = vmatmul.bf16.gmra.mxu0 %v5651
  %v8579 = vpop.f32.mrf.mxu0
  %v8580 = vadd.f32 0.0, %v8579
  %v8581 = vpop.f32.mrf.mxu0
  %v8582 = vadd.f32 0.0, %v8581
  %8583 = vmatmul.bf16.gmra.mxu0 %v6461
  %v8584 = vpop.f32.mrf.mxu0
  %v8585 = vadd.f32 0.0, %v8584
  %v8586 = vpop.f32.mrf.mxu0
  %v8587 = vadd.f32 0.0, %v8586
  %8588 = vdwg.mxu0
  %v8589 = vadd.f32 %v8312, %v8565
  %v8590 = vadd.f32 %v8313, %v8567
  %v8591 = vadd.f32 %v8314, %v8570
  %v8592 = vadd.f32 %v8315, %v8572
  %v8593 = vadd.f32 %v8316, %v8575
  %v8594 = vadd.f32 %v8317, %v8577
  %v8595 = vadd.f32 %v8318, %v8580
  %v8596 = vadd.f32 %v8319, %v8582
  %v8597 = vadd.f32 %v8320, %v8585
  %v8598 = vadd.f32 %v8321, %v8587
  %8599 = vmatpush.bf16.msra.mxu0 0
  %8600 = vmatpush.bf16.msra.mxu0 0
  %8601 = vmatpush.bf16.msra.mxu0 0
  %8602 = vmatpush.bf16.msra.mxu0 0
  %8603 = vmatpush.bf16.msra.mxu0 0
  %8604 = vmatpush.bf16.msra.mxu0 0
  %8605 = vmatpush.bf16.msra.mxu0 %v8552
  %8606 = vmatpush.bf16.msra.mxu0 %v8551
  %8607 = vmatmul.bf16.gmra.mxu0 %v5726
  %v8608 = vpop.f32.mrf.mxu0
  %v8609 = vadd.f32 0.0, %v8608
  %v8610 = vpop.f32.mrf.mxu0
  %v8611 = vadd.f32 0.0, %v8610
  %8612 = vmatmul.bf16.gmra.mxu0 %v5729
  %v8613 = vpop.f32.mrf.mxu0
  %v8614 = vadd.f32 0.0, %v8613
  %v8615 = vpop.f32.mrf.mxu0
  %v8616 = vadd.f32 0.0, %v8615
  %8617 = vmatmul.bf16.gmra.mxu0 %v5732
  %v8618 = vpop.f32.mrf.mxu0
  %v8619 = vadd.f32 0.0, %v8618
  %v8620 = vpop.f32.mrf.mxu0
  %v8621 = vadd.f32 0.0, %v8620
  %8622 = vmatmul.bf16.gmra.mxu0 %v5735
  %v8623 = vpop.f32.mrf.mxu0
  %v8624 = vadd.f32 0.0, %v8623
  %v8625 = vpop.f32.mrf.mxu0
  %v8626 = vadd.f32 0.0, %v8625
  %8627 = vmatmul.bf16.gmra.mxu0 %v6513
  %v8628 = vpop.f32.mrf.mxu0
  %v8629 = vadd.f32 0.0, %v8628
  %v8630 = vpop.f32.mrf.mxu0
  %v8631 = vadd.f32 0.0, %v8630
  %8632 = vdwg.mxu0
  %v8633 = vadd.f32 %v8356, %v8609
  %v8634 = vadd.f32 %v8357, %v8611
  %v8635 = vadd.f32 %v8358, %v8614
  %v8636 = vadd.f32 %v8359, %v8616
  %v8637 = vadd.f32 %v8360, %v8619
  %v8638 = vadd.f32 %v8361, %v8621
  %v8639 = vadd.f32 %v8362, %v8624
  %v8640 = vadd.f32 %v8363, %v8626
  %v8641 = vadd.f32 %v8364, %v8629
  %v8642 = vadd.f32 %v8365, %v8631
  %8643 = vmatpush.bf16.msra.mxu0 0
  %8644 = vmatpush.bf16.msra.mxu0 0
  %8645 = vmatpush.bf16.msra.mxu0 0
  %8646 = vmatpush.bf16.msra.mxu0 0
  %8647 = vmatpush.bf16.msra.mxu0 0
  %8648 = vmatpush.bf16.msra.mxu0 0
  %8649 = vmatpush.bf16.msra.mxu0 %v8552
  %8650 = vmatpush.bf16.msra.mxu0 %v8551
  %8651 = vmatmul.bf16.gmra.mxu0 %v5810
  %v8652 = vpop.f32.mrf.mxu0
  %v8653 = vadd.f32 0.0, %v8652
  %v8654 = vpop.f32.mrf.mxu0
  %v8655 = vadd.f32 0.0, %v8654
  %8656 = vmatmul.bf16.gmra.mxu0 %v5813
  %v8657 = vpop.f32.mrf.mxu0
  %v8658 = vadd.f32 0.0, %v8657
  %v8659 = vpop.f32.mrf.mxu0
  %v8660 = vadd.f32 0.0, %v8659
  %8661 = vmatmul.bf16.gmra.mxu0 %v5816
  %v8662 = vpop.f32.mrf.mxu0
  %v8663 = vadd.f32 0.0, %v8662
  %v8664 = vpop.f32.mrf.mxu0
  %v8665 = vadd.f32 0.0, %v8664
  %8666 = vmatmul.bf16.gmra.mxu0 %v5819
  %v8667 = vpop.f32.mrf.mxu0
  %v8668 = vadd.f32 0.0, %v8667
  %v8669 = vpop.f32.mrf.mxu0
  %v8670 = vadd.f32 0.0, %v8669
  %8671 = vmatmul.bf16.gmra.mxu0 %v6565
  %v8672 = vpop.f32.mrf.mxu0
  %v8673 = vadd.f32 0.0, %v8672
  %v8674 = vpop.f32.mrf.mxu0
  %v8675 = vadd.f32 0.0, %v8674
  %8676 = vdwg.mxu0
  %v8677 = vadd.f32 %v8400, %v8653
  %v8678 = vadd.f32 %v8401, %v8655
  %v8679 = vadd.f32 %v8402, %v8658
  %v8680 = vadd.f32 %v8403, %v8660
  %v8681 = vadd.f32 %v8404, %v8663
  %v8682 = vadd.f32 %v8405, %v8665
  %v8683 = vadd.f32 %v8406, %v8668
  %v8684 = vadd.f32 %v8407, %v8670
  %v8685 = vadd.f32 %v8408, %v8673
  %v8686 = vadd.f32 %v8409, %v8675
  %8687 = vmatpush.bf16.msra.mxu0 0
  %8688 = vmatpush.bf16.msra.mxu0 0
  %8689 = vmatpush.bf16.msra.mxu0 0
  %8690 = vmatpush.bf16.msra.mxu0 0
  %8691 = vmatpush.bf16.msra.mxu0 0
  %8692 = vmatpush.bf16.msra.mxu0 0
  %8693 = vmatpush.bf16.msra.mxu0 %v8552
  %8694 = vmatpush.bf16.msra.mxu0 %v8551
  %8695 = vmatmul.bf16.gmra.mxu0 %v5894
  %v8696 = vpop.f32.mrf.mxu0
  %v8697 = vadd.f32 0.0, %v8696
  %v8698 = vpop.f32.mrf.mxu0
  %v8699 = vadd.f32 0.0, %v8698
  %8700 = vmatmul.bf16.gmra.mxu0 %v5897
  %v8701 = vpop.f32.mrf.mxu0
  %v8702 = vadd.f32 0.0, %v8701
  %v8703 = vpop.f32.mrf.mxu0
  %v8704 = vadd.f32 0.0, %v8703
  %8705 = vmatmul.bf16.gmra.mxu0 %v5900
  %v8706 = vpop.f32.mrf.mxu0
  %v8707 = vadd.f32 0.0, %v8706
  %v8708 = vpop.f32.mrf.mxu0
  %v8709 = vadd.f32 0.0, %v8708
  %8710 = vmatmul.bf16.gmra.mxu0 %v5903
  %v8711 = vpop.f32.mrf.mxu0
  %v8712 = vadd.f32 0.0, %v8711
  %v8713 = vpop.f32.mrf.mxu0
  %v8714 = vadd.f32 0.0, %v8713
  %8715 = vmatmul.bf16.gmra.mxu0 %v6617
  %v8716 = vpop.f32.mrf.mxu0
  %v8717 = vadd.f32 0.0, %v8716
  %v8718 = vpop.f32.mrf.mxu0
  %v8719 = vadd.f32 0.0, %v8718
  %8720 = vdwg.mxu0
  %v8721 = vadd.f32 %v8444, %v8697
  %v8722 = vadd.f32 %v8445, %v8699
  %v8723 = vadd.f32 %v8446, %v8702
  %v8724 = vadd.f32 %v8447, %v8704
  %v8725 = vadd.f32 %v8448, %v8707
  %v8726 = vadd.f32 %v8449, %v8709
  %v8727 = vadd.f32 %v8450, %v8712
  %v8728 = vadd.f32 %v8451, %v8714
  %v8729 = vadd.f32 %v8452, %v8717
  %v8730 = vadd.f32 %v8453, %v8719
  %v8733 = vunpack.c.l.b16 %v4170
  %v8734 = vunpack.c.l.b16 %v4171
  %v8735 = vpack.c.b16 %v8734, %v8733
  %v8737 = vsel %vm4230, %v8735, 0
  %8739 = vmatpush.bf16.msra.mxu0 0
  %8740 = vmatpush.bf16.msra.mxu0 0
  %8741 = vmatpush.bf16.msra.mxu0 0
  %8742 = vmatpush.bf16.msra.mxu0 0
  %8743 = vmatpush.bf16.msra.mxu0 0
  %8744 = vmatpush.bf16.msra.mxu0 0
  %8745 = vmatpush.bf16.msra.mxu0 %v8552
  %8746 = vmatpush.bf16.msra.mxu0 %v8551
  %8747 = vmatmul.bf16.gmra.mxu0 %v8206
  %v8748 = vpop.f32.mrf.mxu0
  %v8749 = vadd.f32 0.0, %v8748
  %v8750 = vpop.f32.mrf.mxu0
  %v8751 = vadd.f32 0.0, %v8750
  %8752 = vmatmul.bf16.gmra.mxu0 %v8209
  %v8753 = vpop.f32.mrf.mxu0
  %v8754 = vadd.f32 0.0, %v8753
  %v8755 = vpop.f32.mrf.mxu0
  %v8756 = vadd.f32 0.0, %v8755
  %8757 = vmatmul.bf16.gmra.mxu0 %v8212
  %v8758 = vpop.f32.mrf.mxu0
  %v8759 = vadd.f32 0.0, %v8758
  %v8760 = vpop.f32.mrf.mxu0
  %v8761 = vadd.f32 0.0, %v8760
  %8762 = vmatmul.bf16.gmra.mxu0 %v8215
  %v8763 = vpop.f32.mrf.mxu0
  %v8764 = vadd.f32 0.0, %v8763
  %v8765 = vpop.f32.mrf.mxu0
  %v8766 = vadd.f32 0.0, %v8765
  %8767 = vmatmul.bf16.gmra.mxu0 %v8737
  %v8768 = vpop.f32.mrf.mxu0
  %v8769 = vadd.f32 0.0, %v8768
  %v8770 = vpop.f32.mrf.mxu0
  %v8771 = vadd.f32 0.0, %v8770
  %8772 = vdwg.mxu0
  %v8773 = vadd.f32 %v8528, %v8749
  %v8774 = vadd.f32 %v8529, %v8751
  %v8775 = vadd.f32 %v8530, %v8754
  %v8776 = vadd.f32 %v8531, %v8756
  %v8777 = vadd.f32 %v8532, %v8759
  %v8778 = vadd.f32 %v8533, %v8761
  %v8779 = vadd.f32 %v8534, %v8764
  %v8780 = vadd.f32 %v8535, %v8766
  %v8781 = vadd.f32 %v8536, %v8769
  %v8782 = vadd.f32 %v8537, %v8771
  %s8783 = scalar_lea.vmem %s3, 240
  %v8784 = vld [vmem:[%s8783] sm:$0xf]
  %v8785 = vld [vmem:[%s8783 + $0x4] sm:$0xf]
  %v8786 = vld [vmem:[%s8783 + $0x8] sm:$0xf]
  %v8787 = vld [vmem:[%s8783 + $0xc] sm:$0xf]
  %v8792 = vunpack.c.l.b16 %v8784
  %v8793 = vunpack.c.l.b16 %v8785
  %v8794 = vunpack.c.l.b16 %v8786
  %v8795 = vunpack.c.l.b16 %v8787
  %v8796 = vpack.c.b16 %v8793, %v8792
  %v8797 = vpack.c.b16 %v8795, %v8794
  %8800 = vmatpush.bf16.msra.mxu0 0
  %8801 = vmatpush.bf16.msra.mxu0 0
  %8802 = vmatpush.bf16.msra.mxu0 0
  %8803 = vmatpush.bf16.msra.mxu0 0
  %8804 = vmatpush.bf16.msra.mxu0 0
  %8805 = vmatpush.bf16.msra.mxu0 0
  %8806 = vmatpush.bf16.msra.mxu0 %v8797
  %8807 = vmatpush.bf16.msra.mxu0 %v8796
  %8808 = vmatmul.bf16.gmra.mxu0 %v6079
  %v8809 = vpop.f32.mrf.mxu0
  %v8810 = vadd.f32 0.0, %v8809
  %v8811 = vpop.f32.mrf.mxu0
  %v8812 = vadd.f32 0.0, %v8811
  %8813 = vmatmul.bf16.gmra.mxu0 %v6082
  %v8814 = vpop.f32.mrf.mxu0
  %v8815 = vadd.f32 0.0, %v8814
  %v8816 = vpop.f32.mrf.mxu0
  %v8817 = vadd.f32 0.0, %v8816
  %8818 = vmatmul.bf16.gmra.mxu0 %v6085
  %v8819 = vpop.f32.mrf.mxu0
  %v8820 = vadd.f32 0.0, %v8819
  %v8821 = vpop.f32.mrf.mxu0
  %v8822 = vadd.f32 0.0, %v8821
  %8823 = vmatmul.bf16.gmra.mxu0 %v6088
  %v8824 = vpop.f32.mrf.mxu0
  %v8825 = vadd.f32 0.0, %v8824
  %v8826 = vpop.f32.mrf.mxu0
  %v8827 = vadd.f32 0.0, %v8826
  %8828 = vmatmul.bf16.gmra.mxu0 %v6738
  %v8829 = vpop.f32.mrf.mxu0
  %v8830 = vadd.f32 0.0, %v8829
  %v8831 = vpop.f32.mrf.mxu0
  %v8832 = vadd.f32 0.0, %v8831
  %8833 = vdwg.mxu0
  %v8834 = vadd.f32 %v8589, %v8810
  %v8835 = vadd.f32 %v8590, %v8812
  %v8836 = vadd.f32 %v8591, %v8815
  %v8837 = vadd.f32 %v8592, %v8817
  %v8838 = vadd.f32 %v8593, %v8820
  %v8839 = vadd.f32 %v8594, %v8822
  %v8840 = vadd.f32 %v8595, %v8825
  %v8841 = vadd.f32 %v8596, %v8827
  %v8842 = vadd.f32 %v8597, %v8830
  %v8843 = vadd.f32 %v8598, %v8832
  %8844 = vmatpush.bf16.msra.mxu0 0
  %8845 = vmatpush.bf16.msra.mxu0 0
  %8846 = vmatpush.bf16.msra.mxu0 0
  %8847 = vmatpush.bf16.msra.mxu0 0
  %8848 = vmatpush.bf16.msra.mxu0 0
  %8849 = vmatpush.bf16.msra.mxu0 0
  %8850 = vmatpush.bf16.msra.mxu0 %v8797
  %8851 = vmatpush.bf16.msra.mxu0 %v8796
  %8852 = vmatmul.bf16.gmra.mxu0 %v6163
  %v8853 = vpop.f32.mrf.mxu0
  %v8854 = vadd.f32 0.0, %v8853
  %v8855 = vpop.f32.mrf.mxu0
  %v8856 = vadd.f32 0.0, %v8855
  %8857 = vmatmul.bf16.gmra.mxu0 %v6166
  %v8858 = vpop.f32.mrf.mxu0
  %v8859 = vadd.f32 0.0, %v8858
  %v8860 = vpop.f32.mrf.mxu0
  %v8861 = vadd.f32 0.0, %v8860
  %8862 = vmatmul.bf16.gmra.mxu0 %v6169
  %v8863 = vpop.f32.mrf.mxu0
  %v8864 = vadd.f32 0.0, %v8863
  %v8865 = vpop.f32.mrf.mxu0
  %v8866 = vadd.f32 0.0, %v8865
  %8867 = vmatmul.bf16.gmra.mxu0 %v6172
  %v8868 = vpop.f32.mrf.mxu0
  %v8869 = vadd.f32 0.0, %v8868
  %v8870 = vpop.f32.mrf.mxu0
  %v8871 = vadd.f32 0.0, %v8870
  %8872 = vmatmul.bf16.gmra.mxu0 %v6790
  %v8873 = vpop.f32.mrf.mxu0
  %v8874 = vadd.f32 0.0, %v8873
  %v8875 = vpop.f32.mrf.mxu0
  %v8876 = vadd.f32 0.0, %v8875
  %8877 = vdwg.mxu0
  %v8878 = vadd.f32 %v8633, %v8854
  %v8879 = vadd.f32 %v8634, %v8856
  %v8880 = vadd.f32 %v8635, %v8859
  %v8881 = vadd.f32 %v8636, %v8861
  %v8882 = vadd.f32 %v8637, %v8864
  %v8883 = vadd.f32 %v8638, %v8866
  %v8884 = vadd.f32 %v8639, %v8869
  %v8885 = vadd.f32 %v8640, %v8871
  %v8886 = vadd.f32 %v8641, %v8874
  %v8887 = vadd.f32 %v8642, %v8876
  %8888 = vmatpush.bf16.msra.mxu0 0
  %8889 = vmatpush.bf16.msra.mxu0 0
  %8890 = vmatpush.bf16.msra.mxu0 0
  %8891 = vmatpush.bf16.msra.mxu0 0
  %8892 = vmatpush.bf16.msra.mxu0 0
  %8893 = vmatpush.bf16.msra.mxu0 0
  %8894 = vmatpush.bf16.msra.mxu0 %v8797
  %8895 = vmatpush.bf16.msra.mxu0 %v8796
  %8896 = vmatmul.bf16.gmra.mxu0 %v6247
  %v8897 = vpop.f32.mrf.mxu0
  %v8898 = vadd.f32 0.0, %v8897
  %v8899 = vpop.f32.mrf.mxu0
  %v8900 = vadd.f32 0.0, %v8899
  %8901 = vmatmul.bf16.gmra.mxu0 %v6250
  %v8902 = vpop.f32.mrf.mxu0
  %v8903 = vadd.f32 0.0, %v8902
  %v8904 = vpop.f32.mrf.mxu0
  %v8905 = vadd.f32 0.0, %v8904
  %8906 = vmatmul.bf16.gmra.mxu0 %v6253
  %v8907 = vpop.f32.mrf.mxu0
  %v8908 = vadd.f32 0.0, %v8907
  %v8909 = vpop.f32.mrf.mxu0
  %v8910 = vadd.f32 0.0, %v8909
  %8911 = vmatmul.bf16.gmra.mxu0 %v6256
  %v8912 = vpop.f32.mrf.mxu0
  %v8913 = vadd.f32 0.0, %v8912
  %v8914 = vpop.f32.mrf.mxu0
  %v8915 = vadd.f32 0.0, %v8914
  %8916 = vmatmul.bf16.gmra.mxu0 %v6842
  %v8917 = vpop.f32.mrf.mxu0
  %v8918 = vadd.f32 0.0, %v8917
  %v8919 = vpop.f32.mrf.mxu0
  %v8920 = vadd.f32 0.0, %v8919
  %8921 = vdwg.mxu0
  %v8922 = vadd.f32 %v8677, %v8898
  %v8923 = vadd.f32 %v8678, %v8900
  %v8924 = vadd.f32 %v8679, %v8903
  %v8925 = vadd.f32 %v8680, %v8905
  %v8926 = vadd.f32 %v8681, %v8908
  %v8927 = vadd.f32 %v8682, %v8910
  %v8928 = vadd.f32 %v8683, %v8913
  %v8929 = vadd.f32 %v8684, %v8915
  %v8930 = vadd.f32 %v8685, %v8918
  %v8931 = vadd.f32 %v8686, %v8920
  %8932 = vmatpush.bf16.msra.mxu0 0
  %8933 = vmatpush.bf16.msra.mxu0 0
  %8934 = vmatpush.bf16.msra.mxu0 0
  %8935 = vmatpush.bf16.msra.mxu0 0
  %8936 = vmatpush.bf16.msra.mxu0 0
  %8937 = vmatpush.bf16.msra.mxu0 0
  %8938 = vmatpush.bf16.msra.mxu0 %v8797
  %8939 = vmatpush.bf16.msra.mxu0 %v8796
  %8940 = vmatmul.bf16.gmra.mxu0 %v6331
  %v8941 = vpop.f32.mrf.mxu0
  %v8942 = vadd.f32 0.0, %v8941
  %v8943 = vpop.f32.mrf.mxu0
  %v8944 = vadd.f32 0.0, %v8943
  %8945 = vmatmul.bf16.gmra.mxu0 %v6334
  %v8946 = vpop.f32.mrf.mxu0
  %v8947 = vadd.f32 0.0, %v8946
  %v8948 = vpop.f32.mrf.mxu0
  %v8949 = vadd.f32 0.0, %v8948
  %8950 = vmatmul.bf16.gmra.mxu0 %v6337
  %v8951 = vpop.f32.mrf.mxu0
  %v8952 = vadd.f32 0.0, %v8951
  %v8953 = vpop.f32.mrf.mxu0
  %v8954 = vadd.f32 0.0, %v8953
  %8955 = vmatmul.bf16.gmra.mxu0 %v6340
  %v8956 = vpop.f32.mrf.mxu0
  %v8957 = vadd.f32 0.0, %v8956
  %v8958 = vpop.f32.mrf.mxu0
  %v8959 = vadd.f32 0.0, %v8958
  %8960 = vmatmul.bf16.gmra.mxu0 %v6894
  %v8961 = vpop.f32.mrf.mxu0
  %v8962 = vadd.f32 0.0, %v8961
  %v8963 = vpop.f32.mrf.mxu0
  %v8964 = vadd.f32 0.0, %v8963
  %8965 = vdwg.mxu0
  %v8966 = vadd.f32 %v8721, %v8942
  %v8967 = vadd.f32 %v8722, %v8944
  %v8968 = vadd.f32 %v8723, %v8947
  %v8969 = vadd.f32 %v8724, %v8949
  %v8970 = vadd.f32 %v8725, %v8952
  %v8971 = vadd.f32 %v8726, %v8954
  %v8972 = vadd.f32 %v8727, %v8957
  %v8973 = vadd.f32 %v8728, %v8959
  %v8974 = vadd.f32 %v8729, %v8962
  %v8975 = vadd.f32 %v8730, %v8964
  %v8978 = vunpack.c.l.b16 %v4182
  %v8979 = vunpack.c.l.b16 %v4183
  %v8980 = vpack.c.b16 %v8979, %v8978
  %v8982 = vsel %vm4230, %v8980, 0
  %8984 = vmatpush.bf16.msra.mxu0 0
  %8985 = vmatpush.bf16.msra.mxu0 0
  %8986 = vmatpush.bf16.msra.mxu0 0
  %8987 = vmatpush.bf16.msra.mxu0 0
  %8988 = vmatpush.bf16.msra.mxu0 0
  %8989 = vmatpush.bf16.msra.mxu0 0
  %8990 = vmatpush.bf16.msra.mxu0 %v8797
  %8991 = vmatpush.bf16.msra.mxu0 %v8796
  %8992 = vmatmul.bf16.gmra.mxu0 %v8483
  %v8993 = vpop.f32.mrf.mxu0
  %v8994 = vadd.f32 0.0, %v8993
  %v8995 = vpop.f32.mrf.mxu0
  %v8996 = vadd.f32 0.0, %v8995
  %8997 = vmatmul.bf16.gmra.mxu0 %v8486
  %v8998 = vpop.f32.mrf.mxu0
  %v8999 = vadd.f32 0.0, %v8998
  %v9000 = vpop.f32.mrf.mxu0
  %v9001 = vadd.f32 0.0, %v9000
  %9002 = vmatmul.bf16.gmra.mxu0 %v8489
  %v9003 = vpop.f32.mrf.mxu0
  %v9004 = vadd.f32 0.0, %v9003
  %v9005 = vpop.f32.mrf.mxu0
  %v9006 = vadd.f32 0.0, %v9005
  %9007 = vmatmul.bf16.gmra.mxu0 %v8492
  %v9008 = vpop.f32.mrf.mxu0
  %v9009 = vadd.f32 0.0, %v9008
  %v9010 = vpop.f32.mrf.mxu0
  %v9011 = vadd.f32 0.0, %v9010
  %9012 = vmatmul.bf16.gmra.mxu0 %v8982
  %v9013 = vpop.f32.mrf.mxu0
  %v9014 = vadd.f32 0.0, %v9013
  %v9015 = vpop.f32.mrf.mxu0
  %v9016 = vadd.f32 0.0, %v9015
  %9017 = vdwg.mxu0
  %v9018 = vadd.f32 %v8773, %v8994
  %v9019 = vadd.f32 %v8774, %v8996
  %v9020 = vadd.f32 %v8775, %v8999
  %v9021 = vadd.f32 %v8776, %v9001
  %v9022 = vadd.f32 %v8777, %v9004
  %v9023 = vadd.f32 %v8778, %v9006
  %v9024 = vadd.f32 %v8779, %v9009
  %v9025 = vadd.f32 %v8780, %v9011
  %v9026 = vadd.f32 %v8781, %v9014
  %v9027 = vadd.f32 %v8782, %v9016
  %v9028 = vld [vmem:[%s4] sm:$0x1]
  %v9030 = vperm.slane %v9028, 0
  %v9032 = vadd.f32 %v8834, %v9030
  %v9033 = vadd.f32 %v8835, %v9030
  %v9034 = vadd.f32 %v8836, %v9030
  %v9035 = vadd.f32 %v8837, %v9030
  %v9036 = vadd.f32 %v8838, %v9030
  %v9037 = vadd.f32 %v8839, %v9030
  %v9038 = vadd.f32 %v8840, %v9030
  %v9039 = vadd.f32 %v8841, %v9030
  %v9040 = vadd.f32 %v8842, %v9030
  %v9041 = vadd.f32 %v8843, %v9030
  %v9042 = vmax.f32 %v9032, 0.0
  %v9043 = vmax.f32 %v9033, 0.0
  %v9044 = vmax.f32 %v9034, 0.0
  %v9045 = vmax.f32 %v9035, 0.0
  %v9046 = vmax.f32 %v9036, 0.0
  %v9047 = vmax.f32 %v9037, 0.0
  %v9048 = vmax.f32 %v9038, 0.0
  %v9049 = vmax.f32 %v9039, 0.0
  %v9050 = vmax.f32 %v9040, 0.0
  %v9051 = vmax.f32 %v9041, 0.0
  %v9052 = vpack.c.bf16 %v9042, %v9042
  %v9053 = vpack.c.bf16 %v9043, %v9043
  %v9054 = vpack.c.bf16 %v9044, %v9044
  %v9055 = vpack.c.bf16 %v9045, %v9045
  %v9056 = vpack.c.bf16 %v9046, %v9046
  %v9057 = vpack.c.bf16 %v9047, %v9047
  %v9058 = vpack.c.bf16 %v9048, %v9048
  %v9059 = vpack.c.bf16 %v9049, %v9049
  %v9060 = vpack.c.bf16 %v9050, %v9050
  %v9061 = vpack.c.bf16 %v9051, %v9051
  %v9062 = vadd.f32 %v8878, %v9030
  %v9063 = vadd.f32 %v8879, %v9030
  %v9064 = vadd.f32 %v8880, %v9030
  %v9065 = vadd.f32 %v8881, %v9030
  %v9066 = vadd.f32 %v8882, %v9030
  %v9067 = vadd.f32 %v8883, %v9030
  %v9068 = vadd.f32 %v8884, %v9030
  %v9069 = vadd.f32 %v8885, %v9030
  %v9070 = vadd.f32 %v8886, %v9030
  %v9071 = vadd.f32 %v8887, %v9030
  %v9072 = vmax.f32 %v9062, 0.0
  %v9073 = vmax.f32 %v9063, 0.0
  %v9074 = vmax.f32 %v9064, 0.0
  %v9075 = vmax.f32 %v9065, 0.0
  %v9076 = vmax.f32 %v9066, 0.0
  %v9077 = vmax.f32 %v9067, 0.0
  %v9078 = vmax.f32 %v9068, 0.0
  %v9079 = vmax.f32 %v9069, 0.0
  %v9080 = vmax.f32 %v9070, 0.0
  %v9081 = vmax.f32 %v9071, 0.0
  %v9082 = vpack.c.bf16 %v9072, %v9072
  %v9083 = vpack.c.bf16 %v9073, %v9073
  %v9084 = vpack.c.bf16 %v9074, %v9074
  %v9085 = vpack.c.bf16 %v9075, %v9075
  %v9086 = vpack.c.bf16 %v9076, %v9076
  %v9087 = vpack.c.bf16 %v9077, %v9077
  %v9088 = vpack.c.bf16 %v9078, %v9078
  %v9089 = vpack.c.bf16 %v9079, %v9079
  %v9090 = vpack.c.bf16 %v9080, %v9080
  %v9091 = vpack.c.bf16 %v9081, %v9081
  %v9092 = vadd.f32 %v8922, %v9030
  %v9093 = vadd.f32 %v8923, %v9030
  %v9094 = vadd.f32 %v8924, %v9030
  %v9095 = vadd.f32 %v8925, %v9030
  %v9096 = vadd.f32 %v8926, %v9030
  %v9097 = vadd.f32 %v8927, %v9030
  %v9098 = vadd.f32 %v8928, %v9030
  %v9099 = vadd.f32 %v8929, %v9030
  %v9100 = vadd.f32 %v8930, %v9030
  %v9101 = vadd.f32 %v8931, %v9030
  %v9102 = vmax.f32 %v9092, 0.0
  %v9103 = vmax.f32 %v9093, 0.0
  %v9104 = vmax.f32 %v9094, 0.0
  %v9105 = vmax.f32 %v9095, 0.0
  %v9106 = vmax.f32 %v9096, 0.0
  %v9107 = vmax.f32 %v9097, 0.0
  %v9108 = vmax.f32 %v9098, 0.0
  %v9109 = vmax.f32 %v9099, 0.0
  %v9110 = vmax.f32 %v9100, 0.0
  %v9111 = vmax.f32 %v9101, 0.0
  %v9112 = vpack.c.bf16 %v9102, %v9102
  %v9113 = vpack.c.bf16 %v9103, %v9103
  %v9114 = vpack.c.bf16 %v9104, %v9104
  %v9115 = vpack.c.bf16 %v9105, %v9105
  %v9116 = vpack.c.bf16 %v9106, %v9106
  %v9117 = vpack.c.bf16 %v9107, %v9107
  %v9118 = vpack.c.bf16 %v9108, %v9108
  %v9119 = vpack.c.bf16 %v9109, %v9109
  %v9120 = vpack.c.bf16 %v9110, %v9110
  %v9121 = vpack.c.bf16 %v9111, %v9111
  %v9122 = vadd.f32 %v8966, %v9030
  %v9123 = vadd.f32 %v8967, %v9030
  %v9124 = vadd.f32 %v8968, %v9030
  %v9125 = vadd.f32 %v8969, %v9030
  %v9126 = vadd.f32 %v8970, %v9030
  %v9127 = vadd.f32 %v8971, %v9030
  %v9128 = vadd.f32 %v8972, %v9030
  %v9129 = vadd.f32 %v8973, %v9030
  %v9130 = vadd.f32 %v8974, %v9030
  %v9131 = vadd.f32 %v8975, %v9030
  %v9132 = vmax.f32 %v9122, 0.0
  %v9133 = vmax.f32 %v9123, 0.0
  %v9134 = vmax.f32 %v9124, 0.0
  %v9135 = vmax.f32 %v9125, 0.0
  %v9136 = vmax.f32 %v9126, 0.0
  %v9137 = vmax.f32 %v9127, 0.0
  %v9138 = vmax.f32 %v9128, 0.0
  %v9139 = vmax.f32 %v9129, 0.0
  %v9140 = vmax.f32 %v9130, 0.0
  %v9141 = vmax.f32 %v9131, 0.0
  %v9142 = vpack.c.bf16 %v9132, %v9132
  %v9143 = vpack.c.bf16 %v9133, %v9133
  %v9144 = vpack.c.bf16 %v9134, %v9134
  %v9145 = vpack.c.bf16 %v9135, %v9135
  %v9146 = vpack.c.bf16 %v9136, %v9136
  %v9147 = vpack.c.bf16 %v9137, %v9137
  %v9148 = vpack.c.bf16 %v9138, %v9138
  %v9149 = vpack.c.bf16 %v9139, %v9139
  %v9150 = vpack.c.bf16 %v9140, %v9140
  %v9151 = vpack.c.bf16 %v9141, %v9141
  %v9152 = vadd.f32 %v9018, %v9030
  %v9153 = vadd.f32 %v9019, %v9030
  %v9154 = vadd.f32 %v9020, %v9030
  %v9155 = vadd.f32 %v9021, %v9030
  %v9156 = vadd.f32 %v9022, %v9030
  %v9157 = vadd.f32 %v9023, %v9030
  %v9158 = vadd.f32 %v9024, %v9030
  %v9159 = vadd.f32 %v9025, %v9030
  %v9160 = vadd.f32 %v9026, %v9030
  %v9161 = vadd.f32 %v9027, %v9030
  %v9162 = vmax.f32 %v9152, 0.0
  %v9163 = vmax.f32 %v9153, 0.0
  %v9164 = vmax.f32 %v9154, 0.0
  %v9165 = vmax.f32 %v9155, 0.0
  %v9166 = vmax.f32 %v9156, 0.0
  %v9167 = vmax.f32 %v9157, 0.0
  %v9168 = vmax.f32 %v9158, 0.0
  %v9169 = vmax.f32 %v9159, 0.0
  %v9170 = vmax.f32 %v9160, 0.0
  %v9171 = vmax.f32 %v9161, 0.0
  %v9172 = vpack.c.bf16 %v9162, %v9162
  %v9173 = vpack.c.bf16 %v9163, %v9163
  %v9174 = vpack.c.bf16 %v9164, %v9164
  %v9175 = vpack.c.bf16 %v9165, %v9165
  %v9176 = vpack.c.bf16 %v9166, %v9166
  %v9177 = vpack.c.bf16 %v9167, %v9167
  %v9178 = vpack.c.bf16 %v9168, %v9168
  %v9179 = vpack.c.bf16 %v9169, %v9169
  %v9180 = vpack.c.bf16 %v9170, %v9170
  %v9181 = vpack.c.bf16 %v9171, %v9171
  %v9182 = vld [vmem:[%s5] sm:$0xf]
  %v9183 = vld [vmem:[%s5 + $0x4] sm:$0xf]
  %v9184 = vld [vmem:[%s5 + $0x8] sm:$0xf]
  %v9185 = vld [vmem:[%s5 + $0xc] sm:$0xf]
  %v9186 = vld [vmem:[%s5 + $0x10] sm:$0xf]
  %v9187 = vld [vmem:[%s5 + $0x14] sm:$0xf]
  %v9188 = vld [vmem:[%s5 + $0x18] sm:$0xf]
  %v9189 = vld [vmem:[%s5 + $0x1c] sm:$0xf]
  %s9190 = scalar_lea.vmem %s5, 32
  %v9191 = vld [vmem:[%s9190] sm:$0xf]
  %v9192 = vld [vmem:[%s9190 + $0x4] sm:$0xf]
  %v9193 = vld [vmem:[%s9190 + $0x8] sm:$0xf]
  %v9194 = vld [vmem:[%s9190 + $0xc] sm:$0xf]
  %v9195 = vld [vmem:[%s9190 + $0x10] sm:$0xf]
  %v9196 = vld [vmem:[%s9190 + $0x14] sm:$0xf]
  %v9197 = vld [vmem:[%s9190 + $0x18] sm:$0xf]
  %v9198 = vld [vmem:[%s9190 + $0x1c] sm:$0xf]
  %v9205 = vunpack.c.l.b16 %v9054
  %v9206 = vunpack.c.l.b16 %v9055
  %v9207 = vunpack.c.l.b16 %v9056
  %v9208 = vunpack.c.l.b16 %v9057
  %v9209 = vunpack.c.l.b16 %v9058
  %v9210 = vunpack.c.l.b16 %v9059
  %v9211 = vpack.c.b16 %v9206, %v9205
  %v9212 = vpack.c.b16 %v9208, %v9207
  %v9213 = vpack.c.b16 %v9210, %v9209
  %v9222 = vunpack.c.l.b16 %v9191
  %v9223 = vunpack.c.l.b16 %v9192
  %v9224 = vunpack.c.l.b16 %v9193
  %v9225 = vunpack.c.l.b16 %v9194
  %v9226 = vunpack.c.l.b16 %v9195
  %v9227 = vunpack.c.l.b16 %v9196
  %v9228 = vunpack.c.l.b16 %v9197
  %v9229 = vunpack.c.l.b16 %v9198
  %v9230 = vpack.c.b16 %v9223, %v9222
  %v9231 = vpack.c.b16 %v9225, %v9224
  %v9232 = vpack.c.b16 %v9227, %v9226
  %v9233 = vpack.c.b16 %v9229, %v9228
  %v9239 = vsel %vm1717, %v9211, 0
  %v9242 = vsel %vm1717, %v9212, 0
  %v9245 = vsel %vm1717, %v9213, 0
  %9247 = vmatpush.bf16.msra.mxu0 0
  %9248 = vmatpush.bf16.msra.mxu0 0
  %9249 = vmatpush.bf16.msra.mxu0 0
  %9250 = vmatpush.bf16.msra.mxu0 0
  %9251 = vmatpush.bf16.msra.mxu0 %v9233
  %9252 = vmatpush.bf16.msra.mxu0 %v9232
  %9253 = vmatpush.bf16.msra.mxu0 %v9231
  %9254 = vmatpush.bf16.msra.mxu0 %v9230
  %9255 = vmatmul.bf16.gmra.mxu0 %v9239
  %v9256 = vpop.f32.mrf.mxu0
  %v9257 = vadd.f32 0.0, %v9256
  %v9258 = vpop.f32.mrf.mxu0
  %v9259 = vadd.f32 0.0, %v9258
  %9260 = vmatmul.bf16.gmra.mxu0 %v9242
  %v9261 = vpop.f32.mrf.mxu0
  %v9262 = vadd.f32 0.0, %v9261
  %v9263 = vpop.f32.mrf.mxu0
  %v9264 = vadd.f32 0.0, %v9263
  %9265 = vmatmul.bf16.gmra.mxu0 %v9245
  %v9266 = vpop.f32.mrf.mxu0
  %v9267 = vadd.f32 0.0, %v9266
  %v9268 = vpop.f32.mrf.mxu0
  %v9269 = vadd.f32 0.0, %v9268
  %9270 = vdwg.mxu0
  %v9273 = vunpack.c.l.b16 %v9052
  %v9274 = vunpack.c.l.b16 %v9053
  %v9275 = vpack.c.b16 %v9274, %v9273
  %v9284 = vunpack.c.l.b16 %v9182
  %v9285 = vunpack.c.l.b16 %v9183
  %v9286 = vunpack.c.l.b16 %v9184
  %v9287 = vunpack.c.l.b16 %v9185
  %v9288 = vunpack.c.l.b16 %v9186
  %v9289 = vunpack.c.l.b16 %v9187
  %v9290 = vunpack.c.l.b16 %v9188
  %v9291 = vunpack.c.l.b16 %v9189
  %v9292 = vpack.c.b16 %v9285, %v9284
  %v9293 = vpack.c.b16 %v9287, %v9286
  %v9294 = vpack.c.b16 %v9289, %v9288
  %v9295 = vpack.c.b16 %v9291, %v9290
  %v9301 = vsel %vm1717, %v9275, 0
  %9303 = vmatpush.bf16.msra.mxu0 0
  %9304 = vmatpush.bf16.msra.mxu0 0
  %9305 = vmatpush.bf16.msra.mxu0 0
  %9306 = vmatpush.bf16.msra.mxu0 0
  %9307 = vmatpush.bf16.msra.mxu0 %v9295
  %9308 = vmatpush.bf16.msra.mxu0 %v9294
  %9309 = vmatpush.bf16.msra.mxu0 %v9293
  %9310 = vmatpush.bf16.msra.mxu0 %v9292
  %9311 = vmatmul.bf16.gmra.mxu0 %v9301
  %v9312 = vpop.f32.mrf.mxu0
  %v9313 = vadd.f32 %v9257, %v9312
  %v9314 = vpop.f32.mrf.mxu0
  %v9315 = vadd.f32 %v9259, %v9314
  %9316 = vmatmul.bf16.gmra.mxu0 %v9239
  %v9317 = vpop.f32.mrf.mxu0
  %v9318 = vadd.f32 %v9262, %v9317
  %v9319 = vpop.f32.mrf.mxu0
  %v9320 = vadd.f32 %v9264, %v9319
  %9321 = vmatmul.bf16.gmra.mxu0 %v9242
  %v9322 = vpop.f32.mrf.mxu0
  %v9323 = vadd.f32 %v9267, %v9322
  %v9324 = vpop.f32.mrf.mxu0
  %v9325 = vadd.f32 %v9269, %v9324
  %9326 = vdwg.mxu0
  %v9333 = vunpack.c.l.b16 %v9084
  %v9334 = vunpack.c.l.b16 %v9085
  %v9335 = vunpack.c.l.b16 %v9086
  %v9336 = vunpack.c.l.b16 %v9087
  %v9337 = vunpack.c.l.b16 %v9088
  %v9338 = vunpack.c.l.b16 %v9089
  %v9339 = vpack.c.b16 %v9334, %v9333
  %v9340 = vpack.c.b16 %v9336, %v9335
  %v9341 = vpack.c.b16 %v9338, %v9337
  %v9343 = vsel %vm1717, %v9339, 0
  %v9346 = vsel %vm1717, %v9340, 0
  %v9349 = vsel %vm1717, %v9341, 0
  %9351 = vmatpush.bf16.msra.mxu0 0
  %9352 = vmatpush.bf16.msra.mxu0 0
  %9353 = vmatpush.bf16.msra.mxu0 0
  %9354 = vmatpush.bf16.msra.mxu0 0
  %9355 = vmatpush.bf16.msra.mxu0 %v9233
  %9356 = vmatpush.bf16.msra.mxu0 %v9232
  %9357 = vmatpush.bf16.msra.mxu0 %v9231
  %9358 = vmatpush.bf16.msra.mxu0 %v9230
  %9359 = vmatmul.bf16.gmra.mxu0 %v9343
  %v9360 = vpop.f32.mrf.mxu0
  %v9361 = vadd.f32 0.0, %v9360
  %v9362 = vpop.f32.mrf.mxu0
  %v9363 = vadd.f32 0.0, %v9362
  %9364 = vmatmul.bf16.gmra.mxu0 %v9346
  %v9365 = vpop.f32.mrf.mxu0
  %v9366 = vadd.f32 0.0, %v9365
  %v9367 = vpop.f32.mrf.mxu0
  %v9368 = vadd.f32 0.0, %v9367
  %9369 = vmatmul.bf16.gmra.mxu0 %v9349
  %v9370 = vpop.f32.mrf.mxu0
  %v9371 = vadd.f32 0.0, %v9370
  %v9372 = vpop.f32.mrf.mxu0
  %v9373 = vadd.f32 0.0, %v9372
  %9374 = vdwg.mxu0
  %v9377 = vunpack.c.l.b16 %v9082
  %v9378 = vunpack.c.l.b16 %v9083
  %v9379 = vpack.c.b16 %v9378, %v9377
  %v9381 = vsel %vm1717, %v9379, 0
  %9383 = vmatpush.bf16.msra.mxu0 0
  %9384 = vmatpush.bf16.msra.mxu0 0
  %9385 = vmatpush.bf16.msra.mxu0 0
  %9386 = vmatpush.bf16.msra.mxu0 0
  %9387 = vmatpush.bf16.msra.mxu0 %v9295
  %9388 = vmatpush.bf16.msra.mxu0 %v9294
  %9389 = vmatpush.bf16.msra.mxu0 %v9293
  %9390 = vmatpush.bf16.msra.mxu0 %v9292
  %9391 = vmatmul.bf16.gmra.mxu0 %v9381
  %v9392 = vpop.f32.mrf.mxu0
  %v9393 = vadd.f32 %v9361, %v9392
  %v9394 = vpop.f32.mrf.mxu0
  %v9395 = vadd.f32 %v9363, %v9394
  %9396 = vmatmul.bf16.gmra.mxu0 %v9343
  %v9397 = vpop.f32.mrf.mxu0
  %v9398 = vadd.f32 %v9366, %v9397
  %v9399 = vpop.f32.mrf.mxu0
  %v9400 = vadd.f32 %v9368, %v9399
  %9401 = vmatmul.bf16.gmra.mxu0 %v9346
  %v9402 = vpop.f32.mrf.mxu0
  %v9403 = vadd.f32 %v9371, %v9402
  %v9404 = vpop.f32.mrf.mxu0
  %v9405 = vadd.f32 %v9373, %v9404
  %9406 = vdwg.mxu0
  %v9413 = vunpack.c.l.b16 %v9114
  %v9414 = vunpack.c.l.b16 %v9115
  %v9415 = vunpack.c.l.b16 %v9116
  %v9416 = vunpack.c.l.b16 %v9117
  %v9417 = vunpack.c.l.b16 %v9118
  %v9418 = vunpack.c.l.b16 %v9119
  %v9419 = vpack.c.b16 %v9414, %v9413
  %v9420 = vpack.c.b16 %v9416, %v9415
  %v9421 = vpack.c.b16 %v9418, %v9417
  %v9423 = vsel %vm1717, %v9419, 0
  %v9426 = vsel %vm1717, %v9420, 0
  %v9429 = vsel %vm1717, %v9421, 0
  %9431 = vmatpush.bf16.msra.mxu0 0
  %9432 = vmatpush.bf16.msra.mxu0 0
  %9433 = vmatpush.bf16.msra.mxu0 0
  %9434 = vmatpush.bf16.msra.mxu0 0
  %9435 = vmatpush.bf16.msra.mxu0 %v9233
  %9436 = vmatpush.bf16.msra.mxu0 %v9232
  %9437 = vmatpush.bf16.msra.mxu0 %v9231
  %9438 = vmatpush.bf16.msra.mxu0 %v9230
  %9439 = vmatmul.bf16.gmra.mxu0 %v9423
  %v9440 = vpop.f32.mrf.mxu0
  %v9441 = vadd.f32 0.0, %v9440
  %v9442 = vpop.f32.mrf.mxu0
  %v9443 = vadd.f32 0.0, %v9442
  %9444 = vmatmul.bf16.gmra.mxu0 %v9426
  %v9445 = vpop.f32.mrf.mxu0
  %v9446 = vadd.f32 0.0, %v9445
  %v9447 = vpop.f32.mrf.mxu0
  %v9448 = vadd.f32 0.0, %v9447
  %9449 = vmatmul.bf16.gmra.mxu0 %v9429
  %v9450 = vpop.f32.mrf.mxu0
  %v9451 = vadd.f32 0.0, %v9450
  %v9452 = vpop.f32.mrf.mxu0
  %v9453 = vadd.f32 0.0, %v9452
  %9454 = vdwg.mxu0
  %v9457 = vunpack.c.l.b16 %v9112
  %v9458 = vunpack.c.l.b16 %v9113
  %v9459 = vpack.c.b16 %v9458, %v9457
  %v9461 = vsel %vm1717, %v9459, 0
  %9463 = vmatpush.bf16.msra.mxu0 0
  %9464 = vmatpush.bf16.msra.mxu0 0
  %9465 = vmatpush.bf16.msra.mxu0 0
  %9466 = vmatpush.bf16.msra.mxu0 0
  %9467 = vmatpush.bf16.msra.mxu0 %v9295
  %9468 = vmatpush.bf16.msra.mxu0 %v9294
  %9469 = vmatpush.bf16.msra.mxu0 %v9293
  %9470 = vmatpush.bf16.msra.mxu0 %v9292
  %9471 = vmatmul.bf16.gmra.mxu0 %v9461
  %v9472 = vpop.f32.mrf.mxu0
  %v9473 = vadd.f32 %v9441, %v9472
  %v9474 = vpop.f32.mrf.mxu0
  %v9475 = vadd.f32 %v9443, %v9474
  %9476 = vmatmul.bf16.gmra.mxu0 %v9423
  %v9477 = vpop.f32.mrf.mxu0
  %v9478 = vadd.f32 %v9446, %v9477
  %v9479 = vpop.f32.mrf.mxu0
  %v9480 = vadd.f32 %v9448, %v9479
  %9481 = vmatmul.bf16.gmra.mxu0 %v9426
  %v9482 = vpop.f32.mrf.mxu0
  %v9483 = vadd.f32 %v9451, %v9482
  %v9484 = vpop.f32.mrf.mxu0
  %v9485 = vadd.f32 %v9453, %v9484
  %9486 = vdwg.mxu0
  %s9487 = scalar_lea.vmem %s5, 64
  %v9488 = vld [vmem:[%s9487] sm:$0xf]
  %v9489 = vld [vmem:[%s9487 + $0x4] sm:$0xf]
  %v9490 = vld [vmem:[%s9487 + $0x8] sm:$0xf]
  %v9491 = vld [vmem:[%s9487 + $0xc] sm:$0xf]
  %v9492 = vld [vmem:[%s9487 + $0x10] sm:$0xf]
  %v9493 = vld [vmem:[%s9487 + $0x14] sm:$0xf]
  %v9494 = vld [vmem:[%s9487 + $0x18] sm:$0xf]
  %v9495 = vld [vmem:[%s9487 + $0x1c] sm:$0xf]
  %v9498 = vunpack.c.l.b16 %v9060
  %v9499 = vunpack.c.l.b16 %v9061
  %v9500 = vpack.c.b16 %v9499, %v9498
  %v9509 = vunpack.c.l.b16 %v9488
  %v9510 = vunpack.c.l.b16 %v9489
  %v9511 = vunpack.c.l.b16 %v9490
  %v9512 = vunpack.c.l.b16 %v9491
  %v9513 = vunpack.c.l.b16 %v9492
  %v9514 = vunpack.c.l.b16 %v9493
  %v9515 = vunpack.c.l.b16 %v9494
  %v9516 = vunpack.c.l.b16 %v9495
  %v9517 = vpack.c.b16 %v9510, %v9509
  %v9518 = vpack.c.b16 %v9512, %v9511
  %v9519 = vpack.c.b16 %v9514, %v9513
  %v9520 = vpack.c.b16 %v9516, %v9515
  %v9526 = vsel %vm1717, %v9500, 0
  %9528 = vmatpush.bf16.msra.mxu0 0
  %9529 = vmatpush.bf16.msra.mxu0 0
  %9530 = vmatpush.bf16.msra.mxu0 0
  %9531 = vmatpush.bf16.msra.mxu0 0
  %9532 = vmatpush.bf16.msra.mxu0 %v9520
  %9533 = vmatpush.bf16.msra.mxu0 %v9519
  %9534 = vmatpush.bf16.msra.mxu0 %v9518
  %9535 = vmatpush.bf16.msra.mxu0 %v9517
  %9536 = vmatmul.bf16.gmra.mxu0 %v9242
  %v9537 = vpop.f32.mrf.mxu0
  %v9538 = vadd.f32 0.0, %v9537
  %v9539 = vpop.f32.mrf.mxu0
  %v9540 = vadd.f32 0.0, %v9539
  %9541 = vmatmul.bf16.gmra.mxu0 %v9245
  %v9542 = vpop.f32.mrf.mxu0
  %v9543 = vadd.f32 0.0, %v9542
  %v9544 = vpop.f32.mrf.mxu0
  %v9545 = vadd.f32 0.0, %v9544
  %9546 = vmatmul.bf16.gmra.mxu0 %v9526
  %v9547 = vpop.f32.mrf.mxu0
  %v9548 = vadd.f32 0.0, %v9547
  %v9549 = vpop.f32.mrf.mxu0
  %v9550 = vadd.f32 0.0, %v9549
  %9551 = vdwg.mxu0
  %v9552 = vadd.f32 %v9313, %v9538
  %v9553 = vadd.f32 %v9315, %v9540
  %v9554 = vadd.f32 %v9318, %v9543
  %v9555 = vadd.f32 %v9320, %v9545
  %v9556 = vadd.f32 %v9323, %v9548
  %v9557 = vadd.f32 %v9325, %v9550
  %v9560 = vunpack.c.l.b16 %v9090
  %v9561 = vunpack.c.l.b16 %v9091
  %v9562 = vpack.c.b16 %v9561, %v9560
  %v9564 = vsel %vm1717, %v9562, 0
  %9566 = vmatpush.bf16.msra.mxu0 0
  %9567 = vmatpush.bf16.msra.mxu0 0
  %9568 = vmatpush.bf16.msra.mxu0 0
  %9569 = vmatpush.bf16.msra.mxu0 0
  %9570 = vmatpush.bf16.msra.mxu0 %v9520
  %9571 = vmatpush.bf16.msra.mxu0 %v9519
  %9572 = vmatpush.bf16.msra.mxu0 %v9518
  %9573 = vmatpush.bf16.msra.mxu0 %v9517
  %9574 = vmatmul.bf16.gmra.mxu0 %v9346
  %v9575 = vpop.f32.mrf.mxu0
  %v9576 = vadd.f32 0.0, %v9575
  %v9577 = vpop.f32.mrf.mxu0
  %v9578 = vadd.f32 0.0, %v9577
  %9579 = vmatmul.bf16.gmra.mxu0 %v9349
  %v9580 = vpop.f32.mrf.mxu0
  %v9581 = vadd.f32 0.0, %v9580
  %v9582 = vpop.f32.mrf.mxu0
  %v9583 = vadd.f32 0.0, %v9582
  %9584 = vmatmul.bf16.gmra.mxu0 %v9564
  %v9585 = vpop.f32.mrf.mxu0
  %v9586 = vadd.f32 0.0, %v9585
  %v9587 = vpop.f32.mrf.mxu0
  %v9588 = vadd.f32 0.0, %v9587
  %9589 = vdwg.mxu0
  %v9590 = vadd.f32 %v9393, %v9576
  %v9591 = vadd.f32 %v9395, %v9578
  %v9592 = vadd.f32 %v9398, %v9581
  %v9593 = vadd.f32 %v9400, %v9583
  %v9594 = vadd.f32 %v9403, %v9586
  %v9595 = vadd.f32 %v9405, %v9588
  %v9598 = vunpack.c.l.b16 %v9120
  %v9599 = vunpack.c.l.b16 %v9121
  %v9600 = vpack.c.b16 %v9599, %v9598
  %v9602 = vsel %vm1717, %v9600, 0
  %9604 = vmatpush.bf16.msra.mxu0 0
  %9605 = vmatpush.bf16.msra.mxu0 0
  %9606 = vmatpush.bf16.msra.mxu0 0
  %9607 = vmatpush.bf16.msra.mxu0 0
  %9608 = vmatpush.bf16.msra.mxu0 %v9520
  %9609 = vmatpush.bf16.msra.mxu0 %v9519
  %9610 = vmatpush.bf16.msra.mxu0 %v9518
  %9611 = vmatpush.bf16.msra.mxu0 %v9517
  %9612 = vmatmul.bf16.gmra.mxu0 %v9426
  %v9613 = vpop.f32.mrf.mxu0
  %v9614 = vadd.f32 0.0, %v9613
  %v9615 = vpop.f32.mrf.mxu0
  %v9616 = vadd.f32 0.0, %v9615
  %9617 = vmatmul.bf16.gmra.mxu0 %v9429
  %v9618 = vpop.f32.mrf.mxu0
  %v9619 = vadd.f32 0.0, %v9618
  %v9620 = vpop.f32.mrf.mxu0
  %v9621 = vadd.f32 0.0, %v9620
  %9622 = vmatmul.bf16.gmra.mxu0 %v9602
  %v9623 = vpop.f32.mrf.mxu0
  %v9624 = vadd.f32 0.0, %v9623
  %v9625 = vpop.f32.mrf.mxu0
  %v9626 = vadd.f32 0.0, %v9625
  %9627 = vdwg.mxu0
  %v9628 = vadd.f32 %v9473, %v9614
  %v9629 = vadd.f32 %v9475, %v9616
  %v9630 = vadd.f32 %v9478, %v9619
  %v9631 = vadd.f32 %v9480, %v9621
  %v9632 = vadd.f32 %v9483, %v9624
  %v9633 = vadd.f32 %v9485, %v9626
  %s9634 = scalar_lea.vmem %s5, 96
  %v9635 = vld [vmem:[%s9634] sm:$0xf]
  %v9636 = vld [vmem:[%s9634 + $0x4] sm:$0xf]
  %v9637 = vld [vmem:[%s9634 + $0x8] sm:$0xf]
  %v9638 = vld [vmem:[%s9634 + $0xc] sm:$0xf]
  %v9639 = vld [vmem:[%s9634 + $0x10] sm:$0xf]
  %v9640 = vld [vmem:[%s9634 + $0x14] sm:$0xf]
  %v9641 = vld [vmem:[%s9634 + $0x18] sm:$0xf]
  %v9642 = vld [vmem:[%s9634 + $0x1c] sm:$0xf]
  %v9651 = vunpack.c.l.b16 %v9635
  %v9652 = vunpack.c.l.b16 %v9636
  %v9653 = vunpack.c.l.b16 %v9637
  %v9654 = vunpack.c.l.b16 %v9638
  %v9655 = vunpack.c.l.b16 %v9639
  %v9656 = vunpack.c.l.b16 %v9640
  %v9657 = vunpack.c.l.b16 %v9641
  %v9658 = vunpack.c.l.b16 %v9642
  %v9659 = vpack.c.b16 %v9652, %v9651
  %v9660 = vpack.c.b16 %v9654, %v9653
  %v9661 = vpack.c.b16 %v9656, %v9655
  %v9662 = vpack.c.b16 %v9658, %v9657
  %9667 = vmatpush.bf16.msra.mxu0 0
  %9668 = vmatpush.bf16.msra.mxu0 0
  %9669 = vmatpush.bf16.msra.mxu0 0
  %9670 = vmatpush.bf16.msra.mxu0 0
  %9671 = vmatpush.bf16.msra.mxu0 %v9662
  %9672 = vmatpush.bf16.msra.mxu0 %v9661
  %9673 = vmatpush.bf16.msra.mxu0 %v9660
  %9674 = vmatpush.bf16.msra.mxu0 %v9659
  %9675 = vmatmul.bf16.gmra.mxu0 %v9381
  %v9676 = vpop.f32.mrf.mxu0
  %v9677 = vadd.f32 0.0, %v9676
  %v9678 = vpop.f32.mrf.mxu0
  %v9679 = vadd.f32 0.0, %v9678
  %9680 = vmatmul.bf16.gmra.mxu0 %v9343
  %v9681 = vpop.f32.mrf.mxu0
  %v9682 = vadd.f32 0.0, %v9681
  %v9683 = vpop.f32.mrf.mxu0
  %v9684 = vadd.f32 0.0, %v9683
  %9685 = vmatmul.bf16.gmra.mxu0 %v9346
  %v9686 = vpop.f32.mrf.mxu0
  %v9687 = vadd.f32 0.0, %v9686
  %v9688 = vpop.f32.mrf.mxu0
  %v9689 = vadd.f32 0.0, %v9688
  %9690 = vdwg.mxu0
  %v9691 = vadd.f32 %v9552, %v9677
  %v9692 = vadd.f32 %v9553, %v9679
  %v9693 = vadd.f32 %v9554, %v9682
  %v9694 = vadd.f32 %v9555, %v9684
  %v9695 = vadd.f32 %v9556, %v9687
  %v9696 = vadd.f32 %v9557, %v9689
  %9697 = vmatpush.bf16.msra.mxu0 0
  %9698 = vmatpush.bf16.msra.mxu0 0
  %9699 = vmatpush.bf16.msra.mxu0 0
  %9700 = vmatpush.bf16.msra.mxu0 0
  %9701 = vmatpush.bf16.msra.mxu0 %v9662
  %9702 = vmatpush.bf16.msra.mxu0 %v9661
  %9703 = vmatpush.bf16.msra.mxu0 %v9660
  %9704 = vmatpush.bf16.msra.mxu0 %v9659
  %9705 = vmatmul.bf16.gmra.mxu0 %v9461
  %v9706 = vpop.f32.mrf.mxu0
  %v9707 = vadd.f32 0.0, %v9706
  %v9708 = vpop.f32.mrf.mxu0
  %v9709 = vadd.f32 0.0, %v9708
  %9710 = vmatmul.bf16.gmra.mxu0 %v9423
  %v9711 = vpop.f32.mrf.mxu0
  %v9712 = vadd.f32 0.0, %v9711
  %v9713 = vpop.f32.mrf.mxu0
  %v9714 = vadd.f32 0.0, %v9713
  %9715 = vmatmul.bf16.gmra.mxu0 %v9426
  %v9716 = vpop.f32.mrf.mxu0
  %v9717 = vadd.f32 0.0, %v9716
  %v9718 = vpop.f32.mrf.mxu0
  %v9719 = vadd.f32 0.0, %v9718
  %9720 = vdwg.mxu0
  %v9721 = vadd.f32 %v9590, %v9707
  %v9722 = vadd.f32 %v9591, %v9709
  %v9723 = vadd.f32 %v9592, %v9712
  %v9724 = vadd.f32 %v9593, %v9714
  %v9725 = vadd.f32 %v9594, %v9717
  %v9726 = vadd.f32 %v9595, %v9719
  %v9733 = vunpack.c.l.b16 %v9142
  %v9734 = vunpack.c.l.b16 %v9143
  %v9735 = vunpack.c.l.b16 %v9144
  %v9736 = vunpack.c.l.b16 %v9145
  %v9737 = vunpack.c.l.b16 %v9146
  %v9738 = vunpack.c.l.b16 %v9147
  %v9739 = vpack.c.b16 %v9734, %v9733
  %v9740 = vpack.c.b16 %v9736, %v9735
  %v9741 = vpack.c.b16 %v9738, %v9737
  %v9743 = vsel %vm1717, %v9739, 0
  %v9746 = vsel %vm1717, %v9740, 0
  %v9749 = vsel %vm1717, %v9741, 0
  %9751 = vmatpush.bf16.msra.mxu0 0
  %9752 = vmatpush.bf16.msra.mxu0 0
  %9753 = vmatpush.bf16.msra.mxu0 0
  %9754 = vmatpush.bf16.msra.mxu0 0
  %9755 = vmatpush.bf16.msra.mxu0 %v9662
  %9756 = vmatpush.bf16.msra.mxu0 %v9661
  %9757 = vmatpush.bf16.msra.mxu0 %v9660
  %9758 = vmatpush.bf16.msra.mxu0 %v9659
  %9759 = vmatmul.bf16.gmra.mxu0 %v9743
  %v9760 = vpop.f32.mrf.mxu0
  %v9761 = vadd.f32 0.0, %v9760
  %v9762 = vpop.f32.mrf.mxu0
  %v9763 = vadd.f32 0.0, %v9762
  %9764 = vmatmul.bf16.gmra.mxu0 %v9746
  %v9765 = vpop.f32.mrf.mxu0
  %v9766 = vadd.f32 0.0, %v9765
  %v9767 = vpop.f32.mrf.mxu0
  %v9768 = vadd.f32 0.0, %v9767
  %9769 = vmatmul.bf16.gmra.mxu0 %v9749
  %v9770 = vpop.f32.mrf.mxu0
  %v9771 = vadd.f32 0.0, %v9770
  %v9772 = vpop.f32.mrf.mxu0
  %v9773 = vadd.f32 0.0, %v9772
  %9774 = vdwg.mxu0
  %v9775 = vadd.f32 %v9628, %v9761
  %v9776 = vadd.f32 %v9629, %v9763
  %v9777 = vadd.f32 %v9630, %v9766
  %v9778 = vadd.f32 %v9631, %v9768
  %v9779 = vadd.f32 %v9632, %v9771
  %v9780 = vadd.f32 %v9633, %v9773
  %s9781 = scalar_lea.vmem %s5, 128
  %v9782 = vld [vmem:[%s9781] sm:$0xf]
  %v9783 = vld [vmem:[%s9781 + $0x4] sm:$0xf]
  %v9784 = vld [vmem:[%s9781 + $0x8] sm:$0xf]
  %v9785 = vld [vmem:[%s9781 + $0xc] sm:$0xf]
  %v9786 = vld [vmem:[%s9781 + $0x10] sm:$0xf]
  %v9787 = vld [vmem:[%s9781 + $0x14] sm:$0xf]
  %v9788 = vld [vmem:[%s9781 + $0x18] sm:$0xf]
  %v9789 = vld [vmem:[%s9781 + $0x1c] sm:$0xf]
  %v9798 = vunpack.c.l.b16 %v9782
  %v9799 = vunpack.c.l.b16 %v9783
  %v9800 = vunpack.c.l.b16 %v9784
  %v9801 = vunpack.c.l.b16 %v9785
  %v9802 = vunpack.c.l.b16 %v9786
  %v9803 = vunpack.c.l.b16 %v9787
  %v9804 = vunpack.c.l.b16 %v9788
  %v9805 = vunpack.c.l.b16 %v9789
  %v9806 = vpack.c.b16 %v9799, %v9798
  %v9807 = vpack.c.b16 %v9801, %v9800
  %v9808 = vpack.c.b16 %v9803, %v9802
  %v9809 = vpack.c.b16 %v9805, %v9804
  %9814 = vmatpush.bf16.msra.mxu0 0
  %9815 = vmatpush.bf16.msra.mxu0 0
  %9816 = vmatpush.bf16.msra.mxu0 0
  %9817 = vmatpush.bf16.msra.mxu0 0
  %9818 = vmatpush.bf16.msra.mxu0 %v9809
  %9819 = vmatpush.bf16.msra.mxu0 %v9808
  %9820 = vmatpush.bf16.msra.mxu0 %v9807
  %9821 = vmatpush.bf16.msra.mxu0 %v9806
  %9822 = vmatmul.bf16.gmra.mxu0 %v9343
  %v9823 = vpop.f32.mrf.mxu0
  %v9824 = vadd.f32 0.0, %v9823
  %v9825 = vpop.f32.mrf.mxu0
  %v9826 = vadd.f32 0.0, %v9825
  %9827 = vmatmul.bf16.gmra.mxu0 %v9346
  %v9828 = vpop.f32.mrf.mxu0
  %v9829 = vadd.f32 0.0, %v9828
  %v9830 = vpop.f32.mrf.mxu0
  %v9831 = vadd.f32 0.0, %v9830
  %9832 = vmatmul.bf16.gmra.mxu0 %v9349
  %v9833 = vpop.f32.mrf.mxu0
  %v9834 = vadd.f32 0.0, %v9833
  %v9835 = vpop.f32.mrf.mxu0
  %v9836 = vadd.f32 0.0, %v9835
  %9837 = vdwg.mxu0
  %v9838 = vadd.f32 %v9691, %v9824
  %v9839 = vadd.f32 %v9692, %v9826
  %v9840 = vadd.f32 %v9693, %v9829
  %v9841 = vadd.f32 %v9694, %v9831
  %v9842 = vadd.f32 %v9695, %v9834
  %v9843 = vadd.f32 %v9696, %v9836
  %9844 = vmatpush.bf16.msra.mxu0 0
  %9845 = vmatpush.bf16.msra.mxu0 0
  %9846 = vmatpush.bf16.msra.mxu0 0
  %9847 = vmatpush.bf16.msra.mxu0 0
  %9848 = vmatpush.bf16.msra.mxu0 %v9809
  %9849 = vmatpush.bf16.msra.mxu0 %v9808
  %9850 = vmatpush.bf16.msra.mxu0 %v9807
  %9851 = vmatpush.bf16.msra.mxu0 %v9806
  %9852 = vmatmul.bf16.gmra.mxu0 %v9423
  %v9853 = vpop.f32.mrf.mxu0
  %v9854 = vadd.f32 0.0, %v9853
  %v9855 = vpop.f32.mrf.mxu0
  %v9856 = vadd.f32 0.0, %v9855
  %9857 = vmatmul.bf16.gmra.mxu0 %v9426
  %v9858 = vpop.f32.mrf.mxu0
  %v9859 = vadd.f32 0.0, %v9858
  %v9860 = vpop.f32.mrf.mxu0
  %v9861 = vadd.f32 0.0, %v9860
  %9862 = vmatmul.bf16.gmra.mxu0 %v9429
  %v9863 = vpop.f32.mrf.mxu0
  %v9864 = vadd.f32 0.0, %v9863
  %v9865 = vpop.f32.mrf.mxu0
  %v9866 = vadd.f32 0.0, %v9865
  %9867 = vdwg.mxu0
  %v9868 = vadd.f32 %v9721, %v9854
  %v9869 = vadd.f32 %v9722, %v9856
  %v9870 = vadd.f32 %v9723, %v9859
  %v9871 = vadd.f32 %v9724, %v9861
  %v9872 = vadd.f32 %v9725, %v9864
  %v9873 = vadd.f32 %v9726, %v9866
  %v9876 = vunpack.c.l.b16 %v9148
  %v9877 = vunpack.c.l.b16 %v9149
  %v9878 = vpack.c.b16 %v9877, %v9876
  %v9880 = vsel %vm1717, %v9878, 0
  %9882 = vmatpush.bf16.msra.mxu0 0
  %9883 = vmatpush.bf16.msra.mxu0 0
  %9884 = vmatpush.bf16.msra.mxu0 0
  %9885 = vmatpush.bf16.msra.mxu0 0
  %9886 = vmatpush.bf16.msra.mxu0 %v9809
  %9887 = vmatpush.bf16.msra.mxu0 %v9808
  %9888 = vmatpush.bf16.msra.mxu0 %v9807
  %9889 = vmatpush.bf16.msra.mxu0 %v9806
  %9890 = vmatmul.bf16.gmra.mxu0 %v9746
  %v9891 = vpop.f32.mrf.mxu0
  %v9892 = vadd.f32 0.0, %v9891
  %v9893 = vpop.f32.mrf.mxu0
  %v9894 = vadd.f32 0.0, %v9893
  %9895 = vmatmul.bf16.gmra.mxu0 %v9749
  %v9896 = vpop.f32.mrf.mxu0
  %v9897 = vadd.f32 0.0, %v9896
  %v9898 = vpop.f32.mrf.mxu0
  %v9899 = vadd.f32 0.0, %v9898
  %9900 = vmatmul.bf16.gmra.mxu0 %v9880
  %v9901 = vpop.f32.mrf.mxu0
  %v9902 = vadd.f32 0.0, %v9901
  %v9903 = vpop.f32.mrf.mxu0
  %v9904 = vadd.f32 0.0, %v9903
  %9905 = vdwg.mxu0
  %v9906 = vadd.f32 %v9775, %v9892
  %v9907 = vadd.f32 %v9776, %v9894
  %v9908 = vadd.f32 %v9777, %v9897
  %v9909 = vadd.f32 %v9778, %v9899
  %v9910 = vadd.f32 %v9779, %v9902
  %v9911 = vadd.f32 %v9780, %v9904
  %s9912 = scalar_lea.vmem %s5, 160
  %v9913 = vld [vmem:[%s9912] sm:$0xf]
  %v9914 = vld [vmem:[%s9912 + $0x4] sm:$0xf]
  %v9915 = vld [vmem:[%s9912 + $0x8] sm:$0xf]
  %v9916 = vld [vmem:[%s9912 + $0xc] sm:$0xf]
  %v9917 = vld [vmem:[%s9912 + $0x10] sm:$0xf]
  %v9918 = vld [vmem:[%s9912 + $0x14] sm:$0xf]
  %v9919 = vld [vmem:[%s9912 + $0x18] sm:$0xf]
  %v9920 = vld [vmem:[%s9912 + $0x1c] sm:$0xf]
  %v9929 = vunpack.c.l.b16 %v9913
  %v9930 = vunpack.c.l.b16 %v9914
  %v9931 = vunpack.c.l.b16 %v9915
  %v9932 = vunpack.c.l.b16 %v9916
  %v9933 = vunpack.c.l.b16 %v9917
  %v9934 = vunpack.c.l.b16 %v9918
  %v9935 = vunpack.c.l.b16 %v9919
  %v9936 = vunpack.c.l.b16 %v9920
  %v9937 = vpack.c.b16 %v9930, %v9929
  %v9938 = vpack.c.b16 %v9932, %v9931
  %v9939 = vpack.c.b16 %v9934, %v9933
  %v9940 = vpack.c.b16 %v9936, %v9935
  %9945 = vmatpush.bf16.msra.mxu0 0
  %9946 = vmatpush.bf16.msra.mxu0 0
  %9947 = vmatpush.bf16.msra.mxu0 0
  %9948 = vmatpush.bf16.msra.mxu0 0
  %9949 = vmatpush.bf16.msra.mxu0 %v9940
  %9950 = vmatpush.bf16.msra.mxu0 %v9939
  %9951 = vmatpush.bf16.msra.mxu0 %v9938
  %9952 = vmatpush.bf16.msra.mxu0 %v9937
  %9953 = vmatmul.bf16.gmra.mxu0 %v9346
  %v9954 = vpop.f32.mrf.mxu0
  %v9955 = vadd.f32 0.0, %v9954
  %v9956 = vpop.f32.mrf.mxu0
  %v9957 = vadd.f32 0.0, %v9956
  %9958 = vmatmul.bf16.gmra.mxu0 %v9349
  %v9959 = vpop.f32.mrf.mxu0
  %v9960 = vadd.f32 0.0, %v9959
  %v9961 = vpop.f32.mrf.mxu0
  %v9962 = vadd.f32 0.0, %v9961
  %9963 = vmatmul.bf16.gmra.mxu0 %v9564
  %v9964 = vpop.f32.mrf.mxu0
  %v9965 = vadd.f32 0.0, %v9964
  %v9966 = vpop.f32.mrf.mxu0
  %v9967 = vadd.f32 0.0, %v9966
  %9968 = vdwg.mxu0
  %v9969 = vadd.f32 %v9838, %v9955
  %v9970 = vadd.f32 %v9839, %v9957
  %v9971 = vadd.f32 %v9840, %v9960
  %v9972 = vadd.f32 %v9841, %v9962
  %v9973 = vadd.f32 %v9842, %v9965
  %v9974 = vadd.f32 %v9843, %v9967
  %9975 = vmatpush.bf16.msra.mxu0 0
  %9976 = vmatpush.bf16.msra.mxu0 0
  %9977 = vmatpush.bf16.msra.mxu0 0
  %9978 = vmatpush.bf16.msra.mxu0 0
  %9979 = vmatpush.bf16.msra.mxu0 %v9940
  %9980 = vmatpush.bf16.msra.mxu0 %v9939
  %9981 = vmatpush.bf16.msra.mxu0 %v9938
  %9982 = vmatpush.bf16.msra.mxu0 %v9937
  %9983 = vmatmul.bf16.gmra.mxu0 %v9426
  %v9984 = vpop.f32.mrf.mxu0
  %v9985 = vadd.f32 0.0, %v9984
  %v9986 = vpop.f32.mrf.mxu0
  %v9987 = vadd.f32 0.0, %v9986
  %9988 = vmatmul.bf16.gmra.mxu0 %v9429
  %v9989 = vpop.f32.mrf.mxu0
  %v9990 = vadd.f32 0.0, %v9989
  %v9991 = vpop.f32.mrf.mxu0
  %v9992 = vadd.f32 0.0, %v9991
  %9993 = vmatmul.bf16.gmra.mxu0 %v9602
  %v9994 = vpop.f32.mrf.mxu0
  %v9995 = vadd.f32 0.0, %v9994
  %v9996 = vpop.f32.mrf.mxu0
  %v9997 = vadd.f32 0.0, %v9996
  %9998 = vdwg.mxu0
  %v9999 = vadd.f32 %v9868, %v9985
  %v10000 = vadd.f32 %v9869, %v9987
  %v10001 = vadd.f32 %v9870, %v9990
  %v10002 = vadd.f32 %v9871, %v9992
  %v10003 = vadd.f32 %v9872, %v9995
  %v10004 = vadd.f32 %v9873, %v9997
  %v10007 = vunpack.c.l.b16 %v9150
  %v10008 = vunpack.c.l.b16 %v9151
  %v10009 = vpack.c.b16 %v10008, %v10007
  %v10011 = vsel %vm1717, %v10009, 0
  %10013 = vmatpush.bf16.msra.mxu0 0
  %10014 = vmatpush.bf16.msra.mxu0 0
  %10015 = vmatpush.bf16.msra.mxu0 0
  %10016 = vmatpush.bf16.msra.mxu0 0
  %10017 = vmatpush.bf16.msra.mxu0 %v9940
  %10018 = vmatpush.bf16.msra.mxu0 %v9939
  %10019 = vmatpush.bf16.msra.mxu0 %v9938
  %10020 = vmatpush.bf16.msra.mxu0 %v9937
  %10021 = vmatmul.bf16.gmra.mxu0 %v9749
  %v10022 = vpop.f32.mrf.mxu0
  %v10023 = vadd.f32 0.0, %v10022
  %v10024 = vpop.f32.mrf.mxu0
  %v10025 = vadd.f32 0.0, %v10024
  %10026 = vmatmul.bf16.gmra.mxu0 %v9880
  %v10027 = vpop.f32.mrf.mxu0
  %v10028 = vadd.f32 0.0, %v10027
  %v10029 = vpop.f32.mrf.mxu0
  %v10030 = vadd.f32 0.0, %v10029
  %10031 = vmatmul.bf16.gmra.mxu0 %v10011
  %v10032 = vpop.f32.mrf.mxu0
  %v10033 = vadd.f32 0.0, %v10032
  %v10034 = vpop.f32.mrf.mxu0
  %v10035 = vadd.f32 0.0, %v10034
  %10036 = vdwg.mxu0
  %v10037 = vadd.f32 %v9906, %v10023
  %v10038 = vadd.f32 %v9907, %v10025
  %v10039 = vadd.f32 %v9908, %v10028
  %v10040 = vadd.f32 %v9909, %v10030
  %v10041 = vadd.f32 %v9910, %v10033
  %v10042 = vadd.f32 %v9911, %v10035
  %s10043 = scalar_lea.vmem %s5, 192
  %v10044 = vld [vmem:[%s10043] sm:$0xf]
  %v10045 = vld [vmem:[%s10043 + $0x4] sm:$0xf]
  %v10046 = vld [vmem:[%s10043 + $0x8] sm:$0xf]
  %v10047 = vld [vmem:[%s10043 + $0xc] sm:$0xf]
  %v10048 = vld [vmem:[%s10043 + $0x10] sm:$0xf]
  %v10049 = vld [vmem:[%s10043 + $0x14] sm:$0xf]
  %v10050 = vld [vmem:[%s10043 + $0x18] sm:$0xf]
  %v10051 = vld [vmem:[%s10043 + $0x1c] sm:$0xf]
  %v10060 = vunpack.c.l.b16 %v10044
  %v10061 = vunpack.c.l.b16 %v10045
  %v10062 = vunpack.c.l.b16 %v10046
  %v10063 = vunpack.c.l.b16 %v10047
  %v10064 = vunpack.c.l.b16 %v10048
  %v10065 = vunpack.c.l.b16 %v10049
  %v10066 = vunpack.c.l.b16 %v10050
  %v10067 = vunpack.c.l.b16 %v10051
  %v10068 = vpack.c.b16 %v10061, %v10060
  %v10069 = vpack.c.b16 %v10063, %v10062
  %v10070 = vpack.c.b16 %v10065, %v10064
  %v10071 = vpack.c.b16 %v10067, %v10066
  %10076 = vmatpush.bf16.msra.mxu0 0
  %10077 = vmatpush.bf16.msra.mxu0 0
  %10078 = vmatpush.bf16.msra.mxu0 0
  %10079 = vmatpush.bf16.msra.mxu0 0
  %10080 = vmatpush.bf16.msra.mxu0 %v10071
  %10081 = vmatpush.bf16.msra.mxu0 %v10070
  %10082 = vmatpush.bf16.msra.mxu0 %v10069
  %10083 = vmatpush.bf16.msra.mxu0 %v10068
  %10084 = vmatmul.bf16.gmra.mxu0 %v9461
  %v10085 = vpop.f32.mrf.mxu0
  %v10086 = vadd.f32 0.0, %v10085
  %v10087 = vpop.f32.mrf.mxu0
  %v10088 = vadd.f32 0.0, %v10087
  %10089 = vmatmul.bf16.gmra.mxu0 %v9423
  %v10090 = vpop.f32.mrf.mxu0
  %v10091 = vadd.f32 0.0, %v10090
  %v10092 = vpop.f32.mrf.mxu0
  %v10093 = vadd.f32 0.0, %v10092
  %10094 = vmatmul.bf16.gmra.mxu0 %v9426
  %v10095 = vpop.f32.mrf.mxu0
  %v10096 = vadd.f32 0.0, %v10095
  %v10097 = vpop.f32.mrf.mxu0
  %v10098 = vadd.f32 0.0, %v10097
  %10099 = vdwg.mxu0
  %v10100 = vadd.f32 %v9969, %v10086
  %v10101 = vadd.f32 %v9970, %v10088
  %v10102 = vadd.f32 %v9971, %v10091
  %v10103 = vadd.f32 %v9972, %v10093
  %v10104 = vadd.f32 %v9973, %v10096
  %v10105 = vadd.f32 %v9974, %v10098
  %10106 = vmatpush.bf16.msra.mxu0 0
  %10107 = vmatpush.bf16.msra.mxu0 0
  %10108 = vmatpush.bf16.msra.mxu0 0
  %10109 = vmatpush.bf16.msra.mxu0 0
  %10110 = vmatpush.bf16.msra.mxu0 %v10071
  %10111 = vmatpush.bf16.msra.mxu0 %v10070
  %10112 = vmatpush.bf16.msra.mxu0 %v10069
  %10113 = vmatpush.bf16.msra.mxu0 %v10068
  %10114 = vmatmul.bf16.gmra.mxu0 %v9743
  %v10115 = vpop.f32.mrf.mxu0
  %v10116 = vadd.f32 0.0, %v10115
  %v10117 = vpop.f32.mrf.mxu0
  %v10118 = vadd.f32 0.0, %v10117
  %10119 = vmatmul.bf16.gmra.mxu0 %v9746
  %v10120 = vpop.f32.mrf.mxu0
  %v10121 = vadd.f32 0.0, %v10120
  %v10122 = vpop.f32.mrf.mxu0
  %v10123 = vadd.f32 0.0, %v10122
  %10124 = vmatmul.bf16.gmra.mxu0 %v9749
  %v10125 = vpop.f32.mrf.mxu0
  %v10126 = vadd.f32 0.0, %v10125
  %v10127 = vpop.f32.mrf.mxu0
  %v10128 = vadd.f32 0.0, %v10127
  %10129 = vdwg.mxu0
  %v10130 = vadd.f32 %v9999, %v10116
  %v10131 = vadd.f32 %v10000, %v10118
  %v10132 = vadd.f32 %v10001, %v10121
  %v10133 = vadd.f32 %v10002, %v10123
  %v10134 = vadd.f32 %v10003, %v10126
  %v10135 = vadd.f32 %v10004, %v10128
  %v10142 = vunpack.c.l.b16 %v9172
  %v10143 = vunpack.c.l.b16 %v9173
  %v10144 = vunpack.c.l.b16 %v9174
  %v10145 = vunpack.c.l.b16 %v9175
  %v10146 = vunpack.c.l.b16 %v9176
  %v10147 = vunpack.c.l.b16 %v9177
  %v10148 = vpack.c.b16 %v10143, %v10142
  %v10149 = vpack.c.b16 %v10145, %v10144
  %v10150 = vpack.c.b16 %v10147, %v10146
  %v10152 = vsel %vm1717, %v10148, 0
  %v10155 = vsel %vm1717, %v10149, 0
  %v10158 = vsel %vm1717, %v10150, 0
  %10160 = vmatpush.bf16.msra.mxu0 0
  %10161 = vmatpush.bf16.msra.mxu0 0
  %10162 = vmatpush.bf16.msra.mxu0 0
  %10163 = vmatpush.bf16.msra.mxu0 0
  %10164 = vmatpush.bf16.msra.mxu0 %v10071
  %10165 = vmatpush.bf16.msra.mxu0 %v10070
  %10166 = vmatpush.bf16.msra.mxu0 %v10069
  %10167 = vmatpush.bf16.msra.mxu0 %v10068
  %10168 = vmatmul.bf16.gmra.mxu0 %v10152
  %v10169 = vpop.f32.mrf.mxu0
  %v10170 = vadd.f32 0.0, %v10169
  %v10171 = vpop.f32.mrf.mxu0
  %v10172 = vadd.f32 0.0, %v10171
  %10173 = vmatmul.bf16.gmra.mxu0 %v10155
  %v10174 = vpop.f32.mrf.mxu0
  %v10175 = vadd.f32 0.0, %v10174
  %v10176 = vpop.f32.mrf.mxu0
  %v10177 = vadd.f32 0.0, %v10176
  %10178 = vmatmul.bf16.gmra.mxu0 %v10158
  %v10179 = vpop.f32.mrf.mxu0
  %v10180 = vadd.f32 0.0, %v10179
  %v10181 = vpop.f32.mrf.mxu0
  %v10182 = vadd.f32 0.0, %v10181
  %10183 = vdwg.mxu0
  %v10184 = vadd.f32 %v10037, %v10170
  %v10185 = vadd.f32 %v10038, %v10172
  %v10186 = vadd.f32 %v10039, %v10175
  %v10187 = vadd.f32 %v10040, %v10177
  %v10188 = vadd.f32 %v10041, %v10180
  %v10189 = vadd.f32 %v10042, %v10182
  %s10190 = scalar_lea.vmem %s5, 224
  %v10191 = vld [vmem:[%s10190] sm:$0xf]
  %v10192 = vld [vmem:[%s10190 + $0x4] sm:$0xf]
  %v10193 = vld [vmem:[%s10190 + $0x8] sm:$0xf]
  %v10194 = vld [vmem:[%s10190 + $0xc] sm:$0xf]
  %v10195 = vld [vmem:[%s10190 + $0x10] sm:$0xf]
  %v10196 = vld [vmem:[%s10190 + $0x14] sm:$0xf]
  %v10197 = vld [vmem:[%s10190 + $0x18] sm:$0xf]
  %v10198 = vld [vmem:[%s10190 + $0x1c] sm:$0xf]
  %v10207 = vunpack.c.l.b16 %v10191
  %v10208 = vunpack.c.l.b16 %v10192
  %v10209 = vunpack.c.l.b16 %v10193
  %v10210 = vunpack.c.l.b16 %v10194
  %v10211 = vunpack.c.l.b16 %v10195
  %v10212 = vunpack.c.l.b16 %v10196
  %v10213 = vunpack.c.l.b16 %v10197
  %v10214 = vunpack.c.l.b16 %v10198
  %v10215 = vpack.c.b16 %v10208, %v10207
  %v10216 = vpack.c.b16 %v10210, %v10209
  %v10217 = vpack.c.b16 %v10212, %v10211
  %v10218 = vpack.c.b16 %v10214, %v10213
  %10223 = vmatpush.bf16.msra.mxu0 0
  %10224 = vmatpush.bf16.msra.mxu0 0
  %10225 = vmatpush.bf16.msra.mxu0 0
  %10226 = vmatpush.bf16.msra.mxu0 0
  %10227 = vmatpush.bf16.msra.mxu0 %v10218
  %10228 = vmatpush.bf16.msra.mxu0 %v10217
  %10229 = vmatpush.bf16.msra.mxu0 %v10216
  %10230 = vmatpush.bf16.msra.mxu0 %v10215
  %10231 = vmatmul.bf16.gmra.mxu0 %v9423
  %v10232 = vpop.f32.mrf.mxu0
  %v10233 = vadd.f32 0.0, %v10232
  %v10234 = vpop.f32.mrf.mxu0
  %v10235 = vadd.f32 0.0, %v10234
  %10236 = vmatmul.bf16.gmra.mxu0 %v9426
  %v10237 = vpop.f32.mrf.mxu0
  %v10238 = vadd.f32 0.0, %v10237
  %v10239 = vpop.f32.mrf.mxu0
  %v10240 = vadd.f32 0.0, %v10239
  %10241 = vmatmul.bf16.gmra.mxu0 %v9429
  %v10242 = vpop.f32.mrf.mxu0
  %v10243 = vadd.f32 0.0, %v10242
  %v10244 = vpop.f32.mrf.mxu0
  %v10245 = vadd.f32 0.0, %v10244
  %10246 = vdwg.mxu0
  %v10247 = vadd.f32 %v10100, %v10233
  %v10248 = vadd.f32 %v10101, %v10235
  %v10249 = vadd.f32 %v10102, %v10238
  %v10250 = vadd.f32 %v10103, %v10240
  %v10251 = vadd.f32 %v10104, %v10243
  %v10252 = vadd.f32 %v10105, %v10245
  %10253 = vmatpush.bf16.msra.mxu0 0
  %10254 = vmatpush.bf16.msra.mxu0 0
  %10255 = vmatpush.bf16.msra.mxu0 0
  %10256 = vmatpush.bf16.msra.mxu0 0
  %10257 = vmatpush.bf16.msra.mxu0 %v10218
  %10258 = vmatpush.bf16.msra.mxu0 %v10217
  %10259 = vmatpush.bf16.msra.mxu0 %v10216
  %10260 = vmatpush.bf16.msra.mxu0 %v10215
  %10261 = vmatmul.bf16.gmra.mxu0 %v9746
  %v10262 = vpop.f32.mrf.mxu0
  %v10263 = vadd.f32 0.0, %v10262
  %v10264 = vpop.f32.mrf.mxu0
  %v10265 = vadd.f32 0.0, %v10264
  %10266 = vmatmul.bf16.gmra.mxu0 %v9749
  %v10267 = vpop.f32.mrf.mxu0
  %v10268 = vadd.f32 0.0, %v10267
  %v10269 = vpop.f32.mrf.mxu0
  %v10270 = vadd.f32 0.0, %v10269
  %10271 = vmatmul.bf16.gmra.mxu0 %v9880
  %v10272 = vpop.f32.mrf.mxu0
  %v10273 = vadd.f32 0.0, %v10272
  %v10274 = vpop.f32.mrf.mxu0
  %v10275 = vadd.f32 0.0, %v10274
  %10276 = vdwg.mxu0
  %v10277 = vadd.f32 %v10130, %v10263
  %v10278 = vadd.f32 %v10131, %v10265
  %v10279 = vadd.f32 %v10132, %v10268
  %v10280 = vadd.f32 %v10133, %v10270
  %v10281 = vadd.f32 %v10134, %v10273
  %v10282 = vadd.f32 %v10135, %v10275
  %v10285 = vunpack.c.l.b16 %v9178
  %v10286 = vunpack.c.l.b16 %v9179
  %v10287 = vpack.c.b16 %v10286, %v10285
  %v10289 = vsel %vm1717, %v10287, 0
  %10291 = vmatpush.bf16.msra.mxu0 0
  %10292 = vmatpush.bf16.msra.mxu0 0
  %10293 = vmatpush.bf16.msra.mxu0 0
  %10294 = vmatpush.bf16.msra.mxu0 0
  %10295 = vmatpush.bf16.msra.mxu0 %v10218
  %10296 = vmatpush.bf16.msra.mxu0 %v10217
  %10297 = vmatpush.bf16.msra.mxu0 %v10216
  %10298 = vmatpush.bf16.msra.mxu0 %v10215
  %10299 = vmatmul.bf16.gmra.mxu0 %v10155
  %v10300 = vpop.f32.mrf.mxu0
  %v10301 = vadd.f32 0.0, %v10300
  %v10302 = vpop.f32.mrf.mxu0
  %v10303 = vadd.f32 0.0, %v10302
  %10304 = vmatmul.bf16.gmra.mxu0 %v10158
  %v10305 = vpop.f32.mrf.mxu0
  %v10306 = vadd.f32 0.0, %v10305
  %v10307 = vpop.f32.mrf.mxu0
  %v10308 = vadd.f32 0.0, %v10307
  %10309 = vmatmul.bf16.gmra.mxu0 %v10289
  %v10310 = vpop.f32.mrf.mxu0
  %v10311 = vadd.f32 0.0, %v10310
  %v10312 = vpop.f32.mrf.mxu0
  %v10313 = vadd.f32 0.0, %v10312
  %10314 = vdwg.mxu0
  %v10315 = vadd.f32 %v10184, %v10301
  %v10316 = vadd.f32 %v10185, %v10303
  %v10317 = vadd.f32 %v10186, %v10306
  %v10318 = vadd.f32 %v10187, %v10308
  %v10319 = vadd.f32 %v10188, %v10311
  %v10320 = vadd.f32 %v10189, %v10313
  %s10321 = scalar_lea.vmem %s5, 256
  %v10322 = vld [vmem:[%s10321] sm:$0xf]
  %v10323 = vld [vmem:[%s10321 + $0x4] sm:$0xf]
  %v10324 = vld [vmem:[%s10321 + $0x8] sm:$0xf]
  %v10325 = vld [vmem:[%s10321 + $0xc] sm:$0xf]
  %v10326 = vld [vmem:[%s10321 + $0x10] sm:$0xf]
  %v10327 = vld [vmem:[%s10321 + $0x14] sm:$0xf]
  %v10328 = vld [vmem:[%s10321 + $0x18] sm:$0xf]
  %v10329 = vld [vmem:[%s10321 + $0x1c] sm:$0xf]
  %v10338 = vunpack.c.l.b16 %v10322
  %v10339 = vunpack.c.l.b16 %v10323
  %v10340 = vunpack.c.l.b16 %v10324
  %v10341 = vunpack.c.l.b16 %v10325
  %v10342 = vunpack.c.l.b16 %v10326
  %v10343 = vunpack.c.l.b16 %v10327
  %v10344 = vunpack.c.l.b16 %v10328
  %v10345 = vunpack.c.l.b16 %v10329
  %v10346 = vpack.c.b16 %v10339, %v10338
  %v10347 = vpack.c.b16 %v10341, %v10340
  %v10348 = vpack.c.b16 %v10343, %v10342
  %v10349 = vpack.c.b16 %v10345, %v10344
  %10354 = vmatpush.bf16.msra.mxu0 0
  %10355 = vmatpush.bf16.msra.mxu0 0
  %10356 = vmatpush.bf16.msra.mxu0 0
  %10357 = vmatpush.bf16.msra.mxu0 0
  %10358 = vmatpush.bf16.msra.mxu0 %v10349
  %10359 = vmatpush.bf16.msra.mxu0 %v10348
  %10360 = vmatpush.bf16.msra.mxu0 %v10347
  %10361 = vmatpush.bf16.msra.mxu0 %v10346
  %10362 = vmatmul.bf16.gmra.mxu0 %v9426
  %v10363 = vpop.f32.mrf.mxu0
  %v10364 = vadd.f32 0.0, %v10363
  %v10365 = vpop.f32.mrf.mxu0
  %v10366 = vadd.f32 0.0, %v10365
  %10367 = vmatmul.bf16.gmra.mxu0 %v9429
  %v10368 = vpop.f32.mrf.mxu0
  %v10369 = vadd.f32 0.0, %v10368
  %v10370 = vpop.f32.mrf.mxu0
  %v10371 = vadd.f32 0.0, %v10370
  %10372 = vmatmul.bf16.gmra.mxu0 %v9602
  %v10373 = vpop.f32.mrf.mxu0
  %v10374 = vadd.f32 0.0, %v10373
  %v10375 = vpop.f32.mrf.mxu0
  %v10376 = vadd.f32 0.0, %v10375
  %10377 = vdwg.mxu0
  %v10378 = vadd.f32 %v10247, %v10364
  %v10379 = vadd.f32 %v10248, %v10366
  %v10380 = vadd.f32 %v10249, %v10369
  %v10381 = vadd.f32 %v10250, %v10371
  %v10382 = vadd.f32 %v10251, %v10374
  %v10383 = vadd.f32 %v10252, %v10376
  %10384 = vmatpush.bf16.msra.mxu0 0
  %10385 = vmatpush.bf16.msra.mxu0 0
  %10386 = vmatpush.bf16.msra.mxu0 0
  %10387 = vmatpush.bf16.msra.mxu0 0
  %10388 = vmatpush.bf16.msra.mxu0 %v10349
  %10389 = vmatpush.bf16.msra.mxu0 %v10348
  %10390 = vmatpush.bf16.msra.mxu0 %v10347
  %10391 = vmatpush.bf16.msra.mxu0 %v10346
  %10392 = vmatmul.bf16.gmra.mxu0 %v9749
  %v10393 = vpop.f32.mrf.mxu0
  %v10394 = vadd.f32 0.0, %v10393
  %v10395 = vpop.f32.mrf.mxu0
  %v10396 = vadd.f32 0.0, %v10395
  %10397 = vmatmul.bf16.gmra.mxu0 %v9880
  %v10398 = vpop.f32.mrf.mxu0
  %v10399 = vadd.f32 0.0, %v10398
  %v10400 = vpop.f32.mrf.mxu0
  %v10401 = vadd.f32 0.0, %v10400
  %10402 = vmatmul.bf16.gmra.mxu0 %v10011
  %v10403 = vpop.f32.mrf.mxu0
  %v10404 = vadd.f32 0.0, %v10403
  %v10405 = vpop.f32.mrf.mxu0
  %v10406 = vadd.f32 0.0, %v10405
  %10407 = vdwg.mxu0
  %v10408 = vadd.f32 %v10277, %v10394
  %v10409 = vadd.f32 %v10278, %v10396
  %v10410 = vadd.f32 %v10279, %v10399
  %v10411 = vadd.f32 %v10280, %v10401
  %v10412 = vadd.f32 %v10281, %v10404
  %v10413 = vadd.f32 %v10282, %v10406
  %v10416 = vunpack.c.l.b16 %v9180
  %v10417 = vunpack.c.l.b16 %v9181
  %v10418 = vpack.c.b16 %v10417, %v10416
  %v10420 = vsel %vm1717, %v10418, 0
  %10422 = vmatpush.bf16.msra.mxu0 0
  %10423 = vmatpush.bf16.msra.mxu0 0
  %10424 = vmatpush.bf16.msra.mxu0 0
  %10425 = vmatpush.bf16.msra.mxu0 0
  %10426 = vmatpush.bf16.msra.mxu0 %v10349
  %10427 = vmatpush.bf16.msra.mxu0 %v10348
  %10428 = vmatpush.bf16.msra.mxu0 %v10347
  %10429 = vmatpush.bf16.msra.mxu0 %v10346
  %10430 = vmatmul.bf16.gmra.mxu0 %v10158
  %v10431 = vpop.f32.mrf.mxu0
  %v10432 = vadd.f32 0.0, %v10431
  %v10433 = vpop.f32.mrf.mxu0
  %v10434 = vadd.f32 0.0, %v10433
  %10435 = vmatmul.bf16.gmra.mxu0 %v10289
  %v10436 = vpop.f32.mrf.mxu0
  %v10437 = vadd.f32 0.0, %v10436
  %v10438 = vpop.f32.mrf.mxu0
  %v10439 = vadd.f32 0.0, %v10438
  %10440 = vmatmul.bf16.gmra.mxu0 %v10420
  %v10441 = vpop.f32.mrf.mxu0
  %v10442 = vadd.f32 0.0, %v10441
  %v10443 = vpop.f32.mrf.mxu0
  %v10444 = vadd.f32 0.0, %v10443
  %10445 = vdwg.mxu0
  %v10446 = vadd.f32 %v10315, %v10432
  %v10447 = vadd.f32 %v10316, %v10434
  %v10448 = vadd.f32 %v10317, %v10437
  %v10449 = vadd.f32 %v10318, %v10439
  %v10450 = vadd.f32 %v10319, %v10442
  %v10451 = vadd.f32 %v10320, %v10444
  %v10452 = vld [vmem:[%s6] sm:$0x1]
  %v10454 = vperm.slane %v10452, 0
  %v10456 = vadd.f32 %v10378, %v10454
  %v10457 = vadd.f32 %v10379, %v10454
  %v10458 = vadd.f32 %v10380, %v10454
  %v10459 = vadd.f32 %v10381, %v10454
  %v10460 = vadd.f32 %v10382, %v10454
  %v10461 = vadd.f32 %v10383, %v10454
  %v10462 = vmax.f32 %v10456, 0.0
  %v10463 = vmax.f32 %v10457, 0.0
  %v10464 = vmax.f32 %v10458, 0.0
  %v10465 = vmax.f32 %v10459, 0.0
  %v10466 = vmax.f32 %v10460, 0.0
  %v10467 = vmax.f32 %v10461, 0.0
  %v10468 = vpack.c.bf16 %v10462, %v10462
  %v10469 = vpack.c.bf16 %v10463, %v10463
  %v10470 = vpack.c.bf16 %v10464, %v10464
  %v10471 = vpack.c.bf16 %v10465, %v10465
  %v10472 = vpack.c.bf16 %v10466, %v10466
  %v10473 = vpack.c.bf16 %v10467, %v10467
  %v10474 = vadd.f32 %v10408, %v10454
  %v10475 = vadd.f32 %v10409, %v10454
  %v10476 = vadd.f32 %v10410, %v10454
  %v10477 = vadd.f32 %v10411, %v10454
  %v10478 = vadd.f32 %v10412, %v10454
  %v10479 = vadd.f32 %v10413, %v10454
  %v10480 = vmax.f32 %v10474, 0.0
  %v10481 = vmax.f32 %v10475, 0.0
  %v10482 = vmax.f32 %v10476, 0.0
  %v10483 = vmax.f32 %v10477, 0.0
  %v10484 = vmax.f32 %v10478, 0.0
  %v10485 = vmax.f32 %v10479, 0.0
  %v10486 = vpack.c.bf16 %v10480, %v10480
  %v10487 = vpack.c.bf16 %v10481, %v10481
  %v10488 = vpack.c.bf16 %v10482, %v10482
  %v10489 = vpack.c.bf16 %v10483, %v10483
  %v10490 = vpack.c.bf16 %v10484, %v10484
  %v10491 = vpack.c.bf16 %v10485, %v10485
  %v10492 = vadd.f32 %v10446, %v10454
  %v10493 = vadd.f32 %v10447, %v10454
  %v10494 = vadd.f32 %v10448, %v10454
  %v10495 = vadd.f32 %v10449, %v10454
  %v10496 = vadd.f32 %v10450, %v10454
  %v10497 = vadd.f32 %v10451, %v10454
  %v10498 = vmax.f32 %v10492, 0.0
  %v10499 = vmax.f32 %v10493, 0.0
  %v10500 = vmax.f32 %v10494, 0.0
  %v10501 = vmax.f32 %v10495, 0.0
  %v10502 = vmax.f32 %v10496, 0.0
  %v10503 = vmax.f32 %v10497, 0.0
  %v10504 = vpack.c.bf16 %v10498, %v10498
  %v10505 = vpack.c.bf16 %v10499, %v10499
  %v10506 = vpack.c.bf16 %v10500, %v10500
  %v10507 = vpack.c.bf16 %v10501, %v10501
  %v10508 = vpack.c.bf16 %v10502, %v10502
  %v10509 = vpack.c.bf16 %v10503, %v10503
  %v10510 = vld [vmem:[%s7] sm:$0xf]
  %v10511 = vld [vmem:[%s7 + $0x4] sm:$0xf]
  %v10512 = vld [vmem:[%s7 + $0x8] sm:$0xf]
  %v10513 = vld [vmem:[%s7 + $0xc] sm:$0xf]
  %v10514 = vld [vmem:[%s7 + $0x10] sm:$0xf]
  %v10515 = vld [vmem:[%s7 + $0x14] sm:$0xf]
  %v10516 = vld [vmem:[%s7 + $0x18] sm:$0xf]
  %v10517 = vld [vmem:[%s7 + $0x1c] sm:$0xf]
  %s10518 = scalar_lea.vmem %s7, 32
  %v10519 = vld [vmem:[%s10518] sm:$0xf]
  %v10520 = vld [vmem:[%s10518 + $0x4] sm:$0xf]
  %v10521 = vld [vmem:[%s10518 + $0x8] sm:$0xf]
  %v10522 = vld [vmem:[%s10518 + $0xc] sm:$0xf]
  %v10523 = vld [vmem:[%s10518 + $0x10] sm:$0xf]
  %v10524 = vld [vmem:[%s10518 + $0x14] sm:$0xf]
  %v10525 = vld [vmem:[%s10518 + $0x18] sm:$0xf]
  %v10526 = vld [vmem:[%s10518 + $0x1c] sm:$0xf]
  %v10529 = vunpack.c.l.b16 %v10470
  %v10530 = vunpack.c.l.b16 %v10471
  %v10531 = vpack.c.b16 %v10530, %v10529
  %v10540 = vunpack.c.l.b16 %v10519
  %v10541 = vunpack.c.l.b16 %v10520
  %v10542 = vunpack.c.l.b16 %v10521
  %v10543 = vunpack.c.l.b16 %v10522
  %v10544 = vunpack.c.l.b16 %v10523
  %v10545 = vunpack.c.l.b16 %v10524
  %v10546 = vunpack.c.l.b16 %v10525
  %v10547 = vunpack.c.l.b16 %v10526
  %v10548 = vpack.c.b16 %v10541, %v10540
  %v10549 = vpack.c.b16 %v10543, %v10542
  %v10550 = vpack.c.b16 %v10545, %v10544
  %v10551 = vpack.c.b16 %v10547, %v10546
  %v10557 = vsel %vm1717, %v10531, 0
  %10559 = vmatpush.bf16.msra.mxu0 0
  %10560 = vmatpush.bf16.msra.mxu0 0
  %10561 = vmatpush.bf16.msra.mxu0 0
  %10562 = vmatpush.bf16.msra.mxu0 0
  %10563 = vmatpush.bf16.msra.mxu0 %v10551
  %10564 = vmatpush.bf16.msra.mxu0 %v10550
  %10565 = vmatpush.bf16.msra.mxu0 %v10549
  %10566 = vmatpush.bf16.msra.mxu0 %v10548
  %10567 = vmatmul.bf16.gmra.mxu0 %v10557
  %v10568 = vpop.f32.mrf.mxu0
  %v10569 = vadd.f32 0.0, %v10568
  %v10570 = vpop.f32.mrf.mxu0
  %v10571 = vadd.f32 0.0, %v10570
  %10572 = vdwg.mxu0
  %v10575 = vunpack.c.l.b16 %v10468
  %v10576 = vunpack.c.l.b16 %v10469
  %v10577 = vpack.c.b16 %v10576, %v10575
  %v10586 = vunpack.c.l.b16 %v10510
  %v10587 = vunpack.c.l.b16 %v10511
  %v10588 = vunpack.c.l.b16 %v10512
  %v10589 = vunpack.c.l.b16 %v10513
  %v10590 = vunpack.c.l.b16 %v10514
  %v10591 = vunpack.c.l.b16 %v10515
  %v10592 = vunpack.c.l.b16 %v10516
  %v10593 = vunpack.c.l.b16 %v10517
  %v10594 = vpack.c.b16 %v10587, %v10586
  %v10595 = vpack.c.b16 %v10589, %v10588
  %v10596 = vpack.c.b16 %v10591, %v10590
  %v10597 = vpack.c.b16 %v10593, %v10592
  %v10603 = vsel %vm1717, %v10577, 0
  %10605 = vmatpush.bf16.msra.mxu0 0
  %10606 = vmatpush.bf16.msra.mxu0 0
  %10607 = vmatpush.bf16.msra.mxu0 0
  %10608 = vmatpush.bf16.msra.mxu0 0
  %10609 = vmatpush.bf16.msra.mxu0 %v10597
  %10610 = vmatpush.bf16.msra.mxu0 %v10596
  %10611 = vmatpush.bf16.msra.mxu0 %v10595
  %10612 = vmatpush.bf16.msra.mxu0 %v10594
  %10613 = vmatmul.bf16.gmra.mxu0 %v10603
  %v10614 = vpop.f32.mrf.mxu0
  %v10615 = vadd.f32 %v10569, %v10614
  %v10616 = vpop.f32.mrf.mxu0
  %v10617 = vadd.f32 %v10571, %v10616
  %10618 = vdwg.mxu0
  %s10619 = scalar_lea.vmem %s7, 64
  %v10620 = vld [vmem:[%s10619] sm:$0xf]
  %v10621 = vld [vmem:[%s10619 + $0x4] sm:$0xf]
  %v10622 = vld [vmem:[%s10619 + $0x8] sm:$0xf]
  %v10623 = vld [vmem:[%s10619 + $0xc] sm:$0xf]
  %v10624 = vld [vmem:[%s10619 + $0x10] sm:$0xf]
  %v10625 = vld [vmem:[%s10619 + $0x14] sm:$0xf]
  %v10626 = vld [vmem:[%s10619 + $0x18] sm:$0xf]
  %v10627 = vld [vmem:[%s10619 + $0x1c] sm:$0xf]
  %v10630 = vunpack.c.l.b16 %v10472
  %v10631 = vunpack.c.l.b16 %v10473
  %v10632 = vpack.c.b16 %v10631, %v10630
  %v10641 = vunpack.c.l.b16 %v10620
  %v10642 = vunpack.c.l.b16 %v10621
  %v10643 = vunpack.c.l.b16 %v10622
  %v10644 = vunpack.c.l.b16 %v10623
  %v10645 = vunpack.c.l.b16 %v10624
  %v10646 = vunpack.c.l.b16 %v10625
  %v10647 = vunpack.c.l.b16 %v10626
  %v10648 = vunpack.c.l.b16 %v10627
  %v10649 = vpack.c.b16 %v10642, %v10641
  %v10650 = vpack.c.b16 %v10644, %v10643
  %v10651 = vpack.c.b16 %v10646, %v10645
  %v10652 = vpack.c.b16 %v10648, %v10647
  %v10658 = vsel %vm1717, %v10632, 0
  %10660 = vmatpush.bf16.msra.mxu0 0
  %10661 = vmatpush.bf16.msra.mxu0 0
  %10662 = vmatpush.bf16.msra.mxu0 0
  %10663 = vmatpush.bf16.msra.mxu0 0
  %10664 = vmatpush.bf16.msra.mxu0 %v10652
  %10665 = vmatpush.bf16.msra.mxu0 %v10651
  %10666 = vmatpush.bf16.msra.mxu0 %v10650
  %10667 = vmatpush.bf16.msra.mxu0 %v10649
  %10668 = vmatmul.bf16.gmra.mxu0 %v10658
  %v10669 = vpop.f32.mrf.mxu0
  %v10670 = vadd.f32 0.0, %v10669
  %v10671 = vpop.f32.mrf.mxu0
  %v10672 = vadd.f32 0.0, %v10671
  %10673 = vdwg.mxu0
  %v10674 = vadd.f32 %v10615, %v10670
  %v10675 = vadd.f32 %v10617, %v10672
  %s10676 = scalar_lea.vmem %s7, 96
  %v10677 = vld [vmem:[%s10676] sm:$0xf]
  %v10678 = vld [vmem:[%s10676 + $0x4] sm:$0xf]
  %v10679 = vld [vmem:[%s10676 + $0x8] sm:$0xf]
  %v10680 = vld [vmem:[%s10676 + $0xc] sm:$0xf]
  %v10681 = vld [vmem:[%s10676 + $0x10] sm:$0xf]
  %v10682 = vld [vmem:[%s10676 + $0x14] sm:$0xf]
  %v10683 = vld [vmem:[%s10676 + $0x18] sm:$0xf]
  %v10684 = vld [vmem:[%s10676 + $0x1c] sm:$0xf]
  %v10687 = vunpack.c.l.b16 %v10486
  %v10688 = vunpack.c.l.b16 %v10487
  %v10689 = vpack.c.b16 %v10688, %v10687
  %v10698 = vunpack.c.l.b16 %v10677
  %v10699 = vunpack.c.l.b16 %v10678
  %v10700 = vunpack.c.l.b16 %v10679
  %v10701 = vunpack.c.l.b16 %v10680
  %v10702 = vunpack.c.l.b16 %v10681
  %v10703 = vunpack.c.l.b16 %v10682
  %v10704 = vunpack.c.l.b16 %v10683
  %v10705 = vunpack.c.l.b16 %v10684
  %v10706 = vpack.c.b16 %v10699, %v10698
  %v10707 = vpack.c.b16 %v10701, %v10700
  %v10708 = vpack.c.b16 %v10703, %v10702
  %v10709 = vpack.c.b16 %v10705, %v10704
  %v10715 = vsel %vm1717, %v10689, 0
  %10717 = vmatpush.bf16.msra.mxu0 0
  %10718 = vmatpush.bf16.msra.mxu0 0
  %10719 = vmatpush.bf16.msra.mxu0 0
  %10720 = vmatpush.bf16.msra.mxu0 0
  %10721 = vmatpush.bf16.msra.mxu0 %v10709
  %10722 = vmatpush.bf16.msra.mxu0 %v10708
  %10723 = vmatpush.bf16.msra.mxu0 %v10707
  %10724 = vmatpush.bf16.msra.mxu0 %v10706
  %10725 = vmatmul.bf16.gmra.mxu0 %v10715
  %v10726 = vpop.f32.mrf.mxu0
  %v10727 = vadd.f32 0.0, %v10726
  %v10728 = vpop.f32.mrf.mxu0
  %v10729 = vadd.f32 0.0, %v10728
  %10730 = vdwg.mxu0
  %v10731 = vadd.f32 %v10674, %v10727
  %v10732 = vadd.f32 %v10675, %v10729
  %s10733 = scalar_lea.vmem %s7, 128
  %v10734 = vld [vmem:[%s10733] sm:$0xf]
  %v10735 = vld [vmem:[%s10733 + $0x4] sm:$0xf]
  %v10736 = vld [vmem:[%s10733 + $0x8] sm:$0xf]
  %v10737 = vld [vmem:[%s10733 + $0xc] sm:$0xf]
  %v10738 = vld [vmem:[%s10733 + $0x10] sm:$0xf]
  %v10739 = vld [vmem:[%s10733 + $0x14] sm:$0xf]
  %v10740 = vld [vmem:[%s10733 + $0x18] sm:$0xf]
  %v10741 = vld [vmem:[%s10733 + $0x1c] sm:$0xf]
  %v10744 = vunpack.c.l.b16 %v10488
  %v10745 = vunpack.c.l.b16 %v10489
  %v10746 = vpack.c.b16 %v10745, %v10744
  %v10755 = vunpack.c.l.b16 %v10734
  %v10756 = vunpack.c.l.b16 %v10735
  %v10757 = vunpack.c.l.b16 %v10736
  %v10758 = vunpack.c.l.b16 %v10737
  %v10759 = vunpack.c.l.b16 %v10738
  %v10760 = vunpack.c.l.b16 %v10739
  %v10761 = vunpack.c.l.b16 %v10740
  %v10762 = vunpack.c.l.b16 %v10741
  %v10763 = vpack.c.b16 %v10756, %v10755
  %v10764 = vpack.c.b16 %v10758, %v10757
  %v10765 = vpack.c.b16 %v10760, %v10759
  %v10766 = vpack.c.b16 %v10762, %v10761
  %v10772 = vsel %vm1717, %v10746, 0
  %10774 = vmatpush.bf16.msra.mxu0 0
  %10775 = vmatpush.bf16.msra.mxu0 0
  %10776 = vmatpush.bf16.msra.mxu0 0
  %10777 = vmatpush.bf16.msra.mxu0 0
  %10778 = vmatpush.bf16.msra.mxu0 %v10766
  %10779 = vmatpush.bf16.msra.mxu0 %v10765
  %10780 = vmatpush.bf16.msra.mxu0 %v10764
  %10781 = vmatpush.bf16.msra.mxu0 %v10763
  %10782 = vmatmul.bf16.gmra.mxu0 %v10772
  %v10783 = vpop.f32.mrf.mxu0
  %v10784 = vadd.f32 0.0, %v10783
  %v10785 = vpop.f32.mrf.mxu0
  %v10786 = vadd.f32 0.0, %v10785
  %10787 = vdwg.mxu0
  %v10788 = vadd.f32 %v10731, %v10784
  %v10789 = vadd.f32 %v10732, %v10786
  %s10790 = scalar_lea.vmem %s7, 160
  %v10791 = vld [vmem:[%s10790] sm:$0xf]
  %v10792 = vld [vmem:[%s10790 + $0x4] sm:$0xf]
  %v10793 = vld [vmem:[%s10790 + $0x8] sm:$0xf]
  %v10794 = vld [vmem:[%s10790 + $0xc] sm:$0xf]
  %v10795 = vld [vmem:[%s10790 + $0x10] sm:$0xf]
  %v10796 = vld [vmem:[%s10790 + $0x14] sm:$0xf]
  %v10797 = vld [vmem:[%s10790 + $0x18] sm:$0xf]
  %v10798 = vld [vmem:[%s10790 + $0x1c] sm:$0xf]
  %v10801 = vunpack.c.l.b16 %v10490
  %v10802 = vunpack.c.l.b16 %v10491
  %v10803 = vpack.c.b16 %v10802, %v10801
  %v10812 = vunpack.c.l.b16 %v10791
  %v10813 = vunpack.c.l.b16 %v10792
  %v10814 = vunpack.c.l.b16 %v10793
  %v10815 = vunpack.c.l.b16 %v10794
  %v10816 = vunpack.c.l.b16 %v10795
  %v10817 = vunpack.c.l.b16 %v10796
  %v10818 = vunpack.c.l.b16 %v10797
  %v10819 = vunpack.c.l.b16 %v10798
  %v10820 = vpack.c.b16 %v10813, %v10812
  %v10821 = vpack.c.b16 %v10815, %v10814
  %v10822 = vpack.c.b16 %v10817, %v10816
  %v10823 = vpack.c.b16 %v10819, %v10818
  %v10829 = vsel %vm1717, %v10803, 0
  %10831 = vmatpush.bf16.msra.mxu0 0
  %10832 = vmatpush.bf16.msra.mxu0 0
  %10833 = vmatpush.bf16.msra.mxu0 0
  %10834 = vmatpush.bf16.msra.mxu0 0
  %10835 = vmatpush.bf16.msra.mxu0 %v10823
  %10836 = vmatpush.bf16.msra.mxu0 %v10822
  %10837 = vmatpush.bf16.msra.mxu0 %v10821
  %10838 = vmatpush.bf16.msra.mxu0 %v10820
  %10839 = vmatmul.bf16.gmra.mxu0 %v10829
  %v10840 = vpop.f32.mrf.mxu0
  %v10841 = vadd.f32 0.0, %v10840
  %v10842 = vpop.f32.mrf.mxu0
  %v10843 = vadd.f32 0.0, %v10842
  %10844 = vdwg.mxu0
  %v10845 = vadd.f32 %v10788, %v10841
  %v10846 = vadd.f32 %v10789, %v10843
  %s10847 = scalar_lea.vmem %s7, 192
  %v10848 = vld [vmem:[%s10847] sm:$0xf]
  %v10849 = vld [vmem:[%s10847 + $0x4] sm:$0xf]
  %v10850 = vld [vmem:[%s10847 + $0x8] sm:$0xf]
  %v10851 = vld [vmem:[%s10847 + $0xc] sm:$0xf]
  %v10852 = vld [vmem:[%s10847 + $0x10] sm:$0xf]
  %v10853 = vld [vmem:[%s10847 + $0x14] sm:$0xf]
  %v10854 = vld [vmem:[%s10847 + $0x18] sm:$0xf]
  %v10855 = vld [vmem:[%s10847 + $0x1c] sm:$0xf]
  %v10858 = vunpack.c.l.b16 %v10504
  %v10859 = vunpack.c.l.b16 %v10505
  %v10860 = vpack.c.b16 %v10859, %v10858
  %v10869 = vunpack.c.l.b16 %v10848
  %v10870 = vunpack.c.l.b16 %v10849
  %v10871 = vunpack.c.l.b16 %v10850
  %v10872 = vunpack.c.l.b16 %v10851
  %v10873 = vunpack.c.l.b16 %v10852
  %v10874 = vunpack.c.l.b16 %v10853
  %v10875 = vunpack.c.l.b16 %v10854
  %v10876 = vunpack.c.l.b16 %v10855
  %v10877 = vpack.c.b16 %v10870, %v10869
  %v10878 = vpack.c.b16 %v10872, %v10871
  %v10879 = vpack.c.b16 %v10874, %v10873
  %v10880 = vpack.c.b16 %v10876, %v10875
  %v10886 = vsel %vm1717, %v10860, 0
  %10888 = vmatpush.bf16.msra.mxu0 0
  %10889 = vmatpush.bf16.msra.mxu0 0
  %10890 = vmatpush.bf16.msra.mxu0 0
  %10891 = vmatpush.bf16.msra.mxu0 0
  %10892 = vmatpush.bf16.msra.mxu0 %v10880
  %10893 = vmatpush.bf16.msra.mxu0 %v10879
  %10894 = vmatpush.bf16.msra.mxu0 %v10878
  %10895 = vmatpush.bf16.msra.mxu0 %v10877
  %10896 = vmatmul.bf16.gmra.mxu0 %v10886
  %v10897 = vpop.f32.mrf.mxu0
  %v10898 = vadd.f32 0.0, %v10897
  %v10899 = vpop.f32.mrf.mxu0
  %v10900 = vadd.f32 0.0, %v10899
  %10901 = vdwg.mxu0
  %v10902 = vadd.f32 %v10845, %v10898
  %v10903 = vadd.f32 %v10846, %v10900
  %s10904 = scalar_lea.vmem %s7, 224
  %v10905 = vld [vmem:[%s10904] sm:$0xf]
  %v10906 = vld [vmem:[%s10904 + $0x4] sm:$0xf]
  %v10907 = vld [vmem:[%s10904 + $0x8] sm:$0xf]
  %v10908 = vld [vmem:[%s10904 + $0xc] sm:$0xf]
  %v10909 = vld [vmem:[%s10904 + $0x10] sm:$0xf]
  %v10910 = vld [vmem:[%s10904 + $0x14] sm:$0xf]
  %v10911 = vld [vmem:[%s10904 + $0x18] sm:$0xf]
  %v10912 = vld [vmem:[%s10904 + $0x1c] sm:$0xf]
  %v10915 = vunpack.c.l.b16 %v10506
  %v10916 = vunpack.c.l.b16 %v10507
  %v10917 = vpack.c.b16 %v10916, %v10915
  %v10926 = vunpack.c.l.b16 %v10905
  %v10927 = vunpack.c.l.b16 %v10906
  %v10928 = vunpack.c.l.b16 %v10907
  %v10929 = vunpack.c.l.b16 %v10908
  %v10930 = vunpack.c.l.b16 %v10909
  %v10931 = vunpack.c.l.b16 %v10910
  %v10932 = vunpack.c.l.b16 %v10911
  %v10933 = vunpack.c.l.b16 %v10912
  %v10934 = vpack.c.b16 %v10927, %v10926
  %v10935 = vpack.c.b16 %v10929, %v10928
  %v10936 = vpack.c.b16 %v10931, %v10930
  %v10937 = vpack.c.b16 %v10933, %v10932
  %v10943 = vsel %vm1717, %v10917, 0
  %10945 = vmatpush.bf16.msra.mxu0 0
  %10946 = vmatpush.bf16.msra.mxu0 0
  %10947 = vmatpush.bf16.msra.mxu0 0
  %10948 = vmatpush.bf16.msra.mxu0 0
  %10949 = vmatpush.bf16.msra.mxu0 %v10937
  %10950 = vmatpush.bf16.msra.mxu0 %v10936
  %10951 = vmatpush.bf16.msra.mxu0 %v10935
  %10952 = vmatpush.bf16.msra.mxu0 %v10934
  %10953 = vmatmul.bf16.gmra.mxu0 %v10943
  %v10954 = vpop.f32.mrf.mxu0
  %v10955 = vadd.f32 0.0, %v10954
  %v10956 = vpop.f32.mrf.mxu0
  %v10957 = vadd.f32 0.0, %v10956
  %10958 = vdwg.mxu0
  %v10959 = vadd.f32 %v10902, %v10955
  %v10960 = vadd.f32 %v10903, %v10957
  %s10961 = scalar_lea.vmem %s7, 256
  %v10962 = vld [vmem:[%s10961] sm:$0xf]
  %v10963 = vld [vmem:[%s10961 + $0x4] sm:$0xf]
  %v10964 = vld [vmem:[%s10961 + $0x8] sm:$0xf]
  %v10965 = vld [vmem:[%s10961 + $0xc] sm:$0xf]
  %v10966 = vld [vmem:[%s10961 + $0x10] sm:$0xf]
  %v10967 = vld [vmem:[%s10961 + $0x14] sm:$0xf]
  %v10968 = vld [vmem:[%s10961 + $0x18] sm:$0xf]
  %v10969 = vld [vmem:[%s10961 + $0x1c] sm:$0xf]
  %v10972 = vunpack.c.l.b16 %v10508
  %v10973 = vunpack.c.l.b16 %v10509
  %v10974 = vpack.c.b16 %v10973, %v10972
  %v10983 = vunpack.c.l.b16 %v10962
  %v10984 = vunpack.c.l.b16 %v10963
  %v10985 = vunpack.c.l.b16 %v10964
  %v10986 = vunpack.c.l.b16 %v10965
  %v10987 = vunpack.c.l.b16 %v10966
  %v10988 = vunpack.c.l.b16 %v10967
  %v10989 = vunpack.c.l.b16 %v10968
  %v10990 = vunpack.c.l.b16 %v10969
  %v10991 = vpack.c.b16 %v10984, %v10983
  %v10992 = vpack.c.b16 %v10986, %v10985
  %v10993 = vpack.c.b16 %v10988, %v10987
  %v10994 = vpack.c.b16 %v10990, %v10989
  %v11000 = vsel %vm1717, %v10974, 0
  %11002 = vmatpush.bf16.msra.mxu0 0
  %11003 = vmatpush.bf16.msra.mxu0 0
  %11004 = vmatpush.bf16.msra.mxu0 0
  %11005 = vmatpush.bf16.msra.mxu0 0
  %11006 = vmatpush.bf16.msra.mxu0 %v10994
  %11007 = vmatpush.bf16.msra.mxu0 %v10993
  %11008 = vmatpush.bf16.msra.mxu0 %v10992
  %11009 = vmatpush.bf16.msra.mxu0 %v10991
  %11010 = vmatmul.bf16.gmra.mxu0 %v11000
  %v11011 = vpop.f32.mrf.mxu0
  %v11012 = vadd.f32 0.0, %v11011
  %v11013 = vpop.f32.mrf.mxu0
  %v11014 = vadd.f32 0.0, %v11013
  %11015 = vdwg.mxu0
  %v11016 = vadd.f32 %v10959, %v11012
  %v11017 = vadd.f32 %v10960, %v11014
  %v11018 = vld [vmem:[%s8] sm:$0x1]
  %v11020 = vperm.slane %v11018, 0
  %v11022 = vadd.f32 %v11016, %v11020
  %v11023 = vadd.f32 %v11017, %v11020
  %v11024 = vmax.f32 %v11022, 0.0
  %v11025 = vmax.f32 %v11023, 0.0
  %11026 = vst.msk [vmem:[%s9] sm:$0xff] %vm4230, %v11024
  %11027 = vst.msk [vmem:[%s9 + $0x8] sm:$0xff] %vm4230, %v11025
  // Predicated region
  $region38: #{state_encoder_forward.1} parent=0 // pred_check
    _
  $region39: #{state_encoder_forward.1} parent=0 // pred_check_branch
    %11029 = sbr.rel (0) target = $region41
  $region40: #{state_encoder_forward.1} parent=0 // pred_region
    _
  $region41: #{state_encoder_forward.1} parent=0 // pred_fallthru
    _
  // Predicated region
  $region42: #{state_encoder_forward.1} parent=0 // pred_check
    _
  $region43: #{state_encoder_forward.1} parent=0 // pred_check_branch
    %11031 = sbr.rel (0) target = $region45
  $region44: #{state_encoder_forward.1} parent=0 // pred_region
    _
  $region45: #{state_encoder_forward.1} parent=0 // pred_fallthru
    _

</llo_original>
